<compile_context>
chip_gen: v7x
topology: tpu7x:2x2x1
jax: 0.10.0
libtpu: 0.0.40
codegen_flags: <defaults>
</compile_context>

<pallas_src>
import jax
import jax.numpy as jnp
import numpy as np
from jax import lax
from jax.experimental import pallas as pl
from jax.experimental.pallas import tpu as pltpu

# small synthetic shapes consistent with the module
B = 2              # batch
F_FIELDS = 4       # sparse.feature_count
BAG = 8            # ids per field (bag size for the SUM combiner)
V = 32             # vocab / hash-table size
E = 16             # emb_size
EPS = 1e-12        # F.normalize default eps

BT = 256                     # batch tile (review: 256-512 for v7x, larger ok on v5e/v6e)
FE = F_FIELDS * E            # 64  -> width of the concatenated embedding (output width)
FV = F_FIELDS * V            # 128 -> K dim of the single block-diagonal matmul
SLOTS = F_FIELDS * BAG       # 32  -> total bag slots per row


def item_kernel(idx_ref, bdtab_ref, out_ref):
    """idx_ref:   [BT, F*BAG] int32, ids already offset by field*V (block-diag column ids)
       bdtab_ref: [F*V, F*E]  f32 block-diagonal embedding table
       out_ref:   [BT, F*E]   f32 normalized concatenated embeddings."""
    idx = idx_ref[...]                                                     # [BT, 32]

    # Multi-hot counts over the block-diagonal vocab: unrolled compare + accumulate
    # over the 32 bag slots (VALU work only; no 3-D one-hot intermediate).
    # Duplicate ids within a bag are counted, matching embedding-bag SUM semantics.
    iota_fv = lax.broadcasted_iota(jnp.int32, (BT, FV), 1)                 # [BT, 128]
    counts = jnp.zeros((BT, FV), jnp.float32)
    for s in range(SLOTS):                                                 # static unroll
        counts = counts + (idx[:, s:s + 1] == iota_fv).astype(jnp.float32)

    # One MXU push: [BT,128] @ [128,64] directly yields the concatenated row layout.
    emb = jnp.dot(counts, bdtab_ref[...], preferred_element_type=jnp.float32)  # [BT, 64]

    # F.normalize: x * rsqrt(max(||x||^2, eps^2)); rsqrt lands on the EUP slot.
    sumsq = jnp.sum(emb * emb, axis=-1, keepdims=True)                     # [BT, 1]
    inv = lax.rsqrt(jnp.maximum(sumsq, EPS * EPS))
    out_ref[...] = emb * inv                                               # single store


def _make_block_diag(table, n_fields):
    """[V, E] -> block-diagonal [n_fields*V, n_fields*E]."""
    v, e = table.shape
    bd = jnp.zeros((n_fields * v, n_fields * e), table.dtype)
    for f in range(n_fields):
        bd = bd.at[f * v:(f + 1) * v, f * e:(f + 1) * e].set(table)
    return bd


def item_module_forward(indices, table):
    """indices: [B, F, BAG] int feature ids, table: [V, E] f32 embedding table."""
    b_in = indices.shape[0]
    b_pad = ((b_in + BT - 1) // BT) * BT

    # Batch-major (no transpose): add per-field vocab offset and flatten bag slots.
    idx = jnp.asarray(indices, jnp.int32)
    offs = (jnp.arange(F_FIELDS, dtype=jnp.int32) * V)[None, :, None]      # [1, F, 1]
    idx = (idx + offs).reshape(b_in, SLOTS)                                # [B, F*BAG]
    if b_pad != b_in:
        idx = jnp.pad(idx, ((0, b_pad - b_in), (0, 0)))                    # pad batch rows

    bd_table = _make_block_diag(table.astype(jnp.float32), F_FIELDS)       # [F*V, F*E]

    out = pl.pallas_call(
        item_kernel,
        out_shape=jax.ShapeDtypeStruct((b_pad, FE), jnp.float32),
        grid=(b_pad // BT,),
        in_specs=[
            pl.BlockSpec((BT, SLOTS), lambda b: (b, 0)),                   # index batch tile
            pl.BlockSpec((FV, FE), lambda b: (0, 0)),                      # constant table block
        ],
        out_specs=pl.BlockSpec((BT, FE), lambda b: (b, 0)),
        compiler_params=pltpu.CompilerParams(
            dimension_semantics=("parallel",)),                            # batch tiles -> both TCs on v7x
    )(idx, bd_table)

    return out[:b_in]                                                      # drop batch padding only


def reference_forward(indices, table):
    emb = table[indices]                          # [B, F, BAG, E]
    summed = emb.sum(axis=2)                      # [B, F, E]   (EmbeddingSum per field)
    flat = summed.reshape(indices.shape[0], FE)   # concat      (EmbeddingSumConcat)
    norm = jnp.sqrt(jnp.sum(flat * flat, axis=1, keepdims=True))
    return flat / jnp.maximum(norm, EPS)          # F.normalize


if __name__ == "__main__":
    key = jax.random.PRNGKey(0)
    k_idx, k_tab = jax.random.split(key)

    # deterministic synthetic inputs
    indices = jax.random.randint(k_idx, (B, F_FIELDS, BAG), 0, V, dtype=jnp.int32)
    # NormalTensorInitializer(var=0.0001) -> std = 0.01
    table = 0.01 * jax.random.normal(k_tab, (V, E), dtype=jnp.float32)

    out = item_module_forward(indices, table)
    out = jax.block_until_ready(out)

    ref = reference_forward(indices, table)
    np.testing.assert_allclose(np.asarray(out), np.asarray(ref), rtol=1e-5, atol=1e-5)

    print("KERNEL_OK")
</pallas_src>

<mosaic_0001>
module attributes {stable_mosaic.version = 11 : i64} {
  func.func @item_kernel(%arg0: i32, %arg1: memref<256x32xi32, #tpu.memory_space<vmem>>, %arg2: memref<128x64xf32, #tpu.memory_space<vmem>>, %arg3: memref<256x64xf32, #tpu.memory_space<vmem>>) attributes {dimension_semantics = [#tpu.dimension_semantics<parallel>], iteration_bounds = array<i64: 1>, scalar_prefetch = 0 : i64, scratch_operands = 0 : i64, tpu.core_type = #tpu.core_type<tc>, window_params = [{transform_indices = @transform_0, window_bounds = array<i64: 256, 32>}, {pipeline_mode = #tpu.pipeline_mode<synchronous>, transform_indices = @transform_1, window_bounds = array<i64: 128, 64>}, {transform_indices = @transform_2, window_bounds = array<i64: 256, 64>}]} {
    %c0 = arith.constant 0 : index
    %c0_0 = arith.constant 0 : index
    %0 = vector.load %arg1[%c0, %c0_0] : memref<256x32xi32, #tpu.memory_space<vmem>>, vector<256x32xi32>
    %1 = tpu.iota {dimensions = array<i32: 1>} : vector<256x128xi32>
    %cst = arith.constant 0.000000e+00 : f32
    %2 = vector.broadcast %cst : f32 to vector<256x128xf32>
    %3 = vector.extract_strided_slice %0 {offsets = [0, 0], sizes = [256, 1], strides = [1, 1]} : vector<256x32xi32> to vector<256x1xi32>
    %4 = vector.broadcast %3 : vector<256x1xi32> to vector<256x128xi32>
    %5 = arith.cmpi eq, %4, %1 : vector<256x128xi32>
    %6 = arith.extui %5 : vector<256x128xi1> to vector<256x128xi32>
    %7 = arith.sitofp %6 : vector<256x128xi32> to vector<256x128xf32>
    %8 = arith.addf %2, %7 : vector<256x128xf32>
    %9 = vector.extract_strided_slice %0 {offsets = [0, 1], sizes = [256, 1], strides = [1, 1]} : vector<256x32xi32> to vector<256x1xi32>
    %10 = vector.broadcast %9 : vector<256x1xi32> to vector<256x128xi32>
    %11 = arith.cmpi eq, %10, %1 : vector<256x128xi32>
    %12 = arith.extui %11 : vector<256x128xi1> to vector<256x128xi32>
    %13 = arith.sitofp %12 : vector<256x128xi32> to vector<256x128xf32>
    %14 = arith.addf %8, %13 : vector<256x128xf32>
    %15 = vector.extract_strided_slice %0 {offsets = [0, 2], sizes = [256, 1], strides = [1, 1]} : vector<256x32xi32> to vector<256x1xi32>
    %16 = vector.broadcast %15 : vector<256x1xi32> to vector<256x128xi32>
    %17 = arith.cmpi eq, %16, %1 : vector<256x128xi32>
    %18 = arith.extui %17 : vector<256x128xi1> to vector<256x128xi32>
    %19 = arith.sitofp %18 : vector<256x128xi32> to vector<256x128xf32>
    %20 = arith.addf %14, %19 : vector<256x128xf32>
    %21 = vector.extract_strided_slice %0 {offsets = [0, 3], sizes = [256, 1], strides = [1, 1]} : vector<256x32xi32> to vector<256x1xi32>
    %22 = vector.broadcast %21 : vector<256x1xi32> to vector<256x128xi32>
    %23 = arith.cmpi eq, %22, %1 : vector<256x128xi32>
    %24 = arith.extui %23 : vector<256x128xi1> to vector<256x128xi32>
    %25 = arith.sitofp %24 : vector<256x128xi32> to vector<256x128xf32>
    %26 = arith.addf %20, %25 : vector<256x128xf32>
    %27 = vector.extract_strided_slice %0 {offsets = [0, 4], sizes = [256, 1], strides = [1, 1]} : vector<256x32xi32> to vector<256x1xi32>
    %28 = vector.broadcast %27 : vector<256x1xi32> to vector<256x128xi32>
    %29 = arith.cmpi eq, %28, %1 : vector<256x128xi32>
    %30 = arith.extui %29 : vector<256x128xi1> to vector<256x128xi32>
    %31 = arith.sitofp %30 : vector<256x128xi32> to vector<256x128xf32>
    %32 = arith.addf %26, %31 : vector<256x128xf32>
    %33 = vector.extract_strided_slice %0 {offsets = [0, 5], sizes = [256, 1], strides = [1, 1]} : vector<256x32xi32> to vector<256x1xi32>
    %34 = vector.broadcast %33 : vector<256x1xi32> to vector<256x128xi32>
    %35 = arith.cmpi eq, %34, %1 : vector<256x128xi32>
    %36 = arith.extui %35 : vector<256x128xi1> to vector<256x128xi32>
    %37 = arith.sitofp %36 : vector<256x128xi32> to vector<256x128xf32>
    %38 = arith.addf %32, %37 : vector<256x128xf32>
    %39 = vector.extract_strided_slice %0 {offsets = [0, 6], sizes = [256, 1], strides = [1, 1]} : vector<256x32xi32> to vector<256x1xi32>
    %40 = vector.broadcast %39 : vector<256x1xi32> to vector<256x128xi32>
    %41 = arith.cmpi eq, %40, %1 : vector<256x128xi32>
    %42 = arith.extui %41 : vector<256x128xi1> to vector<256x128xi32>
    %43 = arith.sitofp %42 : vector<256x128xi32> to vector<256x128xf32>
    %44 = arith.addf %38, %43 : vector<256x128xf32>
    %45 = vector.extract_strided_slice %0 {offsets = [0, 7], sizes = [256, 1], strides = [1, 1]} : vector<256x32xi32> to vector<256x1xi32>
    %46 = vector.broadcast %45 : vector<256x1xi32> to vector<256x128xi32>
    %47 = arith.cmpi eq, %46, %1 : vector<256x128xi32>
    %48 = arith.extui %47 : vector<256x128xi1> to vector<256x128xi32>
    %49 = arith.sitofp %48 : vector<256x128xi32> to vector<256x128xf32>
    %50 = arith.addf %44, %49 : vector<256x128xf32>
    %51 = vector.extract_strided_slice %0 {offsets = [0, 8], sizes = [256, 1], strides = [1, 1]} : vector<256x32xi32> to vector<256x1xi32>
    %52 = vector.broadcast %51 : vector<256x1xi32> to vector<256x128xi32>
    %53 = arith.cmpi eq, %52, %1 : vector<256x128xi32>
    %54 = arith.extui %53 : vector<256x128xi1> to vector<256x128xi32>
    %55 = arith.sitofp %54 : vector<256x128xi32> to vector<256x128xf32>
    %56 = arith.addf %50, %55 : vector<256x128xf32>
    %57 = vector.extract_strided_slice %0 {offsets = [0, 9], sizes = [256, 1], strides = [1, 1]} : vector<256x32xi32> to vector<256x1xi32>
    %58 = vector.broadcast %57 : vector<256x1xi32> to vector<256x128xi32>
    %59 = arith.cmpi eq, %58, %1 : vector<256x128xi32>
    %60 = arith.extui %59 : vector<256x128xi1> to vector<256x128xi32>
    %61 = arith.sitofp %60 : vector<256x128xi32> to vector<256x128xf32>
    %62 = arith.addf %56, %61 : vector<256x128xf32>
    %63 = vector.extract_strided_slice %0 {offsets = [0, 10], sizes = [256, 1], strides = [1, 1]} : vector<256x32xi32> to vector<256x1xi32>
    %64 = vector.broadcast %63 : vector<256x1xi32> to vector<256x128xi32>
    %65 = arith.cmpi eq, %64, %1 : vector<256x128xi32>
    %66 = arith.extui %65 : vector<256x128xi1> to vector<256x128xi32>
    %67 = arith.sitofp %66 : vector<256x128xi32> to vector<256x128xf32>
    %68 = arith.addf %62, %67 : vector<256x128xf32>
    %69 = vector.extract_strided_slice %0 {offsets = [0, 11], sizes = [256, 1], strides = [1, 1]} : vector<256x32xi32> to vector<256x1xi32>
    %70 = vector.broadcast %69 : vector<256x1xi32> to vector<256x128xi32>
    %71 = arith.cmpi eq, %70, %1 : vector<256x128xi32>
    %72 = arith.extui %71 : vector<256x128xi1> to vector<256x128xi32>
    %73 = arith.sitofp %72 : vector<256x128xi32> to vector<256x128xf32>
    %74 = arith.addf %68, %73 : vector<256x128xf32>
    %75 = vector.extract_strided_slice %0 {offsets = [0, 12], sizes = [256, 1], strides = [1, 1]} : vector<256x32xi32> to vector<256x1xi32>
    %76 = vector.broadcast %75 : vector<256x1xi32> to vector<256x128xi32>
    %77 = arith.cmpi eq, %76, %1 : vector<256x128xi32>
    %78 = arith.extui %77 : vector<256x128xi1> to vector<256x128xi32>
    %79 = arith.sitofp %78 : vector<256x128xi32> to vector<256x128xf32>
    %80 = arith.addf %74, %79 : vector<256x128xf32>
    %81 = vector.extract_strided_slice %0 {offsets = [0, 13], sizes = [256, 1], strides = [1, 1]} : vector<256x32xi32> to vector<256x1xi32>
    %82 = vector.broadcast %81 : vector<256x1xi32> to vector<256x128xi32>
    %83 = arith.cmpi eq, %82, %1 : vector<256x128xi32>
    %84 = arith.extui %83 : vector<256x128xi1> to vector<256x128xi32>
    %85 = arith.sitofp %84 : vector<256x128xi32> to vector<256x128xf32>
    %86 = arith.addf %80, %85 : vector<256x128xf32>
    %87 = vector.extract_strided_slice %0 {offsets = [0, 14], sizes = [256, 1], strides = [1, 1]} : vector<256x32xi32> to vector<256x1xi32>
    %88 = vector.broadcast %87 : vector<256x1xi32> to vector<256x128xi32>
    %89 = arith.cmpi eq, %88, %1 : vector<256x128xi32>
    %90 = arith.extui %89 : vector<256x128xi1> to vector<256x128xi32>
    %91 = arith.sitofp %90 : vector<256x128xi32> to vector<256x128xf32>
    %92 = arith.addf %86, %91 : vector<256x128xf32>
    %93 = vector.extract_strided_slice %0 {offsets = [0, 15], sizes = [256, 1], strides = [1, 1]} : vector<256x32xi32> to vector<256x1xi32>
    %94 = vector.broadcast %93 : vector<256x1xi32> to vector<256x128xi32>
    %95 = arith.cmpi eq, %94, %1 : vector<256x128xi32>
    %96 = arith.extui %95 : vector<256x128xi1> to vector<256x128xi32>
    %97 = arith.sitofp %96 : vector<256x128xi32> to vector<256x128xf32>
    %98 = arith.addf %92, %97 : vector<256x128xf32>
    %99 = vector.extract_strided_slice %0 {offsets = [0, 16], sizes = [256, 1], strides = [1, 1]} : vector<256x32xi32> to vector<256x1xi32>
    %100 = vector.broadcast %99 : vector<256x1xi32> to vector<256x128xi32>
    %101 = arith.cmpi eq, %100, %1 : vector<256x128xi32>
    %102 = arith.extui %101 : vector<256x128xi1> to vector<256x128xi32>
    %103 = arith.sitofp %102 : vector<256x128xi32> to vector<256x128xf32>
    %104 = arith.addf %98, %103 : vector<256x128xf32>
    %105 = vector.extract_strided_slice %0 {offsets = [0, 17], sizes = [256, 1], strides = [1, 1]} : vector<256x32xi32> to vector<256x1xi32>
    %106 = vector.broadcast %105 : vector<256x1xi32> to vector<256x128xi32>
    %107 = arith.cmpi eq, %106, %1 : vector<256x128xi32>
    %108 = arith.extui %107 : vector<256x128xi1> to vector<256x128xi32>
    %109 = arith.sitofp %108 : vector<256x128xi32> to vector<256x128xf32>
    %110 = arith.addf %104, %109 : vector<256x128xf32>
    %111 = vector.extract_strided_slice %0 {offsets = [0, 18], sizes = [256, 1], strides = [1, 1]} : vector<256x32xi32> to vector<256x1xi32>
    %112 = vector.broadcast %111 : vector<256x1xi32> to vector<256x128xi32>
    %113 = arith.cmpi eq, %112, %1 : vector<256x128xi32>
    %114 = arith.extui %113 : vector<256x128xi1> to vector<256x128xi32>
    %115 = arith.sitofp %114 : vector<256x128xi32> to vector<256x128xf32>
    %116 = arith.addf %110, %115 : vector<256x128xf32>
    %117 = vector.extract_strided_slice %0 {offsets = [0, 19], sizes = [256, 1], strides = [1, 1]} : vector<256x32xi32> to vector<256x1xi32>
    %118 = vector.broadcast %117 : vector<256x1xi32> to vector<256x128xi32>
    %119 = arith.cmpi eq, %118, %1 : vector<256x128xi32>
    %120 = arith.extui %119 : vector<256x128xi1> to vector<256x128xi32>
    %121 = arith.sitofp %120 : vector<256x128xi32> to vector<256x128xf32>
    %122 = arith.addf %116, %121 : vector<256x128xf32>
    %123 = vector.extract_strided_slice %0 {offsets = [0, 20], sizes = [256, 1], strides = [1, 1]} : vector<256x32xi32> to vector<256x1xi32>
    %124 = vector.broadcast %123 : vector<256x1xi32> to vector<256x128xi32>
    %125 = arith.cmpi eq, %124, %1 : vector<256x128xi32>
    %126 = arith.extui %125 : vector<256x128xi1> to vector<256x128xi32>
    %127 = arith.sitofp %126 : vector<256x128xi32> to vector<256x128xf32>
    %128 = arith.addf %122, %127 : vector<256x128xf32>
    %129 = vector.extract_strided_slice %0 {offsets = [0, 21], sizes = [256, 1], strides = [1, 1]} : vector<256x32xi32> to vector<256x1xi32>
    %130 = vector.broadcast %129 : vector<256x1xi32> to vector<256x128xi32>
    %131 = arith.cmpi eq, %130, %1 : vector<256x128xi32>
    %132 = arith.extui %131 : vector<256x128xi1> to vector<256x128xi32>
    %133 = arith.sitofp %132 : vector<256x128xi32> to vector<256x128xf32>
    %134 = arith.addf %128, %133 : vector<256x128xf32>
    %135 = vector.extract_strided_slice %0 {offsets = [0, 22], sizes = [256, 1], strides = [1, 1]} : vector<256x32xi32> to vector<256x1xi32>
    %136 = vector.broadcast %135 : vector<256x1xi32> to vector<256x128xi32>
    %137 = arith.cmpi eq, %136, %1 : vector<256x128xi32>
    %138 = arith.extui %137 : vector<256x128xi1> to vector<256x128xi32>
    %139 = arith.sitofp %138 : vector<256x128xi32> to vector<256x128xf32>
    %140 = arith.addf %134, %139 : vector<256x128xf32>
    %141 = vector.extract_strided_slice %0 {offsets = [0, 23], sizes = [256, 1], strides = [1, 1]} : vector<256x32xi32> to vector<256x1xi32>
    %142 = vector.broadcast %141 : vector<256x1xi32> to vector<256x128xi32>
    %143 = arith.cmpi eq, %142, %1 : vector<256x128xi32>
    %144 = arith.extui %143 : vector<256x128xi1> to vector<256x128xi32>
    %145 = arith.sitofp %144 : vector<256x128xi32> to vector<256x128xf32>
    %146 = arith.addf %140, %145 : vector<256x128xf32>
    %147 = vector.extract_strided_slice %0 {offsets = [0, 24], sizes = [256, 1], strides = [1, 1]} : vector<256x32xi32> to vector<256x1xi32>
    %148 = vector.broadcast %147 : vector<256x1xi32> to vector<256x128xi32>
    %149 = arith.cmpi eq, %148, %1 : vector<256x128xi32>
    %150 = arith.extui %149 : vector<256x128xi1> to vector<256x128xi32>
    %151 = arith.sitofp %150 : vector<256x128xi32> to vector<256x128xf32>
    %152 = arith.addf %146, %151 : vector<256x128xf32>
    %153 = vector.extract_strided_slice %0 {offsets = [0, 25], sizes = [256, 1], strides = [1, 1]} : vector<256x32xi32> to vector<256x1xi32>
    %154 = vector.broadcast %153 : vector<256x1xi32> to vector<256x128xi32>
    %155 = arith.cmpi eq, %154, %1 : vector<256x128xi32>
    %156 = arith.extui %155 : vector<256x128xi1> to vector<256x128xi32>
    %157 = arith.sitofp %156 : vector<256x128xi32> to vector<256x128xf32>
    %158 = arith.addf %152, %157 : vector<256x128xf32>
    %159 = vector.extract_strided_slice %0 {offsets = [0, 26], sizes = [256, 1], strides = [1, 1]} : vector<256x32xi32> to vector<256x1xi32>
    %160 = vector.broadcast %159 : vector<256x1xi32> to vector<256x128xi32>
    %161 = arith.cmpi eq, %160, %1 : vector<256x128xi32>
    %162 = arith.extui %161 : vector<256x128xi1> to vector<256x128xi32>
    %163 = arith.sitofp %162 : vector<256x128xi32> to vector<256x128xf32>
    %164 = arith.addf %158, %163 : vector<256x128xf32>
    %165 = vector.extract_strided_slice %0 {offsets = [0, 27], sizes = [256, 1], strides = [1, 1]} : vector<256x32xi32> to vector<256x1xi32>
    %166 = vector.broadcast %165 : vector<256x1xi32> to vector<256x128xi32>
    %167 = arith.cmpi eq, %166, %1 : vector<256x128xi32>
    %168 = arith.extui %167 : vector<256x128xi1> to vector<256x128xi32>
    %169 = arith.sitofp %168 : vector<256x128xi32> to vector<256x128xf32>
    %170 = arith.addf %164, %169 : vector<256x128xf32>
    %171 = vector.extract_strided_slice %0 {offsets = [0, 28], sizes = [256, 1], strides = [1, 1]} : vector<256x32xi32> to vector<256x1xi32>
    %172 = vector.broadcast %171 : vector<256x1xi32> to vector<256x128xi32>
    %173 = arith.cmpi eq, %172, %1 : vector<256x128xi32>
    %174 = arith.extui %173 : vector<256x128xi1> to vector<256x128xi32>
    %175 = arith.sitofp %174 : vector<256x128xi32> to vector<256x128xf32>
    %176 = arith.addf %170, %175 : vector<256x128xf32>
    %177 = vector.extract_strided_slice %0 {offsets = [0, 29], sizes = [256, 1], strides = [1, 1]} : vector<256x32xi32> to vector<256x1xi32>
    %178 = vector.broadcast %177 : vector<256x1xi32> to vector<256x128xi32>
    %179 = arith.cmpi eq, %178, %1 : vector<256x128xi32>
    %180 = arith.extui %179 : vector<256x128xi1> to vector<256x128xi32>
    %181 = arith.sitofp %180 : vector<256x128xi32> to vector<256x128xf32>
    %182 = arith.addf %176, %181 : vector<256x128xf32>
    %183 = vector.extract_strided_slice %0 {offsets = [0, 30], sizes = [256, 1], strides = [1, 1]} : vector<256x32xi32> to vector<256x1xi32>
    %184 = vector.broadcast %183 : vector<256x1xi32> to vector<256x128xi32>
    %185 = arith.cmpi eq, %184, %1 : vector<256x128xi32>
    %186 = arith.extui %185 : vector<256x128xi1> to vector<256x128xi32>
    %187 = arith.sitofp %186 : vector<256x128xi32> to vector<256x128xf32>
    %188 = arith.addf %182, %187 : vector<256x128xf32>
    %189 = vector.extract_strided_slice %0 {offsets = [0, 31], sizes = [256, 1], strides = [1, 1]} : vector<256x32xi32> to vector<256x1xi32>
    %190 = vector.broadcast %189 : vector<256x1xi32> to vector<256x128xi32>
    %191 = arith.cmpi eq, %190, %1 : vector<256x128xi32>
    %192 = arith.extui %191 : vector<256x128xi1> to vector<256x128xi32>
    %193 = arith.sitofp %192 : vector<256x128xi32> to vector<256x128xf32>
    %194 = arith.addf %188, %193 : vector<256x128xf32>
    %c0_1 = arith.constant 0 : index
    %c0_2 = arith.constant 0 : index
    %195 = vector.load %arg2[%c0_1, %c0_2] : memref<128x64xf32, #tpu.memory_space<vmem>>, vector<128x64xf32>
    %cst_3 = arith.constant dense<0.000000e+00> : vector<256x64xf32>
    %196 = tpu.matmul %194, %195, %cst_3 {dimension_numbers = #tpu.dot_dimension_numbers<[1], [0], [0], [1], [0, 0, 1, 1], [], []>} : vector<256x128xf32>, vector<128x64xf32>, vector<256x64xf32> -> vector<256x64xf32>
    %197 = arith.mulf %196, %196 : vector<256x64xf32>
    %cst_4 = arith.constant dense<0.000000e+00> : vector<256xf32>
    %198 = vector.multi_reduction <add>, %197, %cst_4 [1] : vector<256x64xf32> to vector<256xf32>
    %199 = vector.shape_cast %198 : vector<256xf32> to vector<256x1xf32>
    %cst_5 = arith.constant 1.000000e-24 : f32
    %200 = vector.broadcast %cst_5 : f32 to vector<256x1xf32>
    %201 = arith.maximumf %199, %200 : vector<256x1xf32>
    %202 = math.rsqrt %201 : vector<256x1xf32>
    %203 = vector.broadcast %202 : vector<256x1xf32> to vector<256x64xf32>
    %204 = arith.mulf %196, %203 : vector<256x64xf32>
    %c0_6 = arith.constant 0 : index
    %c0_7 = arith.constant 0 : index
    %205 = vector.load %arg3[%c0_6, %c0_7] : memref<256x64xf32, #tpu.memory_space<vmem>>, vector<256x64xf32>
    tpu.vector_store %arg3[%c0_6, %c0_7], %204 {strides = array<i32>} : memref<256x64xf32, #tpu.memory_space<vmem>>, vector<256x64xf32>,
    return
  }
  func.func @transform_0(%arg0: i32) -> (i32, i32) {
    %c0_i32 = arith.constant 0 : i32
    %c0_i32_0 = arith.constant 0 : i32
    return %arg0, %c0_i32 : i32, i32
  }
  func.func @transform_1(%arg0: i32) -> (i32, i32) {
    %c0_i32 = arith.constant 0 : i32
    %c0_i32_0 = arith.constant 0 : i32
    %c0_i32_1 = arith.constant 0 : i32
    return %c0_i32, %c0_i32_0 : i32, i32
  }
  func.func @transform_2(%arg0: i32) -> (i32, i32) {
    %c0_i32 = arith.constant 0 : i32
    %c0_i32_0 = arith.constant 0 : i32
    return %arg0, %c0_i32 : i32, i32
  }
}

</mosaic_0001>

<llo_original>
// kernel: tpu_custom_call.1
$region0: #{tpu_custom_call.1}
  #allocation0 [shape = 'u32[]', space=smem, size = 0x4, offset = 0x4, fixed_abs, tag = 'smem constant byte address 0x4 - core index']
  #allocation1 [shape = 'u32[144,128]{1,0:T(1,128)}', space=vmem, size = 0x12000, scoped, tag = 'internal scratch']
  %s0 = inlined_call_operand.vmem [shape: s32[256,32], index: 0, kind: input, shape index: {}]
  %s1 = inlined_call_operand.vmem [shape: f32[128,64], index: 1, kind: input, shape index: {}]
  %s2 = inlined_call_operand.vmem [shape: f32[256,64], index: 2, kind: output, shape index: {}]
  %s3 = sld [smem:[#allocation0]]
  $region18: #{tpu_custom_call.1} parent=0
    _
  %s5 = ssub.s32 1, %s3
  %s6 = scalar_select 0, %s5, %s3
  // Predicated region
  $region2: #{tpu_custom_call.1} parent=0 // pred_check
    _
  $region3: #{tpu_custom_call.1} parent=0 // pred_check_branch
    %8 = sbr.rel (0) target = $region5
  $region4: #{tpu_custom_call.1} parent=0 // pred_region
    _
  $region5: #{tpu_custom_call.1} parent=0 // pred_fallthru
    _
  // Predicated region
  $region6: #{tpu_custom_call.1} parent=0 // pred_check
    _
  $region7: #{tpu_custom_call.1} parent=0 // pred_check_branch
    %10 = sbr.rel (0) target = $region9
  $region8: #{tpu_custom_call.1} parent=0 // pred_region
    _
  $region9: #{tpu_custom_call.1} parent=0 // pred_fallthru
    _
  %v11 = vld [vmem:[%s0] sm:$0xff]
  %v12 = vld [vmem:[%s0 + $0x8] sm:$0xff]
  %v13 = vld [vmem:[%s0 + $0x10] sm:$0xff]
  %v14 = vld [vmem:[%s0 + $0x18] sm:$0xff]
  %v15 = vld [vmem:[%s0 + $0x20] sm:$0xff]
  %v16 = vld [vmem:[%s0 + $0x28] sm:$0xff]
  %v17 = vld [vmem:[%s0 + $0x30] sm:$0xff]
  %v18 = vld [vmem:[%s0 + $0x38] sm:$0xff]
  %v19 = vld [vmem:[%s0 + $0x40] sm:$0xff]
  %v20 = vld [vmem:[%s0 + $0x48] sm:$0xff]
  %v21 = vld [vmem:[%s0 + $0x50] sm:$0xff]
  %v22 = vld [vmem:[%s0 + $0x58] sm:$0xff]
  %v23 = vld [vmem:[%s0 + $0x60] sm:$0xff]
  %v24 = vld [vmem:[%s0 + $0x68] sm:$0xff]
  %v25 = vld [vmem:[%s0 + $0x70] sm:$0xff]
  %v26 = vld [vmem:[%s0 + $0x78] sm:$0xff]
  %v27 = vld [vmem:[%s0 + $0x80] sm:$0xff]
  %v28 = vld [vmem:[%s0 + $0x88] sm:$0xff]
  %v29 = vld [vmem:[%s0 + $0x90] sm:$0xff]
  %v30 = vld [vmem:[%s0 + $0x98] sm:$0xff]
  %v31 = vld [vmem:[%s0 + $0xa0] sm:$0xff]
  %v32 = vld [vmem:[%s0 + $0xa8] sm:$0xff]
  %v33 = vld [vmem:[%s0 + $0xb0] sm:$0xff]
  %v34 = vld [vmem:[%s0 + $0xb8] sm:$0xff]
  %v35 = vld [vmem:[%s0 + $0xc0] sm:$0xff]
  %v36 = vld [vmem:[%s0 + $0xc8] sm:$0xff]
  %v37 = vld [vmem:[%s0 + $0xd0] sm:$0xff]
  %v38 = vld [vmem:[%s0 + $0xd8] sm:$0xff]
  %v39 = vld [vmem:[%s0 + $0xe0] sm:$0xff]
  %v40 = vld [vmem:[%s0 + $0xe8] sm:$0xff]
  %v41 = vld [vmem:[%s0 + $0xf0] sm:$0xff]
  %v42 = vld [vmem:[%s0 + $0xf8] sm:$0xff]
  %v43 = vlaneseq
  %v44 = vand.u32 %v43, 127
  %45 = vset.pattern.permute.xlu0 0
  %46 = vperm.xlu0 %45, %v11
  %v47 = vpop.permute.xlu0 %46
  %48 = vset.pattern.permute.xlu0 0
  %49 = vperm.xlu0 %48, %v12
  %v50 = vpop.permute.xlu0 %49
  %51 = vset.pattern.permute.xlu0 0
  %52 = vperm.xlu0 %51, %v13
  %v53 = vpop.permute.xlu0 %52
  %54 = vset.pattern.permute.xlu0 0
  %55 = vperm.xlu0 %54, %v14
  %v56 = vpop.permute.xlu0 %55
  %57 = vset.pattern.permute.xlu0 0
  %58 = vperm.xlu0 %57, %v15
  %v59 = vpop.permute.xlu0 %58
  %60 = vset.pattern.permute.xlu0 0
  %61 = vperm.xlu0 %60, %v16
  %v62 = vpop.permute.xlu0 %61
  %63 = vset.pattern.permute.xlu0 0
  %64 = vperm.xlu0 %63, %v17
  %v65 = vpop.permute.xlu0 %64
  %66 = vset.pattern.permute.xlu0 0
  %67 = vperm.xlu0 %66, %v18
  %v68 = vpop.permute.xlu0 %67
  %69 = vset.pattern.permute.xlu0 0
  %70 = vperm.xlu0 %69, %v19
  %v71 = vpop.permute.xlu0 %70
  %72 = vset.pattern.permute.xlu0 0
  %73 = vperm.xlu0 %72, %v20
  %v74 = vpop.permute.xlu0 %73
  %75 = vset.pattern.permute.xlu0 0
  %76 = vperm.xlu0 %75, %v21
  %v77 = vpop.permute.xlu0 %76
  %78 = vset.pattern.permute.xlu0 0
  %79 = vperm.xlu0 %78, %v22
  %v80 = vpop.permute.xlu0 %79
  %81 = vset.pattern.permute.xlu0 0
  %82 = vperm.xlu0 %81, %v23
  %v83 = vpop.permute.xlu0 %82
  %84 = vset.pattern.permute.xlu0 0
  %85 = vperm.xlu0 %84, %v24
  %v86 = vpop.permute.xlu0 %85
  %87 = vset.pattern.permute.xlu0 0
  %88 = vperm.xlu0 %87, %v25
  %v89 = vpop.permute.xlu0 %88
  %90 = vset.pattern.permute.xlu0 0
  %91 = vperm.xlu0 %90, %v26
  %v92 = vpop.permute.xlu0 %91
  %93 = vset.pattern.permute.xlu0 0
  %94 = vperm.xlu0 %93, %v27
  %v95 = vpop.permute.xlu0 %94
  %96 = vset.pattern.permute.xlu0 0
  %97 = vperm.xlu0 %96, %v28
  %v98 = vpop.permute.xlu0 %97
  %99 = vset.pattern.permute.xlu0 0
  %100 = vperm.xlu0 %99, %v29
  %v101 = vpop.permute.xlu0 %100
  %102 = vset.pattern.permute.xlu0 0
  %103 = vperm.xlu0 %102, %v30
  %v104 = vpop.permute.xlu0 %103
  %105 = vset.pattern.permute.xlu0 0
  %106 = vperm.xlu0 %105, %v31
  %v107 = vpop.permute.xlu0 %106
  %108 = vset.pattern.permute.xlu0 0
  %109 = vperm.xlu0 %108, %v32
  %v110 = vpop.permute.xlu0 %109
  %111 = vset.pattern.permute.xlu0 0
  %112 = vperm.xlu0 %111, %v33
  %v113 = vpop.permute.xlu0 %112
  %114 = vset.pattern.permute.xlu0 0
  %115 = vperm.xlu0 %114, %v34
  %v116 = vpop.permute.xlu0 %115
  %117 = vset.pattern.permute.xlu0 0
  %118 = vperm.xlu0 %117, %v35
  %v119 = vpop.permute.xlu0 %118
  %120 = vset.pattern.permute.xlu0 0
  %121 = vperm.xlu0 %120, %v36
  %v122 = vpop.permute.xlu0 %121
  %123 = vset.pattern.permute.xlu0 0
  %124 = vperm.xlu0 %123, %v37
  %v125 = vpop.permute.xlu0 %124
  %126 = vset.pattern.permute.xlu0 0
  %127 = vperm.xlu0 %126, %v38
  %v128 = vpop.permute.xlu0 %127
  %129 = vset.pattern.permute.xlu0 0
  %130 = vperm.xlu0 %129, %v39
  %v131 = vpop.permute.xlu0 %130
  %132 = vset.pattern.permute.xlu0 0
  %133 = vperm.xlu0 %132, %v40
  %v134 = vpop.permute.xlu0 %133
  %135 = vset.pattern.permute.xlu0 0
  %136 = vperm.xlu0 %135, %v41
  %v137 = vpop.permute.xlu0 %136
  %138 = vset.pattern.permute.xlu0 0
  %139 = vperm.xlu0 %138, %v42
  %v140 = vpop.permute.xlu0 %139
  %vm141 = vcmp.eq.s32.totalorder %v47, %v44
  %vm142 = vcmp.eq.s32.totalorder %v50, %v44
  %vm143 = vcmp.eq.s32.totalorder %v53, %v44
  %vm144 = vcmp.eq.s32.totalorder %v56, %v44
  %vm145 = vcmp.eq.s32.totalorder %v59, %v44
  %vm146 = vcmp.eq.s32.totalorder %v62, %v44
  %vm147 = vcmp.eq.s32.totalorder %v65, %v44
  %vm148 = vcmp.eq.s32.totalorder %v68, %v44
  %vm149 = vcmp.eq.s32.totalorder %v71, %v44
  %vm150 = vcmp.eq.s32.totalorder %v74, %v44
  %vm151 = vcmp.eq.s32.totalorder %v77, %v44
  %vm152 = vcmp.eq.s32.totalorder %v80, %v44
  %vm153 = vcmp.eq.s32.totalorder %v83, %v44
  %vm154 = vcmp.eq.s32.totalorder %v86, %v44
  %vm155 = vcmp.eq.s32.totalorder %v89, %v44
  %vm156 = vcmp.eq.s32.totalorder %v92, %v44
  %vm157 = vcmp.eq.s32.totalorder %v95, %v44
  %vm158 = vcmp.eq.s32.totalorder %v98, %v44
  %vm159 = vcmp.eq.s32.totalorder %v101, %v44
  %vm160 = vcmp.eq.s32.totalorder %v104, %v44
  %vm161 = vcmp.eq.s32.totalorder %v107, %v44
  %vm162 = vcmp.eq.s32.totalorder %v110, %v44
  %vm163 = vcmp.eq.s32.totalorder %v113, %v44
  %vm164 = vcmp.eq.s32.totalorder %v116, %v44
  %vm165 = vcmp.eq.s32.totalorder %v119, %v44
  %vm166 = vcmp.eq.s32.totalorder %v122, %v44
  %vm167 = vcmp.eq.s32.totalorder %v125, %v44
  %vm168 = vcmp.eq.s32.totalorder %v128, %v44
  %vm169 = vcmp.eq.s32.totalorder %v131, %v44
  %vm170 = vcmp.eq.s32.totalorder %v134, %v44
  %vm171 = vcmp.eq.s32.totalorder %v137, %v44
  %vm172 = vcmp.eq.s32.totalorder %v140, %v44
  %v173 = vsel %vm141, 1, 0
  %v174 = vsel %vm142, 1, 0
  %v175 = vsel %vm143, 1, 0
  %v176 = vsel %vm144, 1, 0
  %v177 = vsel %vm145, 1, 0
  %v178 = vsel %vm146, 1, 0
  %v179 = vsel %vm147, 1, 0
  %v180 = vsel %vm148, 1, 0
  %v181 = vsel %vm149, 1, 0
  %v182 = vsel %vm150, 1, 0
  %v183 = vsel %vm151, 1, 0
  %v184 = vsel %vm152, 1, 0
  %v185 = vsel %vm153, 1, 0
  %v186 = vsel %vm154, 1, 0
  %v187 = vsel %vm155, 1, 0
  %v188 = vsel %vm156, 1, 0
  %v189 = vsel %vm157, 1, 0
  %v190 = vsel %vm158, 1, 0
  %v191 = vsel %vm159, 1, 0
  %v192 = vsel %vm160, 1, 0
  %v193 = vsel %vm161, 1, 0
  %v194 = vsel %vm162, 1, 0
  %v195 = vsel %vm163, 1, 0
  %v196 = vsel %vm164, 1, 0
  %v197 = vsel %vm165, 1, 0
  %v198 = vsel %vm166, 1, 0
  %v199 = vsel %vm167, 1, 0
  %v200 = vsel %vm168, 1, 0
  %v201 = vsel %vm169, 1, 0
  %v202 = vsel %vm170, 1, 0
  %v203 = vsel %vm171, 1, 0
  %v204 = vsel %vm172, 1, 0
  %v205 = vcvt.s32.f32 %v173
  %v206 = vcvt.s32.f32 %v174
  %v207 = vcvt.s32.f32 %v175
  %v208 = vcvt.s32.f32 %v176
  %v209 = vcvt.s32.f32 %v177
  %v210 = vcvt.s32.f32 %v178
  %v211 = vcvt.s32.f32 %v179
  %v212 = vcvt.s32.f32 %v180
  %v213 = vcvt.s32.f32 %v181
  %v214 = vcvt.s32.f32 %v182
  %v215 = vcvt.s32.f32 %v183
  %v216 = vcvt.s32.f32 %v184
  %v217 = vcvt.s32.f32 %v185
  %v218 = vcvt.s32.f32 %v186
  %v219 = vcvt.s32.f32 %v187
  %v220 = vcvt.s32.f32 %v188
  %v221 = vcvt.s32.f32 %v189
  %v222 = vcvt.s32.f32 %v190
  %v223 = vcvt.s32.f32 %v191
  %v224 = vcvt.s32.f32 %v192
  %v225 = vcvt.s32.f32 %v193
  %v226 = vcvt.s32.f32 %v194
  %v227 = vcvt.s32.f32 %v195
  %v228 = vcvt.s32.f32 %v196
  %v229 = vcvt.s32.f32 %v197
  %v230 = vcvt.s32.f32 %v198
  %v231 = vcvt.s32.f32 %v199
  %v232 = vcvt.s32.f32 %v200
  %v233 = vcvt.s32.f32 %v201
  %v234 = vcvt.s32.f32 %v202
  %v235 = vcvt.s32.f32 %v203
  %v236 = vcvt.s32.f32 %v204
  %v237 = vadd.f32 %v205, 0.0
  %v238 = vadd.f32 %v206, 0.0
  %v239 = vadd.f32 %v207, 0.0
  %v240 = vadd.f32 %v208, 0.0
  %v241 = vadd.f32 %v209, 0.0
  %v242 = vadd.f32 %v210, 0.0
  %v243 = vadd.f32 %v211, 0.0
  %v244 = vadd.f32 %v212, 0.0
  %v245 = vadd.f32 %v213, 0.0
  %v246 = vadd.f32 %v214, 0.0
  %v247 = vadd.f32 %v215, 0.0
  %v248 = vadd.f32 %v216, 0.0
  %v249 = vadd.f32 %v217, 0.0
  %v250 = vadd.f32 %v218, 0.0
  %v251 = vadd.f32 %v219, 0.0
  %v252 = vadd.f32 %v220, 0.0
  %v253 = vadd.f32 %v221, 0.0
  %v254 = vadd.f32 %v222, 0.0
  %v255 = vadd.f32 %v223, 0.0
  %v256 = vadd.f32 %v224, 0.0
  %v257 = vadd.f32 %v225, 0.0
  %v258 = vadd.f32 %v226, 0.0
  %v259 = vadd.f32 %v227, 0.0
  %v260 = vadd.f32 %v228, 0.0
  %v261 = vadd.f32 %v229, 0.0
  %v262 = vadd.f32 %v230, 0.0
  %v263 = vadd.f32 %v231, 0.0
  %v264 = vadd.f32 %v232, 0.0
  %v265 = vadd.f32 %v233, 0.0
  %v266 = vadd.f32 %v234, 0.0
  %v267 = vadd.f32 %v235, 0.0
  %v268 = vadd.f32 %v236, 0.0
  %269 = vset.pattern.permute.xlu0 1
  %270 = vperm.xlu0 %269, %v11
  %v271 = vpop.permute.xlu0 %270
  %272 = vset.pattern.permute.xlu0 1
  %273 = vperm.xlu0 %272, %v12
  %v274 = vpop.permute.xlu0 %273
  %275 = vset.pattern.permute.xlu0 1
  %276 = vperm.xlu0 %275, %v13
  %v277 = vpop.permute.xlu0 %276
  %278 = vset.pattern.permute.xlu0 1
  %279 = vperm.xlu0 %278, %v14
  %v280 = vpop.permute.xlu0 %279
  %281 = vset.pattern.permute.xlu0 1
  %282 = vperm.xlu0 %281, %v15
  %v283 = vpop.permute.xlu0 %282
  %284 = vset.pattern.permute.xlu0 1
  %285 = vperm.xlu0 %284, %v16
  %v286 = vpop.permute.xlu0 %285
  %287 = vset.pattern.permute.xlu0 1
  %288 = vperm.xlu0 %287, %v17
  %v289 = vpop.permute.xlu0 %288
  %290 = vset.pattern.permute.xlu0 1
  %291 = vperm.xlu0 %290, %v18
  %v292 = vpop.permute.xlu0 %291
  %293 = vset.pattern.permute.xlu0 1
  %294 = vperm.xlu0 %293, %v19
  %v295 = vpop.permute.xlu0 %294
  %296 = vset.pattern.permute.xlu0 1
  %297 = vperm.xlu0 %296, %v20
  %v298 = vpop.permute.xlu0 %297
  %299 = vset.pattern.permute.xlu0 1
  %300 = vperm.xlu0 %299, %v21
  %v301 = vpop.permute.xlu0 %300
  %302 = vset.pattern.permute.xlu0 1
  %303 = vperm.xlu0 %302, %v22
  %v304 = vpop.permute.xlu0 %303
  %305 = vset.pattern.permute.xlu0 1
  %306 = vperm.xlu0 %305, %v23
  %v307 = vpop.permute.xlu0 %306
  %308 = vset.pattern.permute.xlu0 1
  %309 = vperm.xlu0 %308, %v24
  %v310 = vpop.permute.xlu0 %309
  %311 = vset.pattern.permute.xlu0 1
  %312 = vperm.xlu0 %311, %v25
  %v313 = vpop.permute.xlu0 %312
  %314 = vset.pattern.permute.xlu0 1
  %315 = vperm.xlu0 %314, %v26
  %v316 = vpop.permute.xlu0 %315
  %317 = vset.pattern.permute.xlu0 1
  %318 = vperm.xlu0 %317, %v27
  %v319 = vpop.permute.xlu0 %318
  %320 = vset.pattern.permute.xlu0 1
  %321 = vperm.xlu0 %320, %v28
  %v322 = vpop.permute.xlu0 %321
  %323 = vset.pattern.permute.xlu0 1
  %324 = vperm.xlu0 %323, %v29
  %v325 = vpop.permute.xlu0 %324
  %326 = vset.pattern.permute.xlu0 1
  %327 = vperm.xlu0 %326, %v30
  %v328 = vpop.permute.xlu0 %327
  %329 = vset.pattern.permute.xlu0 1
  %330 = vperm.xlu0 %329, %v31
  %v331 = vpop.permute.xlu0 %330
  %332 = vset.pattern.permute.xlu0 1
  %333 = vperm.xlu0 %332, %v32
  %v334 = vpop.permute.xlu0 %333
  %335 = vset.pattern.permute.xlu0 1
  %336 = vperm.xlu0 %335, %v33
  %v337 = vpop.permute.xlu0 %336
  %338 = vset.pattern.permute.xlu0 1
  %339 = vperm.xlu0 %338, %v34
  %v340 = vpop.permute.xlu0 %339
  %341 = vset.pattern.permute.xlu0 1
  %342 = vperm.xlu0 %341, %v35
  %v343 = vpop.permute.xlu0 %342
  %344 = vset.pattern.permute.xlu0 1
  %345 = vperm.xlu0 %344, %v36
  %v346 = vpop.permute.xlu0 %345
  %347 = vset.pattern.permute.xlu0 1
  %348 = vperm.xlu0 %347, %v37
  %v349 = vpop.permute.xlu0 %348
  %350 = vset.pattern.permute.xlu0 1
  %351 = vperm.xlu0 %350, %v38
  %v352 = vpop.permute.xlu0 %351
  %353 = vset.pattern.permute.xlu0 1
  %354 = vperm.xlu0 %353, %v39
  %v355 = vpop.permute.xlu0 %354
  %356 = vset.pattern.permute.xlu0 1
  %357 = vperm.xlu0 %356, %v40
  %v358 = vpop.permute.xlu0 %357
  %359 = vset.pattern.permute.xlu0 1
  %360 = vperm.xlu0 %359, %v41
  %v361 = vpop.permute.xlu0 %360
  %362 = vset.pattern.permute.xlu0 1
  %363 = vperm.xlu0 %362, %v42
  %v364 = vpop.permute.xlu0 %363
  %vm365 = vcmp.eq.s32.totalorder %v271, %v44
  %vm366 = vcmp.eq.s32.totalorder %v274, %v44
  %vm367 = vcmp.eq.s32.totalorder %v277, %v44
  %vm368 = vcmp.eq.s32.totalorder %v280, %v44
  %vm369 = vcmp.eq.s32.totalorder %v283, %v44
  %vm370 = vcmp.eq.s32.totalorder %v286, %v44
  %vm371 = vcmp.eq.s32.totalorder %v289, %v44
  %vm372 = vcmp.eq.s32.totalorder %v292, %v44
  %vm373 = vcmp.eq.s32.totalorder %v295, %v44
  %vm374 = vcmp.eq.s32.totalorder %v298, %v44
  %vm375 = vcmp.eq.s32.totalorder %v301, %v44
  %vm376 = vcmp.eq.s32.totalorder %v304, %v44
  %vm377 = vcmp.eq.s32.totalorder %v307, %v44
  %vm378 = vcmp.eq.s32.totalorder %v310, %v44
  %vm379 = vcmp.eq.s32.totalorder %v313, %v44
  %vm380 = vcmp.eq.s32.totalorder %v316, %v44
  %vm381 = vcmp.eq.s32.totalorder %v319, %v44
  %vm382 = vcmp.eq.s32.totalorder %v322, %v44
  %vm383 = vcmp.eq.s32.totalorder %v325, %v44
  %vm384 = vcmp.eq.s32.totalorder %v328, %v44
  %vm385 = vcmp.eq.s32.totalorder %v331, %v44
  %vm386 = vcmp.eq.s32.totalorder %v334, %v44
  %vm387 = vcmp.eq.s32.totalorder %v337, %v44
  %vm388 = vcmp.eq.s32.totalorder %v340, %v44
  %vm389 = vcmp.eq.s32.totalorder %v343, %v44
  %vm390 = vcmp.eq.s32.totalorder %v346, %v44
  %vm391 = vcmp.eq.s32.totalorder %v349, %v44
  %vm392 = vcmp.eq.s32.totalorder %v352, %v44
  %vm393 = vcmp.eq.s32.totalorder %v355, %v44
  %vm394 = vcmp.eq.s32.totalorder %v358, %v44
  %vm395 = vcmp.eq.s32.totalorder %v361, %v44
  %vm396 = vcmp.eq.s32.totalorder %v364, %v44
  %v397 = vsel %vm365, 1, 0
  %v398 = vsel %vm366, 1, 0
  %v399 = vsel %vm367, 1, 0
  %v400 = vsel %vm368, 1, 0
  %v401 = vsel %vm369, 1, 0
  %v402 = vsel %vm370, 1, 0
  %v403 = vsel %vm371, 1, 0
  %v404 = vsel %vm372, 1, 0
  %v405 = vsel %vm373, 1, 0
  %v406 = vsel %vm374, 1, 0
  %v407 = vsel %vm375, 1, 0
  %v408 = vsel %vm376, 1, 0
  %v409 = vsel %vm377, 1, 0
  %v410 = vsel %vm378, 1, 0
  %v411 = vsel %vm379, 1, 0
  %v412 = vsel %vm380, 1, 0
  %v413 = vsel %vm381, 1, 0
  %v414 = vsel %vm382, 1, 0
  %v415 = vsel %vm383, 1, 0
  %v416 = vsel %vm384, 1, 0
  %v417 = vsel %vm385, 1, 0
  %v418 = vsel %vm386, 1, 0
  %v419 = vsel %vm387, 1, 0
  %v420 = vsel %vm388, 1, 0
  %v421 = vsel %vm389, 1, 0
  %v422 = vsel %vm390, 1, 0
  %v423 = vsel %vm391, 1, 0
  %v424 = vsel %vm392, 1, 0
  %v425 = vsel %vm393, 1, 0
  %v426 = vsel %vm394, 1, 0
  %v427 = vsel %vm395, 1, 0
  %v428 = vsel %vm396, 1, 0
  %v429 = vcvt.s32.f32 %v397
  %v430 = vcvt.s32.f32 %v398
  %v431 = vcvt.s32.f32 %v399
  %v432 = vcvt.s32.f32 %v400
  %v433 = vcvt.s32.f32 %v401
  %v434 = vcvt.s32.f32 %v402
  %v435 = vcvt.s32.f32 %v403
  %v436 = vcvt.s32.f32 %v404
  %v437 = vcvt.s32.f32 %v405
  %v438 = vcvt.s32.f32 %v406
  %v439 = vcvt.s32.f32 %v407
  %v440 = vcvt.s32.f32 %v408
  %v441 = vcvt.s32.f32 %v409
  %v442 = vcvt.s32.f32 %v410
  %v443 = vcvt.s32.f32 %v411
  %v444 = vcvt.s32.f32 %v412
  %v445 = vcvt.s32.f32 %v413
  %v446 = vcvt.s32.f32 %v414
  %v447 = vcvt.s32.f32 %v415
  %v448 = vcvt.s32.f32 %v416
  %v449 = vcvt.s32.f32 %v417
  %v450 = vcvt.s32.f32 %v418
  %v451 = vcvt.s32.f32 %v419
  %v452 = vcvt.s32.f32 %v420
  %v453 = vcvt.s32.f32 %v421
  %v454 = vcvt.s32.f32 %v422
  %v455 = vcvt.s32.f32 %v423
  %v456 = vcvt.s32.f32 %v424
  %v457 = vcvt.s32.f32 %v425
  %v458 = vcvt.s32.f32 %v426
  %v459 = vcvt.s32.f32 %v427
  %v460 = vcvt.s32.f32 %v428
  %v461 = vadd.f32 %v237, %v429
  %v462 = vadd.f32 %v238, %v430
  %v463 = vadd.f32 %v239, %v431
  %v464 = vadd.f32 %v240, %v432
  %v465 = vadd.f32 %v241, %v433
  %v466 = vadd.f32 %v242, %v434
  %v467 = vadd.f32 %v243, %v435
  %v468 = vadd.f32 %v244, %v436
  %v469 = vadd.f32 %v245, %v437
  %v470 = vadd.f32 %v246, %v438
  %v471 = vadd.f32 %v247, %v439
  %v472 = vadd.f32 %v248, %v440
  %v473 = vadd.f32 %v249, %v441
  %v474 = vadd.f32 %v250, %v442
  %v475 = vadd.f32 %v251, %v443
  %v476 = vadd.f32 %v252, %v444
  %v477 = vadd.f32 %v253, %v445
  %v478 = vadd.f32 %v254, %v446
  %v479 = vadd.f32 %v255, %v447
  %v480 = vadd.f32 %v256, %v448
  %v481 = vadd.f32 %v257, %v449
  %v482 = vadd.f32 %v258, %v450
  %v483 = vadd.f32 %v259, %v451
  %v484 = vadd.f32 %v260, %v452
  %v485 = vadd.f32 %v261, %v453
  %v486 = vadd.f32 %v262, %v454
  %v487 = vadd.f32 %v263, %v455
  %v488 = vadd.f32 %v264, %v456
  %v489 = vadd.f32 %v265, %v457
  %v490 = vadd.f32 %v266, %v458
  %v491 = vadd.f32 %v267, %v459
  %v492 = vadd.f32 %v268, %v460
  %493 = vset.pattern.permute.xlu0 2
  %494 = vperm.xlu0 %493, %v11
  %v495 = vpop.permute.xlu0 %494
  %496 = vset.pattern.permute.xlu0 2
  %497 = vperm.xlu0 %496, %v12
  %v498 = vpop.permute.xlu0 %497
  %499 = vset.pattern.permute.xlu0 2
  %500 = vperm.xlu0 %499, %v13
  %v501 = vpop.permute.xlu0 %500
  %502 = vset.pattern.permute.xlu0 2
  %503 = vperm.xlu0 %502, %v14
  %v504 = vpop.permute.xlu0 %503
  %505 = vset.pattern.permute.xlu0 2
  %506 = vperm.xlu0 %505, %v15
  %v507 = vpop.permute.xlu0 %506
  %508 = vset.pattern.permute.xlu0 2
  %509 = vperm.xlu0 %508, %v16
  %v510 = vpop.permute.xlu0 %509
  %511 = vset.pattern.permute.xlu0 2
  %512 = vperm.xlu0 %511, %v17
  %v513 = vpop.permute.xlu0 %512
  %514 = vset.pattern.permute.xlu0 2
  %515 = vperm.xlu0 %514, %v18
  %v516 = vpop.permute.xlu0 %515
  %517 = vset.pattern.permute.xlu0 2
  %518 = vperm.xlu0 %517, %v19
  %v519 = vpop.permute.xlu0 %518
  %520 = vset.pattern.permute.xlu0 2
  %521 = vperm.xlu0 %520, %v20
  %v522 = vpop.permute.xlu0 %521
  %523 = vset.pattern.permute.xlu0 2
  %524 = vperm.xlu0 %523, %v21
  %v525 = vpop.permute.xlu0 %524
  %526 = vset.pattern.permute.xlu0 2
  %527 = vperm.xlu0 %526, %v22
  %v528 = vpop.permute.xlu0 %527
  %529 = vset.pattern.permute.xlu0 2
  %530 = vperm.xlu0 %529, %v23
  %v531 = vpop.permute.xlu0 %530
  %532 = vset.pattern.permute.xlu0 2
  %533 = vperm.xlu0 %532, %v24
  %v534 = vpop.permute.xlu0 %533
  %535 = vset.pattern.permute.xlu0 2
  %536 = vperm.xlu0 %535, %v25
  %v537 = vpop.permute.xlu0 %536
  %538 = vset.pattern.permute.xlu0 2
  %539 = vperm.xlu0 %538, %v26
  %v540 = vpop.permute.xlu0 %539
  %541 = vset.pattern.permute.xlu0 2
  %542 = vperm.xlu0 %541, %v27
  %v543 = vpop.permute.xlu0 %542
  %544 = vset.pattern.permute.xlu0 2
  %545 = vperm.xlu0 %544, %v28
  %v546 = vpop.permute.xlu0 %545
  %547 = vset.pattern.permute.xlu0 2
  %548 = vperm.xlu0 %547, %v29
  %v549 = vpop.permute.xlu0 %548
  %550 = vset.pattern.permute.xlu0 2
  %551 = vperm.xlu0 %550, %v30
  %v552 = vpop.permute.xlu0 %551
  %553 = vset.pattern.permute.xlu0 2
  %554 = vperm.xlu0 %553, %v31
  %v555 = vpop.permute.xlu0 %554
  %556 = vset.pattern.permute.xlu0 2
  %557 = vperm.xlu0 %556, %v32
  %v558 = vpop.permute.xlu0 %557
  %559 = vset.pattern.permute.xlu0 2
  %560 = vperm.xlu0 %559, %v33
  %v561 = vpop.permute.xlu0 %560
  %562 = vset.pattern.permute.xlu0 2
  %563 = vperm.xlu0 %562, %v34
  %v564 = vpop.permute.xlu0 %563
  %565 = vset.pattern.permute.xlu0 2
  %566 = vperm.xlu0 %565, %v35
  %v567 = vpop.permute.xlu0 %566
  %568 = vset.pattern.permute.xlu0 2
  %569 = vperm.xlu0 %568, %v36
  %v570 = vpop.permute.xlu0 %569
  %571 = vset.pattern.permute.xlu0 2
  %572 = vperm.xlu0 %571, %v37
  %v573 = vpop.permute.xlu0 %572
  %574 = vset.pattern.permute.xlu0 2
  %575 = vperm.xlu0 %574, %v38
  %v576 = vpop.permute.xlu0 %575
  %577 = vset.pattern.permute.xlu0 2
  %578 = vperm.xlu0 %577, %v39
  %v579 = vpop.permute.xlu0 %578
  %580 = vset.pattern.permute.xlu0 2
  %581 = vperm.xlu0 %580, %v40
  %v582 = vpop.permute.xlu0 %581
  %583 = vset.pattern.permute.xlu0 2
  %584 = vperm.xlu0 %583, %v41
  %v585 = vpop.permute.xlu0 %584
  %586 = vset.pattern.permute.xlu0 2
  %587 = vperm.xlu0 %586, %v42
  %v588 = vpop.permute.xlu0 %587
  %vm589 = vcmp.eq.s32.totalorder %v495, %v44
  %vm590 = vcmp.eq.s32.totalorder %v498, %v44
  %vm591 = vcmp.eq.s32.totalorder %v501, %v44
  %vm592 = vcmp.eq.s32.totalorder %v504, %v44
  %vm593 = vcmp.eq.s32.totalorder %v507, %v44
  %vm594 = vcmp.eq.s32.totalorder %v510, %v44
  %vm595 = vcmp.eq.s32.totalorder %v513, %v44
  %vm596 = vcmp.eq.s32.totalorder %v516, %v44
  %vm597 = vcmp.eq.s32.totalorder %v519, %v44
  %vm598 = vcmp.eq.s32.totalorder %v522, %v44
  %vm599 = vcmp.eq.s32.totalorder %v525, %v44
  %vm600 = vcmp.eq.s32.totalorder %v528, %v44
  %vm601 = vcmp.eq.s32.totalorder %v531, %v44
  %vm602 = vcmp.eq.s32.totalorder %v534, %v44
  %vm603 = vcmp.eq.s32.totalorder %v537, %v44
  %vm604 = vcmp.eq.s32.totalorder %v540, %v44
  %vm605 = vcmp.eq.s32.totalorder %v543, %v44
  %vm606 = vcmp.eq.s32.totalorder %v546, %v44
  %vm607 = vcmp.eq.s32.totalorder %v549, %v44
  %vm608 = vcmp.eq.s32.totalorder %v552, %v44
  %vm609 = vcmp.eq.s32.totalorder %v555, %v44
  %vm610 = vcmp.eq.s32.totalorder %v558, %v44
  %vm611 = vcmp.eq.s32.totalorder %v561, %v44
  %vm612 = vcmp.eq.s32.totalorder %v564, %v44
  %vm613 = vcmp.eq.s32.totalorder %v567, %v44
  %vm614 = vcmp.eq.s32.totalorder %v570, %v44
  %vm615 = vcmp.eq.s32.totalorder %v573, %v44
  %vm616 = vcmp.eq.s32.totalorder %v576, %v44
  %vm617 = vcmp.eq.s32.totalorder %v579, %v44
  %vm618 = vcmp.eq.s32.totalorder %v582, %v44
  %vm619 = vcmp.eq.s32.totalorder %v585, %v44
  %vm620 = vcmp.eq.s32.totalorder %v588, %v44
  %v621 = vsel %vm589, 1, 0
  %v622 = vsel %vm590, 1, 0
  %v623 = vsel %vm591, 1, 0
  %v624 = vsel %vm592, 1, 0
  %v625 = vsel %vm593, 1, 0
  %v626 = vsel %vm594, 1, 0
  %v627 = vsel %vm595, 1, 0
  %v628 = vsel %vm596, 1, 0
  %v629 = vsel %vm597, 1, 0
  %v630 = vsel %vm598, 1, 0
  %v631 = vsel %vm599, 1, 0
  %v632 = vsel %vm600, 1, 0
  %v633 = vsel %vm601, 1, 0
  %v634 = vsel %vm602, 1, 0
  %v635 = vsel %vm603, 1, 0
  %v636 = vsel %vm604, 1, 0
  %v637 = vsel %vm605, 1, 0
  %v638 = vsel %vm606, 1, 0
  %v639 = vsel %vm607, 1, 0
  %v640 = vsel %vm608, 1, 0
  %v641 = vsel %vm609, 1, 0
  %v642 = vsel %vm610, 1, 0
  %v643 = vsel %vm611, 1, 0
  %v644 = vsel %vm612, 1, 0
  %v645 = vsel %vm613, 1, 0
  %v646 = vsel %vm614, 1, 0
  %v647 = vsel %vm615, 1, 0
  %v648 = vsel %vm616, 1, 0
  %v649 = vsel %vm617, 1, 0
  %v650 = vsel %vm618, 1, 0
  %v651 = vsel %vm619, 1, 0
  %v652 = vsel %vm620, 1, 0
  %v653 = vcvt.s32.f32 %v621
  %v654 = vcvt.s32.f32 %v622
  %v655 = vcvt.s32.f32 %v623
  %v656 = vcvt.s32.f32 %v624
  %v657 = vcvt.s32.f32 %v625
  %v658 = vcvt.s32.f32 %v626
  %v659 = vcvt.s32.f32 %v627
  %v660 = vcvt.s32.f32 %v628
  %v661 = vcvt.s32.f32 %v629
  %v662 = vcvt.s32.f32 %v630
  %v663 = vcvt.s32.f32 %v631
  %v664 = vcvt.s32.f32 %v632
  %v665 = vcvt.s32.f32 %v633
  %v666 = vcvt.s32.f32 %v634
  %v667 = vcvt.s32.f32 %v635
  %v668 = vcvt.s32.f32 %v636
  %v669 = vcvt.s32.f32 %v637
  %v670 = vcvt.s32.f32 %v638
  %v671 = vcvt.s32.f32 %v639
  %v672 = vcvt.s32.f32 %v640
  %v673 = vcvt.s32.f32 %v641
  %v674 = vcvt.s32.f32 %v642
  %v675 = vcvt.s32.f32 %v643
  %v676 = vcvt.s32.f32 %v644
  %v677 = vcvt.s32.f32 %v645
  %v678 = vcvt.s32.f32 %v646
  %v679 = vcvt.s32.f32 %v647
  %v680 = vcvt.s32.f32 %v648
  %v681 = vcvt.s32.f32 %v649
  %v682 = vcvt.s32.f32 %v650
  %v683 = vcvt.s32.f32 %v651
  %v684 = vcvt.s32.f32 %v652
  %v685 = vadd.f32 %v461, %v653
  %v686 = vadd.f32 %v462, %v654
  %v687 = vadd.f32 %v463, %v655
  %v688 = vadd.f32 %v464, %v656
  %v689 = vadd.f32 %v465, %v657
  %v690 = vadd.f32 %v466, %v658
  %v691 = vadd.f32 %v467, %v659
  %v692 = vadd.f32 %v468, %v660
  %v693 = vadd.f32 %v469, %v661
  %v694 = vadd.f32 %v470, %v662
  %v695 = vadd.f32 %v471, %v663
  %v696 = vadd.f32 %v472, %v664
  %v697 = vadd.f32 %v473, %v665
  %v698 = vadd.f32 %v474, %v666
  %v699 = vadd.f32 %v475, %v667
  %v700 = vadd.f32 %v476, %v668
  %v701 = vadd.f32 %v477, %v669
  %v702 = vadd.f32 %v478, %v670
  %v703 = vadd.f32 %v479, %v671
  %v704 = vadd.f32 %v480, %v672
  %v705 = vadd.f32 %v481, %v673
  %v706 = vadd.f32 %v482, %v674
  %v707 = vadd.f32 %v483, %v675
  %v708 = vadd.f32 %v484, %v676
  %v709 = vadd.f32 %v485, %v677
  %v710 = vadd.f32 %v486, %v678
  %v711 = vadd.f32 %v487, %v679
  %v712 = vadd.f32 %v488, %v680
  %v713 = vadd.f32 %v489, %v681
  %v714 = vadd.f32 %v490, %v682
  %v715 = vadd.f32 %v491, %v683
  %v716 = vadd.f32 %v492, %v684
  %717 = vset.pattern.permute.xlu0 3
  %718 = vperm.xlu0 %717, %v11
  %v719 = vpop.permute.xlu0 %718
  %720 = vset.pattern.permute.xlu0 3
  %721 = vperm.xlu0 %720, %v12
  %v722 = vpop.permute.xlu0 %721
  %723 = vset.pattern.permute.xlu0 3
  %724 = vperm.xlu0 %723, %v13
  %v725 = vpop.permute.xlu0 %724
  %726 = vset.pattern.permute.xlu0 3
  %727 = vperm.xlu0 %726, %v14
  %v728 = vpop.permute.xlu0 %727
  %729 = vset.pattern.permute.xlu0 3
  %730 = vperm.xlu0 %729, %v15
  %v731 = vpop.permute.xlu0 %730
  %732 = vset.pattern.permute.xlu0 3
  %733 = vperm.xlu0 %732, %v16
  %v734 = vpop.permute.xlu0 %733
  %735 = vset.pattern.permute.xlu0 3
  %736 = vperm.xlu0 %735, %v17
  %v737 = vpop.permute.xlu0 %736
  %738 = vset.pattern.permute.xlu0 3
  %739 = vperm.xlu0 %738, %v18
  %v740 = vpop.permute.xlu0 %739
  %741 = vset.pattern.permute.xlu0 3
  %742 = vperm.xlu0 %741, %v19
  %v743 = vpop.permute.xlu0 %742
  %744 = vset.pattern.permute.xlu0 3
  %745 = vperm.xlu0 %744, %v20
  %v746 = vpop.permute.xlu0 %745
  %747 = vset.pattern.permute.xlu0 3
  %748 = vperm.xlu0 %747, %v21
  %v749 = vpop.permute.xlu0 %748
  %750 = vset.pattern.permute.xlu0 3
  %751 = vperm.xlu0 %750, %v22
  %v752 = vpop.permute.xlu0 %751
  %753 = vset.pattern.permute.xlu0 3
  %754 = vperm.xlu0 %753, %v23
  %v755 = vpop.permute.xlu0 %754
  %756 = vset.pattern.permute.xlu0 3
  %757 = vperm.xlu0 %756, %v24
  %v758 = vpop.permute.xlu0 %757
  %759 = vset.pattern.permute.xlu0 3
  %760 = vperm.xlu0 %759, %v25
  %v761 = vpop.permute.xlu0 %760
  %762 = vset.pattern.permute.xlu0 3
  %763 = vperm.xlu0 %762, %v26
  %v764 = vpop.permute.xlu0 %763
  %765 = vset.pattern.permute.xlu0 3
  %766 = vperm.xlu0 %765, %v27
  %v767 = vpop.permute.xlu0 %766
  %768 = vset.pattern.permute.xlu0 3
  %769 = vperm.xlu0 %768, %v28
  %v770 = vpop.permute.xlu0 %769
  %771 = vset.pattern.permute.xlu0 3
  %772 = vperm.xlu0 %771, %v29
  %v773 = vpop.permute.xlu0 %772
  %774 = vset.pattern.permute.xlu0 3
  %775 = vperm.xlu0 %774, %v30
  %v776 = vpop.permute.xlu0 %775
  %777 = vset.pattern.permute.xlu0 3
  %778 = vperm.xlu0 %777, %v31
  %v779 = vpop.permute.xlu0 %778
  %780 = vset.pattern.permute.xlu0 3
  %781 = vperm.xlu0 %780, %v32
  %v782 = vpop.permute.xlu0 %781
  %783 = vset.pattern.permute.xlu0 3
  %784 = vperm.xlu0 %783, %v33
  %v785 = vpop.permute.xlu0 %784
  %786 = vset.pattern.permute.xlu0 3
  %787 = vperm.xlu0 %786, %v34
  %v788 = vpop.permute.xlu0 %787
  %789 = vset.pattern.permute.xlu0 3
  %790 = vperm.xlu0 %789, %v35
  %v791 = vpop.permute.xlu0 %790
  %792 = vset.pattern.permute.xlu0 3
  %793 = vperm.xlu0 %792, %v36
  %v794 = vpop.permute.xlu0 %793
  %795 = vset.pattern.permute.xlu0 3
  %796 = vperm.xlu0 %795, %v37
  %v797 = vpop.permute.xlu0 %796
  %798 = vset.pattern.permute.xlu0 3
  %799 = vperm.xlu0 %798, %v38
  %v800 = vpop.permute.xlu0 %799
  %801 = vset.pattern.permute.xlu0 3
  %802 = vperm.xlu0 %801, %v39
  %v803 = vpop.permute.xlu0 %802
  %804 = vset.pattern.permute.xlu0 3
  %805 = vperm.xlu0 %804, %v40
  %v806 = vpop.permute.xlu0 %805
  %807 = vset.pattern.permute.xlu0 3
  %808 = vperm.xlu0 %807, %v41
  %v809 = vpop.permute.xlu0 %808
  %810 = vset.pattern.permute.xlu0 3
  %811 = vperm.xlu0 %810, %v42
  %v812 = vpop.permute.xlu0 %811
  %vm813 = vcmp.eq.s32.totalorder %v719, %v44
  %vm814 = vcmp.eq.s32.totalorder %v722, %v44
  %vm815 = vcmp.eq.s32.totalorder %v725, %v44
  %vm816 = vcmp.eq.s32.totalorder %v728, %v44
  %vm817 = vcmp.eq.s32.totalorder %v731, %v44
  %vm818 = vcmp.eq.s32.totalorder %v734, %v44
  %vm819 = vcmp.eq.s32.totalorder %v737, %v44
  %vm820 = vcmp.eq.s32.totalorder %v740, %v44
  %vm821 = vcmp.eq.s32.totalorder %v743, %v44
  %vm822 = vcmp.eq.s32.totalorder %v746, %v44
  %vm823 = vcmp.eq.s32.totalorder %v749, %v44
  %vm824 = vcmp.eq.s32.totalorder %v752, %v44
  %vm825 = vcmp.eq.s32.totalorder %v755, %v44
  %vm826 = vcmp.eq.s32.totalorder %v758, %v44
  %vm827 = vcmp.eq.s32.totalorder %v761, %v44
  %vm828 = vcmp.eq.s32.totalorder %v764, %v44
  %vm829 = vcmp.eq.s32.totalorder %v767, %v44
  %vm830 = vcmp.eq.s32.totalorder %v770, %v44
  %vm831 = vcmp.eq.s32.totalorder %v773, %v44
  %vm832 = vcmp.eq.s32.totalorder %v776, %v44
  %vm833 = vcmp.eq.s32.totalorder %v779, %v44
  %vm834 = vcmp.eq.s32.totalorder %v782, %v44
  %vm835 = vcmp.eq.s32.totalorder %v785, %v44
  %vm836 = vcmp.eq.s32.totalorder %v788, %v44
  %vm837 = vcmp.eq.s32.totalorder %v791, %v44
  %vm838 = vcmp.eq.s32.totalorder %v794, %v44
  %vm839 = vcmp.eq.s32.totalorder %v797, %v44
  %vm840 = vcmp.eq.s32.totalorder %v800, %v44
  %vm841 = vcmp.eq.s32.totalorder %v803, %v44
  %vm842 = vcmp.eq.s32.totalorder %v806, %v44
  %vm843 = vcmp.eq.s32.totalorder %v809, %v44
  %vm844 = vcmp.eq.s32.totalorder %v812, %v44
  %v845 = vsel %vm813, 1, 0
  %v846 = vsel %vm814, 1, 0
  %v847 = vsel %vm815, 1, 0
  %v848 = vsel %vm816, 1, 0
  %v849 = vsel %vm817, 1, 0
  %v850 = vsel %vm818, 1, 0
  %v851 = vsel %vm819, 1, 0
  %v852 = vsel %vm820, 1, 0
  %v853 = vsel %vm821, 1, 0
  %v854 = vsel %vm822, 1, 0
  %v855 = vsel %vm823, 1, 0
  %v856 = vsel %vm824, 1, 0
  %v857 = vsel %vm825, 1, 0
  %v858 = vsel %vm826, 1, 0
  %v859 = vsel %vm827, 1, 0
  %v860 = vsel %vm828, 1, 0
  %v861 = vsel %vm829, 1, 0
  %v862 = vsel %vm830, 1, 0
  %v863 = vsel %vm831, 1, 0
  %v864 = vsel %vm832, 1, 0
  %v865 = vsel %vm833, 1, 0
  %v866 = vsel %vm834, 1, 0
  %v867 = vsel %vm835, 1, 0
  %v868 = vsel %vm836, 1, 0
  %v869 = vsel %vm837, 1, 0
  %v870 = vsel %vm838, 1, 0
  %v871 = vsel %vm839, 1, 0
  %v872 = vsel %vm840, 1, 0
  %v873 = vsel %vm841, 1, 0
  %v874 = vsel %vm842, 1, 0
  %v875 = vsel %vm843, 1, 0
  %v876 = vsel %vm844, 1, 0
  %v877 = vcvt.s32.f32 %v845
  %v878 = vcvt.s32.f32 %v846
  %v879 = vcvt.s32.f32 %v847
  %v880 = vcvt.s32.f32 %v848
  %v881 = vcvt.s32.f32 %v849
  %v882 = vcvt.s32.f32 %v850
  %v883 = vcvt.s32.f32 %v851
  %v884 = vcvt.s32.f32 %v852
  %v885 = vcvt.s32.f32 %v853
  %v886 = vcvt.s32.f32 %v854
  %v887 = vcvt.s32.f32 %v855
  %v888 = vcvt.s32.f32 %v856
  %v889 = vcvt.s32.f32 %v857
  %v890 = vcvt.s32.f32 %v858
  %v891 = vcvt.s32.f32 %v859
  %v892 = vcvt.s32.f32 %v860
  %v893 = vcvt.s32.f32 %v861
  %v894 = vcvt.s32.f32 %v862
  %v895 = vcvt.s32.f32 %v863
  %v896 = vcvt.s32.f32 %v864
  %v897 = vcvt.s32.f32 %v865
  %v898 = vcvt.s32.f32 %v866
  %v899 = vcvt.s32.f32 %v867
  %v900 = vcvt.s32.f32 %v868
  %v901 = vcvt.s32.f32 %v869
  %v902 = vcvt.s32.f32 %v870
  %v903 = vcvt.s32.f32 %v871
  %v904 = vcvt.s32.f32 %v872
  %v905 = vcvt.s32.f32 %v873
  %v906 = vcvt.s32.f32 %v874
  %v907 = vcvt.s32.f32 %v875
  %v908 = vcvt.s32.f32 %v876
  %v909 = vadd.f32 %v685, %v877
  %v910 = vadd.f32 %v686, %v878
  %v911 = vadd.f32 %v687, %v879
  %v912 = vadd.f32 %v688, %v880
  %v913 = vadd.f32 %v689, %v881
  %v914 = vadd.f32 %v690, %v882
  %v915 = vadd.f32 %v691, %v883
  %v916 = vadd.f32 %v692, %v884
  %v917 = vadd.f32 %v693, %v885
  %v918 = vadd.f32 %v694, %v886
  %v919 = vadd.f32 %v695, %v887
  %v920 = vadd.f32 %v696, %v888
  %v921 = vadd.f32 %v697, %v889
  %v922 = vadd.f32 %v698, %v890
  %v923 = vadd.f32 %v699, %v891
  %v924 = vadd.f32 %v700, %v892
  %v925 = vadd.f32 %v701, %v893
  %v926 = vadd.f32 %v702, %v894
  %v927 = vadd.f32 %v703, %v895
  %v928 = vadd.f32 %v704, %v896
  %v929 = vadd.f32 %v705, %v897
  %v930 = vadd.f32 %v706, %v898
  %v931 = vadd.f32 %v707, %v899
  %v932 = vadd.f32 %v708, %v900
  %v933 = vadd.f32 %v709, %v901
  %v934 = vadd.f32 %v710, %v902
  %v935 = vadd.f32 %v711, %v903
  %v936 = vadd.f32 %v712, %v904
  %v937 = vadd.f32 %v713, %v905
  %v938 = vadd.f32 %v714, %v906
  %v939 = vadd.f32 %v715, %v907
  %v940 = vadd.f32 %v716, %v908
  %941 = vset.pattern.permute.xlu0 4
  %942 = vperm.xlu0 %941, %v11
  %v943 = vpop.permute.xlu0 %942
  %944 = vset.pattern.permute.xlu0 4
  %945 = vperm.xlu0 %944, %v12
  %v946 = vpop.permute.xlu0 %945
  %947 = vset.pattern.permute.xlu0 4
  %948 = vperm.xlu0 %947, %v13
  %v949 = vpop.permute.xlu0 %948
  %950 = vset.pattern.permute.xlu0 4
  %951 = vperm.xlu0 %950, %v14
  %v952 = vpop.permute.xlu0 %951
  %953 = vset.pattern.permute.xlu0 4
  %954 = vperm.xlu0 %953, %v15
  %v955 = vpop.permute.xlu0 %954
  %956 = vset.pattern.permute.xlu0 4
  %957 = vperm.xlu0 %956, %v16
  %v958 = vpop.permute.xlu0 %957
  %959 = vset.pattern.permute.xlu0 4
  %960 = vperm.xlu0 %959, %v17
  %v961 = vpop.permute.xlu0 %960
  %962 = vset.pattern.permute.xlu0 4
  %963 = vperm.xlu0 %962, %v18
  %v964 = vpop.permute.xlu0 %963
  %965 = vset.pattern.permute.xlu0 4
  %966 = vperm.xlu0 %965, %v19
  %v967 = vpop.permute.xlu0 %966
  %968 = vset.pattern.permute.xlu0 4
  %969 = vperm.xlu0 %968, %v20
  %v970 = vpop.permute.xlu0 %969
  %971 = vset.pattern.permute.xlu0 4
  %972 = vperm.xlu0 %971, %v21
  %v973 = vpop.permute.xlu0 %972
  %974 = vset.pattern.permute.xlu0 4
  %975 = vperm.xlu0 %974, %v22
  %v976 = vpop.permute.xlu0 %975
  %977 = vset.pattern.permute.xlu0 4
  %978 = vperm.xlu0 %977, %v23
  %v979 = vpop.permute.xlu0 %978
  %980 = vset.pattern.permute.xlu0 4
  %981 = vperm.xlu0 %980, %v24
  %v982 = vpop.permute.xlu0 %981
  %983 = vset.pattern.permute.xlu0 4
  %984 = vperm.xlu0 %983, %v25
  %v985 = vpop.permute.xlu0 %984
  %986 = vset.pattern.permute.xlu0 4
  %987 = vperm.xlu0 %986, %v26
  %v988 = vpop.permute.xlu0 %987
  %989 = vset.pattern.permute.xlu0 4
  %990 = vperm.xlu0 %989, %v27
  %v991 = vpop.permute.xlu0 %990
  %992 = vset.pattern.permute.xlu0 4
  %993 = vperm.xlu0 %992, %v28
  %v994 = vpop.permute.xlu0 %993
  %995 = vset.pattern.permute.xlu0 4
  %996 = vperm.xlu0 %995, %v29
  %v997 = vpop.permute.xlu0 %996
  %998 = vset.pattern.permute.xlu0 4
  %999 = vperm.xlu0 %998, %v30
  %v1000 = vpop.permute.xlu0 %999
  %1001 = vset.pattern.permute.xlu0 4
  %1002 = vperm.xlu0 %1001, %v31
  %v1003 = vpop.permute.xlu0 %1002
  %1004 = vset.pattern.permute.xlu0 4
  %1005 = vperm.xlu0 %1004, %v32
  %v1006 = vpop.permute.xlu0 %1005
  %1007 = vset.pattern.permute.xlu0 4
  %1008 = vperm.xlu0 %1007, %v33
  %v1009 = vpop.permute.xlu0 %1008
  %1010 = vset.pattern.permute.xlu0 4
  %1011 = vperm.xlu0 %1010, %v34
  %v1012 = vpop.permute.xlu0 %1011
  %1013 = vset.pattern.permute.xlu0 4
  %1014 = vperm.xlu0 %1013, %v35
  %v1015 = vpop.permute.xlu0 %1014
  %1016 = vset.pattern.permute.xlu0 4
  %1017 = vperm.xlu0 %1016, %v36
  %v1018 = vpop.permute.xlu0 %1017
  %1019 = vset.pattern.permute.xlu0 4
  %1020 = vperm.xlu0 %1019, %v37
  %v1021 = vpop.permute.xlu0 %1020
  %1022 = vset.pattern.permute.xlu0 4
  %1023 = vperm.xlu0 %1022, %v38
  %v1024 = vpop.permute.xlu0 %1023
  %1025 = vset.pattern.permute.xlu0 4
  %1026 = vperm.xlu0 %1025, %v39
  %v1027 = vpop.permute.xlu0 %1026
  %1028 = vset.pattern.permute.xlu0 4
  %1029 = vperm.xlu0 %1028, %v40
  %v1030 = vpop.permute.xlu0 %1029
  %1031 = vset.pattern.permute.xlu0 4
  %1032 = vperm.xlu0 %1031, %v41
  %v1033 = vpop.permute.xlu0 %1032
  %1034 = vset.pattern.permute.xlu0 4
  %1035 = vperm.xlu0 %1034, %v42
  %v1036 = vpop.permute.xlu0 %1035
  %vm1037 = vcmp.eq.s32.totalorder %v943, %v44
  %vm1038 = vcmp.eq.s32.totalorder %v946, %v44
  %vm1039 = vcmp.eq.s32.totalorder %v949, %v44
  %vm1040 = vcmp.eq.s32.totalorder %v952, %v44
  %vm1041 = vcmp.eq.s32.totalorder %v955, %v44
  %vm1042 = vcmp.eq.s32.totalorder %v958, %v44
  %vm1043 = vcmp.eq.s32.totalorder %v961, %v44
  %vm1044 = vcmp.eq.s32.totalorder %v964, %v44
  %vm1045 = vcmp.eq.s32.totalorder %v967, %v44
  %vm1046 = vcmp.eq.s32.totalorder %v970, %v44
  %vm1047 = vcmp.eq.s32.totalorder %v973, %v44
  %vm1048 = vcmp.eq.s32.totalorder %v976, %v44
  %vm1049 = vcmp.eq.s32.totalorder %v979, %v44
  %vm1050 = vcmp.eq.s32.totalorder %v982, %v44
  %vm1051 = vcmp.eq.s32.totalorder %v985, %v44
  %vm1052 = vcmp.eq.s32.totalorder %v988, %v44
  %vm1053 = vcmp.eq.s32.totalorder %v991, %v44
  %vm1054 = vcmp.eq.s32.totalorder %v994, %v44
  %vm1055 = vcmp.eq.s32.totalorder %v997, %v44
  %vm1056 = vcmp.eq.s32.totalorder %v1000, %v44
  %vm1057 = vcmp.eq.s32.totalorder %v1003, %v44
  %vm1058 = vcmp.eq.s32.totalorder %v1006, %v44
  %vm1059 = vcmp.eq.s32.totalorder %v1009, %v44
  %vm1060 = vcmp.eq.s32.totalorder %v1012, %v44
  %vm1061 = vcmp.eq.s32.totalorder %v1015, %v44
  %vm1062 = vcmp.eq.s32.totalorder %v1018, %v44
  %vm1063 = vcmp.eq.s32.totalorder %v1021, %v44
  %vm1064 = vcmp.eq.s32.totalorder %v1024, %v44
  %vm1065 = vcmp.eq.s32.totalorder %v1027, %v44
  %vm1066 = vcmp.eq.s32.totalorder %v1030, %v44
  %vm1067 = vcmp.eq.s32.totalorder %v1033, %v44
  %vm1068 = vcmp.eq.s32.totalorder %v1036, %v44
  %v1069 = vsel %vm1037, 1, 0
  %v1070 = vsel %vm1038, 1, 0
  %v1071 = vsel %vm1039, 1, 0
  %v1072 = vsel %vm1040, 1, 0
  %v1073 = vsel %vm1041, 1, 0
  %v1074 = vsel %vm1042, 1, 0
  %v1075 = vsel %vm1043, 1, 0
  %v1076 = vsel %vm1044, 1, 0
  %v1077 = vsel %vm1045, 1, 0
  %v1078 = vsel %vm1046, 1, 0
  %v1079 = vsel %vm1047, 1, 0
  %v1080 = vsel %vm1048, 1, 0
  %v1081 = vsel %vm1049, 1, 0
  %v1082 = vsel %vm1050, 1, 0
  %v1083 = vsel %vm1051, 1, 0
  %v1084 = vsel %vm1052, 1, 0
  %v1085 = vsel %vm1053, 1, 0
  %v1086 = vsel %vm1054, 1, 0
  %v1087 = vsel %vm1055, 1, 0
  %v1088 = vsel %vm1056, 1, 0
  %v1089 = vsel %vm1057, 1, 0
  %v1090 = vsel %vm1058, 1, 0
  %v1091 = vsel %vm1059, 1, 0
  %v1092 = vsel %vm1060, 1, 0
  %v1093 = vsel %vm1061, 1, 0
  %v1094 = vsel %vm1062, 1, 0
  %v1095 = vsel %vm1063, 1, 0
  %v1096 = vsel %vm1064, 1, 0
  %v1097 = vsel %vm1065, 1, 0
  %v1098 = vsel %vm1066, 1, 0
  %v1099 = vsel %vm1067, 1, 0
  %v1100 = vsel %vm1068, 1, 0
  %v1101 = vcvt.s32.f32 %v1069
  %v1102 = vcvt.s32.f32 %v1070
  %v1103 = vcvt.s32.f32 %v1071
  %v1104 = vcvt.s32.f32 %v1072
  %v1105 = vcvt.s32.f32 %v1073
  %v1106 = vcvt.s32.f32 %v1074
  %v1107 = vcvt.s32.f32 %v1075
  %v1108 = vcvt.s32.f32 %v1076
  %v1109 = vcvt.s32.f32 %v1077
  %v1110 = vcvt.s32.f32 %v1078
  %v1111 = vcvt.s32.f32 %v1079
  %v1112 = vcvt.s32.f32 %v1080
  %v1113 = vcvt.s32.f32 %v1081
  %v1114 = vcvt.s32.f32 %v1082
  %v1115 = vcvt.s32.f32 %v1083
  %v1116 = vcvt.s32.f32 %v1084
  %v1117 = vcvt.s32.f32 %v1085
  %v1118 = vcvt.s32.f32 %v1086
  %v1119 = vcvt.s32.f32 %v1087
  %v1120 = vcvt.s32.f32 %v1088
  %v1121 = vcvt.s32.f32 %v1089
  %v1122 = vcvt.s32.f32 %v1090
  %v1123 = vcvt.s32.f32 %v1091
  %v1124 = vcvt.s32.f32 %v1092
  %v1125 = vcvt.s32.f32 %v1093
  %v1126 = vcvt.s32.f32 %v1094
  %v1127 = vcvt.s32.f32 %v1095
  %v1128 = vcvt.s32.f32 %v1096
  %v1129 = vcvt.s32.f32 %v1097
  %v1130 = vcvt.s32.f32 %v1098
  %v1131 = vcvt.s32.f32 %v1099
  %v1132 = vcvt.s32.f32 %v1100
  %v1133 = vadd.f32 %v909, %v1101
  %v1134 = vadd.f32 %v910, %v1102
  %v1135 = vadd.f32 %v911, %v1103
  %v1136 = vadd.f32 %v912, %v1104
  %v1137 = vadd.f32 %v913, %v1105
  %v1138 = vadd.f32 %v914, %v1106
  %v1139 = vadd.f32 %v915, %v1107
  %v1140 = vadd.f32 %v916, %v1108
  %v1141 = vadd.f32 %v917, %v1109
  %v1142 = vadd.f32 %v918, %v1110
  %v1143 = vadd.f32 %v919, %v1111
  %v1144 = vadd.f32 %v920, %v1112
  %v1145 = vadd.f32 %v921, %v1113
  %v1146 = vadd.f32 %v922, %v1114
  %v1147 = vadd.f32 %v923, %v1115
  %v1148 = vadd.f32 %v924, %v1116
  %v1149 = vadd.f32 %v925, %v1117
  %v1150 = vadd.f32 %v926, %v1118
  %v1151 = vadd.f32 %v927, %v1119
  %v1152 = vadd.f32 %v928, %v1120
  %v1153 = vadd.f32 %v929, %v1121
  %v1154 = vadd.f32 %v930, %v1122
  %v1155 = vadd.f32 %v931, %v1123
  %v1156 = vadd.f32 %v932, %v1124
  %v1157 = vadd.f32 %v933, %v1125
  %v1158 = vadd.f32 %v934, %v1126
  %v1159 = vadd.f32 %v935, %v1127
  %v1160 = vadd.f32 %v936, %v1128
  %v1161 = vadd.f32 %v937, %v1129
  %v1162 = vadd.f32 %v938, %v1130
  %v1163 = vadd.f32 %v939, %v1131
  %v1164 = vadd.f32 %v940, %v1132
  %1165 = vset.pattern.permute.xlu0 5
  %1166 = vperm.xlu0 %1165, %v11
  %v1167 = vpop.permute.xlu0 %1166
  %1168 = vset.pattern.permute.xlu0 5
  %1169 = vperm.xlu0 %1168, %v12
  %v1170 = vpop.permute.xlu0 %1169
  %1171 = vset.pattern.permute.xlu0 5
  %1172 = vperm.xlu0 %1171, %v13
  %v1173 = vpop.permute.xlu0 %1172
  %1174 = vset.pattern.permute.xlu0 5
  %1175 = vperm.xlu0 %1174, %v14
  %v1176 = vpop.permute.xlu0 %1175
  %1177 = vset.pattern.permute.xlu0 5
  %1178 = vperm.xlu0 %1177, %v15
  %v1179 = vpop.permute.xlu0 %1178
  %1180 = vset.pattern.permute.xlu0 5
  %1181 = vperm.xlu0 %1180, %v16
  %v1182 = vpop.permute.xlu0 %1181
  %1183 = vset.pattern.permute.xlu0 5
  %1184 = vperm.xlu0 %1183, %v17
  %v1185 = vpop.permute.xlu0 %1184
  %1186 = vset.pattern.permute.xlu0 5
  %1187 = vperm.xlu0 %1186, %v18
  %v1188 = vpop.permute.xlu0 %1187
  %1189 = vset.pattern.permute.xlu0 5
  %1190 = vperm.xlu0 %1189, %v19
  %v1191 = vpop.permute.xlu0 %1190
  %1192 = vset.pattern.permute.xlu0 5
  %1193 = vperm.xlu0 %1192, %v20
  %v1194 = vpop.permute.xlu0 %1193
  %1195 = vset.pattern.permute.xlu0 5
  %1196 = vperm.xlu0 %1195, %v21
  %v1197 = vpop.permute.xlu0 %1196
  %1198 = vset.pattern.permute.xlu0 5
  %1199 = vperm.xlu0 %1198, %v22
  %v1200 = vpop.permute.xlu0 %1199
  %1201 = vset.pattern.permute.xlu0 5
  %1202 = vperm.xlu0 %1201, %v23
  %v1203 = vpop.permute.xlu0 %1202
  %1204 = vset.pattern.permute.xlu0 5
  %1205 = vperm.xlu0 %1204, %v24
  %v1206 = vpop.permute.xlu0 %1205
  %1207 = vset.pattern.permute.xlu0 5
  %1208 = vperm.xlu0 %1207, %v25
  %v1209 = vpop.permute.xlu0 %1208
  %1210 = vset.pattern.permute.xlu0 5
  %1211 = vperm.xlu0 %1210, %v26
  %v1212 = vpop.permute.xlu0 %1211
  %1213 = vset.pattern.permute.xlu0 5
  %1214 = vperm.xlu0 %1213, %v27
  %v1215 = vpop.permute.xlu0 %1214
  %1216 = vset.pattern.permute.xlu0 5
  %1217 = vperm.xlu0 %1216, %v28
  %v1218 = vpop.permute.xlu0 %1217
  %1219 = vset.pattern.permute.xlu0 5
  %1220 = vperm.xlu0 %1219, %v29
  %v1221 = vpop.permute.xlu0 %1220
  %1222 = vset.pattern.permute.xlu0 5
  %1223 = vperm.xlu0 %1222, %v30
  %v1224 = vpop.permute.xlu0 %1223
  %1225 = vset.pattern.permute.xlu0 5
  %1226 = vperm.xlu0 %1225, %v31
  %v1227 = vpop.permute.xlu0 %1226
  %1228 = vset.pattern.permute.xlu0 5
  %1229 = vperm.xlu0 %1228, %v32
  %v1230 = vpop.permute.xlu0 %1229
  %1231 = vset.pattern.permute.xlu0 5
  %1232 = vperm.xlu0 %1231, %v33
  %v1233 = vpop.permute.xlu0 %1232
  %1234 = vset.pattern.permute.xlu0 5
  %1235 = vperm.xlu0 %1234, %v34
  %v1236 = vpop.permute.xlu0 %1235
  %1237 = vset.pattern.permute.xlu0 5
  %1238 = vperm.xlu0 %1237, %v35
  %v1239 = vpop.permute.xlu0 %1238
  %1240 = vset.pattern.permute.xlu0 5
  %1241 = vperm.xlu0 %1240, %v36
  %v1242 = vpop.permute.xlu0 %1241
  %1243 = vset.pattern.permute.xlu0 5
  %1244 = vperm.xlu0 %1243, %v37
  %v1245 = vpop.permute.xlu0 %1244
  %1246 = vset.pattern.permute.xlu0 5
  %1247 = vperm.xlu0 %1246, %v38
  %v1248 = vpop.permute.xlu0 %1247
  %1249 = vset.pattern.permute.xlu0 5
  %1250 = vperm.xlu0 %1249, %v39
  %v1251 = vpop.permute.xlu0 %1250
  %1252 = vset.pattern.permute.xlu0 5
  %1253 = vperm.xlu0 %1252, %v40
  %v1254 = vpop.permute.xlu0 %1253
  %1255 = vset.pattern.permute.xlu0 5
  %1256 = vperm.xlu0 %1255, %v41
  %v1257 = vpop.permute.xlu0 %1256
  %1258 = vset.pattern.permute.xlu0 5
  %1259 = vperm.xlu0 %1258, %v42
  %v1260 = vpop.permute.xlu0 %1259
  %vm1261 = vcmp.eq.s32.totalorder %v1167, %v44
  %vm1262 = vcmp.eq.s32.totalorder %v1170, %v44
  %vm1263 = vcmp.eq.s32.totalorder %v1173, %v44
  %vm1264 = vcmp.eq.s32.totalorder %v1176, %v44
  %vm1265 = vcmp.eq.s32.totalorder %v1179, %v44
  %vm1266 = vcmp.eq.s32.totalorder %v1182, %v44
  %vm1267 = vcmp.eq.s32.totalorder %v1185, %v44
  %vm1268 = vcmp.eq.s32.totalorder %v1188, %v44
  %vm1269 = vcmp.eq.s32.totalorder %v1191, %v44
  %vm1270 = vcmp.eq.s32.totalorder %v1194, %v44
  %vm1271 = vcmp.eq.s32.totalorder %v1197, %v44
  %vm1272 = vcmp.eq.s32.totalorder %v1200, %v44
  %vm1273 = vcmp.eq.s32.totalorder %v1203, %v44
  %vm1274 = vcmp.eq.s32.totalorder %v1206, %v44
  %vm1275 = vcmp.eq.s32.totalorder %v1209, %v44
  %vm1276 = vcmp.eq.s32.totalorder %v1212, %v44
  %vm1277 = vcmp.eq.s32.totalorder %v1215, %v44
  %vm1278 = vcmp.eq.s32.totalorder %v1218, %v44
  %vm1279 = vcmp.eq.s32.totalorder %v1221, %v44
  %vm1280 = vcmp.eq.s32.totalorder %v1224, %v44
  %vm1281 = vcmp.eq.s32.totalorder %v1227, %v44
  %vm1282 = vcmp.eq.s32.totalorder %v1230, %v44
  %vm1283 = vcmp.eq.s32.totalorder %v1233, %v44
  %vm1284 = vcmp.eq.s32.totalorder %v1236, %v44
  %vm1285 = vcmp.eq.s32.totalorder %v1239, %v44
  %vm1286 = vcmp.eq.s32.totalorder %v1242, %v44
  %vm1287 = vcmp.eq.s32.totalorder %v1245, %v44
  %vm1288 = vcmp.eq.s32.totalorder %v1248, %v44
  %vm1289 = vcmp.eq.s32.totalorder %v1251, %v44
  %vm1290 = vcmp.eq.s32.totalorder %v1254, %v44
  %vm1291 = vcmp.eq.s32.totalorder %v1257, %v44
  %vm1292 = vcmp.eq.s32.totalorder %v1260, %v44
  %v1293 = vsel %vm1261, 1, 0
  %v1294 = vsel %vm1262, 1, 0
  %v1295 = vsel %vm1263, 1, 0
  %v1296 = vsel %vm1264, 1, 0
  %v1297 = vsel %vm1265, 1, 0
  %v1298 = vsel %vm1266, 1, 0
  %v1299 = vsel %vm1267, 1, 0
  %v1300 = vsel %vm1268, 1, 0
  %v1301 = vsel %vm1269, 1, 0
  %v1302 = vsel %vm1270, 1, 0
  %v1303 = vsel %vm1271, 1, 0
  %v1304 = vsel %vm1272, 1, 0
  %v1305 = vsel %vm1273, 1, 0
  %v1306 = vsel %vm1274, 1, 0
  %v1307 = vsel %vm1275, 1, 0
  %v1308 = vsel %vm1276, 1, 0
  %v1309 = vsel %vm1277, 1, 0
  %v1310 = vsel %vm1278, 1, 0
  %v1311 = vsel %vm1279, 1, 0
  %v1312 = vsel %vm1280, 1, 0
  %v1313 = vsel %vm1281, 1, 0
  %v1314 = vsel %vm1282, 1, 0
  %v1315 = vsel %vm1283, 1, 0
  %v1316 = vsel %vm1284, 1, 0
  %v1317 = vsel %vm1285, 1, 0
  %v1318 = vsel %vm1286, 1, 0
  %v1319 = vsel %vm1287, 1, 0
  %v1320 = vsel %vm1288, 1, 0
  %v1321 = vsel %vm1289, 1, 0
  %v1322 = vsel %vm1290, 1, 0
  %v1323 = vsel %vm1291, 1, 0
  %v1324 = vsel %vm1292, 1, 0
  %v1325 = vcvt.s32.f32 %v1293
  %v1326 = vcvt.s32.f32 %v1294
  %v1327 = vcvt.s32.f32 %v1295
  %v1328 = vcvt.s32.f32 %v1296
  %v1329 = vcvt.s32.f32 %v1297
  %v1330 = vcvt.s32.f32 %v1298
  %v1331 = vcvt.s32.f32 %v1299
  %v1332 = vcvt.s32.f32 %v1300
  %v1333 = vcvt.s32.f32 %v1301
  %v1334 = vcvt.s32.f32 %v1302
  %v1335 = vcvt.s32.f32 %v1303
  %v1336 = vcvt.s32.f32 %v1304
  %v1337 = vcvt.s32.f32 %v1305
  %v1338 = vcvt.s32.f32 %v1306
  %v1339 = vcvt.s32.f32 %v1307
  %v1340 = vcvt.s32.f32 %v1308
  %v1341 = vcvt.s32.f32 %v1309
  %v1342 = vcvt.s32.f32 %v1310
  %v1343 = vcvt.s32.f32 %v1311
  %v1344 = vcvt.s32.f32 %v1312
  %v1345 = vcvt.s32.f32 %v1313
  %v1346 = vcvt.s32.f32 %v1314
  %v1347 = vcvt.s32.f32 %v1315
  %v1348 = vcvt.s32.f32 %v1316
  %v1349 = vcvt.s32.f32 %v1317
  %v1350 = vcvt.s32.f32 %v1318
  %v1351 = vcvt.s32.f32 %v1319
  %v1352 = vcvt.s32.f32 %v1320
  %v1353 = vcvt.s32.f32 %v1321
  %v1354 = vcvt.s32.f32 %v1322
  %v1355 = vcvt.s32.f32 %v1323
  %v1356 = vcvt.s32.f32 %v1324
  %v1357 = vadd.f32 %v1133, %v1325
  %v1358 = vadd.f32 %v1134, %v1326
  %v1359 = vadd.f32 %v1135, %v1327
  %v1360 = vadd.f32 %v1136, %v1328
  %v1361 = vadd.f32 %v1137, %v1329
  %v1362 = vadd.f32 %v1138, %v1330
  %v1363 = vadd.f32 %v1139, %v1331
  %v1364 = vadd.f32 %v1140, %v1332
  %v1365 = vadd.f32 %v1141, %v1333
  %v1366 = vadd.f32 %v1142, %v1334
  %v1367 = vadd.f32 %v1143, %v1335
  %v1368 = vadd.f32 %v1144, %v1336
  %v1369 = vadd.f32 %v1145, %v1337
  %v1370 = vadd.f32 %v1146, %v1338
  %v1371 = vadd.f32 %v1147, %v1339
  %v1372 = vadd.f32 %v1148, %v1340
  %v1373 = vadd.f32 %v1149, %v1341
  %v1374 = vadd.f32 %v1150, %v1342
  %v1375 = vadd.f32 %v1151, %v1343
  %v1376 = vadd.f32 %v1152, %v1344
  %v1377 = vadd.f32 %v1153, %v1345
  %v1378 = vadd.f32 %v1154, %v1346
  %v1379 = vadd.f32 %v1155, %v1347
  %v1380 = vadd.f32 %v1156, %v1348
  %v1381 = vadd.f32 %v1157, %v1349
  %v1382 = vadd.f32 %v1158, %v1350
  %v1383 = vadd.f32 %v1159, %v1351
  %v1384 = vadd.f32 %v1160, %v1352
  %v1385 = vadd.f32 %v1161, %v1353
  %v1386 = vadd.f32 %v1162, %v1354
  %v1387 = vadd.f32 %v1163, %v1355
  %v1388 = vadd.f32 %v1164, %v1356
  %1389 = vset.pattern.permute.xlu0 6
  %1390 = vperm.xlu0 %1389, %v11
  %v1391 = vpop.permute.xlu0 %1390
  %1392 = vset.pattern.permute.xlu0 6
  %1393 = vperm.xlu0 %1392, %v12
  %v1394 = vpop.permute.xlu0 %1393
  %1395 = vset.pattern.permute.xlu0 6
  %1396 = vperm.xlu0 %1395, %v13
  %v1397 = vpop.permute.xlu0 %1396
  %1398 = vset.pattern.permute.xlu0 6
  %1399 = vperm.xlu0 %1398, %v14
  %v1400 = vpop.permute.xlu0 %1399
  %1401 = vset.pattern.permute.xlu0 6
  %1402 = vperm.xlu0 %1401, %v15
  %v1403 = vpop.permute.xlu0 %1402
  %1404 = vset.pattern.permute.xlu0 6
  %1405 = vperm.xlu0 %1404, %v16
  %v1406 = vpop.permute.xlu0 %1405
  %1407 = vset.pattern.permute.xlu0 6
  %1408 = vperm.xlu0 %1407, %v17
  %v1409 = vpop.permute.xlu0 %1408
  %1410 = vset.pattern.permute.xlu0 6
  %1411 = vperm.xlu0 %1410, %v18
  %v1412 = vpop.permute.xlu0 %1411
  %1413 = vset.pattern.permute.xlu0 6
  %1414 = vperm.xlu0 %1413, %v19
  %v1415 = vpop.permute.xlu0 %1414
  %1416 = vset.pattern.permute.xlu0 6
  %1417 = vperm.xlu0 %1416, %v20
  %v1418 = vpop.permute.xlu0 %1417
  %1419 = vset.pattern.permute.xlu0 6
  %1420 = vperm.xlu0 %1419, %v21
  %v1421 = vpop.permute.xlu0 %1420
  %1422 = vset.pattern.permute.xlu0 6
  %1423 = vperm.xlu0 %1422, %v22
  %v1424 = vpop.permute.xlu0 %1423
  %1425 = vset.pattern.permute.xlu0 6
  %1426 = vperm.xlu0 %1425, %v23
  %v1427 = vpop.permute.xlu0 %1426
  %1428 = vset.pattern.permute.xlu0 6
  %1429 = vperm.xlu0 %1428, %v24
  %v1430 = vpop.permute.xlu0 %1429
  %1431 = vset.pattern.permute.xlu0 6
  %1432 = vperm.xlu0 %1431, %v25
  %v1433 = vpop.permute.xlu0 %1432
  %1434 = vset.pattern.permute.xlu0 6
  %1435 = vperm.xlu0 %1434, %v26
  %v1436 = vpop.permute.xlu0 %1435
  %1437 = vset.pattern.permute.xlu0 6
  %1438 = vperm.xlu0 %1437, %v27
  %v1439 = vpop.permute.xlu0 %1438
  %1440 = vset.pattern.permute.xlu0 6
  %1441 = vperm.xlu0 %1440, %v28
  %v1442 = vpop.permute.xlu0 %1441
  %1443 = vset.pattern.permute.xlu0 6
  %1444 = vperm.xlu0 %1443, %v29
  %v1445 = vpop.permute.xlu0 %1444
  %1446 = vset.pattern.permute.xlu0 6
  %1447 = vperm.xlu0 %1446, %v30
  %v1448 = vpop.permute.xlu0 %1447
  %1449 = vset.pattern.permute.xlu0 6
  %1450 = vperm.xlu0 %1449, %v31
  %v1451 = vpop.permute.xlu0 %1450
  %1452 = vset.pattern.permute.xlu0 6
  %1453 = vperm.xlu0 %1452, %v32
  %v1454 = vpop.permute.xlu0 %1453
  %1455 = vset.pattern.permute.xlu0 6
  %1456 = vperm.xlu0 %1455, %v33
  %v1457 = vpop.permute.xlu0 %1456
  %1458 = vset.pattern.permute.xlu0 6
  %1459 = vperm.xlu0 %1458, %v34
  %v1460 = vpop.permute.xlu0 %1459
  %1461 = vset.pattern.permute.xlu0 6
  %1462 = vperm.xlu0 %1461, %v35
  %v1463 = vpop.permute.xlu0 %1462
  %1464 = vset.pattern.permute.xlu0 6
  %1465 = vperm.xlu0 %1464, %v36
  %v1466 = vpop.permute.xlu0 %1465
  %1467 = vset.pattern.permute.xlu0 6
  %1468 = vperm.xlu0 %1467, %v37
  %v1469 = vpop.permute.xlu0 %1468
  %1470 = vset.pattern.permute.xlu0 6
  %1471 = vperm.xlu0 %1470, %v38
  %v1472 = vpop.permute.xlu0 %1471
  %1473 = vset.pattern.permute.xlu0 6
  %1474 = vperm.xlu0 %1473, %v39
  %v1475 = vpop.permute.xlu0 %1474
  %1476 = vset.pattern.permute.xlu0 6
  %1477 = vperm.xlu0 %1476, %v40
  %v1478 = vpop.permute.xlu0 %1477
  %1479 = vset.pattern.permute.xlu0 6
  %1480 = vperm.xlu0 %1479, %v41
  %v1481 = vpop.permute.xlu0 %1480
  %1482 = vset.pattern.permute.xlu0 6
  %1483 = vperm.xlu0 %1482, %v42
  %v1484 = vpop.permute.xlu0 %1483
  %vm1485 = vcmp.eq.s32.totalorder %v1391, %v44
  %vm1486 = vcmp.eq.s32.totalorder %v1394, %v44
  %vm1487 = vcmp.eq.s32.totalorder %v1397, %v44
  %vm1488 = vcmp.eq.s32.totalorder %v1400, %v44
  %vm1489 = vcmp.eq.s32.totalorder %v1403, %v44
  %vm1490 = vcmp.eq.s32.totalorder %v1406, %v44
  %vm1491 = vcmp.eq.s32.totalorder %v1409, %v44
  %vm1492 = vcmp.eq.s32.totalorder %v1412, %v44
  %vm1493 = vcmp.eq.s32.totalorder %v1415, %v44
  %vm1494 = vcmp.eq.s32.totalorder %v1418, %v44
  %vm1495 = vcmp.eq.s32.totalorder %v1421, %v44
  %vm1496 = vcmp.eq.s32.totalorder %v1424, %v44
  %vm1497 = vcmp.eq.s32.totalorder %v1427, %v44
  %vm1498 = vcmp.eq.s32.totalorder %v1430, %v44
  %vm1499 = vcmp.eq.s32.totalorder %v1433, %v44
  %vm1500 = vcmp.eq.s32.totalorder %v1436, %v44
  %vm1501 = vcmp.eq.s32.totalorder %v1439, %v44
  %vm1502 = vcmp.eq.s32.totalorder %v1442, %v44
  %vm1503 = vcmp.eq.s32.totalorder %v1445, %v44
  %vm1504 = vcmp.eq.s32.totalorder %v1448, %v44
  %vm1505 = vcmp.eq.s32.totalorder %v1451, %v44
  %vm1506 = vcmp.eq.s32.totalorder %v1454, %v44
  %vm1507 = vcmp.eq.s32.totalorder %v1457, %v44
  %vm1508 = vcmp.eq.s32.totalorder %v1460, %v44
  %vm1509 = vcmp.eq.s32.totalorder %v1463, %v44
  %vm1510 = vcmp.eq.s32.totalorder %v1466, %v44
  %vm1511 = vcmp.eq.s32.totalorder %v1469, %v44
  %vm1512 = vcmp.eq.s32.totalorder %v1472, %v44
  %vm1513 = vcmp.eq.s32.totalorder %v1475, %v44
  %vm1514 = vcmp.eq.s32.totalorder %v1478, %v44
  %vm1515 = vcmp.eq.s32.totalorder %v1481, %v44
  %vm1516 = vcmp.eq.s32.totalorder %v1484, %v44
  %v1517 = vsel %vm1485, 1, 0
  %v1518 = vsel %vm1486, 1, 0
  %v1519 = vsel %vm1487, 1, 0
  %v1520 = vsel %vm1488, 1, 0
  %v1521 = vsel %vm1489, 1, 0
  %v1522 = vsel %vm1490, 1, 0
  %v1523 = vsel %vm1491, 1, 0
  %v1524 = vsel %vm1492, 1, 0
  %v1525 = vsel %vm1493, 1, 0
  %v1526 = vsel %vm1494, 1, 0
  %v1527 = vsel %vm1495, 1, 0
  %v1528 = vsel %vm1496, 1, 0
  %v1529 = vsel %vm1497, 1, 0
  %v1530 = vsel %vm1498, 1, 0
  %v1531 = vsel %vm1499, 1, 0
  %v1532 = vsel %vm1500, 1, 0
  %v1533 = vsel %vm1501, 1, 0
  %v1534 = vsel %vm1502, 1, 0
  %v1535 = vsel %vm1503, 1, 0
  %v1536 = vsel %vm1504, 1, 0
  %v1537 = vsel %vm1505, 1, 0
  %v1538 = vsel %vm1506, 1, 0
  %v1539 = vsel %vm1507, 1, 0
  %v1540 = vsel %vm1508, 1, 0
  %v1541 = vsel %vm1509, 1, 0
  %v1542 = vsel %vm1510, 1, 0
  %v1543 = vsel %vm1511, 1, 0
  %v1544 = vsel %vm1512, 1, 0
  %v1545 = vsel %vm1513, 1, 0
  %v1546 = vsel %vm1514, 1, 0
  %v1547 = vsel %vm1515, 1, 0
  %v1548 = vsel %vm1516, 1, 0
  %v1549 = vcvt.s32.f32 %v1517
  %v1550 = vcvt.s32.f32 %v1518
  %v1551 = vcvt.s32.f32 %v1519
  %v1552 = vcvt.s32.f32 %v1520
  %v1553 = vcvt.s32.f32 %v1521
  %v1554 = vcvt.s32.f32 %v1522
  %v1555 = vcvt.s32.f32 %v1523
  %v1556 = vcvt.s32.f32 %v1524
  %v1557 = vcvt.s32.f32 %v1525
  %v1558 = vcvt.s32.f32 %v1526
  %v1559 = vcvt.s32.f32 %v1527
  %v1560 = vcvt.s32.f32 %v1528
  %v1561 = vcvt.s32.f32 %v1529
  %v1562 = vcvt.s32.f32 %v1530
  %v1563 = vcvt.s32.f32 %v1531
  %v1564 = vcvt.s32.f32 %v1532
  %v1565 = vcvt.s32.f32 %v1533
  %v1566 = vcvt.s32.f32 %v1534
  %v1567 = vcvt.s32.f32 %v1535
  %v1568 = vcvt.s32.f32 %v1536
  %v1569 = vcvt.s32.f32 %v1537
  %v1570 = vcvt.s32.f32 %v1538
  %v1571 = vcvt.s32.f32 %v1539
  %v1572 = vcvt.s32.f32 %v1540
  %v1573 = vcvt.s32.f32 %v1541
  %v1574 = vcvt.s32.f32 %v1542
  %v1575 = vcvt.s32.f32 %v1543
  %v1576 = vcvt.s32.f32 %v1544
  %v1577 = vcvt.s32.f32 %v1545
  %v1578 = vcvt.s32.f32 %v1546
  %v1579 = vcvt.s32.f32 %v1547
  %v1580 = vcvt.s32.f32 %v1548
  %v1581 = vadd.f32 %v1357, %v1549
  %v1582 = vadd.f32 %v1358, %v1550
  %v1583 = vadd.f32 %v1359, %v1551
  %v1584 = vadd.f32 %v1360, %v1552
  %v1585 = vadd.f32 %v1361, %v1553
  %v1586 = vadd.f32 %v1362, %v1554
  %v1587 = vadd.f32 %v1363, %v1555
  %v1588 = vadd.f32 %v1364, %v1556
  %v1589 = vadd.f32 %v1365, %v1557
  %v1590 = vadd.f32 %v1366, %v1558
  %v1591 = vadd.f32 %v1367, %v1559
  %v1592 = vadd.f32 %v1368, %v1560
  %v1593 = vadd.f32 %v1369, %v1561
  %v1594 = vadd.f32 %v1370, %v1562
  %v1595 = vadd.f32 %v1371, %v1563
  %v1596 = vadd.f32 %v1372, %v1564
  %v1597 = vadd.f32 %v1373, %v1565
  %v1598 = vadd.f32 %v1374, %v1566
  %v1599 = vadd.f32 %v1375, %v1567
  %v1600 = vadd.f32 %v1376, %v1568
  %v1601 = vadd.f32 %v1377, %v1569
  %v1602 = vadd.f32 %v1378, %v1570
  %v1603 = vadd.f32 %v1379, %v1571
  %v1604 = vadd.f32 %v1380, %v1572
  %v1605 = vadd.f32 %v1381, %v1573
  %v1606 = vadd.f32 %v1382, %v1574
  %v1607 = vadd.f32 %v1383, %v1575
  %v1608 = vadd.f32 %v1384, %v1576
  %v1609 = vadd.f32 %v1385, %v1577
  %v1610 = vadd.f32 %v1386, %v1578
  %v1611 = vadd.f32 %v1387, %v1579
  %v1612 = vadd.f32 %v1388, %v1580
  %1613 = vset.pattern.permute.xlu0 7
  %1614 = vperm.xlu0 %1613, %v11
  %v1615 = vpop.permute.xlu0 %1614
  %1616 = vset.pattern.permute.xlu0 7
  %1617 = vperm.xlu0 %1616, %v12
  %v1618 = vpop.permute.xlu0 %1617
  %1619 = vset.pattern.permute.xlu0 7
  %1620 = vperm.xlu0 %1619, %v13
  %v1621 = vpop.permute.xlu0 %1620
  %1622 = vset.pattern.permute.xlu0 7
  %1623 = vperm.xlu0 %1622, %v14
  %v1624 = vpop.permute.xlu0 %1623
  %1625 = vset.pattern.permute.xlu0 7
  %1626 = vperm.xlu0 %1625, %v15
  %v1627 = vpop.permute.xlu0 %1626
  %1628 = vset.pattern.permute.xlu0 7
  %1629 = vperm.xlu0 %1628, %v16
  %v1630 = vpop.permute.xlu0 %1629
  %1631 = vset.pattern.permute.xlu0 7
  %1632 = vperm.xlu0 %1631, %v17
  %v1633 = vpop.permute.xlu0 %1632
  %1634 = vset.pattern.permute.xlu0 7
  %1635 = vperm.xlu0 %1634, %v18
  %v1636 = vpop.permute.xlu0 %1635
  %1637 = vset.pattern.permute.xlu0 7
  %1638 = vperm.xlu0 %1637, %v19
  %v1639 = vpop.permute.xlu0 %1638
  %1640 = vset.pattern.permute.xlu0 7
  %1641 = vperm.xlu0 %1640, %v20
  %v1642 = vpop.permute.xlu0 %1641
  %1643 = vset.pattern.permute.xlu0 7
  %1644 = vperm.xlu0 %1643, %v21
  %v1645 = vpop.permute.xlu0 %1644
  %1646 = vset.pattern.permute.xlu0 7
  %1647 = vperm.xlu0 %1646, %v22
  %v1648 = vpop.permute.xlu0 %1647
  %1649 = vset.pattern.permute.xlu0 7
  %1650 = vperm.xlu0 %1649, %v23
  %v1651 = vpop.permute.xlu0 %1650
  %1652 = vset.pattern.permute.xlu0 7
  %1653 = vperm.xlu0 %1652, %v24
  %v1654 = vpop.permute.xlu0 %1653
  %1655 = vset.pattern.permute.xlu0 7
  %1656 = vperm.xlu0 %1655, %v25
  %v1657 = vpop.permute.xlu0 %1656
  %1658 = vset.pattern.permute.xlu0 7
  %1659 = vperm.xlu0 %1658, %v26
  %v1660 = vpop.permute.xlu0 %1659
  %1661 = vset.pattern.permute.xlu0 7
  %1662 = vperm.xlu0 %1661, %v27
  %v1663 = vpop.permute.xlu0 %1662
  %1664 = vset.pattern.permute.xlu0 7
  %1665 = vperm.xlu0 %1664, %v28
  %v1666 = vpop.permute.xlu0 %1665
  %1667 = vset.pattern.permute.xlu0 7
  %1668 = vperm.xlu0 %1667, %v29
  %v1669 = vpop.permute.xlu0 %1668
  %1670 = vset.pattern.permute.xlu0 7
  %1671 = vperm.xlu0 %1670, %v30
  %v1672 = vpop.permute.xlu0 %1671
  %1673 = vset.pattern.permute.xlu0 7
  %1674 = vperm.xlu0 %1673, %v31
  %v1675 = vpop.permute.xlu0 %1674
  %1676 = vset.pattern.permute.xlu0 7
  %1677 = vperm.xlu0 %1676, %v32
  %v1678 = vpop.permute.xlu0 %1677
  %1679 = vset.pattern.permute.xlu0 7
  %1680 = vperm.xlu0 %1679, %v33
  %v1681 = vpop.permute.xlu0 %1680
  %1682 = vset.pattern.permute.xlu0 7
  %1683 = vperm.xlu0 %1682, %v34
  %v1684 = vpop.permute.xlu0 %1683
  %1685 = vset.pattern.permute.xlu0 7
  %1686 = vperm.xlu0 %1685, %v35
  %v1687 = vpop.permute.xlu0 %1686
  %1688 = vset.pattern.permute.xlu0 7
  %1689 = vperm.xlu0 %1688, %v36
  %v1690 = vpop.permute.xlu0 %1689
  %1691 = vset.pattern.permute.xlu0 7
  %1692 = vperm.xlu0 %1691, %v37
  %v1693 = vpop.permute.xlu0 %1692
  %1694 = vset.pattern.permute.xlu0 7
  %1695 = vperm.xlu0 %1694, %v38
  %v1696 = vpop.permute.xlu0 %1695
  %1697 = vset.pattern.permute.xlu0 7
  %1698 = vperm.xlu0 %1697, %v39
  %v1699 = vpop.permute.xlu0 %1698
  %1700 = vset.pattern.permute.xlu0 7
  %1701 = vperm.xlu0 %1700, %v40
  %v1702 = vpop.permute.xlu0 %1701
  %1703 = vset.pattern.permute.xlu0 7
  %1704 = vperm.xlu0 %1703, %v41
  %v1705 = vpop.permute.xlu0 %1704
  %1706 = vset.pattern.permute.xlu0 7
  %1707 = vperm.xlu0 %1706, %v42
  %v1708 = vpop.permute.xlu0 %1707
  %vm1709 = vcmp.eq.s32.totalorder %v1615, %v44
  %vm1710 = vcmp.eq.s32.totalorder %v1618, %v44
  %vm1711 = vcmp.eq.s32.totalorder %v1621, %v44
  %vm1712 = vcmp.eq.s32.totalorder %v1624, %v44
  %vm1713 = vcmp.eq.s32.totalorder %v1627, %v44
  %vm1714 = vcmp.eq.s32.totalorder %v1630, %v44
  %vm1715 = vcmp.eq.s32.totalorder %v1633, %v44
  %vm1716 = vcmp.eq.s32.totalorder %v1636, %v44
  %vm1717 = vcmp.eq.s32.totalorder %v1639, %v44
  %vm1718 = vcmp.eq.s32.totalorder %v1642, %v44
  %vm1719 = vcmp.eq.s32.totalorder %v1645, %v44
  %vm1720 = vcmp.eq.s32.totalorder %v1648, %v44
  %vm1721 = vcmp.eq.s32.totalorder %v1651, %v44
  %vm1722 = vcmp.eq.s32.totalorder %v1654, %v44
  %vm1723 = vcmp.eq.s32.totalorder %v1657, %v44
  %vm1724 = vcmp.eq.s32.totalorder %v1660, %v44
  %vm1725 = vcmp.eq.s32.totalorder %v1663, %v44
  %vm1726 = vcmp.eq.s32.totalorder %v1666, %v44
  %vm1727 = vcmp.eq.s32.totalorder %v1669, %v44
  %vm1728 = vcmp.eq.s32.totalorder %v1672, %v44
  %vm1729 = vcmp.eq.s32.totalorder %v1675, %v44
  %vm1730 = vcmp.eq.s32.totalorder %v1678, %v44
  %vm1731 = vcmp.eq.s32.totalorder %v1681, %v44
  %vm1732 = vcmp.eq.s32.totalorder %v1684, %v44
  %vm1733 = vcmp.eq.s32.totalorder %v1687, %v44
  %vm1734 = vcmp.eq.s32.totalorder %v1690, %v44
  %vm1735 = vcmp.eq.s32.totalorder %v1693, %v44
  %vm1736 = vcmp.eq.s32.totalorder %v1696, %v44
  %vm1737 = vcmp.eq.s32.totalorder %v1699, %v44
  %vm1738 = vcmp.eq.s32.totalorder %v1702, %v44
  %vm1739 = vcmp.eq.s32.totalorder %v1705, %v44
  %vm1740 = vcmp.eq.s32.totalorder %v1708, %v44
  %v1741 = vsel %vm1709, 1, 0
  %v1742 = vsel %vm1710, 1, 0
  %v1743 = vsel %vm1711, 1, 0
  %v1744 = vsel %vm1712, 1, 0
  %v1745 = vsel %vm1713, 1, 0
  %v1746 = vsel %vm1714, 1, 0
  %v1747 = vsel %vm1715, 1, 0
  %v1748 = vsel %vm1716, 1, 0
  %v1749 = vsel %vm1717, 1, 0
  %v1750 = vsel %vm1718, 1, 0
  %v1751 = vsel %vm1719, 1, 0
  %v1752 = vsel %vm1720, 1, 0
  %v1753 = vsel %vm1721, 1, 0
  %v1754 = vsel %vm1722, 1, 0
  %v1755 = vsel %vm1723, 1, 0
  %v1756 = vsel %vm1724, 1, 0
  %v1757 = vsel %vm1725, 1, 0
  %v1758 = vsel %vm1726, 1, 0
  %v1759 = vsel %vm1727, 1, 0
  %v1760 = vsel %vm1728, 1, 0
  %v1761 = vsel %vm1729, 1, 0
  %v1762 = vsel %vm1730, 1, 0
  %v1763 = vsel %vm1731, 1, 0
  %v1764 = vsel %vm1732, 1, 0
  %v1765 = vsel %vm1733, 1, 0
  %v1766 = vsel %vm1734, 1, 0
  %v1767 = vsel %vm1735, 1, 0
  %v1768 = vsel %vm1736, 1, 0
  %v1769 = vsel %vm1737, 1, 0
  %v1770 = vsel %vm1738, 1, 0
  %v1771 = vsel %vm1739, 1, 0
  %v1772 = vsel %vm1740, 1, 0
  %v1773 = vcvt.s32.f32 %v1741
  %v1774 = vcvt.s32.f32 %v1742
  %v1775 = vcvt.s32.f32 %v1743
  %v1776 = vcvt.s32.f32 %v1744
  %v1777 = vcvt.s32.f32 %v1745
  %v1778 = vcvt.s32.f32 %v1746
  %v1779 = vcvt.s32.f32 %v1747
  %v1780 = vcvt.s32.f32 %v1748
  %v1781 = vcvt.s32.f32 %v1749
  %v1782 = vcvt.s32.f32 %v1750
  %v1783 = vcvt.s32.f32 %v1751
  %v1784 = vcvt.s32.f32 %v1752
  %v1785 = vcvt.s32.f32 %v1753
  %v1786 = vcvt.s32.f32 %v1754
  %v1787 = vcvt.s32.f32 %v1755
  %v1788 = vcvt.s32.f32 %v1756
  %v1789 = vcvt.s32.f32 %v1757
  %v1790 = vcvt.s32.f32 %v1758
  %v1791 = vcvt.s32.f32 %v1759
  %v1792 = vcvt.s32.f32 %v1760
  %v1793 = vcvt.s32.f32 %v1761
  %v1794 = vcvt.s32.f32 %v1762
  %v1795 = vcvt.s32.f32 %v1763
  %v1796 = vcvt.s32.f32 %v1764
  %v1797 = vcvt.s32.f32 %v1765
  %v1798 = vcvt.s32.f32 %v1766
  %v1799 = vcvt.s32.f32 %v1767
  %v1800 = vcvt.s32.f32 %v1768
  %v1801 = vcvt.s32.f32 %v1769
  %v1802 = vcvt.s32.f32 %v1770
  %v1803 = vcvt.s32.f32 %v1771
  %v1804 = vcvt.s32.f32 %v1772
  %v1805 = vadd.f32 %v1581, %v1773
  %v1806 = vadd.f32 %v1582, %v1774
  %v1807 = vadd.f32 %v1583, %v1775
  %v1808 = vadd.f32 %v1584, %v1776
  %v1809 = vadd.f32 %v1585, %v1777
  %v1810 = vadd.f32 %v1586, %v1778
  %v1811 = vadd.f32 %v1587, %v1779
  %v1812 = vadd.f32 %v1588, %v1780
  %v1813 = vadd.f32 %v1589, %v1781
  %v1814 = vadd.f32 %v1590, %v1782
  %v1815 = vadd.f32 %v1591, %v1783
  %v1816 = vadd.f32 %v1592, %v1784
  %v1817 = vadd.f32 %v1593, %v1785
  %v1818 = vadd.f32 %v1594, %v1786
  %v1819 = vadd.f32 %v1595, %v1787
  %v1820 = vadd.f32 %v1596, %v1788
  %v1821 = vadd.f32 %v1597, %v1789
  %v1822 = vadd.f32 %v1598, %v1790
  %v1823 = vadd.f32 %v1599, %v1791
  %v1824 = vadd.f32 %v1600, %v1792
  %v1825 = vadd.f32 %v1601, %v1793
  %v1826 = vadd.f32 %v1602, %v1794
  %v1827 = vadd.f32 %v1603, %v1795
  %v1828 = vadd.f32 %v1604, %v1796
  %v1829 = vadd.f32 %v1605, %v1797
  %v1830 = vadd.f32 %v1606, %v1798
  %v1831 = vadd.f32 %v1607, %v1799
  %v1832 = vadd.f32 %v1608, %v1800
  %v1833 = vadd.f32 %v1609, %v1801
  %v1834 = vadd.f32 %v1610, %v1802
  %v1835 = vadd.f32 %v1611, %v1803
  %v1836 = vadd.f32 %v1612, %v1804
  %1837 = vset.pattern.permute.xlu0 8
  %1838 = vperm.xlu0 %1837, %v11
  %v1839 = vpop.permute.xlu0 %1838
  %1840 = vset.pattern.permute.xlu0 8
  %1841 = vperm.xlu0 %1840, %v12
  %v1842 = vpop.permute.xlu0 %1841
  %1843 = vset.pattern.permute.xlu0 8
  %1844 = vperm.xlu0 %1843, %v13
  %v1845 = vpop.permute.xlu0 %1844
  %1846 = vset.pattern.permute.xlu0 8
  %1847 = vperm.xlu0 %1846, %v14
  %v1848 = vpop.permute.xlu0 %1847
  %1849 = vset.pattern.permute.xlu0 8
  %1850 = vperm.xlu0 %1849, %v15
  %v1851 = vpop.permute.xlu0 %1850
  %1852 = vset.pattern.permute.xlu0 8
  %1853 = vperm.xlu0 %1852, %v16
  %v1854 = vpop.permute.xlu0 %1853
  %1855 = vset.pattern.permute.xlu0 8
  %1856 = vperm.xlu0 %1855, %v17
  %v1857 = vpop.permute.xlu0 %1856
  %1858 = vset.pattern.permute.xlu0 8
  %1859 = vperm.xlu0 %1858, %v18
  %v1860 = vpop.permute.xlu0 %1859
  %1861 = vset.pattern.permute.xlu0 8
  %1862 = vperm.xlu0 %1861, %v19
  %v1863 = vpop.permute.xlu0 %1862
  %1864 = vset.pattern.permute.xlu0 8
  %1865 = vperm.xlu0 %1864, %v20
  %v1866 = vpop.permute.xlu0 %1865
  %1867 = vset.pattern.permute.xlu0 8
  %1868 = vperm.xlu0 %1867, %v21
  %v1869 = vpop.permute.xlu0 %1868
  %1870 = vset.pattern.permute.xlu0 8
  %1871 = vperm.xlu0 %1870, %v22
  %v1872 = vpop.permute.xlu0 %1871
  %1873 = vset.pattern.permute.xlu0 8
  %1874 = vperm.xlu0 %1873, %v23
  %v1875 = vpop.permute.xlu0 %1874
  %1876 = vset.pattern.permute.xlu0 8
  %1877 = vperm.xlu0 %1876, %v24
  %v1878 = vpop.permute.xlu0 %1877
  %1879 = vset.pattern.permute.xlu0 8
  %1880 = vperm.xlu0 %1879, %v25
  %v1881 = vpop.permute.xlu0 %1880
  %1882 = vset.pattern.permute.xlu0 8
  %1883 = vperm.xlu0 %1882, %v26
  %v1884 = vpop.permute.xlu0 %1883
  %1885 = vset.pattern.permute.xlu0 8
  %1886 = vperm.xlu0 %1885, %v27
  %v1887 = vpop.permute.xlu0 %1886
  %1888 = vset.pattern.permute.xlu0 8
  %1889 = vperm.xlu0 %1888, %v28
  %v1890 = vpop.permute.xlu0 %1889
  %1891 = vset.pattern.permute.xlu0 8
  %1892 = vperm.xlu0 %1891, %v29
  %v1893 = vpop.permute.xlu0 %1892
  %1894 = vset.pattern.permute.xlu0 8
  %1895 = vperm.xlu0 %1894, %v30
  %v1896 = vpop.permute.xlu0 %1895
  %1897 = vset.pattern.permute.xlu0 8
  %1898 = vperm.xlu0 %1897, %v31
  %v1899 = vpop.permute.xlu0 %1898
  %1900 = vset.pattern.permute.xlu0 8
  %1901 = vperm.xlu0 %1900, %v32
  %v1902 = vpop.permute.xlu0 %1901
  %1903 = vset.pattern.permute.xlu0 8
  %1904 = vperm.xlu0 %1903, %v33
  %v1905 = vpop.permute.xlu0 %1904
  %1906 = vset.pattern.permute.xlu0 8
  %1907 = vperm.xlu0 %1906, %v34
  %v1908 = vpop.permute.xlu0 %1907
  %1909 = vset.pattern.permute.xlu0 8
  %1910 = vperm.xlu0 %1909, %v35
  %v1911 = vpop.permute.xlu0 %1910
  %1912 = vset.pattern.permute.xlu0 8
  %1913 = vperm.xlu0 %1912, %v36
  %v1914 = vpop.permute.xlu0 %1913
  %1915 = vset.pattern.permute.xlu0 8
  %1916 = vperm.xlu0 %1915, %v37
  %v1917 = vpop.permute.xlu0 %1916
  %1918 = vset.pattern.permute.xlu0 8
  %1919 = vperm.xlu0 %1918, %v38
  %v1920 = vpop.permute.xlu0 %1919
  %1921 = vset.pattern.permute.xlu0 8
  %1922 = vperm.xlu0 %1921, %v39
  %v1923 = vpop.permute.xlu0 %1922
  %1924 = vset.pattern.permute.xlu0 8
  %1925 = vperm.xlu0 %1924, %v40
  %v1926 = vpop.permute.xlu0 %1925
  %1927 = vset.pattern.permute.xlu0 8
  %1928 = vperm.xlu0 %1927, %v41
  %v1929 = vpop.permute.xlu0 %1928
  %1930 = vset.pattern.permute.xlu0 8
  %1931 = vperm.xlu0 %1930, %v42
  %v1932 = vpop.permute.xlu0 %1931
  %vm1933 = vcmp.eq.s32.totalorder %v1839, %v44
  %vm1934 = vcmp.eq.s32.totalorder %v1842, %v44
  %vm1935 = vcmp.eq.s32.totalorder %v1845, %v44
  %vm1936 = vcmp.eq.s32.totalorder %v1848, %v44
  %vm1937 = vcmp.eq.s32.totalorder %v1851, %v44
  %vm1938 = vcmp.eq.s32.totalorder %v1854, %v44
  %vm1939 = vcmp.eq.s32.totalorder %v1857, %v44
  %vm1940 = vcmp.eq.s32.totalorder %v1860, %v44
  %vm1941 = vcmp.eq.s32.totalorder %v1863, %v44
  %vm1942 = vcmp.eq.s32.totalorder %v1866, %v44
  %vm1943 = vcmp.eq.s32.totalorder %v1869, %v44
  %vm1944 = vcmp.eq.s32.totalorder %v1872, %v44
  %vm1945 = vcmp.eq.s32.totalorder %v1875, %v44
  %vm1946 = vcmp.eq.s32.totalorder %v1878, %v44
  %vm1947 = vcmp.eq.s32.totalorder %v1881, %v44
  %vm1948 = vcmp.eq.s32.totalorder %v1884, %v44
  %vm1949 = vcmp.eq.s32.totalorder %v1887, %v44
  %vm1950 = vcmp.eq.s32.totalorder %v1890, %v44
  %vm1951 = vcmp.eq.s32.totalorder %v1893, %v44
  %vm1952 = vcmp.eq.s32.totalorder %v1896, %v44
  %vm1953 = vcmp.eq.s32.totalorder %v1899, %v44
  %vm1954 = vcmp.eq.s32.totalorder %v1902, %v44
  %vm1955 = vcmp.eq.s32.totalorder %v1905, %v44
  %vm1956 = vcmp.eq.s32.totalorder %v1908, %v44
  %vm1957 = vcmp.eq.s32.totalorder %v1911, %v44
  %vm1958 = vcmp.eq.s32.totalorder %v1914, %v44
  %vm1959 = vcmp.eq.s32.totalorder %v1917, %v44
  %vm1960 = vcmp.eq.s32.totalorder %v1920, %v44
  %vm1961 = vcmp.eq.s32.totalorder %v1923, %v44
  %vm1962 = vcmp.eq.s32.totalorder %v1926, %v44
  %vm1963 = vcmp.eq.s32.totalorder %v1929, %v44
  %vm1964 = vcmp.eq.s32.totalorder %v1932, %v44
  %v1965 = vsel %vm1933, 1, 0
  %v1966 = vsel %vm1934, 1, 0
  %v1967 = vsel %vm1935, 1, 0
  %v1968 = vsel %vm1936, 1, 0
  %v1969 = vsel %vm1937, 1, 0
  %v1970 = vsel %vm1938, 1, 0
  %v1971 = vsel %vm1939, 1, 0
  %v1972 = vsel %vm1940, 1, 0
  %v1973 = vsel %vm1941, 1, 0
  %v1974 = vsel %vm1942, 1, 0
  %v1975 = vsel %vm1943, 1, 0
  %v1976 = vsel %vm1944, 1, 0
  %v1977 = vsel %vm1945, 1, 0
  %v1978 = vsel %vm1946, 1, 0
  %v1979 = vsel %vm1947, 1, 0
  %v1980 = vsel %vm1948, 1, 0
  %v1981 = vsel %vm1949, 1, 0
  %v1982 = vsel %vm1950, 1, 0
  %v1983 = vsel %vm1951, 1, 0
  %v1984 = vsel %vm1952, 1, 0
  %v1985 = vsel %vm1953, 1, 0
  %v1986 = vsel %vm1954, 1, 0
  %v1987 = vsel %vm1955, 1, 0
  %v1988 = vsel %vm1956, 1, 0
  %v1989 = vsel %vm1957, 1, 0
  %v1990 = vsel %vm1958, 1, 0
  %v1991 = vsel %vm1959, 1, 0
  %v1992 = vsel %vm1960, 1, 0
  %v1993 = vsel %vm1961, 1, 0
  %v1994 = vsel %vm1962, 1, 0
  %v1995 = vsel %vm1963, 1, 0
  %v1996 = vsel %vm1964, 1, 0
  %v1997 = vcvt.s32.f32 %v1965
  %v1998 = vcvt.s32.f32 %v1966
  %v1999 = vcvt.s32.f32 %v1967
  %v2000 = vcvt.s32.f32 %v1968
  %v2001 = vcvt.s32.f32 %v1969
  %v2002 = vcvt.s32.f32 %v1970
  %v2003 = vcvt.s32.f32 %v1971
  %v2004 = vcvt.s32.f32 %v1972
  %v2005 = vcvt.s32.f32 %v1973
  %v2006 = vcvt.s32.f32 %v1974
  %v2007 = vcvt.s32.f32 %v1975
  %v2008 = vcvt.s32.f32 %v1976
  %v2009 = vcvt.s32.f32 %v1977
  %v2010 = vcvt.s32.f32 %v1978
  %v2011 = vcvt.s32.f32 %v1979
  %v2012 = vcvt.s32.f32 %v1980
  %v2013 = vcvt.s32.f32 %v1981
  %v2014 = vcvt.s32.f32 %v1982
  %v2015 = vcvt.s32.f32 %v1983
  %v2016 = vcvt.s32.f32 %v1984
  %v2017 = vcvt.s32.f32 %v1985
  %v2018 = vcvt.s32.f32 %v1986
  %v2019 = vcvt.s32.f32 %v1987
  %v2020 = vcvt.s32.f32 %v1988
  %v2021 = vcvt.s32.f32 %v1989
  %v2022 = vcvt.s32.f32 %v1990
  %v2023 = vcvt.s32.f32 %v1991
  %v2024 = vcvt.s32.f32 %v1992
  %v2025 = vcvt.s32.f32 %v1993
  %v2026 = vcvt.s32.f32 %v1994
  %v2027 = vcvt.s32.f32 %v1995
  %v2028 = vcvt.s32.f32 %v1996
  %v2029 = vadd.f32 %v1805, %v1997
  %v2030 = vadd.f32 %v1806, %v1998
  %v2031 = vadd.f32 %v1807, %v1999
  %v2032 = vadd.f32 %v1808, %v2000
  %v2033 = vadd.f32 %v1809, %v2001
  %v2034 = vadd.f32 %v1810, %v2002
  %v2035 = vadd.f32 %v1811, %v2003
  %v2036 = vadd.f32 %v1812, %v2004
  %v2037 = vadd.f32 %v1813, %v2005
  %v2038 = vadd.f32 %v1814, %v2006
  %v2039 = vadd.f32 %v1815, %v2007
  %v2040 = vadd.f32 %v1816, %v2008
  %v2041 = vadd.f32 %v1817, %v2009
  %v2042 = vadd.f32 %v1818, %v2010
  %v2043 = vadd.f32 %v1819, %v2011
  %v2044 = vadd.f32 %v1820, %v2012
  %v2045 = vadd.f32 %v1821, %v2013
  %v2046 = vadd.f32 %v1822, %v2014
  %v2047 = vadd.f32 %v1823, %v2015
  %v2048 = vadd.f32 %v1824, %v2016
  %v2049 = vadd.f32 %v1825, %v2017
  %v2050 = vadd.f32 %v1826, %v2018
  %v2051 = vadd.f32 %v1827, %v2019
  %v2052 = vadd.f32 %v1828, %v2020
  %v2053 = vadd.f32 %v1829, %v2021
  %v2054 = vadd.f32 %v1830, %v2022
  %v2055 = vadd.f32 %v1831, %v2023
  %v2056 = vadd.f32 %v1832, %v2024
  %v2057 = vadd.f32 %v1833, %v2025
  %v2058 = vadd.f32 %v1834, %v2026
  %v2059 = vadd.f32 %v1835, %v2027
  %v2060 = vadd.f32 %v1836, %v2028
  %2061 = vset.pattern.permute.xlu0 9
  %2062 = vperm.xlu0 %2061, %v11
  %v2063 = vpop.permute.xlu0 %2062
  %2064 = vset.pattern.permute.xlu0 9
  %2065 = vperm.xlu0 %2064, %v12
  %v2066 = vpop.permute.xlu0 %2065
  %2067 = vset.pattern.permute.xlu0 9
  %2068 = vperm.xlu0 %2067, %v13
  %v2069 = vpop.permute.xlu0 %2068
  %2070 = vset.pattern.permute.xlu0 9
  %2071 = vperm.xlu0 %2070, %v14
  %v2072 = vpop.permute.xlu0 %2071
  %2073 = vset.pattern.permute.xlu0 9
  %2074 = vperm.xlu0 %2073, %v15
  %v2075 = vpop.permute.xlu0 %2074
  %2076 = vset.pattern.permute.xlu0 9
  %2077 = vperm.xlu0 %2076, %v16
  %v2078 = vpop.permute.xlu0 %2077
  %2079 = vset.pattern.permute.xlu0 9
  %2080 = vperm.xlu0 %2079, %v17
  %v2081 = vpop.permute.xlu0 %2080
  %2082 = vset.pattern.permute.xlu0 9
  %2083 = vperm.xlu0 %2082, %v18
  %v2084 = vpop.permute.xlu0 %2083
  %2085 = vset.pattern.permute.xlu0 9
  %2086 = vperm.xlu0 %2085, %v19
  %v2087 = vpop.permute.xlu0 %2086
  %2088 = vset.pattern.permute.xlu0 9
  %2089 = vperm.xlu0 %2088, %v20
  %v2090 = vpop.permute.xlu0 %2089
  %2091 = vset.pattern.permute.xlu0 9
  %2092 = vperm.xlu0 %2091, %v21
  %v2093 = vpop.permute.xlu0 %2092
  %2094 = vset.pattern.permute.xlu0 9
  %2095 = vperm.xlu0 %2094, %v22
  %v2096 = vpop.permute.xlu0 %2095
  %2097 = vset.pattern.permute.xlu0 9
  %2098 = vperm.xlu0 %2097, %v23
  %v2099 = vpop.permute.xlu0 %2098
  %2100 = vset.pattern.permute.xlu0 9
  %2101 = vperm.xlu0 %2100, %v24
  %v2102 = vpop.permute.xlu0 %2101
  %2103 = vset.pattern.permute.xlu0 9
  %2104 = vperm.xlu0 %2103, %v25
  %v2105 = vpop.permute.xlu0 %2104
  %2106 = vset.pattern.permute.xlu0 9
  %2107 = vperm.xlu0 %2106, %v26
  %v2108 = vpop.permute.xlu0 %2107
  %2109 = vset.pattern.permute.xlu0 9
  %2110 = vperm.xlu0 %2109, %v27
  %v2111 = vpop.permute.xlu0 %2110
  %2112 = vset.pattern.permute.xlu0 9
  %2113 = vperm.xlu0 %2112, %v28
  %v2114 = vpop.permute.xlu0 %2113
  %2115 = vset.pattern.permute.xlu0 9
  %2116 = vperm.xlu0 %2115, %v29
  %v2117 = vpop.permute.xlu0 %2116
  %2118 = vset.pattern.permute.xlu0 9
  %2119 = vperm.xlu0 %2118, %v30
  %v2120 = vpop.permute.xlu0 %2119
  %2121 = vset.pattern.permute.xlu0 9
  %2122 = vperm.xlu0 %2121, %v31
  %v2123 = vpop.permute.xlu0 %2122
  %2124 = vset.pattern.permute.xlu0 9
  %2125 = vperm.xlu0 %2124, %v32
  %v2126 = vpop.permute.xlu0 %2125
  %2127 = vset.pattern.permute.xlu0 9
  %2128 = vperm.xlu0 %2127, %v33
  %v2129 = vpop.permute.xlu0 %2128
  %2130 = vset.pattern.permute.xlu0 9
  %2131 = vperm.xlu0 %2130, %v34
  %v2132 = vpop.permute.xlu0 %2131
  %2133 = vset.pattern.permute.xlu0 9
  %2134 = vperm.xlu0 %2133, %v35
  %v2135 = vpop.permute.xlu0 %2134
  %2136 = vset.pattern.permute.xlu0 9
  %2137 = vperm.xlu0 %2136, %v36
  %v2138 = vpop.permute.xlu0 %2137
  %2139 = vset.pattern.permute.xlu0 9
  %2140 = vperm.xlu0 %2139, %v37
  %v2141 = vpop.permute.xlu0 %2140
  %2142 = vset.pattern.permute.xlu0 9
  %2143 = vperm.xlu0 %2142, %v38
  %v2144 = vpop.permute.xlu0 %2143
  %2145 = vset.pattern.permute.xlu0 9
  %2146 = vperm.xlu0 %2145, %v39
  %v2147 = vpop.permute.xlu0 %2146
  %2148 = vset.pattern.permute.xlu0 9
  %2149 = vperm.xlu0 %2148, %v40
  %v2150 = vpop.permute.xlu0 %2149
  %2151 = vset.pattern.permute.xlu0 9
  %2152 = vperm.xlu0 %2151, %v41
  %v2153 = vpop.permute.xlu0 %2152
  %2154 = vset.pattern.permute.xlu0 9
  %2155 = vperm.xlu0 %2154, %v42
  %v2156 = vpop.permute.xlu0 %2155
  %vm2157 = vcmp.eq.s32.totalorder %v2063, %v44
  %vm2158 = vcmp.eq.s32.totalorder %v2066, %v44
  %vm2159 = vcmp.eq.s32.totalorder %v2069, %v44
  %vm2160 = vcmp.eq.s32.totalorder %v2072, %v44
  %vm2161 = vcmp.eq.s32.totalorder %v2075, %v44
  %vm2162 = vcmp.eq.s32.totalorder %v2078, %v44
  %vm2163 = vcmp.eq.s32.totalorder %v2081, %v44
  %vm2164 = vcmp.eq.s32.totalorder %v2084, %v44
  %vm2165 = vcmp.eq.s32.totalorder %v2087, %v44
  %vm2166 = vcmp.eq.s32.totalorder %v2090, %v44
  %vm2167 = vcmp.eq.s32.totalorder %v2093, %v44
  %vm2168 = vcmp.eq.s32.totalorder %v2096, %v44
  %vm2169 = vcmp.eq.s32.totalorder %v2099, %v44
  %vm2170 = vcmp.eq.s32.totalorder %v2102, %v44
  %vm2171 = vcmp.eq.s32.totalorder %v2105, %v44
  %vm2172 = vcmp.eq.s32.totalorder %v2108, %v44
  %vm2173 = vcmp.eq.s32.totalorder %v2111, %v44
  %vm2174 = vcmp.eq.s32.totalorder %v2114, %v44
  %vm2175 = vcmp.eq.s32.totalorder %v2117, %v44
  %vm2176 = vcmp.eq.s32.totalorder %v2120, %v44
  %vm2177 = vcmp.eq.s32.totalorder %v2123, %v44
  %vm2178 = vcmp.eq.s32.totalorder %v2126, %v44
  %vm2179 = vcmp.eq.s32.totalorder %v2129, %v44
  %vm2180 = vcmp.eq.s32.totalorder %v2132, %v44
  %vm2181 = vcmp.eq.s32.totalorder %v2135, %v44
  %vm2182 = vcmp.eq.s32.totalorder %v2138, %v44
  %vm2183 = vcmp.eq.s32.totalorder %v2141, %v44
  %vm2184 = vcmp.eq.s32.totalorder %v2144, %v44
  %vm2185 = vcmp.eq.s32.totalorder %v2147, %v44
  %vm2186 = vcmp.eq.s32.totalorder %v2150, %v44
  %vm2187 = vcmp.eq.s32.totalorder %v2153, %v44
  %vm2188 = vcmp.eq.s32.totalorder %v2156, %v44
  %v2189 = vsel %vm2157, 1, 0
  %v2190 = vsel %vm2158, 1, 0
  %v2191 = vsel %vm2159, 1, 0
  %v2192 = vsel %vm2160, 1, 0
  %v2193 = vsel %vm2161, 1, 0
  %v2194 = vsel %vm2162, 1, 0
  %v2195 = vsel %vm2163, 1, 0
  %v2196 = vsel %vm2164, 1, 0
  %v2197 = vsel %vm2165, 1, 0
  %v2198 = vsel %vm2166, 1, 0
  %v2199 = vsel %vm2167, 1, 0
  %v2200 = vsel %vm2168, 1, 0
  %v2201 = vsel %vm2169, 1, 0
  %v2202 = vsel %vm2170, 1, 0
  %v2203 = vsel %vm2171, 1, 0
  %v2204 = vsel %vm2172, 1, 0
  %v2205 = vsel %vm2173, 1, 0
  %v2206 = vsel %vm2174, 1, 0
  %v2207 = vsel %vm2175, 1, 0
  %v2208 = vsel %vm2176, 1, 0
  %v2209 = vsel %vm2177, 1, 0
  %v2210 = vsel %vm2178, 1, 0
  %v2211 = vsel %vm2179, 1, 0
  %v2212 = vsel %vm2180, 1, 0
  %v2213 = vsel %vm2181, 1, 0
  %v2214 = vsel %vm2182, 1, 0
  %v2215 = vsel %vm2183, 1, 0
  %v2216 = vsel %vm2184, 1, 0
  %v2217 = vsel %vm2185, 1, 0
  %v2218 = vsel %vm2186, 1, 0
  %v2219 = vsel %vm2187, 1, 0
  %v2220 = vsel %vm2188, 1, 0
  %v2221 = vcvt.s32.f32 %v2189
  %v2222 = vcvt.s32.f32 %v2190
  %v2223 = vcvt.s32.f32 %v2191
  %v2224 = vcvt.s32.f32 %v2192
  %v2225 = vcvt.s32.f32 %v2193
  %v2226 = vcvt.s32.f32 %v2194
  %v2227 = vcvt.s32.f32 %v2195
  %v2228 = vcvt.s32.f32 %v2196
  %v2229 = vcvt.s32.f32 %v2197
  %v2230 = vcvt.s32.f32 %v2198
  %v2231 = vcvt.s32.f32 %v2199
  %v2232 = vcvt.s32.f32 %v2200
  %v2233 = vcvt.s32.f32 %v2201
  %v2234 = vcvt.s32.f32 %v2202
  %v2235 = vcvt.s32.f32 %v2203
  %v2236 = vcvt.s32.f32 %v2204
  %v2237 = vcvt.s32.f32 %v2205
  %v2238 = vcvt.s32.f32 %v2206
  %v2239 = vcvt.s32.f32 %v2207
  %v2240 = vcvt.s32.f32 %v2208
  %v2241 = vcvt.s32.f32 %v2209
  %v2242 = vcvt.s32.f32 %v2210
  %v2243 = vcvt.s32.f32 %v2211
  %v2244 = vcvt.s32.f32 %v2212
  %v2245 = vcvt.s32.f32 %v2213
  %v2246 = vcvt.s32.f32 %v2214
  %v2247 = vcvt.s32.f32 %v2215
  %v2248 = vcvt.s32.f32 %v2216
  %v2249 = vcvt.s32.f32 %v2217
  %v2250 = vcvt.s32.f32 %v2218
  %v2251 = vcvt.s32.f32 %v2219
  %v2252 = vcvt.s32.f32 %v2220
  %v2253 = vadd.f32 %v2029, %v2221
  %v2254 = vadd.f32 %v2030, %v2222
  %v2255 = vadd.f32 %v2031, %v2223
  %v2256 = vadd.f32 %v2032, %v2224
  %v2257 = vadd.f32 %v2033, %v2225
  %v2258 = vadd.f32 %v2034, %v2226
  %v2259 = vadd.f32 %v2035, %v2227
  %v2260 = vadd.f32 %v2036, %v2228
  %v2261 = vadd.f32 %v2037, %v2229
  %v2262 = vadd.f32 %v2038, %v2230
  %v2263 = vadd.f32 %v2039, %v2231
  %v2264 = vadd.f32 %v2040, %v2232
  %v2265 = vadd.f32 %v2041, %v2233
  %v2266 = vadd.f32 %v2042, %v2234
  %v2267 = vadd.f32 %v2043, %v2235
  %v2268 = vadd.f32 %v2044, %v2236
  %v2269 = vadd.f32 %v2045, %v2237
  %v2270 = vadd.f32 %v2046, %v2238
  %v2271 = vadd.f32 %v2047, %v2239
  %v2272 = vadd.f32 %v2048, %v2240
  %v2273 = vadd.f32 %v2049, %v2241
  %v2274 = vadd.f32 %v2050, %v2242
  %v2275 = vadd.f32 %v2051, %v2243
  %v2276 = vadd.f32 %v2052, %v2244
  %v2277 = vadd.f32 %v2053, %v2245
  %v2278 = vadd.f32 %v2054, %v2246
  %v2279 = vadd.f32 %v2055, %v2247
  %v2280 = vadd.f32 %v2056, %v2248
  %v2281 = vadd.f32 %v2057, %v2249
  %v2282 = vadd.f32 %v2058, %v2250
  %v2283 = vadd.f32 %v2059, %v2251
  %v2284 = vadd.f32 %v2060, %v2252
  %2285 = vset.pattern.permute.xlu0 10
  %2286 = vperm.xlu0 %2285, %v11
  %v2287 = vpop.permute.xlu0 %2286
  %2288 = vset.pattern.permute.xlu0 10
  %2289 = vperm.xlu0 %2288, %v12
  %v2290 = vpop.permute.xlu0 %2289
  %2291 = vset.pattern.permute.xlu0 10
  %2292 = vperm.xlu0 %2291, %v13
  %v2293 = vpop.permute.xlu0 %2292
  %2294 = vset.pattern.permute.xlu0 10
  %2295 = vperm.xlu0 %2294, %v14
  %v2296 = vpop.permute.xlu0 %2295
  %2297 = vset.pattern.permute.xlu0 10
  %2298 = vperm.xlu0 %2297, %v15
  %v2299 = vpop.permute.xlu0 %2298
  %2300 = vset.pattern.permute.xlu0 10
  %2301 = vperm.xlu0 %2300, %v16
  %v2302 = vpop.permute.xlu0 %2301
  %2303 = vset.pattern.permute.xlu0 10
  %2304 = vperm.xlu0 %2303, %v17
  %v2305 = vpop.permute.xlu0 %2304
  %2306 = vset.pattern.permute.xlu0 10
  %2307 = vperm.xlu0 %2306, %v18
  %v2308 = vpop.permute.xlu0 %2307
  %2309 = vset.pattern.permute.xlu0 10
  %2310 = vperm.xlu0 %2309, %v19
  %v2311 = vpop.permute.xlu0 %2310
  %2312 = vset.pattern.permute.xlu0 10
  %2313 = vperm.xlu0 %2312, %v20
  %v2314 = vpop.permute.xlu0 %2313
  %2315 = vset.pattern.permute.xlu0 10
  %2316 = vperm.xlu0 %2315, %v21
  %v2317 = vpop.permute.xlu0 %2316
  %2318 = vset.pattern.permute.xlu0 10
  %2319 = vperm.xlu0 %2318, %v22
  %v2320 = vpop.permute.xlu0 %2319
  %2321 = vset.pattern.permute.xlu0 10
  %2322 = vperm.xlu0 %2321, %v23
  %v2323 = vpop.permute.xlu0 %2322
  %2324 = vset.pattern.permute.xlu0 10
  %2325 = vperm.xlu0 %2324, %v24
  %v2326 = vpop.permute.xlu0 %2325
  %2327 = vset.pattern.permute.xlu0 10
  %2328 = vperm.xlu0 %2327, %v25
  %v2329 = vpop.permute.xlu0 %2328
  %2330 = vset.pattern.permute.xlu0 10
  %2331 = vperm.xlu0 %2330, %v26
  %v2332 = vpop.permute.xlu0 %2331
  %2333 = vset.pattern.permute.xlu0 10
  %2334 = vperm.xlu0 %2333, %v27
  %v2335 = vpop.permute.xlu0 %2334
  %2336 = vset.pattern.permute.xlu0 10
  %2337 = vperm.xlu0 %2336, %v28
  %v2338 = vpop.permute.xlu0 %2337
  %2339 = vset.pattern.permute.xlu0 10
  %2340 = vperm.xlu0 %2339, %v29
  %v2341 = vpop.permute.xlu0 %2340
  %2342 = vset.pattern.permute.xlu0 10
  %2343 = vperm.xlu0 %2342, %v30
  %v2344 = vpop.permute.xlu0 %2343
  %2345 = vset.pattern.permute.xlu0 10
  %2346 = vperm.xlu0 %2345, %v31
  %v2347 = vpop.permute.xlu0 %2346
  %2348 = vset.pattern.permute.xlu0 10
  %2349 = vperm.xlu0 %2348, %v32
  %v2350 = vpop.permute.xlu0 %2349
  %2351 = vset.pattern.permute.xlu0 10
  %2352 = vperm.xlu0 %2351, %v33
  %v2353 = vpop.permute.xlu0 %2352
  %2354 = vset.pattern.permute.xlu0 10
  %2355 = vperm.xlu0 %2354, %v34
  %v2356 = vpop.permute.xlu0 %2355
  %2357 = vset.pattern.permute.xlu0 10
  %2358 = vperm.xlu0 %2357, %v35
  %v2359 = vpop.permute.xlu0 %2358
  %2360 = vset.pattern.permute.xlu0 10
  %2361 = vperm.xlu0 %2360, %v36
  %v2362 = vpop.permute.xlu0 %2361
  %2363 = vset.pattern.permute.xlu0 10
  %2364 = vperm.xlu0 %2363, %v37
  %v2365 = vpop.permute.xlu0 %2364
  %2366 = vset.pattern.permute.xlu0 10
  %2367 = vperm.xlu0 %2366, %v38
  %v2368 = vpop.permute.xlu0 %2367
  %2369 = vset.pattern.permute.xlu0 10
  %2370 = vperm.xlu0 %2369, %v39
  %v2371 = vpop.permute.xlu0 %2370
  %2372 = vset.pattern.permute.xlu0 10
  %2373 = vperm.xlu0 %2372, %v40
  %v2374 = vpop.permute.xlu0 %2373
  %2375 = vset.pattern.permute.xlu0 10
  %2376 = vperm.xlu0 %2375, %v41
  %v2377 = vpop.permute.xlu0 %2376
  %2378 = vset.pattern.permute.xlu0 10
  %2379 = vperm.xlu0 %2378, %v42
  %v2380 = vpop.permute.xlu0 %2379
  %vm2381 = vcmp.eq.s32.totalorder %v2287, %v44
  %vm2382 = vcmp.eq.s32.totalorder %v2290, %v44
  %vm2383 = vcmp.eq.s32.totalorder %v2293, %v44
  %vm2384 = vcmp.eq.s32.totalorder %v2296, %v44
  %vm2385 = vcmp.eq.s32.totalorder %v2299, %v44
  %vm2386 = vcmp.eq.s32.totalorder %v2302, %v44
  %vm2387 = vcmp.eq.s32.totalorder %v2305, %v44
  %vm2388 = vcmp.eq.s32.totalorder %v2308, %v44
  %vm2389 = vcmp.eq.s32.totalorder %v2311, %v44
  %vm2390 = vcmp.eq.s32.totalorder %v2314, %v44
  %vm2391 = vcmp.eq.s32.totalorder %v2317, %v44
  %vm2392 = vcmp.eq.s32.totalorder %v2320, %v44
  %vm2393 = vcmp.eq.s32.totalorder %v2323, %v44
  %vm2394 = vcmp.eq.s32.totalorder %v2326, %v44
  %vm2395 = vcmp.eq.s32.totalorder %v2329, %v44
  %vm2396 = vcmp.eq.s32.totalorder %v2332, %v44
  %vm2397 = vcmp.eq.s32.totalorder %v2335, %v44
  %vm2398 = vcmp.eq.s32.totalorder %v2338, %v44
  %vm2399 = vcmp.eq.s32.totalorder %v2341, %v44
  %vm2400 = vcmp.eq.s32.totalorder %v2344, %v44
  %vm2401 = vcmp.eq.s32.totalorder %v2347, %v44
  %vm2402 = vcmp.eq.s32.totalorder %v2350, %v44
  %vm2403 = vcmp.eq.s32.totalorder %v2353, %v44
  %vm2404 = vcmp.eq.s32.totalorder %v2356, %v44
  %vm2405 = vcmp.eq.s32.totalorder %v2359, %v44
  %vm2406 = vcmp.eq.s32.totalorder %v2362, %v44
  %vm2407 = vcmp.eq.s32.totalorder %v2365, %v44
  %vm2408 = vcmp.eq.s32.totalorder %v2368, %v44
  %vm2409 = vcmp.eq.s32.totalorder %v2371, %v44
  %vm2410 = vcmp.eq.s32.totalorder %v2374, %v44
  %vm2411 = vcmp.eq.s32.totalorder %v2377, %v44
  %vm2412 = vcmp.eq.s32.totalorder %v2380, %v44
  %v2413 = vsel %vm2381, 1, 0
  %v2414 = vsel %vm2382, 1, 0
  %v2415 = vsel %vm2383, 1, 0
  %v2416 = vsel %vm2384, 1, 0
  %v2417 = vsel %vm2385, 1, 0
  %v2418 = vsel %vm2386, 1, 0
  %v2419 = vsel %vm2387, 1, 0
  %v2420 = vsel %vm2388, 1, 0
  %v2421 = vsel %vm2389, 1, 0
  %v2422 = vsel %vm2390, 1, 0
  %v2423 = vsel %vm2391, 1, 0
  %v2424 = vsel %vm2392, 1, 0
  %v2425 = vsel %vm2393, 1, 0
  %v2426 = vsel %vm2394, 1, 0
  %v2427 = vsel %vm2395, 1, 0
  %v2428 = vsel %vm2396, 1, 0
  %v2429 = vsel %vm2397, 1, 0
  %v2430 = vsel %vm2398, 1, 0
  %v2431 = vsel %vm2399, 1, 0
  %v2432 = vsel %vm2400, 1, 0
  %v2433 = vsel %vm2401, 1, 0
  %v2434 = vsel %vm2402, 1, 0
  %v2435 = vsel %vm2403, 1, 0
  %v2436 = vsel %vm2404, 1, 0
  %v2437 = vsel %vm2405, 1, 0
  %v2438 = vsel %vm2406, 1, 0
  %v2439 = vsel %vm2407, 1, 0
  %v2440 = vsel %vm2408, 1, 0
  %v2441 = vsel %vm2409, 1, 0
  %v2442 = vsel %vm2410, 1, 0
  %v2443 = vsel %vm2411, 1, 0
  %v2444 = vsel %vm2412, 1, 0
  %v2445 = vcvt.s32.f32 %v2413
  %v2446 = vcvt.s32.f32 %v2414
  %v2447 = vcvt.s32.f32 %v2415
  %v2448 = vcvt.s32.f32 %v2416
  %v2449 = vcvt.s32.f32 %v2417
  %v2450 = vcvt.s32.f32 %v2418
  %v2451 = vcvt.s32.f32 %v2419
  %v2452 = vcvt.s32.f32 %v2420
  %v2453 = vcvt.s32.f32 %v2421
  %v2454 = vcvt.s32.f32 %v2422
  %v2455 = vcvt.s32.f32 %v2423
  %v2456 = vcvt.s32.f32 %v2424
  %v2457 = vcvt.s32.f32 %v2425
  %v2458 = vcvt.s32.f32 %v2426
  %v2459 = vcvt.s32.f32 %v2427
  %v2460 = vcvt.s32.f32 %v2428
  %v2461 = vcvt.s32.f32 %v2429
  %v2462 = vcvt.s32.f32 %v2430
  %v2463 = vcvt.s32.f32 %v2431
  %v2464 = vcvt.s32.f32 %v2432
  %v2465 = vcvt.s32.f32 %v2433
  %v2466 = vcvt.s32.f32 %v2434
  %v2467 = vcvt.s32.f32 %v2435
  %v2468 = vcvt.s32.f32 %v2436
  %v2469 = vcvt.s32.f32 %v2437
  %v2470 = vcvt.s32.f32 %v2438
  %v2471 = vcvt.s32.f32 %v2439
  %v2472 = vcvt.s32.f32 %v2440
  %v2473 = vcvt.s32.f32 %v2441
  %v2474 = vcvt.s32.f32 %v2442
  %v2475 = vcvt.s32.f32 %v2443
  %v2476 = vcvt.s32.f32 %v2444
  %v2477 = vadd.f32 %v2253, %v2445
  %v2478 = vadd.f32 %v2254, %v2446
  %v2479 = vadd.f32 %v2255, %v2447
  %v2480 = vadd.f32 %v2256, %v2448
  %v2481 = vadd.f32 %v2257, %v2449
  %v2482 = vadd.f32 %v2258, %v2450
  %v2483 = vadd.f32 %v2259, %v2451
  %v2484 = vadd.f32 %v2260, %v2452
  %v2485 = vadd.f32 %v2261, %v2453
  %v2486 = vadd.f32 %v2262, %v2454
  %v2487 = vadd.f32 %v2263, %v2455
  %v2488 = vadd.f32 %v2264, %v2456
  %v2489 = vadd.f32 %v2265, %v2457
  %v2490 = vadd.f32 %v2266, %v2458
  %v2491 = vadd.f32 %v2267, %v2459
  %v2492 = vadd.f32 %v2268, %v2460
  %v2493 = vadd.f32 %v2269, %v2461
  %v2494 = vadd.f32 %v2270, %v2462
  %v2495 = vadd.f32 %v2271, %v2463
  %v2496 = vadd.f32 %v2272, %v2464
  %v2497 = vadd.f32 %v2273, %v2465
  %v2498 = vadd.f32 %v2274, %v2466
  %v2499 = vadd.f32 %v2275, %v2467
  %v2500 = vadd.f32 %v2276, %v2468
  %v2501 = vadd.f32 %v2277, %v2469
  %v2502 = vadd.f32 %v2278, %v2470
  %v2503 = vadd.f32 %v2279, %v2471
  %v2504 = vadd.f32 %v2280, %v2472
  %v2505 = vadd.f32 %v2281, %v2473
  %v2506 = vadd.f32 %v2282, %v2474
  %v2507 = vadd.f32 %v2283, %v2475
  %v2508 = vadd.f32 %v2284, %v2476
  %2509 = vset.pattern.permute.xlu0 11
  %2510 = vperm.xlu0 %2509, %v11
  %v2511 = vpop.permute.xlu0 %2510
  %2512 = vset.pattern.permute.xlu0 11
  %2513 = vperm.xlu0 %2512, %v12
  %v2514 = vpop.permute.xlu0 %2513
  %2515 = vset.pattern.permute.xlu0 11
  %2516 = vperm.xlu0 %2515, %v13
  %v2517 = vpop.permute.xlu0 %2516
  %2518 = vset.pattern.permute.xlu0 11
  %2519 = vperm.xlu0 %2518, %v14
  %v2520 = vpop.permute.xlu0 %2519
  %2521 = vset.pattern.permute.xlu0 11
  %2522 = vperm.xlu0 %2521, %v15
  %v2523 = vpop.permute.xlu0 %2522
  %2524 = vset.pattern.permute.xlu0 11
  %2525 = vperm.xlu0 %2524, %v16
  %v2526 = vpop.permute.xlu0 %2525
  %2527 = vset.pattern.permute.xlu0 11
  %2528 = vperm.xlu0 %2527, %v17
  %v2529 = vpop.permute.xlu0 %2528
  %2530 = vset.pattern.permute.xlu0 11
  %2531 = vperm.xlu0 %2530, %v18
  %v2532 = vpop.permute.xlu0 %2531
  %2533 = vset.pattern.permute.xlu0 11
  %2534 = vperm.xlu0 %2533, %v19
  %v2535 = vpop.permute.xlu0 %2534
  %2536 = vset.pattern.permute.xlu0 11
  %2537 = vperm.xlu0 %2536, %v20
  %v2538 = vpop.permute.xlu0 %2537
  %2539 = vset.pattern.permute.xlu0 11
  %2540 = vperm.xlu0 %2539, %v21
  %v2541 = vpop.permute.xlu0 %2540
  %2542 = vset.pattern.permute.xlu0 11
  %2543 = vperm.xlu0 %2542, %v22
  %v2544 = vpop.permute.xlu0 %2543
  %2545 = vset.pattern.permute.xlu0 11
  %2546 = vperm.xlu0 %2545, %v23
  %v2547 = vpop.permute.xlu0 %2546
  %2548 = vset.pattern.permute.xlu0 11
  %2549 = vperm.xlu0 %2548, %v24
  %v2550 = vpop.permute.xlu0 %2549
  %2551 = vset.pattern.permute.xlu0 11
  %2552 = vperm.xlu0 %2551, %v25
  %v2553 = vpop.permute.xlu0 %2552
  %2554 = vset.pattern.permute.xlu0 11
  %2555 = vperm.xlu0 %2554, %v26
  %v2556 = vpop.permute.xlu0 %2555
  %2557 = vset.pattern.permute.xlu0 11
  %2558 = vperm.xlu0 %2557, %v27
  %v2559 = vpop.permute.xlu0 %2558
  %2560 = vset.pattern.permute.xlu0 11
  %2561 = vperm.xlu0 %2560, %v28
  %v2562 = vpop.permute.xlu0 %2561
  %2563 = vset.pattern.permute.xlu0 11
  %2564 = vperm.xlu0 %2563, %v29
  %v2565 = vpop.permute.xlu0 %2564
  %2566 = vset.pattern.permute.xlu0 11
  %2567 = vperm.xlu0 %2566, %v30
  %v2568 = vpop.permute.xlu0 %2567
  %2569 = vset.pattern.permute.xlu0 11
  %2570 = vperm.xlu0 %2569, %v31
  %v2571 = vpop.permute.xlu0 %2570
  %2572 = vset.pattern.permute.xlu0 11
  %2573 = vperm.xlu0 %2572, %v32
  %v2574 = vpop.permute.xlu0 %2573
  %2575 = vset.pattern.permute.xlu0 11
  %2576 = vperm.xlu0 %2575, %v33
  %v2577 = vpop.permute.xlu0 %2576
  %2578 = vset.pattern.permute.xlu0 11
  %2579 = vperm.xlu0 %2578, %v34
  %v2580 = vpop.permute.xlu0 %2579
  %2581 = vset.pattern.permute.xlu0 11
  %2582 = vperm.xlu0 %2581, %v35
  %v2583 = vpop.permute.xlu0 %2582
  %2584 = vset.pattern.permute.xlu0 11
  %2585 = vperm.xlu0 %2584, %v36
  %v2586 = vpop.permute.xlu0 %2585
  %2587 = vset.pattern.permute.xlu0 11
  %2588 = vperm.xlu0 %2587, %v37
  %v2589 = vpop.permute.xlu0 %2588
  %2590 = vset.pattern.permute.xlu0 11
  %2591 = vperm.xlu0 %2590, %v38
  %v2592 = vpop.permute.xlu0 %2591
  %2593 = vset.pattern.permute.xlu0 11
  %2594 = vperm.xlu0 %2593, %v39
  %v2595 = vpop.permute.xlu0 %2594
  %2596 = vset.pattern.permute.xlu0 11
  %2597 = vperm.xlu0 %2596, %v40
  %v2598 = vpop.permute.xlu0 %2597
  %2599 = vset.pattern.permute.xlu0 11
  %2600 = vperm.xlu0 %2599, %v41
  %v2601 = vpop.permute.xlu0 %2600
  %2602 = vset.pattern.permute.xlu0 11
  %2603 = vperm.xlu0 %2602, %v42
  %v2604 = vpop.permute.xlu0 %2603
  %vm2605 = vcmp.eq.s32.totalorder %v2511, %v44
  %vm2606 = vcmp.eq.s32.totalorder %v2514, %v44
  %vm2607 = vcmp.eq.s32.totalorder %v2517, %v44
  %vm2608 = vcmp.eq.s32.totalorder %v2520, %v44
  %vm2609 = vcmp.eq.s32.totalorder %v2523, %v44
  %vm2610 = vcmp.eq.s32.totalorder %v2526, %v44
  %vm2611 = vcmp.eq.s32.totalorder %v2529, %v44
  %vm2612 = vcmp.eq.s32.totalorder %v2532, %v44
  %vm2613 = vcmp.eq.s32.totalorder %v2535, %v44
  %vm2614 = vcmp.eq.s32.totalorder %v2538, %v44
  %vm2615 = vcmp.eq.s32.totalorder %v2541, %v44
  %vm2616 = vcmp.eq.s32.totalorder %v2544, %v44
  %vm2617 = vcmp.eq.s32.totalorder %v2547, %v44
  %vm2618 = vcmp.eq.s32.totalorder %v2550, %v44
  %vm2619 = vcmp.eq.s32.totalorder %v2553, %v44
  %vm2620 = vcmp.eq.s32.totalorder %v2556, %v44
  %vm2621 = vcmp.eq.s32.totalorder %v2559, %v44
  %vm2622 = vcmp.eq.s32.totalorder %v2562, %v44
  %vm2623 = vcmp.eq.s32.totalorder %v2565, %v44
  %vm2624 = vcmp.eq.s32.totalorder %v2568, %v44
  %vm2625 = vcmp.eq.s32.totalorder %v2571, %v44
  %vm2626 = vcmp.eq.s32.totalorder %v2574, %v44
  %vm2627 = vcmp.eq.s32.totalorder %v2577, %v44
  %vm2628 = vcmp.eq.s32.totalorder %v2580, %v44
  %vm2629 = vcmp.eq.s32.totalorder %v2583, %v44
  %vm2630 = vcmp.eq.s32.totalorder %v2586, %v44
  %vm2631 = vcmp.eq.s32.totalorder %v2589, %v44
  %vm2632 = vcmp.eq.s32.totalorder %v2592, %v44
  %vm2633 = vcmp.eq.s32.totalorder %v2595, %v44
  %vm2634 = vcmp.eq.s32.totalorder %v2598, %v44
  %vm2635 = vcmp.eq.s32.totalorder %v2601, %v44
  %vm2636 = vcmp.eq.s32.totalorder %v2604, %v44
  %v2637 = vsel %vm2605, 1, 0
  %v2638 = vsel %vm2606, 1, 0
  %v2639 = vsel %vm2607, 1, 0
  %v2640 = vsel %vm2608, 1, 0
  %v2641 = vsel %vm2609, 1, 0
  %v2642 = vsel %vm2610, 1, 0
  %v2643 = vsel %vm2611, 1, 0
  %v2644 = vsel %vm2612, 1, 0
  %v2645 = vsel %vm2613, 1, 0
  %v2646 = vsel %vm2614, 1, 0
  %v2647 = vsel %vm2615, 1, 0
  %v2648 = vsel %vm2616, 1, 0
  %v2649 = vsel %vm2617, 1, 0
  %v2650 = vsel %vm2618, 1, 0
  %v2651 = vsel %vm2619, 1, 0
  %v2652 = vsel %vm2620, 1, 0
  %v2653 = vsel %vm2621, 1, 0
  %v2654 = vsel %vm2622, 1, 0
  %v2655 = vsel %vm2623, 1, 0
  %v2656 = vsel %vm2624, 1, 0
  %v2657 = vsel %vm2625, 1, 0
  %v2658 = vsel %vm2626, 1, 0
  %v2659 = vsel %vm2627, 1, 0
  %v2660 = vsel %vm2628, 1, 0
  %v2661 = vsel %vm2629, 1, 0
  %v2662 = vsel %vm2630, 1, 0
  %v2663 = vsel %vm2631, 1, 0
  %v2664 = vsel %vm2632, 1, 0
  %v2665 = vsel %vm2633, 1, 0
  %v2666 = vsel %vm2634, 1, 0
  %v2667 = vsel %vm2635, 1, 0
  %v2668 = vsel %vm2636, 1, 0
  %v2669 = vcvt.s32.f32 %v2637
  %v2670 = vcvt.s32.f32 %v2638
  %v2671 = vcvt.s32.f32 %v2639
  %v2672 = vcvt.s32.f32 %v2640
  %v2673 = vcvt.s32.f32 %v2641
  %v2674 = vcvt.s32.f32 %v2642
  %v2675 = vcvt.s32.f32 %v2643
  %v2676 = vcvt.s32.f32 %v2644
  %v2677 = vcvt.s32.f32 %v2645
  %v2678 = vcvt.s32.f32 %v2646
  %v2679 = vcvt.s32.f32 %v2647
  %v2680 = vcvt.s32.f32 %v2648
  %v2681 = vcvt.s32.f32 %v2649
  %v2682 = vcvt.s32.f32 %v2650
  %v2683 = vcvt.s32.f32 %v2651
  %v2684 = vcvt.s32.f32 %v2652
  %v2685 = vcvt.s32.f32 %v2653
  %v2686 = vcvt.s32.f32 %v2654
  %v2687 = vcvt.s32.f32 %v2655
  %v2688 = vcvt.s32.f32 %v2656
  %v2689 = vcvt.s32.f32 %v2657
  %v2690 = vcvt.s32.f32 %v2658
  %v2691 = vcvt.s32.f32 %v2659
  %v2692 = vcvt.s32.f32 %v2660
  %v2693 = vcvt.s32.f32 %v2661
  %v2694 = vcvt.s32.f32 %v2662
  %v2695 = vcvt.s32.f32 %v2663
  %v2696 = vcvt.s32.f32 %v2664
  %v2697 = vcvt.s32.f32 %v2665
  %v2698 = vcvt.s32.f32 %v2666
  %v2699 = vcvt.s32.f32 %v2667
  %v2700 = vcvt.s32.f32 %v2668
  %v2701 = vadd.f32 %v2477, %v2669
  %v2702 = vadd.f32 %v2478, %v2670
  %v2703 = vadd.f32 %v2479, %v2671
  %v2704 = vadd.f32 %v2480, %v2672
  %v2705 = vadd.f32 %v2481, %v2673
  %v2706 = vadd.f32 %v2482, %v2674
  %v2707 = vadd.f32 %v2483, %v2675
  %v2708 = vadd.f32 %v2484, %v2676
  %v2709 = vadd.f32 %v2485, %v2677
  %v2710 = vadd.f32 %v2486, %v2678
  %v2711 = vadd.f32 %v2487, %v2679
  %v2712 = vadd.f32 %v2488, %v2680
  %v2713 = vadd.f32 %v2489, %v2681
  %v2714 = vadd.f32 %v2490, %v2682
  %v2715 = vadd.f32 %v2491, %v2683
  %v2716 = vadd.f32 %v2492, %v2684
  %v2717 = vadd.f32 %v2493, %v2685
  %v2718 = vadd.f32 %v2494, %v2686
  %v2719 = vadd.f32 %v2495, %v2687
  %v2720 = vadd.f32 %v2496, %v2688
  %v2721 = vadd.f32 %v2497, %v2689
  %v2722 = vadd.f32 %v2498, %v2690
  %v2723 = vadd.f32 %v2499, %v2691
  %v2724 = vadd.f32 %v2500, %v2692
  %v2725 = vadd.f32 %v2501, %v2693
  %v2726 = vadd.f32 %v2502, %v2694
  %v2727 = vadd.f32 %v2503, %v2695
  %v2728 = vadd.f32 %v2504, %v2696
  %v2729 = vadd.f32 %v2505, %v2697
  %v2730 = vadd.f32 %v2506, %v2698
  %v2731 = vadd.f32 %v2507, %v2699
  %v2732 = vadd.f32 %v2508, %v2700
  %2733 = vset.pattern.permute.xlu0 12
  %2734 = vperm.xlu0 %2733, %v11
  %v2735 = vpop.permute.xlu0 %2734
  %2736 = vset.pattern.permute.xlu0 12
  %2737 = vperm.xlu0 %2736, %v12
  %v2738 = vpop.permute.xlu0 %2737
  %2739 = vset.pattern.permute.xlu0 12
  %2740 = vperm.xlu0 %2739, %v13
  %v2741 = vpop.permute.xlu0 %2740
  %2742 = vset.pattern.permute.xlu0 12
  %2743 = vperm.xlu0 %2742, %v14
  %v2744 = vpop.permute.xlu0 %2743
  %2745 = vset.pattern.permute.xlu0 12
  %2746 = vperm.xlu0 %2745, %v15
  %v2747 = vpop.permute.xlu0 %2746
  %2748 = vset.pattern.permute.xlu0 12
  %2749 = vperm.xlu0 %2748, %v16
  %v2750 = vpop.permute.xlu0 %2749
  %2751 = vset.pattern.permute.xlu0 12
  %2752 = vperm.xlu0 %2751, %v17
  %v2753 = vpop.permute.xlu0 %2752
  %2754 = vset.pattern.permute.xlu0 12
  %2755 = vperm.xlu0 %2754, %v18
  %v2756 = vpop.permute.xlu0 %2755
  %2757 = vset.pattern.permute.xlu0 12
  %2758 = vperm.xlu0 %2757, %v19
  %v2759 = vpop.permute.xlu0 %2758
  %2760 = vset.pattern.permute.xlu0 12
  %2761 = vperm.xlu0 %2760, %v20
  %v2762 = vpop.permute.xlu0 %2761
  %2763 = vset.pattern.permute.xlu0 12
  %2764 = vperm.xlu0 %2763, %v21
  %v2765 = vpop.permute.xlu0 %2764
  %2766 = vset.pattern.permute.xlu0 12
  %2767 = vperm.xlu0 %2766, %v22
  %v2768 = vpop.permute.xlu0 %2767
  %2769 = vset.pattern.permute.xlu0 12
  %2770 = vperm.xlu0 %2769, %v23
  %v2771 = vpop.permute.xlu0 %2770
  %2772 = vset.pattern.permute.xlu0 12
  %2773 = vperm.xlu0 %2772, %v24
  %v2774 = vpop.permute.xlu0 %2773
  %2775 = vset.pattern.permute.xlu0 12
  %2776 = vperm.xlu0 %2775, %v25
  %v2777 = vpop.permute.xlu0 %2776
  %2778 = vset.pattern.permute.xlu0 12
  %2779 = vperm.xlu0 %2778, %v26
  %v2780 = vpop.permute.xlu0 %2779
  %2781 = vset.pattern.permute.xlu0 12
  %2782 = vperm.xlu0 %2781, %v27
  %v2783 = vpop.permute.xlu0 %2782
  %2784 = vset.pattern.permute.xlu0 12
  %2785 = vperm.xlu0 %2784, %v28
  %v2786 = vpop.permute.xlu0 %2785
  %2787 = vset.pattern.permute.xlu0 12
  %2788 = vperm.xlu0 %2787, %v29
  %v2789 = vpop.permute.xlu0 %2788
  %2790 = vset.pattern.permute.xlu0 12
  %2791 = vperm.xlu0 %2790, %v30
  %v2792 = vpop.permute.xlu0 %2791
  %2793 = vset.pattern.permute.xlu0 12
  %2794 = vperm.xlu0 %2793, %v31
  %v2795 = vpop.permute.xlu0 %2794
  %2796 = vset.pattern.permute.xlu0 12
  %2797 = vperm.xlu0 %2796, %v32
  %v2798 = vpop.permute.xlu0 %2797
  %2799 = vset.pattern.permute.xlu0 12
  %2800 = vperm.xlu0 %2799, %v33
  %v2801 = vpop.permute.xlu0 %2800
  %2802 = vset.pattern.permute.xlu0 12
  %2803 = vperm.xlu0 %2802, %v34
  %v2804 = vpop.permute.xlu0 %2803
  %2805 = vset.pattern.permute.xlu0 12
  %2806 = vperm.xlu0 %2805, %v35
  %v2807 = vpop.permute.xlu0 %2806
  %2808 = vset.pattern.permute.xlu0 12
  %2809 = vperm.xlu0 %2808, %v36
  %v2810 = vpop.permute.xlu0 %2809
  %2811 = vset.pattern.permute.xlu0 12
  %2812 = vperm.xlu0 %2811, %v37
  %v2813 = vpop.permute.xlu0 %2812
  %2814 = vset.pattern.permute.xlu0 12
  %2815 = vperm.xlu0 %2814, %v38
  %v2816 = vpop.permute.xlu0 %2815
  %2817 = vset.pattern.permute.xlu0 12
  %2818 = vperm.xlu0 %2817, %v39
  %v2819 = vpop.permute.xlu0 %2818
  %2820 = vset.pattern.permute.xlu0 12
  %2821 = vperm.xlu0 %2820, %v40
  %v2822 = vpop.permute.xlu0 %2821
  %2823 = vset.pattern.permute.xlu0 12
  %2824 = vperm.xlu0 %2823, %v41
  %v2825 = vpop.permute.xlu0 %2824
  %2826 = vset.pattern.permute.xlu0 12
  %2827 = vperm.xlu0 %2826, %v42
  %v2828 = vpop.permute.xlu0 %2827
  %vm2829 = vcmp.eq.s32.totalorder %v2735, %v44
  %vm2830 = vcmp.eq.s32.totalorder %v2738, %v44
  %vm2831 = vcmp.eq.s32.totalorder %v2741, %v44
  %vm2832 = vcmp.eq.s32.totalorder %v2744, %v44
  %vm2833 = vcmp.eq.s32.totalorder %v2747, %v44
  %vm2834 = vcmp.eq.s32.totalorder %v2750, %v44
  %vm2835 = vcmp.eq.s32.totalorder %v2753, %v44
  %vm2836 = vcmp.eq.s32.totalorder %v2756, %v44
  %vm2837 = vcmp.eq.s32.totalorder %v2759, %v44
  %vm2838 = vcmp.eq.s32.totalorder %v2762, %v44
  %vm2839 = vcmp.eq.s32.totalorder %v2765, %v44
  %vm2840 = vcmp.eq.s32.totalorder %v2768, %v44
  %vm2841 = vcmp.eq.s32.totalorder %v2771, %v44
  %vm2842 = vcmp.eq.s32.totalorder %v2774, %v44
  %vm2843 = vcmp.eq.s32.totalorder %v2777, %v44
  %vm2844 = vcmp.eq.s32.totalorder %v2780, %v44
  %vm2845 = vcmp.eq.s32.totalorder %v2783, %v44
  %vm2846 = vcmp.eq.s32.totalorder %v2786, %v44
  %vm2847 = vcmp.eq.s32.totalorder %v2789, %v44
  %vm2848 = vcmp.eq.s32.totalorder %v2792, %v44
  %vm2849 = vcmp.eq.s32.totalorder %v2795, %v44
  %vm2850 = vcmp.eq.s32.totalorder %v2798, %v44
  %vm2851 = vcmp.eq.s32.totalorder %v2801, %v44
  %vm2852 = vcmp.eq.s32.totalorder %v2804, %v44
  %vm2853 = vcmp.eq.s32.totalorder %v2807, %v44
  %vm2854 = vcmp.eq.s32.totalorder %v2810, %v44
  %vm2855 = vcmp.eq.s32.totalorder %v2813, %v44
  %vm2856 = vcmp.eq.s32.totalorder %v2816, %v44
  %vm2857 = vcmp.eq.s32.totalorder %v2819, %v44
  %vm2858 = vcmp.eq.s32.totalorder %v2822, %v44
  %vm2859 = vcmp.eq.s32.totalorder %v2825, %v44
  %vm2860 = vcmp.eq.s32.totalorder %v2828, %v44
  %v2861 = vsel %vm2829, 1, 0
  %v2862 = vsel %vm2830, 1, 0
  %v2863 = vsel %vm2831, 1, 0
  %v2864 = vsel %vm2832, 1, 0
  %v2865 = vsel %vm2833, 1, 0
  %v2866 = vsel %vm2834, 1, 0
  %v2867 = vsel %vm2835, 1, 0
  %v2868 = vsel %vm2836, 1, 0
  %v2869 = vsel %vm2837, 1, 0
  %v2870 = vsel %vm2838, 1, 0
  %v2871 = vsel %vm2839, 1, 0
  %v2872 = vsel %vm2840, 1, 0
  %v2873 = vsel %vm2841, 1, 0
  %v2874 = vsel %vm2842, 1, 0
  %v2875 = vsel %vm2843, 1, 0
  %v2876 = vsel %vm2844, 1, 0
  %v2877 = vsel %vm2845, 1, 0
  %v2878 = vsel %vm2846, 1, 0
  %v2879 = vsel %vm2847, 1, 0
  %v2880 = vsel %vm2848, 1, 0
  %v2881 = vsel %vm2849, 1, 0
  %v2882 = vsel %vm2850, 1, 0
  %v2883 = vsel %vm2851, 1, 0
  %v2884 = vsel %vm2852, 1, 0
  %v2885 = vsel %vm2853, 1, 0
  %v2886 = vsel %vm2854, 1, 0
  %v2887 = vsel %vm2855, 1, 0
  %v2888 = vsel %vm2856, 1, 0
  %v2889 = vsel %vm2857, 1, 0
  %v2890 = vsel %vm2858, 1, 0
  %v2891 = vsel %vm2859, 1, 0
  %v2892 = vsel %vm2860, 1, 0
  %v2893 = vcvt.s32.f32 %v2861
  %v2894 = vcvt.s32.f32 %v2862
  %v2895 = vcvt.s32.f32 %v2863
  %v2896 = vcvt.s32.f32 %v2864
  %v2897 = vcvt.s32.f32 %v2865
  %v2898 = vcvt.s32.f32 %v2866
  %v2899 = vcvt.s32.f32 %v2867
  %v2900 = vcvt.s32.f32 %v2868
  %v2901 = vcvt.s32.f32 %v2869
  %v2902 = vcvt.s32.f32 %v2870
  %v2903 = vcvt.s32.f32 %v2871
  %v2904 = vcvt.s32.f32 %v2872
  %v2905 = vcvt.s32.f32 %v2873
  %v2906 = vcvt.s32.f32 %v2874
  %v2907 = vcvt.s32.f32 %v2875
  %v2908 = vcvt.s32.f32 %v2876
  %v2909 = vcvt.s32.f32 %v2877
  %v2910 = vcvt.s32.f32 %v2878
  %v2911 = vcvt.s32.f32 %v2879
  %v2912 = vcvt.s32.f32 %v2880
  %v2913 = vcvt.s32.f32 %v2881
  %v2914 = vcvt.s32.f32 %v2882
  %v2915 = vcvt.s32.f32 %v2883
  %v2916 = vcvt.s32.f32 %v2884
  %v2917 = vcvt.s32.f32 %v2885
  %v2918 = vcvt.s32.f32 %v2886
  %v2919 = vcvt.s32.f32 %v2887
  %v2920 = vcvt.s32.f32 %v2888
  %v2921 = vcvt.s32.f32 %v2889
  %v2922 = vcvt.s32.f32 %v2890
  %v2923 = vcvt.s32.f32 %v2891
  %v2924 = vcvt.s32.f32 %v2892
  %v2925 = vadd.f32 %v2701, %v2893
  %v2926 = vadd.f32 %v2702, %v2894
  %v2927 = vadd.f32 %v2703, %v2895
  %v2928 = vadd.f32 %v2704, %v2896
  %v2929 = vadd.f32 %v2705, %v2897
  %v2930 = vadd.f32 %v2706, %v2898
  %v2931 = vadd.f32 %v2707, %v2899
  %v2932 = vadd.f32 %v2708, %v2900
  %v2933 = vadd.f32 %v2709, %v2901
  %v2934 = vadd.f32 %v2710, %v2902
  %v2935 = vadd.f32 %v2711, %v2903
  %v2936 = vadd.f32 %v2712, %v2904
  %v2937 = vadd.f32 %v2713, %v2905
  %v2938 = vadd.f32 %v2714, %v2906
  %v2939 = vadd.f32 %v2715, %v2907
  %v2940 = vadd.f32 %v2716, %v2908
  %v2941 = vadd.f32 %v2717, %v2909
  %v2942 = vadd.f32 %v2718, %v2910
  %v2943 = vadd.f32 %v2719, %v2911
  %v2944 = vadd.f32 %v2720, %v2912
  %v2945 = vadd.f32 %v2721, %v2913
  %v2946 = vadd.f32 %v2722, %v2914
  %v2947 = vadd.f32 %v2723, %v2915
  %v2948 = vadd.f32 %v2724, %v2916
  %v2949 = vadd.f32 %v2725, %v2917
  %v2950 = vadd.f32 %v2726, %v2918
  %v2951 = vadd.f32 %v2727, %v2919
  %v2952 = vadd.f32 %v2728, %v2920
  %v2953 = vadd.f32 %v2729, %v2921
  %v2954 = vadd.f32 %v2730, %v2922
  %v2955 = vadd.f32 %v2731, %v2923
  %v2956 = vadd.f32 %v2732, %v2924
  %2957 = vset.pattern.permute.xlu0 13
  %2958 = vperm.xlu0 %2957, %v11
  %v2959 = vpop.permute.xlu0 %2958
  %2960 = vset.pattern.permute.xlu0 13
  %2961 = vperm.xlu0 %2960, %v12
  %v2962 = vpop.permute.xlu0 %2961
  %2963 = vset.pattern.permute.xlu0 13
  %2964 = vperm.xlu0 %2963, %v13
  %v2965 = vpop.permute.xlu0 %2964
  %2966 = vset.pattern.permute.xlu0 13
  %2967 = vperm.xlu0 %2966, %v14
  %v2968 = vpop.permute.xlu0 %2967
  %2969 = vset.pattern.permute.xlu0 13
  %2970 = vperm.xlu0 %2969, %v15
  %v2971 = vpop.permute.xlu0 %2970
  %2972 = vset.pattern.permute.xlu0 13
  %2973 = vperm.xlu0 %2972, %v16
  %v2974 = vpop.permute.xlu0 %2973
  %2975 = vset.pattern.permute.xlu0 13
  %2976 = vperm.xlu0 %2975, %v17
  %v2977 = vpop.permute.xlu0 %2976
  %2978 = vset.pattern.permute.xlu0 13
  %2979 = vperm.xlu0 %2978, %v18
  %v2980 = vpop.permute.xlu0 %2979
  %2981 = vset.pattern.permute.xlu0 13
  %2982 = vperm.xlu0 %2981, %v19
  %v2983 = vpop.permute.xlu0 %2982
  %2984 = vset.pattern.permute.xlu0 13
  %2985 = vperm.xlu0 %2984, %v20
  %v2986 = vpop.permute.xlu0 %2985
  %2987 = vset.pattern.permute.xlu0 13
  %2988 = vperm.xlu0 %2987, %v21
  %v2989 = vpop.permute.xlu0 %2988
  %2990 = vset.pattern.permute.xlu0 13
  %2991 = vperm.xlu0 %2990, %v22
  %v2992 = vpop.permute.xlu0 %2991
  %2993 = vset.pattern.permute.xlu0 13
  %2994 = vperm.xlu0 %2993, %v23
  %v2995 = vpop.permute.xlu0 %2994
  %2996 = vset.pattern.permute.xlu0 13
  %2997 = vperm.xlu0 %2996, %v24
  %v2998 = vpop.permute.xlu0 %2997
  %2999 = vset.pattern.permute.xlu0 13
  %3000 = vperm.xlu0 %2999, %v25
  %v3001 = vpop.permute.xlu0 %3000
  %3002 = vset.pattern.permute.xlu0 13
  %3003 = vperm.xlu0 %3002, %v26
  %v3004 = vpop.permute.xlu0 %3003
  %3005 = vset.pattern.permute.xlu0 13
  %3006 = vperm.xlu0 %3005, %v27
  %v3007 = vpop.permute.xlu0 %3006
  %3008 = vset.pattern.permute.xlu0 13
  %3009 = vperm.xlu0 %3008, %v28
  %v3010 = vpop.permute.xlu0 %3009
  %3011 = vset.pattern.permute.xlu0 13
  %3012 = vperm.xlu0 %3011, %v29
  %v3013 = vpop.permute.xlu0 %3012
  %3014 = vset.pattern.permute.xlu0 13
  %3015 = vperm.xlu0 %3014, %v30
  %v3016 = vpop.permute.xlu0 %3015
  %3017 = vset.pattern.permute.xlu0 13
  %3018 = vperm.xlu0 %3017, %v31
  %v3019 = vpop.permute.xlu0 %3018
  %3020 = vset.pattern.permute.xlu0 13
  %3021 = vperm.xlu0 %3020, %v32
  %v3022 = vpop.permute.xlu0 %3021
  %3023 = vset.pattern.permute.xlu0 13
  %3024 = vperm.xlu0 %3023, %v33
  %v3025 = vpop.permute.xlu0 %3024
  %3026 = vset.pattern.permute.xlu0 13
  %3027 = vperm.xlu0 %3026, %v34
  %v3028 = vpop.permute.xlu0 %3027
  %3029 = vset.pattern.permute.xlu0 13
  %3030 = vperm.xlu0 %3029, %v35
  %v3031 = vpop.permute.xlu0 %3030
  %3032 = vset.pattern.permute.xlu0 13
  %3033 = vperm.xlu0 %3032, %v36
  %v3034 = vpop.permute.xlu0 %3033
  %3035 = vset.pattern.permute.xlu0 13
  %3036 = vperm.xlu0 %3035, %v37
  %v3037 = vpop.permute.xlu0 %3036
  %3038 = vset.pattern.permute.xlu0 13
  %3039 = vperm.xlu0 %3038, %v38
  %v3040 = vpop.permute.xlu0 %3039
  %3041 = vset.pattern.permute.xlu0 13
  %3042 = vperm.xlu0 %3041, %v39
  %v3043 = vpop.permute.xlu0 %3042
  %3044 = vset.pattern.permute.xlu0 13
  %3045 = vperm.xlu0 %3044, %v40
  %v3046 = vpop.permute.xlu0 %3045
  %3047 = vset.pattern.permute.xlu0 13
  %3048 = vperm.xlu0 %3047, %v41
  %v3049 = vpop.permute.xlu0 %3048
  %3050 = vset.pattern.permute.xlu0 13
  %3051 = vperm.xlu0 %3050, %v42
  %v3052 = vpop.permute.xlu0 %3051
  %vm3053 = vcmp.eq.s32.totalorder %v2959, %v44
  %vm3054 = vcmp.eq.s32.totalorder %v2962, %v44
  %vm3055 = vcmp.eq.s32.totalorder %v2965, %v44
  %vm3056 = vcmp.eq.s32.totalorder %v2968, %v44
  %vm3057 = vcmp.eq.s32.totalorder %v2971, %v44
  %vm3058 = vcmp.eq.s32.totalorder %v2974, %v44
  %vm3059 = vcmp.eq.s32.totalorder %v2977, %v44
  %vm3060 = vcmp.eq.s32.totalorder %v2980, %v44
  %vm3061 = vcmp.eq.s32.totalorder %v2983, %v44
  %vm3062 = vcmp.eq.s32.totalorder %v2986, %v44
  %vm3063 = vcmp.eq.s32.totalorder %v2989, %v44
  %vm3064 = vcmp.eq.s32.totalorder %v2992, %v44
  %vm3065 = vcmp.eq.s32.totalorder %v2995, %v44
  %vm3066 = vcmp.eq.s32.totalorder %v2998, %v44
  %vm3067 = vcmp.eq.s32.totalorder %v3001, %v44
  %vm3068 = vcmp.eq.s32.totalorder %v3004, %v44
  %vm3069 = vcmp.eq.s32.totalorder %v3007, %v44
  %vm3070 = vcmp.eq.s32.totalorder %v3010, %v44
  %vm3071 = vcmp.eq.s32.totalorder %v3013, %v44
  %vm3072 = vcmp.eq.s32.totalorder %v3016, %v44
  %vm3073 = vcmp.eq.s32.totalorder %v3019, %v44
  %vm3074 = vcmp.eq.s32.totalorder %v3022, %v44
  %vm3075 = vcmp.eq.s32.totalorder %v3025, %v44
  %vm3076 = vcmp.eq.s32.totalorder %v3028, %v44
  %vm3077 = vcmp.eq.s32.totalorder %v3031, %v44
  %vm3078 = vcmp.eq.s32.totalorder %v3034, %v44
  %vm3079 = vcmp.eq.s32.totalorder %v3037, %v44
  %vm3080 = vcmp.eq.s32.totalorder %v3040, %v44
  %vm3081 = vcmp.eq.s32.totalorder %v3043, %v44
  %vm3082 = vcmp.eq.s32.totalorder %v3046, %v44
  %vm3083 = vcmp.eq.s32.totalorder %v3049, %v44
  %vm3084 = vcmp.eq.s32.totalorder %v3052, %v44
  %v3085 = vsel %vm3053, 1, 0
  %v3086 = vsel %vm3054, 1, 0
  %v3087 = vsel %vm3055, 1, 0
  %v3088 = vsel %vm3056, 1, 0
  %v3089 = vsel %vm3057, 1, 0
  %v3090 = vsel %vm3058, 1, 0
  %v3091 = vsel %vm3059, 1, 0
  %v3092 = vsel %vm3060, 1, 0
  %v3093 = vsel %vm3061, 1, 0
  %v3094 = vsel %vm3062, 1, 0
  %v3095 = vsel %vm3063, 1, 0
  %v3096 = vsel %vm3064, 1, 0
  %v3097 = vsel %vm3065, 1, 0
  %v3098 = vsel %vm3066, 1, 0
  %v3099 = vsel %vm3067, 1, 0
  %v3100 = vsel %vm3068, 1, 0
  %v3101 = vsel %vm3069, 1, 0
  %v3102 = vsel %vm3070, 1, 0
  %v3103 = vsel %vm3071, 1, 0
  %v3104 = vsel %vm3072, 1, 0
  %v3105 = vsel %vm3073, 1, 0
  %v3106 = vsel %vm3074, 1, 0
  %v3107 = vsel %vm3075, 1, 0
  %v3108 = vsel %vm3076, 1, 0
  %v3109 = vsel %vm3077, 1, 0
  %v3110 = vsel %vm3078, 1, 0
  %v3111 = vsel %vm3079, 1, 0
  %v3112 = vsel %vm3080, 1, 0
  %v3113 = vsel %vm3081, 1, 0
  %v3114 = vsel %vm3082, 1, 0
  %v3115 = vsel %vm3083, 1, 0
  %v3116 = vsel %vm3084, 1, 0
  %v3117 = vcvt.s32.f32 %v3085
  %v3118 = vcvt.s32.f32 %v3086
  %v3119 = vcvt.s32.f32 %v3087
  %v3120 = vcvt.s32.f32 %v3088
  %v3121 = vcvt.s32.f32 %v3089
  %v3122 = vcvt.s32.f32 %v3090
  %v3123 = vcvt.s32.f32 %v3091
  %v3124 = vcvt.s32.f32 %v3092
  %v3125 = vcvt.s32.f32 %v3093
  %v3126 = vcvt.s32.f32 %v3094
  %v3127 = vcvt.s32.f32 %v3095
  %v3128 = vcvt.s32.f32 %v3096
  %v3129 = vcvt.s32.f32 %v3097
  %v3130 = vcvt.s32.f32 %v3098
  %v3131 = vcvt.s32.f32 %v3099
  %v3132 = vcvt.s32.f32 %v3100
  %v3133 = vcvt.s32.f32 %v3101
  %v3134 = vcvt.s32.f32 %v3102
  %v3135 = vcvt.s32.f32 %v3103
  %v3136 = vcvt.s32.f32 %v3104
  %v3137 = vcvt.s32.f32 %v3105
  %v3138 = vcvt.s32.f32 %v3106
  %v3139 = vcvt.s32.f32 %v3107
  %v3140 = vcvt.s32.f32 %v3108
  %v3141 = vcvt.s32.f32 %v3109
  %v3142 = vcvt.s32.f32 %v3110
  %v3143 = vcvt.s32.f32 %v3111
  %v3144 = vcvt.s32.f32 %v3112
  %v3145 = vcvt.s32.f32 %v3113
  %v3146 = vcvt.s32.f32 %v3114
  %v3147 = vcvt.s32.f32 %v3115
  %v3148 = vcvt.s32.f32 %v3116
  %v3149 = vadd.f32 %v2925, %v3117
  %v3150 = vadd.f32 %v2926, %v3118
  %v3151 = vadd.f32 %v2927, %v3119
  %v3152 = vadd.f32 %v2928, %v3120
  %v3153 = vadd.f32 %v2929, %v3121
  %v3154 = vadd.f32 %v2930, %v3122
  %v3155 = vadd.f32 %v2931, %v3123
  %v3156 = vadd.f32 %v2932, %v3124
  %v3157 = vadd.f32 %v2933, %v3125
  %v3158 = vadd.f32 %v2934, %v3126
  %v3159 = vadd.f32 %v2935, %v3127
  %v3160 = vadd.f32 %v2936, %v3128
  %v3161 = vadd.f32 %v2937, %v3129
  %v3162 = vadd.f32 %v2938, %v3130
  %v3163 = vadd.f32 %v2939, %v3131
  %v3164 = vadd.f32 %v2940, %v3132
  %v3165 = vadd.f32 %v2941, %v3133
  %v3166 = vadd.f32 %v2942, %v3134
  %v3167 = vadd.f32 %v2943, %v3135
  %v3168 = vadd.f32 %v2944, %v3136
  %v3169 = vadd.f32 %v2945, %v3137
  %v3170 = vadd.f32 %v2946, %v3138
  %v3171 = vadd.f32 %v2947, %v3139
  %v3172 = vadd.f32 %v2948, %v3140
  %v3173 = vadd.f32 %v2949, %v3141
  %v3174 = vadd.f32 %v2950, %v3142
  %v3175 = vadd.f32 %v2951, %v3143
  %v3176 = vadd.f32 %v2952, %v3144
  %v3177 = vadd.f32 %v2953, %v3145
  %v3178 = vadd.f32 %v2954, %v3146
  %v3179 = vadd.f32 %v2955, %v3147
  %v3180 = vadd.f32 %v2956, %v3148
  %3181 = vset.pattern.permute.xlu0 14
  %3182 = vperm.xlu0 %3181, %v11
  %v3183 = vpop.permute.xlu0 %3182
  %3184 = vset.pattern.permute.xlu0 14
  %3185 = vperm.xlu0 %3184, %v12
  %v3186 = vpop.permute.xlu0 %3185
  %3187 = vset.pattern.permute.xlu0 14
  %3188 = vperm.xlu0 %3187, %v13
  %v3189 = vpop.permute.xlu0 %3188
  %3190 = vset.pattern.permute.xlu0 14
  %3191 = vperm.xlu0 %3190, %v14
  %v3192 = vpop.permute.xlu0 %3191
  %3193 = vset.pattern.permute.xlu0 14
  %3194 = vperm.xlu0 %3193, %v15
  %v3195 = vpop.permute.xlu0 %3194
  %3196 = vset.pattern.permute.xlu0 14
  %3197 = vperm.xlu0 %3196, %v16
  %v3198 = vpop.permute.xlu0 %3197
  %3199 = vset.pattern.permute.xlu0 14
  %3200 = vperm.xlu0 %3199, %v17
  %v3201 = vpop.permute.xlu0 %3200
  %3202 = vset.pattern.permute.xlu0 14
  %3203 = vperm.xlu0 %3202, %v18
  %v3204 = vpop.permute.xlu0 %3203
  %3205 = vset.pattern.permute.xlu0 14
  %3206 = vperm.xlu0 %3205, %v19
  %v3207 = vpop.permute.xlu0 %3206
  %3208 = vset.pattern.permute.xlu0 14
  %3209 = vperm.xlu0 %3208, %v20
  %v3210 = vpop.permute.xlu0 %3209
  %3211 = vset.pattern.permute.xlu0 14
  %3212 = vperm.xlu0 %3211, %v21
  %v3213 = vpop.permute.xlu0 %3212
  %3214 = vset.pattern.permute.xlu0 14
  %3215 = vperm.xlu0 %3214, %v22
  %v3216 = vpop.permute.xlu0 %3215
  %3217 = vset.pattern.permute.xlu0 14
  %3218 = vperm.xlu0 %3217, %v23
  %v3219 = vpop.permute.xlu0 %3218
  %3220 = vset.pattern.permute.xlu0 14
  %3221 = vperm.xlu0 %3220, %v24
  %v3222 = vpop.permute.xlu0 %3221
  %3223 = vset.pattern.permute.xlu0 14
  %3224 = vperm.xlu0 %3223, %v25
  %v3225 = vpop.permute.xlu0 %3224
  %3226 = vset.pattern.permute.xlu0 14
  %3227 = vperm.xlu0 %3226, %v26
  %v3228 = vpop.permute.xlu0 %3227
  %3229 = vset.pattern.permute.xlu0 14
  %3230 = vperm.xlu0 %3229, %v27
  %v3231 = vpop.permute.xlu0 %3230
  %3232 = vset.pattern.permute.xlu0 14
  %3233 = vperm.xlu0 %3232, %v28
  %v3234 = vpop.permute.xlu0 %3233
  %3235 = vset.pattern.permute.xlu0 14
  %3236 = vperm.xlu0 %3235, %v29
  %v3237 = vpop.permute.xlu0 %3236
  %3238 = vset.pattern.permute.xlu0 14
  %3239 = vperm.xlu0 %3238, %v30
  %v3240 = vpop.permute.xlu0 %3239
  %3241 = vset.pattern.permute.xlu0 14
  %3242 = vperm.xlu0 %3241, %v31
  %v3243 = vpop.permute.xlu0 %3242
  %3244 = vset.pattern.permute.xlu0 14
  %3245 = vperm.xlu0 %3244, %v32
  %v3246 = vpop.permute.xlu0 %3245
  %3247 = vset.pattern.permute.xlu0 14
  %3248 = vperm.xlu0 %3247, %v33
  %v3249 = vpop.permute.xlu0 %3248
  %3250 = vset.pattern.permute.xlu0 14
  %3251 = vperm.xlu0 %3250, %v34
  %v3252 = vpop.permute.xlu0 %3251
  %3253 = vset.pattern.permute.xlu0 14
  %3254 = vperm.xlu0 %3253, %v35
  %v3255 = vpop.permute.xlu0 %3254
  %3256 = vset.pattern.permute.xlu0 14
  %3257 = vperm.xlu0 %3256, %v36
  %v3258 = vpop.permute.xlu0 %3257
  %3259 = vset.pattern.permute.xlu0 14
  %3260 = vperm.xlu0 %3259, %v37
  %v3261 = vpop.permute.xlu0 %3260
  %3262 = vset.pattern.permute.xlu0 14
  %3263 = vperm.xlu0 %3262, %v38
  %v3264 = vpop.permute.xlu0 %3263
  %3265 = vset.pattern.permute.xlu0 14
  %3266 = vperm.xlu0 %3265, %v39
  %v3267 = vpop.permute.xlu0 %3266
  %3268 = vset.pattern.permute.xlu0 14
  %3269 = vperm.xlu0 %3268, %v40
  %v3270 = vpop.permute.xlu0 %3269
  %3271 = vset.pattern.permute.xlu0 14
  %3272 = vperm.xlu0 %3271, %v41
  %v3273 = vpop.permute.xlu0 %3272
  %3274 = vset.pattern.permute.xlu0 14
  %3275 = vperm.xlu0 %3274, %v42
  %v3276 = vpop.permute.xlu0 %3275
  %vm3277 = vcmp.eq.s32.totalorder %v3183, %v44
  %vm3278 = vcmp.eq.s32.totalorder %v3186, %v44
  %vm3279 = vcmp.eq.s32.totalorder %v3189, %v44
  %vm3280 = vcmp.eq.s32.totalorder %v3192, %v44
  %vm3281 = vcmp.eq.s32.totalorder %v3195, %v44
  %vm3282 = vcmp.eq.s32.totalorder %v3198, %v44
  %vm3283 = vcmp.eq.s32.totalorder %v3201, %v44
  %vm3284 = vcmp.eq.s32.totalorder %v3204, %v44
  %vm3285 = vcmp.eq.s32.totalorder %v3207, %v44
  %vm3286 = vcmp.eq.s32.totalorder %v3210, %v44
  %vm3287 = vcmp.eq.s32.totalorder %v3213, %v44
  %vm3288 = vcmp.eq.s32.totalorder %v3216, %v44
  %vm3289 = vcmp.eq.s32.totalorder %v3219, %v44
  %vm3290 = vcmp.eq.s32.totalorder %v3222, %v44
  %vm3291 = vcmp.eq.s32.totalorder %v3225, %v44
  %vm3292 = vcmp.eq.s32.totalorder %v3228, %v44
  %vm3293 = vcmp.eq.s32.totalorder %v3231, %v44
  %vm3294 = vcmp.eq.s32.totalorder %v3234, %v44
  %vm3295 = vcmp.eq.s32.totalorder %v3237, %v44
  %vm3296 = vcmp.eq.s32.totalorder %v3240, %v44
  %vm3297 = vcmp.eq.s32.totalorder %v3243, %v44
  %vm3298 = vcmp.eq.s32.totalorder %v3246, %v44
  %vm3299 = vcmp.eq.s32.totalorder %v3249, %v44
  %vm3300 = vcmp.eq.s32.totalorder %v3252, %v44
  %vm3301 = vcmp.eq.s32.totalorder %v3255, %v44
  %vm3302 = vcmp.eq.s32.totalorder %v3258, %v44
  %vm3303 = vcmp.eq.s32.totalorder %v3261, %v44
  %vm3304 = vcmp.eq.s32.totalorder %v3264, %v44
  %vm3305 = vcmp.eq.s32.totalorder %v3267, %v44
  %vm3306 = vcmp.eq.s32.totalorder %v3270, %v44
  %vm3307 = vcmp.eq.s32.totalorder %v3273, %v44
  %vm3308 = vcmp.eq.s32.totalorder %v3276, %v44
  %v3309 = vsel %vm3277, 1, 0
  %v3310 = vsel %vm3278, 1, 0
  %v3311 = vsel %vm3279, 1, 0
  %v3312 = vsel %vm3280, 1, 0
  %v3313 = vsel %vm3281, 1, 0
  %v3314 = vsel %vm3282, 1, 0
  %v3315 = vsel %vm3283, 1, 0
  %v3316 = vsel %vm3284, 1, 0
  %v3317 = vsel %vm3285, 1, 0
  %v3318 = vsel %vm3286, 1, 0
  %v3319 = vsel %vm3287, 1, 0
  %v3320 = vsel %vm3288, 1, 0
  %v3321 = vsel %vm3289, 1, 0
  %v3322 = vsel %vm3290, 1, 0
  %v3323 = vsel %vm3291, 1, 0
  %v3324 = vsel %vm3292, 1, 0
  %v3325 = vsel %vm3293, 1, 0
  %v3326 = vsel %vm3294, 1, 0
  %v3327 = vsel %vm3295, 1, 0
  %v3328 = vsel %vm3296, 1, 0
  %v3329 = vsel %vm3297, 1, 0
  %v3330 = vsel %vm3298, 1, 0
  %v3331 = vsel %vm3299, 1, 0
  %v3332 = vsel %vm3300, 1, 0
  %v3333 = vsel %vm3301, 1, 0
  %v3334 = vsel %vm3302, 1, 0
  %v3335 = vsel %vm3303, 1, 0
  %v3336 = vsel %vm3304, 1, 0
  %v3337 = vsel %vm3305, 1, 0
  %v3338 = vsel %vm3306, 1, 0
  %v3339 = vsel %vm3307, 1, 0
  %v3340 = vsel %vm3308, 1, 0
  %v3341 = vcvt.s32.f32 %v3309
  %v3342 = vcvt.s32.f32 %v3310
  %v3343 = vcvt.s32.f32 %v3311
  %v3344 = vcvt.s32.f32 %v3312
  %v3345 = vcvt.s32.f32 %v3313
  %v3346 = vcvt.s32.f32 %v3314
  %v3347 = vcvt.s32.f32 %v3315
  %v3348 = vcvt.s32.f32 %v3316
  %v3349 = vcvt.s32.f32 %v3317
  %v3350 = vcvt.s32.f32 %v3318
  %v3351 = vcvt.s32.f32 %v3319
  %v3352 = vcvt.s32.f32 %v3320
  %v3353 = vcvt.s32.f32 %v3321
  %v3354 = vcvt.s32.f32 %v3322
  %v3355 = vcvt.s32.f32 %v3323
  %v3356 = vcvt.s32.f32 %v3324
  %v3357 = vcvt.s32.f32 %v3325
  %v3358 = vcvt.s32.f32 %v3326
  %v3359 = vcvt.s32.f32 %v3327
  %v3360 = vcvt.s32.f32 %v3328
  %v3361 = vcvt.s32.f32 %v3329
  %v3362 = vcvt.s32.f32 %v3330
  %v3363 = vcvt.s32.f32 %v3331
  %v3364 = vcvt.s32.f32 %v3332
  %v3365 = vcvt.s32.f32 %v3333
  %v3366 = vcvt.s32.f32 %v3334
  %v3367 = vcvt.s32.f32 %v3335
  %v3368 = vcvt.s32.f32 %v3336
  %v3369 = vcvt.s32.f32 %v3337
  %v3370 = vcvt.s32.f32 %v3338
  %v3371 = vcvt.s32.f32 %v3339
  %v3372 = vcvt.s32.f32 %v3340
  %v3373 = vadd.f32 %v3149, %v3341
  %v3374 = vadd.f32 %v3150, %v3342
  %v3375 = vadd.f32 %v3151, %v3343
  %v3376 = vadd.f32 %v3152, %v3344
  %v3377 = vadd.f32 %v3153, %v3345
  %v3378 = vadd.f32 %v3154, %v3346
  %v3379 = vadd.f32 %v3155, %v3347
  %v3380 = vadd.f32 %v3156, %v3348
  %v3381 = vadd.f32 %v3157, %v3349
  %v3382 = vadd.f32 %v3158, %v3350
  %v3383 = vadd.f32 %v3159, %v3351
  %v3384 = vadd.f32 %v3160, %v3352
  %v3385 = vadd.f32 %v3161, %v3353
  %v3386 = vadd.f32 %v3162, %v3354
  %v3387 = vadd.f32 %v3163, %v3355
  %v3388 = vadd.f32 %v3164, %v3356
  %v3389 = vadd.f32 %v3165, %v3357
  %v3390 = vadd.f32 %v3166, %v3358
  %v3391 = vadd.f32 %v3167, %v3359
  %v3392 = vadd.f32 %v3168, %v3360
  %v3393 = vadd.f32 %v3169, %v3361
  %v3394 = vadd.f32 %v3170, %v3362
  %v3395 = vadd.f32 %v3171, %v3363
  %v3396 = vadd.f32 %v3172, %v3364
  %v3397 = vadd.f32 %v3173, %v3365
  %v3398 = vadd.f32 %v3174, %v3366
  %v3399 = vadd.f32 %v3175, %v3367
  %v3400 = vadd.f32 %v3176, %v3368
  %v3401 = vadd.f32 %v3177, %v3369
  %v3402 = vadd.f32 %v3178, %v3370
  %v3403 = vadd.f32 %v3179, %v3371
  %v3404 = vadd.f32 %v3180, %v3372
  %3405 = vset.pattern.permute.xlu0 15
  %3406 = vperm.xlu0 %3405, %v11
  %v3407 = vpop.permute.xlu0 %3406
  %3408 = vset.pattern.permute.xlu0 15
  %3409 = vperm.xlu0 %3408, %v12
  %v3410 = vpop.permute.xlu0 %3409
  %3411 = vset.pattern.permute.xlu0 15
  %3412 = vperm.xlu0 %3411, %v13
  %v3413 = vpop.permute.xlu0 %3412
  %3414 = vset.pattern.permute.xlu0 15
  %3415 = vperm.xlu0 %3414, %v14
  %v3416 = vpop.permute.xlu0 %3415
  %3417 = vset.pattern.permute.xlu0 15
  %3418 = vperm.xlu0 %3417, %v15
  %v3419 = vpop.permute.xlu0 %3418
  %3420 = vset.pattern.permute.xlu0 15
  %3421 = vperm.xlu0 %3420, %v16
  %v3422 = vpop.permute.xlu0 %3421
  %3423 = vset.pattern.permute.xlu0 15
  %3424 = vperm.xlu0 %3423, %v17
  %v3425 = vpop.permute.xlu0 %3424
  %3426 = vset.pattern.permute.xlu0 15
  %3427 = vperm.xlu0 %3426, %v18
  %v3428 = vpop.permute.xlu0 %3427
  %3429 = vset.pattern.permute.xlu0 15
  %3430 = vperm.xlu0 %3429, %v19
  %v3431 = vpop.permute.xlu0 %3430
  %3432 = vset.pattern.permute.xlu0 15
  %3433 = vperm.xlu0 %3432, %v20
  %v3434 = vpop.permute.xlu0 %3433
  %3435 = vset.pattern.permute.xlu0 15
  %3436 = vperm.xlu0 %3435, %v21
  %v3437 = vpop.permute.xlu0 %3436
  %3438 = vset.pattern.permute.xlu0 15
  %3439 = vperm.xlu0 %3438, %v22
  %v3440 = vpop.permute.xlu0 %3439
  %3441 = vset.pattern.permute.xlu0 15
  %3442 = vperm.xlu0 %3441, %v23
  %v3443 = vpop.permute.xlu0 %3442
  %3444 = vset.pattern.permute.xlu0 15
  %3445 = vperm.xlu0 %3444, %v24
  %v3446 = vpop.permute.xlu0 %3445
  %3447 = vset.pattern.permute.xlu0 15
  %3448 = vperm.xlu0 %3447, %v25
  %v3449 = vpop.permute.xlu0 %3448
  %3450 = vset.pattern.permute.xlu0 15
  %3451 = vperm.xlu0 %3450, %v26
  %v3452 = vpop.permute.xlu0 %3451
  %3453 = vset.pattern.permute.xlu0 15
  %3454 = vperm.xlu0 %3453, %v27
  %v3455 = vpop.permute.xlu0 %3454
  %3456 = vset.pattern.permute.xlu0 15
  %3457 = vperm.xlu0 %3456, %v28
  %v3458 = vpop.permute.xlu0 %3457
  %3459 = vset.pattern.permute.xlu0 15
  %3460 = vperm.xlu0 %3459, %v29
  %v3461 = vpop.permute.xlu0 %3460
  %3462 = vset.pattern.permute.xlu0 15
  %3463 = vperm.xlu0 %3462, %v30
  %v3464 = vpop.permute.xlu0 %3463
  %3465 = vset.pattern.permute.xlu0 15
  %3466 = vperm.xlu0 %3465, %v31
  %v3467 = vpop.permute.xlu0 %3466
  %3468 = vset.pattern.permute.xlu0 15
  %3469 = vperm.xlu0 %3468, %v32
  %v3470 = vpop.permute.xlu0 %3469
  %3471 = vset.pattern.permute.xlu0 15
  %3472 = vperm.xlu0 %3471, %v33
  %v3473 = vpop.permute.xlu0 %3472
  %3474 = vset.pattern.permute.xlu0 15
  %3475 = vperm.xlu0 %3474, %v34
  %v3476 = vpop.permute.xlu0 %3475
  %3477 = vset.pattern.permute.xlu0 15
  %3478 = vperm.xlu0 %3477, %v35
  %v3479 = vpop.permute.xlu0 %3478
  %3480 = vset.pattern.permute.xlu0 15
  %3481 = vperm.xlu0 %3480, %v36
  %v3482 = vpop.permute.xlu0 %3481
  %3483 = vset.pattern.permute.xlu0 15
  %3484 = vperm.xlu0 %3483, %v37
  %v3485 = vpop.permute.xlu0 %3484
  %3486 = vset.pattern.permute.xlu0 15
  %3487 = vperm.xlu0 %3486, %v38
  %v3488 = vpop.permute.xlu0 %3487
  %3489 = vset.pattern.permute.xlu0 15
  %3490 = vperm.xlu0 %3489, %v39
  %v3491 = vpop.permute.xlu0 %3490
  %3492 = vset.pattern.permute.xlu0 15
  %3493 = vperm.xlu0 %3492, %v40
  %v3494 = vpop.permute.xlu0 %3493
  %3495 = vset.pattern.permute.xlu0 15
  %3496 = vperm.xlu0 %3495, %v41
  %v3497 = vpop.permute.xlu0 %3496
  %3498 = vset.pattern.permute.xlu0 15
  %3499 = vperm.xlu0 %3498, %v42
  %v3500 = vpop.permute.xlu0 %3499
  %vm3501 = vcmp.eq.s32.totalorder %v3407, %v44
  %vm3502 = vcmp.eq.s32.totalorder %v3410, %v44
  %vm3503 = vcmp.eq.s32.totalorder %v3413, %v44
  %vm3504 = vcmp.eq.s32.totalorder %v3416, %v44
  %vm3505 = vcmp.eq.s32.totalorder %v3419, %v44
  %vm3506 = vcmp.eq.s32.totalorder %v3422, %v44
  %vm3507 = vcmp.eq.s32.totalorder %v3425, %v44
  %vm3508 = vcmp.eq.s32.totalorder %v3428, %v44
  %vm3509 = vcmp.eq.s32.totalorder %v3431, %v44
  %vm3510 = vcmp.eq.s32.totalorder %v3434, %v44
  %vm3511 = vcmp.eq.s32.totalorder %v3437, %v44
  %vm3512 = vcmp.eq.s32.totalorder %v3440, %v44
  %vm3513 = vcmp.eq.s32.totalorder %v3443, %v44
  %vm3514 = vcmp.eq.s32.totalorder %v3446, %v44
  %vm3515 = vcmp.eq.s32.totalorder %v3449, %v44
  %vm3516 = vcmp.eq.s32.totalorder %v3452, %v44
  %vm3517 = vcmp.eq.s32.totalorder %v3455, %v44
  %vm3518 = vcmp.eq.s32.totalorder %v3458, %v44
  %vm3519 = vcmp.eq.s32.totalorder %v3461, %v44
  %vm3520 = vcmp.eq.s32.totalorder %v3464, %v44
  %vm3521 = vcmp.eq.s32.totalorder %v3467, %v44
  %vm3522 = vcmp.eq.s32.totalorder %v3470, %v44
  %vm3523 = vcmp.eq.s32.totalorder %v3473, %v44
  %vm3524 = vcmp.eq.s32.totalorder %v3476, %v44
  %vm3525 = vcmp.eq.s32.totalorder %v3479, %v44
  %vm3526 = vcmp.eq.s32.totalorder %v3482, %v44
  %vm3527 = vcmp.eq.s32.totalorder %v3485, %v44
  %vm3528 = vcmp.eq.s32.totalorder %v3488, %v44
  %vm3529 = vcmp.eq.s32.totalorder %v3491, %v44
  %vm3530 = vcmp.eq.s32.totalorder %v3494, %v44
  %vm3531 = vcmp.eq.s32.totalorder %v3497, %v44
  %vm3532 = vcmp.eq.s32.totalorder %v3500, %v44
  %v3533 = vsel %vm3501, 1, 0
  %v3534 = vsel %vm3502, 1, 0
  %v3535 = vsel %vm3503, 1, 0
  %v3536 = vsel %vm3504, 1, 0
  %v3537 = vsel %vm3505, 1, 0
  %v3538 = vsel %vm3506, 1, 0
  %v3539 = vsel %vm3507, 1, 0
  %v3540 = vsel %vm3508, 1, 0
  %v3541 = vsel %vm3509, 1, 0
  %v3542 = vsel %vm3510, 1, 0
  %v3543 = vsel %vm3511, 1, 0
  %v3544 = vsel %vm3512, 1, 0
  %v3545 = vsel %vm3513, 1, 0
  %v3546 = vsel %vm3514, 1, 0
  %v3547 = vsel %vm3515, 1, 0
  %v3548 = vsel %vm3516, 1, 0
  %v3549 = vsel %vm3517, 1, 0
  %v3550 = vsel %vm3518, 1, 0
  %v3551 = vsel %vm3519, 1, 0
  %v3552 = vsel %vm3520, 1, 0
  %v3553 = vsel %vm3521, 1, 0
  %v3554 = vsel %vm3522, 1, 0
  %v3555 = vsel %vm3523, 1, 0
  %v3556 = vsel %vm3524, 1, 0
  %v3557 = vsel %vm3525, 1, 0
  %v3558 = vsel %vm3526, 1, 0
  %v3559 = vsel %vm3527, 1, 0
  %v3560 = vsel %vm3528, 1, 0
  %v3561 = vsel %vm3529, 1, 0
  %v3562 = vsel %vm3530, 1, 0
  %v3563 = vsel %vm3531, 1, 0
  %v3564 = vsel %vm3532, 1, 0
  %v3565 = vcvt.s32.f32 %v3533
  %v3566 = vcvt.s32.f32 %v3534
  %v3567 = vcvt.s32.f32 %v3535
  %v3568 = vcvt.s32.f32 %v3536
  %v3569 = vcvt.s32.f32 %v3537
  %v3570 = vcvt.s32.f32 %v3538
  %v3571 = vcvt.s32.f32 %v3539
  %v3572 = vcvt.s32.f32 %v3540
  %v3573 = vcvt.s32.f32 %v3541
  %v3574 = vcvt.s32.f32 %v3542
  %v3575 = vcvt.s32.f32 %v3543
  %v3576 = vcvt.s32.f32 %v3544
  %v3577 = vcvt.s32.f32 %v3545
  %v3578 = vcvt.s32.f32 %v3546
  %v3579 = vcvt.s32.f32 %v3547
  %v3580 = vcvt.s32.f32 %v3548
  %v3581 = vcvt.s32.f32 %v3549
  %v3582 = vcvt.s32.f32 %v3550
  %v3583 = vcvt.s32.f32 %v3551
  %v3584 = vcvt.s32.f32 %v3552
  %v3585 = vcvt.s32.f32 %v3553
  %v3586 = vcvt.s32.f32 %v3554
  %v3587 = vcvt.s32.f32 %v3555
  %v3588 = vcvt.s32.f32 %v3556
  %v3589 = vcvt.s32.f32 %v3557
  %v3590 = vcvt.s32.f32 %v3558
  %v3591 = vcvt.s32.f32 %v3559
  %v3592 = vcvt.s32.f32 %v3560
  %v3593 = vcvt.s32.f32 %v3561
  %v3594 = vcvt.s32.f32 %v3562
  %v3595 = vcvt.s32.f32 %v3563
  %v3596 = vcvt.s32.f32 %v3564
  %v3597 = vadd.f32 %v3373, %v3565
  %v3598 = vadd.f32 %v3374, %v3566
  %v3599 = vadd.f32 %v3375, %v3567
  %v3600 = vadd.f32 %v3376, %v3568
  %v3601 = vadd.f32 %v3377, %v3569
  %v3602 = vadd.f32 %v3378, %v3570
  %v3603 = vadd.f32 %v3379, %v3571
  %v3604 = vadd.f32 %v3380, %v3572
  %v3605 = vadd.f32 %v3381, %v3573
  %v3606 = vadd.f32 %v3382, %v3574
  %v3607 = vadd.f32 %v3383, %v3575
  %v3608 = vadd.f32 %v3384, %v3576
  %v3609 = vadd.f32 %v3385, %v3577
  %v3610 = vadd.f32 %v3386, %v3578
  %v3611 = vadd.f32 %v3387, %v3579
  %v3612 = vadd.f32 %v3388, %v3580
  %v3613 = vadd.f32 %v3389, %v3581
  %v3614 = vadd.f32 %v3390, %v3582
  %v3615 = vadd.f32 %v3391, %v3583
  %v3616 = vadd.f32 %v3392, %v3584
  %v3617 = vadd.f32 %v3393, %v3585
  %v3618 = vadd.f32 %v3394, %v3586
  %v3619 = vadd.f32 %v3395, %v3587
  %v3620 = vadd.f32 %v3396, %v3588
  %v3621 = vadd.f32 %v3397, %v3589
  %v3622 = vadd.f32 %v3398, %v3590
  %v3623 = vadd.f32 %v3399, %v3591
  %v3624 = vadd.f32 %v3400, %v3592
  %v3625 = vadd.f32 %v3401, %v3593
  %v3626 = vadd.f32 %v3402, %v3594
  %v3627 = vadd.f32 %v3403, %v3595
  %v3628 = vadd.f32 %v3404, %v3596
  %3629 = vset.pattern.permute.xlu0 16
  %3630 = vperm.xlu0 %3629, %v11
  %v3631 = vpop.permute.xlu0 %3630
  %3632 = vset.pattern.permute.xlu0 16
  %3633 = vperm.xlu0 %3632, %v12
  %v3634 = vpop.permute.xlu0 %3633
  %3635 = vset.pattern.permute.xlu0 16
  %3636 = vperm.xlu0 %3635, %v13
  %v3637 = vpop.permute.xlu0 %3636
  %3638 = vset.pattern.permute.xlu0 16
  %3639 = vperm.xlu0 %3638, %v14
  %v3640 = vpop.permute.xlu0 %3639
  %3641 = vset.pattern.permute.xlu0 16
  %3642 = vperm.xlu0 %3641, %v15
  %v3643 = vpop.permute.xlu0 %3642
  %3644 = vset.pattern.permute.xlu0 16
  %3645 = vperm.xlu0 %3644, %v16
  %v3646 = vpop.permute.xlu0 %3645
  %3647 = vset.pattern.permute.xlu0 16
  %3648 = vperm.xlu0 %3647, %v17
  %v3649 = vpop.permute.xlu0 %3648
  %3650 = vset.pattern.permute.xlu0 16
  %3651 = vperm.xlu0 %3650, %v18
  %v3652 = vpop.permute.xlu0 %3651
  %3653 = vset.pattern.permute.xlu0 16
  %3654 = vperm.xlu0 %3653, %v19
  %v3655 = vpop.permute.xlu0 %3654
  %3656 = vset.pattern.permute.xlu0 16
  %3657 = vperm.xlu0 %3656, %v20
  %v3658 = vpop.permute.xlu0 %3657
  %3659 = vset.pattern.permute.xlu0 16
  %3660 = vperm.xlu0 %3659, %v21
  %v3661 = vpop.permute.xlu0 %3660
  %3662 = vset.pattern.permute.xlu0 16
  %3663 = vperm.xlu0 %3662, %v22
  %v3664 = vpop.permute.xlu0 %3663
  %3665 = vset.pattern.permute.xlu0 16
  %3666 = vperm.xlu0 %3665, %v23
  %v3667 = vpop.permute.xlu0 %3666
  %3668 = vset.pattern.permute.xlu0 16
  %3669 = vperm.xlu0 %3668, %v24
  %v3670 = vpop.permute.xlu0 %3669
  %3671 = vset.pattern.permute.xlu0 16
  %3672 = vperm.xlu0 %3671, %v25
  %v3673 = vpop.permute.xlu0 %3672
  %3674 = vset.pattern.permute.xlu0 16
  %3675 = vperm.xlu0 %3674, %v26
  %v3676 = vpop.permute.xlu0 %3675
  %3677 = vset.pattern.permute.xlu0 16
  %3678 = vperm.xlu0 %3677, %v27
  %v3679 = vpop.permute.xlu0 %3678
  %3680 = vset.pattern.permute.xlu0 16
  %3681 = vperm.xlu0 %3680, %v28
  %v3682 = vpop.permute.xlu0 %3681
  %3683 = vset.pattern.permute.xlu0 16
  %3684 = vperm.xlu0 %3683, %v29
  %v3685 = vpop.permute.xlu0 %3684
  %3686 = vset.pattern.permute.xlu0 16
  %3687 = vperm.xlu0 %3686, %v30
  %v3688 = vpop.permute.xlu0 %3687
  %3689 = vset.pattern.permute.xlu0 16
  %3690 = vperm.xlu0 %3689, %v31
  %v3691 = vpop.permute.xlu0 %3690
  %3692 = vset.pattern.permute.xlu0 16
  %3693 = vperm.xlu0 %3692, %v32
  %v3694 = vpop.permute.xlu0 %3693
  %3695 = vset.pattern.permute.xlu0 16
  %3696 = vperm.xlu0 %3695, %v33
  %v3697 = vpop.permute.xlu0 %3696
  %3698 = vset.pattern.permute.xlu0 16
  %3699 = vperm.xlu0 %3698, %v34
  %v3700 = vpop.permute.xlu0 %3699
  %3701 = vset.pattern.permute.xlu0 16
  %3702 = vperm.xlu0 %3701, %v35
  %v3703 = vpop.permute.xlu0 %3702
  %3704 = vset.pattern.permute.xlu0 16
  %3705 = vperm.xlu0 %3704, %v36
  %v3706 = vpop.permute.xlu0 %3705
  %3707 = vset.pattern.permute.xlu0 16
  %3708 = vperm.xlu0 %3707, %v37
  %v3709 = vpop.permute.xlu0 %3708
  %3710 = vset.pattern.permute.xlu0 16
  %3711 = vperm.xlu0 %3710, %v38
  %v3712 = vpop.permute.xlu0 %3711
  %3713 = vset.pattern.permute.xlu0 16
  %3714 = vperm.xlu0 %3713, %v39
  %v3715 = vpop.permute.xlu0 %3714
  %3716 = vset.pattern.permute.xlu0 16
  %3717 = vperm.xlu0 %3716, %v40
  %v3718 = vpop.permute.xlu0 %3717
  %3719 = vset.pattern.permute.xlu0 16
  %3720 = vperm.xlu0 %3719, %v41
  %v3721 = vpop.permute.xlu0 %3720
  %3722 = vset.pattern.permute.xlu0 16
  %3723 = vperm.xlu0 %3722, %v42
  %v3724 = vpop.permute.xlu0 %3723
  %vm3725 = vcmp.eq.s32.totalorder %v3631, %v44
  %vm3726 = vcmp.eq.s32.totalorder %v3634, %v44
  %vm3727 = vcmp.eq.s32.totalorder %v3637, %v44
  %vm3728 = vcmp.eq.s32.totalorder %v3640, %v44
  %vm3729 = vcmp.eq.s32.totalorder %v3643, %v44
  %vm3730 = vcmp.eq.s32.totalorder %v3646, %v44
  %vm3731 = vcmp.eq.s32.totalorder %v3649, %v44
  %vm3732 = vcmp.eq.s32.totalorder %v3652, %v44
  %vm3733 = vcmp.eq.s32.totalorder %v3655, %v44
  %vm3734 = vcmp.eq.s32.totalorder %v3658, %v44
  %vm3735 = vcmp.eq.s32.totalorder %v3661, %v44
  %vm3736 = vcmp.eq.s32.totalorder %v3664, %v44
  %vm3737 = vcmp.eq.s32.totalorder %v3667, %v44
  %vm3738 = vcmp.eq.s32.totalorder %v3670, %v44
  %vm3739 = vcmp.eq.s32.totalorder %v3673, %v44
  %vm3740 = vcmp.eq.s32.totalorder %v3676, %v44
  %vm3741 = vcmp.eq.s32.totalorder %v3679, %v44
  %vm3742 = vcmp.eq.s32.totalorder %v3682, %v44
  %vm3743 = vcmp.eq.s32.totalorder %v3685, %v44
  %vm3744 = vcmp.eq.s32.totalorder %v3688, %v44
  %vm3745 = vcmp.eq.s32.totalorder %v3691, %v44
  %vm3746 = vcmp.eq.s32.totalorder %v3694, %v44
  %vm3747 = vcmp.eq.s32.totalorder %v3697, %v44
  %vm3748 = vcmp.eq.s32.totalorder %v3700, %v44
  %vm3749 = vcmp.eq.s32.totalorder %v3703, %v44
  %vm3750 = vcmp.eq.s32.totalorder %v3706, %v44
  %vm3751 = vcmp.eq.s32.totalorder %v3709, %v44
  %vm3752 = vcmp.eq.s32.totalorder %v3712, %v44
  %vm3753 = vcmp.eq.s32.totalorder %v3715, %v44
  %vm3754 = vcmp.eq.s32.totalorder %v3718, %v44
  %vm3755 = vcmp.eq.s32.totalorder %v3721, %v44
  %vm3756 = vcmp.eq.s32.totalorder %v3724, %v44
  %v3757 = vsel %vm3725, 1, 0
  %v3758 = vsel %vm3726, 1, 0
  %v3759 = vsel %vm3727, 1, 0
  %v3760 = vsel %vm3728, 1, 0
  %v3761 = vsel %vm3729, 1, 0
  %v3762 = vsel %vm3730, 1, 0
  %v3763 = vsel %vm3731, 1, 0
  %v3764 = vsel %vm3732, 1, 0
  %v3765 = vsel %vm3733, 1, 0
  %v3766 = vsel %vm3734, 1, 0
  %v3767 = vsel %vm3735, 1, 0
  %v3768 = vsel %vm3736, 1, 0
  %v3769 = vsel %vm3737, 1, 0
  %v3770 = vsel %vm3738, 1, 0
  %v3771 = vsel %vm3739, 1, 0
  %v3772 = vsel %vm3740, 1, 0
  %v3773 = vsel %vm3741, 1, 0
  %v3774 = vsel %vm3742, 1, 0
  %v3775 = vsel %vm3743, 1, 0
  %v3776 = vsel %vm3744, 1, 0
  %v3777 = vsel %vm3745, 1, 0
  %v3778 = vsel %vm3746, 1, 0
  %v3779 = vsel %vm3747, 1, 0
  %v3780 = vsel %vm3748, 1, 0
  %v3781 = vsel %vm3749, 1, 0
  %v3782 = vsel %vm3750, 1, 0
  %v3783 = vsel %vm3751, 1, 0
  %v3784 = vsel %vm3752, 1, 0
  %v3785 = vsel %vm3753, 1, 0
  %v3786 = vsel %vm3754, 1, 0
  %v3787 = vsel %vm3755, 1, 0
  %v3788 = vsel %vm3756, 1, 0
  %v3789 = vcvt.s32.f32 %v3757
  %v3790 = vcvt.s32.f32 %v3758
  %v3791 = vcvt.s32.f32 %v3759
  %v3792 = vcvt.s32.f32 %v3760
  %v3793 = vcvt.s32.f32 %v3761
  %v3794 = vcvt.s32.f32 %v3762
  %v3795 = vcvt.s32.f32 %v3763
  %v3796 = vcvt.s32.f32 %v3764
  %v3797 = vcvt.s32.f32 %v3765
  %v3798 = vcvt.s32.f32 %v3766
  %v3799 = vcvt.s32.f32 %v3767
  %v3800 = vcvt.s32.f32 %v3768
  %v3801 = vcvt.s32.f32 %v3769
  %v3802 = vcvt.s32.f32 %v3770
  %v3803 = vcvt.s32.f32 %v3771
  %v3804 = vcvt.s32.f32 %v3772
  %v3805 = vcvt.s32.f32 %v3773
  %v3806 = vcvt.s32.f32 %v3774
  %v3807 = vcvt.s32.f32 %v3775
  %v3808 = vcvt.s32.f32 %v3776
  %v3809 = vcvt.s32.f32 %v3777
  %v3810 = vcvt.s32.f32 %v3778
  %v3811 = vcvt.s32.f32 %v3779
  %v3812 = vcvt.s32.f32 %v3780
  %v3813 = vcvt.s32.f32 %v3781
  %v3814 = vcvt.s32.f32 %v3782
  %v3815 = vcvt.s32.f32 %v3783
  %v3816 = vcvt.s32.f32 %v3784
  %v3817 = vcvt.s32.f32 %v3785
  %v3818 = vcvt.s32.f32 %v3786
  %v3819 = vcvt.s32.f32 %v3787
  %v3820 = vcvt.s32.f32 %v3788
  %v3821 = vadd.f32 %v3597, %v3789
  %v3822 = vadd.f32 %v3598, %v3790
  %v3823 = vadd.f32 %v3599, %v3791
  %v3824 = vadd.f32 %v3600, %v3792
  %v3825 = vadd.f32 %v3601, %v3793
  %v3826 = vadd.f32 %v3602, %v3794
  %v3827 = vadd.f32 %v3603, %v3795
  %v3828 = vadd.f32 %v3604, %v3796
  %v3829 = vadd.f32 %v3605, %v3797
  %v3830 = vadd.f32 %v3606, %v3798
  %v3831 = vadd.f32 %v3607, %v3799
  %v3832 = vadd.f32 %v3608, %v3800
  %v3833 = vadd.f32 %v3609, %v3801
  %v3834 = vadd.f32 %v3610, %v3802
  %v3835 = vadd.f32 %v3611, %v3803
  %v3836 = vadd.f32 %v3612, %v3804
  %v3837 = vadd.f32 %v3613, %v3805
  %v3838 = vadd.f32 %v3614, %v3806
  %v3839 = vadd.f32 %v3615, %v3807
  %v3840 = vadd.f32 %v3616, %v3808
  %v3841 = vadd.f32 %v3617, %v3809
  %v3842 = vadd.f32 %v3618, %v3810
  %v3843 = vadd.f32 %v3619, %v3811
  %v3844 = vadd.f32 %v3620, %v3812
  %v3845 = vadd.f32 %v3621, %v3813
  %v3846 = vadd.f32 %v3622, %v3814
  %v3847 = vadd.f32 %v3623, %v3815
  %v3848 = vadd.f32 %v3624, %v3816
  %v3849 = vadd.f32 %v3625, %v3817
  %v3850 = vadd.f32 %v3626, %v3818
  %v3851 = vadd.f32 %v3627, %v3819
  %v3852 = vadd.f32 %v3628, %v3820
  %3853 = vset.pattern.permute.xlu0 17
  %3854 = vperm.xlu0 %3853, %v11
  %v3855 = vpop.permute.xlu0 %3854
  %3856 = vset.pattern.permute.xlu0 17
  %3857 = vperm.xlu0 %3856, %v12
  %v3858 = vpop.permute.xlu0 %3857
  %3859 = vset.pattern.permute.xlu0 17
  %3860 = vperm.xlu0 %3859, %v13
  %v3861 = vpop.permute.xlu0 %3860
  %3862 = vset.pattern.permute.xlu0 17
  %3863 = vperm.xlu0 %3862, %v14
  %v3864 = vpop.permute.xlu0 %3863
  %3865 = vset.pattern.permute.xlu0 17
  %3866 = vperm.xlu0 %3865, %v15
  %v3867 = vpop.permute.xlu0 %3866
  %3868 = vset.pattern.permute.xlu0 17
  %3869 = vperm.xlu0 %3868, %v16
  %v3870 = vpop.permute.xlu0 %3869
  %3871 = vset.pattern.permute.xlu0 17
  %3872 = vperm.xlu0 %3871, %v17
  %v3873 = vpop.permute.xlu0 %3872
  %3874 = vset.pattern.permute.xlu0 17
  %3875 = vperm.xlu0 %3874, %v18
  %v3876 = vpop.permute.xlu0 %3875
  %3877 = vset.pattern.permute.xlu0 17
  %3878 = vperm.xlu0 %3877, %v19
  %v3879 = vpop.permute.xlu0 %3878
  %3880 = vset.pattern.permute.xlu0 17
  %3881 = vperm.xlu0 %3880, %v20
  %v3882 = vpop.permute.xlu0 %3881
  %3883 = vset.pattern.permute.xlu0 17
  %3884 = vperm.xlu0 %3883, %v21
  %v3885 = vpop.permute.xlu0 %3884
  %3886 = vset.pattern.permute.xlu0 17
  %3887 = vperm.xlu0 %3886, %v22
  %v3888 = vpop.permute.xlu0 %3887
  %3889 = vset.pattern.permute.xlu0 17
  %3890 = vperm.xlu0 %3889, %v23
  %v3891 = vpop.permute.xlu0 %3890
  %3892 = vset.pattern.permute.xlu0 17
  %3893 = vperm.xlu0 %3892, %v24
  %v3894 = vpop.permute.xlu0 %3893
  %3895 = vset.pattern.permute.xlu0 17
  %3896 = vperm.xlu0 %3895, %v25
  %v3897 = vpop.permute.xlu0 %3896
  %3898 = vset.pattern.permute.xlu0 17
  %3899 = vperm.xlu0 %3898, %v26
  %v3900 = vpop.permute.xlu0 %3899
  %3901 = vset.pattern.permute.xlu0 17
  %3902 = vperm.xlu0 %3901, %v27
  %v3903 = vpop.permute.xlu0 %3902
  %3904 = vset.pattern.permute.xlu0 17
  %3905 = vperm.xlu0 %3904, %v28
  %v3906 = vpop.permute.xlu0 %3905
  %3907 = vset.pattern.permute.xlu0 17
  %3908 = vperm.xlu0 %3907, %v29
  %v3909 = vpop.permute.xlu0 %3908
  %3910 = vset.pattern.permute.xlu0 17
  %3911 = vperm.xlu0 %3910, %v30
  %v3912 = vpop.permute.xlu0 %3911
  %3913 = vset.pattern.permute.xlu0 17
  %3914 = vperm.xlu0 %3913, %v31
  %v3915 = vpop.permute.xlu0 %3914
  %3916 = vset.pattern.permute.xlu0 17
  %3917 = vperm.xlu0 %3916, %v32
  %v3918 = vpop.permute.xlu0 %3917
  %3919 = vset.pattern.permute.xlu0 17
  %3920 = vperm.xlu0 %3919, %v33
  %v3921 = vpop.permute.xlu0 %3920
  %3922 = vset.pattern.permute.xlu0 17
  %3923 = vperm.xlu0 %3922, %v34
  %v3924 = vpop.permute.xlu0 %3923
  %3925 = vset.pattern.permute.xlu0 17
  %3926 = vperm.xlu0 %3925, %v35
  %v3927 = vpop.permute.xlu0 %3926
  %3928 = vset.pattern.permute.xlu0 17
  %3929 = vperm.xlu0 %3928, %v36
  %v3930 = vpop.permute.xlu0 %3929
  %3931 = vset.pattern.permute.xlu0 17
  %3932 = vperm.xlu0 %3931, %v37
  %v3933 = vpop.permute.xlu0 %3932
  %3934 = vset.pattern.permute.xlu0 17
  %3935 = vperm.xlu0 %3934, %v38
  %v3936 = vpop.permute.xlu0 %3935
  %3937 = vset.pattern.permute.xlu0 17
  %3938 = vperm.xlu0 %3937, %v39
  %v3939 = vpop.permute.xlu0 %3938
  %3940 = vset.pattern.permute.xlu0 17
  %3941 = vperm.xlu0 %3940, %v40
  %v3942 = vpop.permute.xlu0 %3941
  %3943 = vset.pattern.permute.xlu0 17
  %3944 = vperm.xlu0 %3943, %v41
  %v3945 = vpop.permute.xlu0 %3944
  %3946 = vset.pattern.permute.xlu0 17
  %3947 = vperm.xlu0 %3946, %v42
  %v3948 = vpop.permute.xlu0 %3947
  %vm3949 = vcmp.eq.s32.totalorder %v3855, %v44
  %vm3950 = vcmp.eq.s32.totalorder %v3858, %v44
  %vm3951 = vcmp.eq.s32.totalorder %v3861, %v44
  %vm3952 = vcmp.eq.s32.totalorder %v3864, %v44
  %vm3953 = vcmp.eq.s32.totalorder %v3867, %v44
  %vm3954 = vcmp.eq.s32.totalorder %v3870, %v44
  %vm3955 = vcmp.eq.s32.totalorder %v3873, %v44
  %vm3956 = vcmp.eq.s32.totalorder %v3876, %v44
  %vm3957 = vcmp.eq.s32.totalorder %v3879, %v44
  %vm3958 = vcmp.eq.s32.totalorder %v3882, %v44
  %vm3959 = vcmp.eq.s32.totalorder %v3885, %v44
  %vm3960 = vcmp.eq.s32.totalorder %v3888, %v44
  %vm3961 = vcmp.eq.s32.totalorder %v3891, %v44
  %vm3962 = vcmp.eq.s32.totalorder %v3894, %v44
  %vm3963 = vcmp.eq.s32.totalorder %v3897, %v44
  %vm3964 = vcmp.eq.s32.totalorder %v3900, %v44
  %vm3965 = vcmp.eq.s32.totalorder %v3903, %v44
  %vm3966 = vcmp.eq.s32.totalorder %v3906, %v44
  %vm3967 = vcmp.eq.s32.totalorder %v3909, %v44
  %vm3968 = vcmp.eq.s32.totalorder %v3912, %v44
  %vm3969 = vcmp.eq.s32.totalorder %v3915, %v44
  %vm3970 = vcmp.eq.s32.totalorder %v3918, %v44
  %vm3971 = vcmp.eq.s32.totalorder %v3921, %v44
  %vm3972 = vcmp.eq.s32.totalorder %v3924, %v44
  %vm3973 = vcmp.eq.s32.totalorder %v3927, %v44
  %vm3974 = vcmp.eq.s32.totalorder %v3930, %v44
  %vm3975 = vcmp.eq.s32.totalorder %v3933, %v44
  %vm3976 = vcmp.eq.s32.totalorder %v3936, %v44
  %vm3977 = vcmp.eq.s32.totalorder %v3939, %v44
  %vm3978 = vcmp.eq.s32.totalorder %v3942, %v44
  %vm3979 = vcmp.eq.s32.totalorder %v3945, %v44
  %vm3980 = vcmp.eq.s32.totalorder %v3948, %v44
  %v3981 = vsel %vm3949, 1, 0
  %v3982 = vsel %vm3950, 1, 0
  %v3983 = vsel %vm3951, 1, 0
  %v3984 = vsel %vm3952, 1, 0
  %v3985 = vsel %vm3953, 1, 0
  %v3986 = vsel %vm3954, 1, 0
  %v3987 = vsel %vm3955, 1, 0
  %v3988 = vsel %vm3956, 1, 0
  %v3989 = vsel %vm3957, 1, 0
  %v3990 = vsel %vm3958, 1, 0
  %v3991 = vsel %vm3959, 1, 0
  %v3992 = vsel %vm3960, 1, 0
  %v3993 = vsel %vm3961, 1, 0
  %v3994 = vsel %vm3962, 1, 0
  %v3995 = vsel %vm3963, 1, 0
  %v3996 = vsel %vm3964, 1, 0
  %v3997 = vsel %vm3965, 1, 0
  %v3998 = vsel %vm3966, 1, 0
  %v3999 = vsel %vm3967, 1, 0
  %v4000 = vsel %vm3968, 1, 0
  %v4001 = vsel %vm3969, 1, 0
  %v4002 = vsel %vm3970, 1, 0
  %v4003 = vsel %vm3971, 1, 0
  %v4004 = vsel %vm3972, 1, 0
  %v4005 = vsel %vm3973, 1, 0
  %v4006 = vsel %vm3974, 1, 0
  %v4007 = vsel %vm3975, 1, 0
  %v4008 = vsel %vm3976, 1, 0
  %v4009 = vsel %vm3977, 1, 0
  %v4010 = vsel %vm3978, 1, 0
  %v4011 = vsel %vm3979, 1, 0
  %v4012 = vsel %vm3980, 1, 0
  %v4013 = vcvt.s32.f32 %v3981
  %v4014 = vcvt.s32.f32 %v3982
  %v4015 = vcvt.s32.f32 %v3983
  %v4016 = vcvt.s32.f32 %v3984
  %v4017 = vcvt.s32.f32 %v3985
  %v4018 = vcvt.s32.f32 %v3986
  %v4019 = vcvt.s32.f32 %v3987
  %v4020 = vcvt.s32.f32 %v3988
  %v4021 = vcvt.s32.f32 %v3989
  %v4022 = vcvt.s32.f32 %v3990
  %v4023 = vcvt.s32.f32 %v3991
  %v4024 = vcvt.s32.f32 %v3992
  %v4025 = vcvt.s32.f32 %v3993
  %v4026 = vcvt.s32.f32 %v3994
  %v4027 = vcvt.s32.f32 %v3995
  %v4028 = vcvt.s32.f32 %v3996
  %v4029 = vcvt.s32.f32 %v3997
  %v4030 = vcvt.s32.f32 %v3998
  %v4031 = vcvt.s32.f32 %v3999
  %v4032 = vcvt.s32.f32 %v4000
  %v4033 = vcvt.s32.f32 %v4001
  %v4034 = vcvt.s32.f32 %v4002
  %v4035 = vcvt.s32.f32 %v4003
  %v4036 = vcvt.s32.f32 %v4004
  %v4037 = vcvt.s32.f32 %v4005
  %v4038 = vcvt.s32.f32 %v4006
  %v4039 = vcvt.s32.f32 %v4007
  %v4040 = vcvt.s32.f32 %v4008
  %v4041 = vcvt.s32.f32 %v4009
  %v4042 = vcvt.s32.f32 %v4010
  %v4043 = vcvt.s32.f32 %v4011
  %v4044 = vcvt.s32.f32 %v4012
  %v4045 = vadd.f32 %v3821, %v4013
  %v4046 = vadd.f32 %v3822, %v4014
  %v4047 = vadd.f32 %v3823, %v4015
  %v4048 = vadd.f32 %v3824, %v4016
  %v4049 = vadd.f32 %v3825, %v4017
  %v4050 = vadd.f32 %v3826, %v4018
  %v4051 = vadd.f32 %v3827, %v4019
  %v4052 = vadd.f32 %v3828, %v4020
  %v4053 = vadd.f32 %v3829, %v4021
  %v4054 = vadd.f32 %v3830, %v4022
  %v4055 = vadd.f32 %v3831, %v4023
  %v4056 = vadd.f32 %v3832, %v4024
  %v4057 = vadd.f32 %v3833, %v4025
  %v4058 = vadd.f32 %v3834, %v4026
  %v4059 = vadd.f32 %v3835, %v4027
  %v4060 = vadd.f32 %v3836, %v4028
  %v4061 = vadd.f32 %v3837, %v4029
  %v4062 = vadd.f32 %v3838, %v4030
  %v4063 = vadd.f32 %v3839, %v4031
  %v4064 = vadd.f32 %v3840, %v4032
  %v4065 = vadd.f32 %v3841, %v4033
  %v4066 = vadd.f32 %v3842, %v4034
  %v4067 = vadd.f32 %v3843, %v4035
  %v4068 = vadd.f32 %v3844, %v4036
  %v4069 = vadd.f32 %v3845, %v4037
  %v4070 = vadd.f32 %v3846, %v4038
  %v4071 = vadd.f32 %v3847, %v4039
  %v4072 = vadd.f32 %v3848, %v4040
  %v4073 = vadd.f32 %v3849, %v4041
  %v4074 = vadd.f32 %v3850, %v4042
  %v4075 = vadd.f32 %v3851, %v4043
  %v4076 = vadd.f32 %v3852, %v4044
  %4077 = vset.pattern.permute.xlu0 18
  %4078 = vperm.xlu0 %4077, %v11
  %v4079 = vpop.permute.xlu0 %4078
  %4080 = vset.pattern.permute.xlu0 18
  %4081 = vperm.xlu0 %4080, %v12
  %v4082 = vpop.permute.xlu0 %4081
  %4083 = vset.pattern.permute.xlu0 18
  %4084 = vperm.xlu0 %4083, %v13
  %v4085 = vpop.permute.xlu0 %4084
  %4086 = vset.pattern.permute.xlu0 18
  %4087 = vperm.xlu0 %4086, %v14
  %v4088 = vpop.permute.xlu0 %4087
  %4089 = vset.pattern.permute.xlu0 18
  %4090 = vperm.xlu0 %4089, %v15
  %v4091 = vpop.permute.xlu0 %4090
  %4092 = vset.pattern.permute.xlu0 18
  %4093 = vperm.xlu0 %4092, %v16
  %v4094 = vpop.permute.xlu0 %4093
  %4095 = vset.pattern.permute.xlu0 18
  %4096 = vperm.xlu0 %4095, %v17
  %v4097 = vpop.permute.xlu0 %4096
  %4098 = vset.pattern.permute.xlu0 18
  %4099 = vperm.xlu0 %4098, %v18
  %v4100 = vpop.permute.xlu0 %4099
  %4101 = vset.pattern.permute.xlu0 18
  %4102 = vperm.xlu0 %4101, %v19
  %v4103 = vpop.permute.xlu0 %4102
  %4104 = vset.pattern.permute.xlu0 18
  %4105 = vperm.xlu0 %4104, %v20
  %v4106 = vpop.permute.xlu0 %4105
  %4107 = vset.pattern.permute.xlu0 18
  %4108 = vperm.xlu0 %4107, %v21
  %v4109 = vpop.permute.xlu0 %4108
  %4110 = vset.pattern.permute.xlu0 18
  %4111 = vperm.xlu0 %4110, %v22
  %v4112 = vpop.permute.xlu0 %4111
  %4113 = vset.pattern.permute.xlu0 18
  %4114 = vperm.xlu0 %4113, %v23
  %v4115 = vpop.permute.xlu0 %4114
  %4116 = vset.pattern.permute.xlu0 18
  %4117 = vperm.xlu0 %4116, %v24
  %v4118 = vpop.permute.xlu0 %4117
  %4119 = vset.pattern.permute.xlu0 18
  %4120 = vperm.xlu0 %4119, %v25
  %v4121 = vpop.permute.xlu0 %4120
  %4122 = vset.pattern.permute.xlu0 18
  %4123 = vperm.xlu0 %4122, %v26
  %v4124 = vpop.permute.xlu0 %4123
  %4125 = vset.pattern.permute.xlu0 18
  %4126 = vperm.xlu0 %4125, %v27
  %v4127 = vpop.permute.xlu0 %4126
  %4128 = vset.pattern.permute.xlu0 18
  %4129 = vperm.xlu0 %4128, %v28
  %v4130 = vpop.permute.xlu0 %4129
  %4131 = vset.pattern.permute.xlu0 18
  %4132 = vperm.xlu0 %4131, %v29
  %v4133 = vpop.permute.xlu0 %4132
  %4134 = vset.pattern.permute.xlu0 18
  %4135 = vperm.xlu0 %4134, %v30
  %v4136 = vpop.permute.xlu0 %4135
  %4137 = vset.pattern.permute.xlu0 18
  %4138 = vperm.xlu0 %4137, %v31
  %v4139 = vpop.permute.xlu0 %4138
  %4140 = vset.pattern.permute.xlu0 18
  %4141 = vperm.xlu0 %4140, %v32
  %v4142 = vpop.permute.xlu0 %4141
  %4143 = vset.pattern.permute.xlu0 18
  %4144 = vperm.xlu0 %4143, %v33
  %v4145 = vpop.permute.xlu0 %4144
  %4146 = vset.pattern.permute.xlu0 18
  %4147 = vperm.xlu0 %4146, %v34
  %v4148 = vpop.permute.xlu0 %4147
  %4149 = vset.pattern.permute.xlu0 18
  %4150 = vperm.xlu0 %4149, %v35
  %v4151 = vpop.permute.xlu0 %4150
  %4152 = vset.pattern.permute.xlu0 18
  %4153 = vperm.xlu0 %4152, %v36
  %v4154 = vpop.permute.xlu0 %4153
  %4155 = vset.pattern.permute.xlu0 18
  %4156 = vperm.xlu0 %4155, %v37
  %v4157 = vpop.permute.xlu0 %4156
  %4158 = vset.pattern.permute.xlu0 18
  %4159 = vperm.xlu0 %4158, %v38
  %v4160 = vpop.permute.xlu0 %4159
  %4161 = vset.pattern.permute.xlu0 18
  %4162 = vperm.xlu0 %4161, %v39
  %v4163 = vpop.permute.xlu0 %4162
  %4164 = vset.pattern.permute.xlu0 18
  %4165 = vperm.xlu0 %4164, %v40
  %v4166 = vpop.permute.xlu0 %4165
  %4167 = vset.pattern.permute.xlu0 18
  %4168 = vperm.xlu0 %4167, %v41
  %v4169 = vpop.permute.xlu0 %4168
  %4170 = vset.pattern.permute.xlu0 18
  %4171 = vperm.xlu0 %4170, %v42
  %v4172 = vpop.permute.xlu0 %4171
  %vm4173 = vcmp.eq.s32.totalorder %v4079, %v44
  %vm4174 = vcmp.eq.s32.totalorder %v4082, %v44
  %vm4175 = vcmp.eq.s32.totalorder %v4085, %v44
  %vm4176 = vcmp.eq.s32.totalorder %v4088, %v44
  %vm4177 = vcmp.eq.s32.totalorder %v4091, %v44
  %vm4178 = vcmp.eq.s32.totalorder %v4094, %v44
  %vm4179 = vcmp.eq.s32.totalorder %v4097, %v44
  %vm4180 = vcmp.eq.s32.totalorder %v4100, %v44
  %vm4181 = vcmp.eq.s32.totalorder %v4103, %v44
  %vm4182 = vcmp.eq.s32.totalorder %v4106, %v44
  %vm4183 = vcmp.eq.s32.totalorder %v4109, %v44
  %vm4184 = vcmp.eq.s32.totalorder %v4112, %v44
  %vm4185 = vcmp.eq.s32.totalorder %v4115, %v44
  %vm4186 = vcmp.eq.s32.totalorder %v4118, %v44
  %vm4187 = vcmp.eq.s32.totalorder %v4121, %v44
  %vm4188 = vcmp.eq.s32.totalorder %v4124, %v44
  %vm4189 = vcmp.eq.s32.totalorder %v4127, %v44
  %vm4190 = vcmp.eq.s32.totalorder %v4130, %v44
  %vm4191 = vcmp.eq.s32.totalorder %v4133, %v44
  %vm4192 = vcmp.eq.s32.totalorder %v4136, %v44
  %vm4193 = vcmp.eq.s32.totalorder %v4139, %v44
  %vm4194 = vcmp.eq.s32.totalorder %v4142, %v44
  %vm4195 = vcmp.eq.s32.totalorder %v4145, %v44
  %vm4196 = vcmp.eq.s32.totalorder %v4148, %v44
  %vm4197 = vcmp.eq.s32.totalorder %v4151, %v44
  %vm4198 = vcmp.eq.s32.totalorder %v4154, %v44
  %vm4199 = vcmp.eq.s32.totalorder %v4157, %v44
  %vm4200 = vcmp.eq.s32.totalorder %v4160, %v44
  %vm4201 = vcmp.eq.s32.totalorder %v4163, %v44
  %vm4202 = vcmp.eq.s32.totalorder %v4166, %v44
  %vm4203 = vcmp.eq.s32.totalorder %v4169, %v44
  %vm4204 = vcmp.eq.s32.totalorder %v4172, %v44
  %v4205 = vsel %vm4173, 1, 0
  %v4206 = vsel %vm4174, 1, 0
  %v4207 = vsel %vm4175, 1, 0
  %v4208 = vsel %vm4176, 1, 0
  %v4209 = vsel %vm4177, 1, 0
  %v4210 = vsel %vm4178, 1, 0
  %v4211 = vsel %vm4179, 1, 0
  %v4212 = vsel %vm4180, 1, 0
  %v4213 = vsel %vm4181, 1, 0
  %v4214 = vsel %vm4182, 1, 0
  %v4215 = vsel %vm4183, 1, 0
  %v4216 = vsel %vm4184, 1, 0
  %v4217 = vsel %vm4185, 1, 0
  %v4218 = vsel %vm4186, 1, 0
  %v4219 = vsel %vm4187, 1, 0
  %v4220 = vsel %vm4188, 1, 0
  %v4221 = vsel %vm4189, 1, 0
  %v4222 = vsel %vm4190, 1, 0
  %v4223 = vsel %vm4191, 1, 0
  %v4224 = vsel %vm4192, 1, 0
  %v4225 = vsel %vm4193, 1, 0
  %v4226 = vsel %vm4194, 1, 0
  %v4227 = vsel %vm4195, 1, 0
  %v4228 = vsel %vm4196, 1, 0
  %v4229 = vsel %vm4197, 1, 0
  %v4230 = vsel %vm4198, 1, 0
  %v4231 = vsel %vm4199, 1, 0
  %v4232 = vsel %vm4200, 1, 0
  %v4233 = vsel %vm4201, 1, 0
  %v4234 = vsel %vm4202, 1, 0
  %v4235 = vsel %vm4203, 1, 0
  %v4236 = vsel %vm4204, 1, 0
  %v4237 = vcvt.s32.f32 %v4205
  %v4238 = vcvt.s32.f32 %v4206
  %v4239 = vcvt.s32.f32 %v4207
  %v4240 = vcvt.s32.f32 %v4208
  %v4241 = vcvt.s32.f32 %v4209
  %v4242 = vcvt.s32.f32 %v4210
  %v4243 = vcvt.s32.f32 %v4211
  %v4244 = vcvt.s32.f32 %v4212
  %v4245 = vcvt.s32.f32 %v4213
  %v4246 = vcvt.s32.f32 %v4214
  %v4247 = vcvt.s32.f32 %v4215
  %v4248 = vcvt.s32.f32 %v4216
  %v4249 = vcvt.s32.f32 %v4217
  %v4250 = vcvt.s32.f32 %v4218
  %v4251 = vcvt.s32.f32 %v4219
  %v4252 = vcvt.s32.f32 %v4220
  %v4253 = vcvt.s32.f32 %v4221
  %v4254 = vcvt.s32.f32 %v4222
  %v4255 = vcvt.s32.f32 %v4223
  %v4256 = vcvt.s32.f32 %v4224
  %v4257 = vcvt.s32.f32 %v4225
  %v4258 = vcvt.s32.f32 %v4226
  %v4259 = vcvt.s32.f32 %v4227
  %v4260 = vcvt.s32.f32 %v4228
  %v4261 = vcvt.s32.f32 %v4229
  %v4262 = vcvt.s32.f32 %v4230
  %v4263 = vcvt.s32.f32 %v4231
  %v4264 = vcvt.s32.f32 %v4232
  %v4265 = vcvt.s32.f32 %v4233
  %v4266 = vcvt.s32.f32 %v4234
  %v4267 = vcvt.s32.f32 %v4235
  %v4268 = vcvt.s32.f32 %v4236
  %v4269 = vadd.f32 %v4045, %v4237
  %v4270 = vadd.f32 %v4046, %v4238
  %v4271 = vadd.f32 %v4047, %v4239
  %v4272 = vadd.f32 %v4048, %v4240
  %v4273 = vadd.f32 %v4049, %v4241
  %v4274 = vadd.f32 %v4050, %v4242
  %v4275 = vadd.f32 %v4051, %v4243
  %v4276 = vadd.f32 %v4052, %v4244
  %v4277 = vadd.f32 %v4053, %v4245
  %v4278 = vadd.f32 %v4054, %v4246
  %v4279 = vadd.f32 %v4055, %v4247
  %v4280 = vadd.f32 %v4056, %v4248
  %v4281 = vadd.f32 %v4057, %v4249
  %v4282 = vadd.f32 %v4058, %v4250
  %v4283 = vadd.f32 %v4059, %v4251
  %v4284 = vadd.f32 %v4060, %v4252
  %v4285 = vadd.f32 %v4061, %v4253
  %v4286 = vadd.f32 %v4062, %v4254
  %v4287 = vadd.f32 %v4063, %v4255
  %v4288 = vadd.f32 %v4064, %v4256
  %v4289 = vadd.f32 %v4065, %v4257
  %v4290 = vadd.f32 %v4066, %v4258
  %v4291 = vadd.f32 %v4067, %v4259
  %v4292 = vadd.f32 %v4068, %v4260
  %v4293 = vadd.f32 %v4069, %v4261
  %v4294 = vadd.f32 %v4070, %v4262
  %v4295 = vadd.f32 %v4071, %v4263
  %v4296 = vadd.f32 %v4072, %v4264
  %v4297 = vadd.f32 %v4073, %v4265
  %v4298 = vadd.f32 %v4074, %v4266
  %v4299 = vadd.f32 %v4075, %v4267
  %v4300 = vadd.f32 %v4076, %v4268
  %4301 = vset.pattern.permute.xlu0 19
  %4302 = vperm.xlu0 %4301, %v11
  %v4303 = vpop.permute.xlu0 %4302
  %4304 = vset.pattern.permute.xlu0 19
  %4305 = vperm.xlu0 %4304, %v12
  %v4306 = vpop.permute.xlu0 %4305
  %4307 = vset.pattern.permute.xlu0 19
  %4308 = vperm.xlu0 %4307, %v13
  %v4309 = vpop.permute.xlu0 %4308
  %4310 = vset.pattern.permute.xlu0 19
  %4311 = vperm.xlu0 %4310, %v14
  %v4312 = vpop.permute.xlu0 %4311
  %4313 = vset.pattern.permute.xlu0 19
  %4314 = vperm.xlu0 %4313, %v15
  %v4315 = vpop.permute.xlu0 %4314
  %4316 = vset.pattern.permute.xlu0 19
  %4317 = vperm.xlu0 %4316, %v16
  %v4318 = vpop.permute.xlu0 %4317
  %4319 = vset.pattern.permute.xlu0 19
  %4320 = vperm.xlu0 %4319, %v17
  %v4321 = vpop.permute.xlu0 %4320
  %4322 = vset.pattern.permute.xlu0 19
  %4323 = vperm.xlu0 %4322, %v18
  %v4324 = vpop.permute.xlu0 %4323
  %4325 = vset.pattern.permute.xlu0 19
  %4326 = vperm.xlu0 %4325, %v19
  %v4327 = vpop.permute.xlu0 %4326
  %4328 = vset.pattern.permute.xlu0 19
  %4329 = vperm.xlu0 %4328, %v20
  %v4330 = vpop.permute.xlu0 %4329
  %4331 = vset.pattern.permute.xlu0 19
  %4332 = vperm.xlu0 %4331, %v21
  %v4333 = vpop.permute.xlu0 %4332
  %4334 = vset.pattern.permute.xlu0 19
  %4335 = vperm.xlu0 %4334, %v22
  %v4336 = vpop.permute.xlu0 %4335
  %4337 = vset.pattern.permute.xlu0 19
  %4338 = vperm.xlu0 %4337, %v23
  %v4339 = vpop.permute.xlu0 %4338
  %4340 = vset.pattern.permute.xlu0 19
  %4341 = vperm.xlu0 %4340, %v24
  %v4342 = vpop.permute.xlu0 %4341
  %4343 = vset.pattern.permute.xlu0 19
  %4344 = vperm.xlu0 %4343, %v25
  %v4345 = vpop.permute.xlu0 %4344
  %4346 = vset.pattern.permute.xlu0 19
  %4347 = vperm.xlu0 %4346, %v26
  %v4348 = vpop.permute.xlu0 %4347
  %4349 = vset.pattern.permute.xlu0 19
  %4350 = vperm.xlu0 %4349, %v27
  %v4351 = vpop.permute.xlu0 %4350
  %4352 = vset.pattern.permute.xlu0 19
  %4353 = vperm.xlu0 %4352, %v28
  %v4354 = vpop.permute.xlu0 %4353
  %4355 = vset.pattern.permute.xlu0 19
  %4356 = vperm.xlu0 %4355, %v29
  %v4357 = vpop.permute.xlu0 %4356
  %4358 = vset.pattern.permute.xlu0 19
  %4359 = vperm.xlu0 %4358, %v30
  %v4360 = vpop.permute.xlu0 %4359
  %4361 = vset.pattern.permute.xlu0 19
  %4362 = vperm.xlu0 %4361, %v31
  %v4363 = vpop.permute.xlu0 %4362
  %4364 = vset.pattern.permute.xlu0 19
  %4365 = vperm.xlu0 %4364, %v32
  %v4366 = vpop.permute.xlu0 %4365
  %4367 = vset.pattern.permute.xlu0 19
  %4368 = vperm.xlu0 %4367, %v33
  %v4369 = vpop.permute.xlu0 %4368
  %4370 = vset.pattern.permute.xlu0 19
  %4371 = vperm.xlu0 %4370, %v34
  %v4372 = vpop.permute.xlu0 %4371
  %4373 = vset.pattern.permute.xlu0 19
  %4374 = vperm.xlu0 %4373, %v35
  %v4375 = vpop.permute.xlu0 %4374
  %4376 = vset.pattern.permute.xlu0 19
  %4377 = vperm.xlu0 %4376, %v36
  %v4378 = vpop.permute.xlu0 %4377
  %4379 = vset.pattern.permute.xlu0 19
  %4380 = vperm.xlu0 %4379, %v37
  %v4381 = vpop.permute.xlu0 %4380
  %4382 = vset.pattern.permute.xlu0 19
  %4383 = vperm.xlu0 %4382, %v38
  %v4384 = vpop.permute.xlu0 %4383
  %4385 = vset.pattern.permute.xlu0 19
  %4386 = vperm.xlu0 %4385, %v39
  %v4387 = vpop.permute.xlu0 %4386
  %4388 = vset.pattern.permute.xlu0 19
  %4389 = vperm.xlu0 %4388, %v40
  %v4390 = vpop.permute.xlu0 %4389
  %4391 = vset.pattern.permute.xlu0 19
  %4392 = vperm.xlu0 %4391, %v41
  %v4393 = vpop.permute.xlu0 %4392
  %4394 = vset.pattern.permute.xlu0 19
  %4395 = vperm.xlu0 %4394, %v42
  %v4396 = vpop.permute.xlu0 %4395
  %vm4397 = vcmp.eq.s32.totalorder %v4303, %v44
  %vm4398 = vcmp.eq.s32.totalorder %v4306, %v44
  %vm4399 = vcmp.eq.s32.totalorder %v4309, %v44
  %vm4400 = vcmp.eq.s32.totalorder %v4312, %v44
  %vm4401 = vcmp.eq.s32.totalorder %v4315, %v44
  %vm4402 = vcmp.eq.s32.totalorder %v4318, %v44
  %vm4403 = vcmp.eq.s32.totalorder %v4321, %v44
  %vm4404 = vcmp.eq.s32.totalorder %v4324, %v44
  %vm4405 = vcmp.eq.s32.totalorder %v4327, %v44
  %vm4406 = vcmp.eq.s32.totalorder %v4330, %v44
  %vm4407 = vcmp.eq.s32.totalorder %v4333, %v44
  %vm4408 = vcmp.eq.s32.totalorder %v4336, %v44
  %vm4409 = vcmp.eq.s32.totalorder %v4339, %v44
  %vm4410 = vcmp.eq.s32.totalorder %v4342, %v44
  %vm4411 = vcmp.eq.s32.totalorder %v4345, %v44
  %vm4412 = vcmp.eq.s32.totalorder %v4348, %v44
  %vm4413 = vcmp.eq.s32.totalorder %v4351, %v44
  %vm4414 = vcmp.eq.s32.totalorder %v4354, %v44
  %vm4415 = vcmp.eq.s32.totalorder %v4357, %v44
  %vm4416 = vcmp.eq.s32.totalorder %v4360, %v44
  %vm4417 = vcmp.eq.s32.totalorder %v4363, %v44
  %vm4418 = vcmp.eq.s32.totalorder %v4366, %v44
  %vm4419 = vcmp.eq.s32.totalorder %v4369, %v44
  %vm4420 = vcmp.eq.s32.totalorder %v4372, %v44
  %vm4421 = vcmp.eq.s32.totalorder %v4375, %v44
  %vm4422 = vcmp.eq.s32.totalorder %v4378, %v44
  %vm4423 = vcmp.eq.s32.totalorder %v4381, %v44
  %vm4424 = vcmp.eq.s32.totalorder %v4384, %v44
  %vm4425 = vcmp.eq.s32.totalorder %v4387, %v44
  %vm4426 = vcmp.eq.s32.totalorder %v4390, %v44
  %vm4427 = vcmp.eq.s32.totalorder %v4393, %v44
  %vm4428 = vcmp.eq.s32.totalorder %v4396, %v44
  %v4429 = vsel %vm4397, 1, 0
  %v4430 = vsel %vm4398, 1, 0
  %v4431 = vsel %vm4399, 1, 0
  %v4432 = vsel %vm4400, 1, 0
  %v4433 = vsel %vm4401, 1, 0
  %v4434 = vsel %vm4402, 1, 0
  %v4435 = vsel %vm4403, 1, 0
  %v4436 = vsel %vm4404, 1, 0
  %v4437 = vsel %vm4405, 1, 0
  %v4438 = vsel %vm4406, 1, 0
  %v4439 = vsel %vm4407, 1, 0
  %v4440 = vsel %vm4408, 1, 0
  %v4441 = vsel %vm4409, 1, 0
  %v4442 = vsel %vm4410, 1, 0
  %v4443 = vsel %vm4411, 1, 0
  %v4444 = vsel %vm4412, 1, 0
  %v4445 = vsel %vm4413, 1, 0
  %v4446 = vsel %vm4414, 1, 0
  %v4447 = vsel %vm4415, 1, 0
  %v4448 = vsel %vm4416, 1, 0
  %v4449 = vsel %vm4417, 1, 0
  %v4450 = vsel %vm4418, 1, 0
  %v4451 = vsel %vm4419, 1, 0
  %v4452 = vsel %vm4420, 1, 0
  %v4453 = vsel %vm4421, 1, 0
  %v4454 = vsel %vm4422, 1, 0
  %v4455 = vsel %vm4423, 1, 0
  %v4456 = vsel %vm4424, 1, 0
  %v4457 = vsel %vm4425, 1, 0
  %v4458 = vsel %vm4426, 1, 0
  %v4459 = vsel %vm4427, 1, 0
  %v4460 = vsel %vm4428, 1, 0
  %v4461 = vcvt.s32.f32 %v4429
  %v4462 = vcvt.s32.f32 %v4430
  %v4463 = vcvt.s32.f32 %v4431
  %v4464 = vcvt.s32.f32 %v4432
  %v4465 = vcvt.s32.f32 %v4433
  %v4466 = vcvt.s32.f32 %v4434
  %v4467 = vcvt.s32.f32 %v4435
  %v4468 = vcvt.s32.f32 %v4436
  %v4469 = vcvt.s32.f32 %v4437
  %v4470 = vcvt.s32.f32 %v4438
  %v4471 = vcvt.s32.f32 %v4439
  %v4472 = vcvt.s32.f32 %v4440
  %v4473 = vcvt.s32.f32 %v4441
  %v4474 = vcvt.s32.f32 %v4442
  %v4475 = vcvt.s32.f32 %v4443
  %v4476 = vcvt.s32.f32 %v4444
  %v4477 = vcvt.s32.f32 %v4445
  %v4478 = vcvt.s32.f32 %v4446
  %v4479 = vcvt.s32.f32 %v4447
  %v4480 = vcvt.s32.f32 %v4448
  %v4481 = vcvt.s32.f32 %v4449
  %v4482 = vcvt.s32.f32 %v4450
  %v4483 = vcvt.s32.f32 %v4451
  %v4484 = vcvt.s32.f32 %v4452
  %v4485 = vcvt.s32.f32 %v4453
  %v4486 = vcvt.s32.f32 %v4454
  %v4487 = vcvt.s32.f32 %v4455
  %v4488 = vcvt.s32.f32 %v4456
  %v4489 = vcvt.s32.f32 %v4457
  %v4490 = vcvt.s32.f32 %v4458
  %v4491 = vcvt.s32.f32 %v4459
  %v4492 = vcvt.s32.f32 %v4460
  %v4493 = vadd.f32 %v4269, %v4461
  %v4494 = vadd.f32 %v4270, %v4462
  %v4495 = vadd.f32 %v4271, %v4463
  %v4496 = vadd.f32 %v4272, %v4464
  %v4497 = vadd.f32 %v4273, %v4465
  %v4498 = vadd.f32 %v4274, %v4466
  %v4499 = vadd.f32 %v4275, %v4467
  %v4500 = vadd.f32 %v4276, %v4468
  %v4501 = vadd.f32 %v4277, %v4469
  %v4502 = vadd.f32 %v4278, %v4470
  %v4503 = vadd.f32 %v4279, %v4471
  %v4504 = vadd.f32 %v4280, %v4472
  %v4505 = vadd.f32 %v4281, %v4473
  %v4506 = vadd.f32 %v4282, %v4474
  %v4507 = vadd.f32 %v4283, %v4475
  %v4508 = vadd.f32 %v4284, %v4476
  %v4509 = vadd.f32 %v4285, %v4477
  %v4510 = vadd.f32 %v4286, %v4478
  %v4511 = vadd.f32 %v4287, %v4479
  %v4512 = vadd.f32 %v4288, %v4480
  %v4513 = vadd.f32 %v4289, %v4481
  %v4514 = vadd.f32 %v4290, %v4482
  %v4515 = vadd.f32 %v4291, %v4483
  %v4516 = vadd.f32 %v4292, %v4484
  %v4517 = vadd.f32 %v4293, %v4485
  %v4518 = vadd.f32 %v4294, %v4486
  %v4519 = vadd.f32 %v4295, %v4487
  %v4520 = vadd.f32 %v4296, %v4488
  %v4521 = vadd.f32 %v4297, %v4489
  %v4522 = vadd.f32 %v4298, %v4490
  %v4523 = vadd.f32 %v4299, %v4491
  %v4524 = vadd.f32 %v4300, %v4492
  %4525 = vset.pattern.permute.xlu0 20
  %4526 = vperm.xlu0 %4525, %v11
  %v4527 = vpop.permute.xlu0 %4526
  %4528 = vset.pattern.permute.xlu0 20
  %4529 = vperm.xlu0 %4528, %v12
  %v4530 = vpop.permute.xlu0 %4529
  %4531 = vset.pattern.permute.xlu0 20
  %4532 = vperm.xlu0 %4531, %v13
  %v4533 = vpop.permute.xlu0 %4532
  %4534 = vset.pattern.permute.xlu0 20
  %4535 = vperm.xlu0 %4534, %v14
  %v4536 = vpop.permute.xlu0 %4535
  %4537 = vset.pattern.permute.xlu0 20
  %4538 = vperm.xlu0 %4537, %v15
  %v4539 = vpop.permute.xlu0 %4538
  %4540 = vset.pattern.permute.xlu0 20
  %4541 = vperm.xlu0 %4540, %v16
  %v4542 = vpop.permute.xlu0 %4541
  %4543 = vset.pattern.permute.xlu0 20
  %4544 = vperm.xlu0 %4543, %v17
  %v4545 = vpop.permute.xlu0 %4544
  %4546 = vset.pattern.permute.xlu0 20
  %4547 = vperm.xlu0 %4546, %v18
  %v4548 = vpop.permute.xlu0 %4547
  %4549 = vset.pattern.permute.xlu0 20
  %4550 = vperm.xlu0 %4549, %v19
  %v4551 = vpop.permute.xlu0 %4550
  %4552 = vset.pattern.permute.xlu0 20
  %4553 = vperm.xlu0 %4552, %v20
  %v4554 = vpop.permute.xlu0 %4553
  %4555 = vset.pattern.permute.xlu0 20
  %4556 = vperm.xlu0 %4555, %v21
  %v4557 = vpop.permute.xlu0 %4556
  %4558 = vset.pattern.permute.xlu0 20
  %4559 = vperm.xlu0 %4558, %v22
  %v4560 = vpop.permute.xlu0 %4559
  %4561 = vset.pattern.permute.xlu0 20
  %4562 = vperm.xlu0 %4561, %v23
  %v4563 = vpop.permute.xlu0 %4562
  %4564 = vset.pattern.permute.xlu0 20
  %4565 = vperm.xlu0 %4564, %v24
  %v4566 = vpop.permute.xlu0 %4565
  %4567 = vset.pattern.permute.xlu0 20
  %4568 = vperm.xlu0 %4567, %v25
  %v4569 = vpop.permute.xlu0 %4568
  %4570 = vset.pattern.permute.xlu0 20
  %4571 = vperm.xlu0 %4570, %v26
  %v4572 = vpop.permute.xlu0 %4571
  %4573 = vset.pattern.permute.xlu0 20
  %4574 = vperm.xlu0 %4573, %v27
  %v4575 = vpop.permute.xlu0 %4574
  %4576 = vset.pattern.permute.xlu0 20
  %4577 = vperm.xlu0 %4576, %v28
  %v4578 = vpop.permute.xlu0 %4577
  %4579 = vset.pattern.permute.xlu0 20
  %4580 = vperm.xlu0 %4579, %v29
  %v4581 = vpop.permute.xlu0 %4580
  %4582 = vset.pattern.permute.xlu0 20
  %4583 = vperm.xlu0 %4582, %v30
  %v4584 = vpop.permute.xlu0 %4583
  %4585 = vset.pattern.permute.xlu0 20
  %4586 = vperm.xlu0 %4585, %v31
  %v4587 = vpop.permute.xlu0 %4586
  %4588 = vset.pattern.permute.xlu0 20
  %4589 = vperm.xlu0 %4588, %v32
  %v4590 = vpop.permute.xlu0 %4589
  %4591 = vset.pattern.permute.xlu0 20
  %4592 = vperm.xlu0 %4591, %v33
  %v4593 = vpop.permute.xlu0 %4592
  %4594 = vset.pattern.permute.xlu0 20
  %4595 = vperm.xlu0 %4594, %v34
  %v4596 = vpop.permute.xlu0 %4595
  %4597 = vset.pattern.permute.xlu0 20
  %4598 = vperm.xlu0 %4597, %v35
  %v4599 = vpop.permute.xlu0 %4598
  %4600 = vset.pattern.permute.xlu0 20
  %4601 = vperm.xlu0 %4600, %v36
  %v4602 = vpop.permute.xlu0 %4601
  %4603 = vset.pattern.permute.xlu0 20
  %4604 = vperm.xlu0 %4603, %v37
  %v4605 = vpop.permute.xlu0 %4604
  %4606 = vset.pattern.permute.xlu0 20
  %4607 = vperm.xlu0 %4606, %v38
  %v4608 = vpop.permute.xlu0 %4607
  %4609 = vset.pattern.permute.xlu0 20
  %4610 = vperm.xlu0 %4609, %v39
  %v4611 = vpop.permute.xlu0 %4610
  %4612 = vset.pattern.permute.xlu0 20
  %4613 = vperm.xlu0 %4612, %v40
  %v4614 = vpop.permute.xlu0 %4613
  %4615 = vset.pattern.permute.xlu0 20
  %4616 = vperm.xlu0 %4615, %v41
  %v4617 = vpop.permute.xlu0 %4616
  %4618 = vset.pattern.permute.xlu0 20
  %4619 = vperm.xlu0 %4618, %v42
  %v4620 = vpop.permute.xlu0 %4619
  %vm4621 = vcmp.eq.s32.totalorder %v4527, %v44
  %vm4622 = vcmp.eq.s32.totalorder %v4530, %v44
  %vm4623 = vcmp.eq.s32.totalorder %v4533, %v44
  %vm4624 = vcmp.eq.s32.totalorder %v4536, %v44
  %vm4625 = vcmp.eq.s32.totalorder %v4539, %v44
  %vm4626 = vcmp.eq.s32.totalorder %v4542, %v44
  %vm4627 = vcmp.eq.s32.totalorder %v4545, %v44
  %vm4628 = vcmp.eq.s32.totalorder %v4548, %v44
  %vm4629 = vcmp.eq.s32.totalorder %v4551, %v44
  %vm4630 = vcmp.eq.s32.totalorder %v4554, %v44
  %vm4631 = vcmp.eq.s32.totalorder %v4557, %v44
  %vm4632 = vcmp.eq.s32.totalorder %v4560, %v44
  %vm4633 = vcmp.eq.s32.totalorder %v4563, %v44
  %vm4634 = vcmp.eq.s32.totalorder %v4566, %v44
  %vm4635 = vcmp.eq.s32.totalorder %v4569, %v44
  %vm4636 = vcmp.eq.s32.totalorder %v4572, %v44
  %vm4637 = vcmp.eq.s32.totalorder %v4575, %v44
  %vm4638 = vcmp.eq.s32.totalorder %v4578, %v44
  %vm4639 = vcmp.eq.s32.totalorder %v4581, %v44
  %vm4640 = vcmp.eq.s32.totalorder %v4584, %v44
  %vm4641 = vcmp.eq.s32.totalorder %v4587, %v44
  %vm4642 = vcmp.eq.s32.totalorder %v4590, %v44
  %vm4643 = vcmp.eq.s32.totalorder %v4593, %v44
  %vm4644 = vcmp.eq.s32.totalorder %v4596, %v44
  %vm4645 = vcmp.eq.s32.totalorder %v4599, %v44
  %vm4646 = vcmp.eq.s32.totalorder %v4602, %v44
  %vm4647 = vcmp.eq.s32.totalorder %v4605, %v44
  %vm4648 = vcmp.eq.s32.totalorder %v4608, %v44
  %vm4649 = vcmp.eq.s32.totalorder %v4611, %v44
  %vm4650 = vcmp.eq.s32.totalorder %v4614, %v44
  %vm4651 = vcmp.eq.s32.totalorder %v4617, %v44
  %vm4652 = vcmp.eq.s32.totalorder %v4620, %v44
  %v4653 = vsel %vm4621, 1, 0
  %v4654 = vsel %vm4622, 1, 0
  %v4655 = vsel %vm4623, 1, 0
  %v4656 = vsel %vm4624, 1, 0
  %v4657 = vsel %vm4625, 1, 0
  %v4658 = vsel %vm4626, 1, 0
  %v4659 = vsel %vm4627, 1, 0
  %v4660 = vsel %vm4628, 1, 0
  %v4661 = vsel %vm4629, 1, 0
  %v4662 = vsel %vm4630, 1, 0
  %v4663 = vsel %vm4631, 1, 0
  %v4664 = vsel %vm4632, 1, 0
  %v4665 = vsel %vm4633, 1, 0
  %v4666 = vsel %vm4634, 1, 0
  %v4667 = vsel %vm4635, 1, 0
  %v4668 = vsel %vm4636, 1, 0
  %v4669 = vsel %vm4637, 1, 0
  %v4670 = vsel %vm4638, 1, 0
  %v4671 = vsel %vm4639, 1, 0
  %v4672 = vsel %vm4640, 1, 0
  %v4673 = vsel %vm4641, 1, 0
  %v4674 = vsel %vm4642, 1, 0
  %v4675 = vsel %vm4643, 1, 0
  %v4676 = vsel %vm4644, 1, 0
  %v4677 = vsel %vm4645, 1, 0
  %v4678 = vsel %vm4646, 1, 0
  %v4679 = vsel %vm4647, 1, 0
  %v4680 = vsel %vm4648, 1, 0
  %v4681 = vsel %vm4649, 1, 0
  %v4682 = vsel %vm4650, 1, 0
  %v4683 = vsel %vm4651, 1, 0
  %v4684 = vsel %vm4652, 1, 0
  %v4685 = vcvt.s32.f32 %v4653
  %v4686 = vcvt.s32.f32 %v4654
  %v4687 = vcvt.s32.f32 %v4655
  %v4688 = vcvt.s32.f32 %v4656
  %v4689 = vcvt.s32.f32 %v4657
  %v4690 = vcvt.s32.f32 %v4658
  %v4691 = vcvt.s32.f32 %v4659
  %v4692 = vcvt.s32.f32 %v4660
  %v4693 = vcvt.s32.f32 %v4661
  %v4694 = vcvt.s32.f32 %v4662
  %v4695 = vcvt.s32.f32 %v4663
  %v4696 = vcvt.s32.f32 %v4664
  %v4697 = vcvt.s32.f32 %v4665
  %v4698 = vcvt.s32.f32 %v4666
  %v4699 = vcvt.s32.f32 %v4667
  %v4700 = vcvt.s32.f32 %v4668
  %v4701 = vcvt.s32.f32 %v4669
  %v4702 = vcvt.s32.f32 %v4670
  %v4703 = vcvt.s32.f32 %v4671
  %v4704 = vcvt.s32.f32 %v4672
  %v4705 = vcvt.s32.f32 %v4673
  %v4706 = vcvt.s32.f32 %v4674
  %v4707 = vcvt.s32.f32 %v4675
  %v4708 = vcvt.s32.f32 %v4676
  %v4709 = vcvt.s32.f32 %v4677
  %v4710 = vcvt.s32.f32 %v4678
  %v4711 = vcvt.s32.f32 %v4679
  %v4712 = vcvt.s32.f32 %v4680
  %v4713 = vcvt.s32.f32 %v4681
  %v4714 = vcvt.s32.f32 %v4682
  %v4715 = vcvt.s32.f32 %v4683
  %v4716 = vcvt.s32.f32 %v4684
  %v4717 = vadd.f32 %v4493, %v4685
  %v4718 = vadd.f32 %v4494, %v4686
  %v4719 = vadd.f32 %v4495, %v4687
  %v4720 = vadd.f32 %v4496, %v4688
  %v4721 = vadd.f32 %v4497, %v4689
  %v4722 = vadd.f32 %v4498, %v4690
  %v4723 = vadd.f32 %v4499, %v4691
  %v4724 = vadd.f32 %v4500, %v4692
  %v4725 = vadd.f32 %v4501, %v4693
  %v4726 = vadd.f32 %v4502, %v4694
  %v4727 = vadd.f32 %v4503, %v4695
  %v4728 = vadd.f32 %v4504, %v4696
  %v4729 = vadd.f32 %v4505, %v4697
  %v4730 = vadd.f32 %v4506, %v4698
  %v4731 = vadd.f32 %v4507, %v4699
  %v4732 = vadd.f32 %v4508, %v4700
  %v4733 = vadd.f32 %v4509, %v4701
  %v4734 = vadd.f32 %v4510, %v4702
  %v4735 = vadd.f32 %v4511, %v4703
  %v4736 = vadd.f32 %v4512, %v4704
  %v4737 = vadd.f32 %v4513, %v4705
  %v4738 = vadd.f32 %v4514, %v4706
  %v4739 = vadd.f32 %v4515, %v4707
  %v4740 = vadd.f32 %v4516, %v4708
  %v4741 = vadd.f32 %v4517, %v4709
  %v4742 = vadd.f32 %v4518, %v4710
  %v4743 = vadd.f32 %v4519, %v4711
  %v4744 = vadd.f32 %v4520, %v4712
  %v4745 = vadd.f32 %v4521, %v4713
  %v4746 = vadd.f32 %v4522, %v4714
  %v4747 = vadd.f32 %v4523, %v4715
  %v4748 = vadd.f32 %v4524, %v4716
  %4749 = vset.pattern.permute.xlu0 21
  %4750 = vperm.xlu0 %4749, %v11
  %v4751 = vpop.permute.xlu0 %4750
  %4752 = vset.pattern.permute.xlu0 21
  %4753 = vperm.xlu0 %4752, %v12
  %v4754 = vpop.permute.xlu0 %4753
  %4755 = vset.pattern.permute.xlu0 21
  %4756 = vperm.xlu0 %4755, %v13
  %v4757 = vpop.permute.xlu0 %4756
  %4758 = vset.pattern.permute.xlu0 21
  %4759 = vperm.xlu0 %4758, %v14
  %v4760 = vpop.permute.xlu0 %4759
  %4761 = vset.pattern.permute.xlu0 21
  %4762 = vperm.xlu0 %4761, %v15
  %v4763 = vpop.permute.xlu0 %4762
  %4764 = vset.pattern.permute.xlu0 21
  %4765 = vperm.xlu0 %4764, %v16
  %v4766 = vpop.permute.xlu0 %4765
  %4767 = vset.pattern.permute.xlu0 21
  %4768 = vperm.xlu0 %4767, %v17
  %v4769 = vpop.permute.xlu0 %4768
  %4770 = vset.pattern.permute.xlu0 21
  %4771 = vperm.xlu0 %4770, %v18
  %v4772 = vpop.permute.xlu0 %4771
  %4773 = vset.pattern.permute.xlu0 21
  %4774 = vperm.xlu0 %4773, %v19
  %v4775 = vpop.permute.xlu0 %4774
  %4776 = vset.pattern.permute.xlu0 21
  %4777 = vperm.xlu0 %4776, %v20
  %v4778 = vpop.permute.xlu0 %4777
  %4779 = vset.pattern.permute.xlu0 21
  %4780 = vperm.xlu0 %4779, %v21
  %v4781 = vpop.permute.xlu0 %4780
  %4782 = vset.pattern.permute.xlu0 21
  %4783 = vperm.xlu0 %4782, %v22
  %v4784 = vpop.permute.xlu0 %4783
  %4785 = vset.pattern.permute.xlu0 21
  %4786 = vperm.xlu0 %4785, %v23
  %v4787 = vpop.permute.xlu0 %4786
  %4788 = vset.pattern.permute.xlu0 21
  %4789 = vperm.xlu0 %4788, %v24
  %v4790 = vpop.permute.xlu0 %4789
  %4791 = vset.pattern.permute.xlu0 21
  %4792 = vperm.xlu0 %4791, %v25
  %v4793 = vpop.permute.xlu0 %4792
  %4794 = vset.pattern.permute.xlu0 21
  %4795 = vperm.xlu0 %4794, %v26
  %v4796 = vpop.permute.xlu0 %4795
  %4797 = vset.pattern.permute.xlu0 21
  %4798 = vperm.xlu0 %4797, %v27
  %v4799 = vpop.permute.xlu0 %4798
  %4800 = vset.pattern.permute.xlu0 21
  %4801 = vperm.xlu0 %4800, %v28
  %v4802 = vpop.permute.xlu0 %4801
  %4803 = vset.pattern.permute.xlu0 21
  %4804 = vperm.xlu0 %4803, %v29
  %v4805 = vpop.permute.xlu0 %4804
  %4806 = vset.pattern.permute.xlu0 21
  %4807 = vperm.xlu0 %4806, %v30
  %v4808 = vpop.permute.xlu0 %4807
  %4809 = vset.pattern.permute.xlu0 21
  %4810 = vperm.xlu0 %4809, %v31
  %v4811 = vpop.permute.xlu0 %4810
  %4812 = vset.pattern.permute.xlu0 21
  %4813 = vperm.xlu0 %4812, %v32
  %v4814 = vpop.permute.xlu0 %4813
  %4815 = vset.pattern.permute.xlu0 21
  %4816 = vperm.xlu0 %4815, %v33
  %v4817 = vpop.permute.xlu0 %4816
  %4818 = vset.pattern.permute.xlu0 21
  %4819 = vperm.xlu0 %4818, %v34
  %v4820 = vpop.permute.xlu0 %4819
  %4821 = vset.pattern.permute.xlu0 21
  %4822 = vperm.xlu0 %4821, %v35
  %v4823 = vpop.permute.xlu0 %4822
  %4824 = vset.pattern.permute.xlu0 21
  %4825 = vperm.xlu0 %4824, %v36
  %v4826 = vpop.permute.xlu0 %4825
  %4827 = vset.pattern.permute.xlu0 21
  %4828 = vperm.xlu0 %4827, %v37
  %v4829 = vpop.permute.xlu0 %4828
  %4830 = vset.pattern.permute.xlu0 21
  %4831 = vperm.xlu0 %4830, %v38
  %v4832 = vpop.permute.xlu0 %4831
  %4833 = vset.pattern.permute.xlu0 21
  %4834 = vperm.xlu0 %4833, %v39
  %v4835 = vpop.permute.xlu0 %4834
  %4836 = vset.pattern.permute.xlu0 21
  %4837 = vperm.xlu0 %4836, %v40
  %v4838 = vpop.permute.xlu0 %4837
  %4839 = vset.pattern.permute.xlu0 21
  %4840 = vperm.xlu0 %4839, %v41
  %v4841 = vpop.permute.xlu0 %4840
  %4842 = vset.pattern.permute.xlu0 21
  %4843 = vperm.xlu0 %4842, %v42
  %v4844 = vpop.permute.xlu0 %4843
  %vm4845 = vcmp.eq.s32.totalorder %v4751, %v44
  %vm4846 = vcmp.eq.s32.totalorder %v4754, %v44
  %vm4847 = vcmp.eq.s32.totalorder %v4757, %v44
  %vm4848 = vcmp.eq.s32.totalorder %v4760, %v44
  %vm4849 = vcmp.eq.s32.totalorder %v4763, %v44
  %vm4850 = vcmp.eq.s32.totalorder %v4766, %v44
  %vm4851 = vcmp.eq.s32.totalorder %v4769, %v44
  %vm4852 = vcmp.eq.s32.totalorder %v4772, %v44
  %vm4853 = vcmp.eq.s32.totalorder %v4775, %v44
  %vm4854 = vcmp.eq.s32.totalorder %v4778, %v44
  %vm4855 = vcmp.eq.s32.totalorder %v4781, %v44
  %vm4856 = vcmp.eq.s32.totalorder %v4784, %v44
  %vm4857 = vcmp.eq.s32.totalorder %v4787, %v44
  %vm4858 = vcmp.eq.s32.totalorder %v4790, %v44
  %vm4859 = vcmp.eq.s32.totalorder %v4793, %v44
  %vm4860 = vcmp.eq.s32.totalorder %v4796, %v44
  %vm4861 = vcmp.eq.s32.totalorder %v4799, %v44
  %vm4862 = vcmp.eq.s32.totalorder %v4802, %v44
  %vm4863 = vcmp.eq.s32.totalorder %v4805, %v44
  %vm4864 = vcmp.eq.s32.totalorder %v4808, %v44
  %vm4865 = vcmp.eq.s32.totalorder %v4811, %v44
  %vm4866 = vcmp.eq.s32.totalorder %v4814, %v44
  %vm4867 = vcmp.eq.s32.totalorder %v4817, %v44
  %vm4868 = vcmp.eq.s32.totalorder %v4820, %v44
  %vm4869 = vcmp.eq.s32.totalorder %v4823, %v44
  %vm4870 = vcmp.eq.s32.totalorder %v4826, %v44
  %vm4871 = vcmp.eq.s32.totalorder %v4829, %v44
  %vm4872 = vcmp.eq.s32.totalorder %v4832, %v44
  %vm4873 = vcmp.eq.s32.totalorder %v4835, %v44
  %vm4874 = vcmp.eq.s32.totalorder %v4838, %v44
  %vm4875 = vcmp.eq.s32.totalorder %v4841, %v44
  %vm4876 = vcmp.eq.s32.totalorder %v4844, %v44
  %v4877 = vsel %vm4845, 1, 0
  %v4878 = vsel %vm4846, 1, 0
  %v4879 = vsel %vm4847, 1, 0
  %v4880 = vsel %vm4848, 1, 0
  %v4881 = vsel %vm4849, 1, 0
  %v4882 = vsel %vm4850, 1, 0
  %v4883 = vsel %vm4851, 1, 0
  %v4884 = vsel %vm4852, 1, 0
  %v4885 = vsel %vm4853, 1, 0
  %v4886 = vsel %vm4854, 1, 0
  %v4887 = vsel %vm4855, 1, 0
  %v4888 = vsel %vm4856, 1, 0
  %v4889 = vsel %vm4857, 1, 0
  %v4890 = vsel %vm4858, 1, 0
  %v4891 = vsel %vm4859, 1, 0
  %v4892 = vsel %vm4860, 1, 0
  %v4893 = vsel %vm4861, 1, 0
  %v4894 = vsel %vm4862, 1, 0
  %v4895 = vsel %vm4863, 1, 0
  %v4896 = vsel %vm4864, 1, 0
  %v4897 = vsel %vm4865, 1, 0
  %v4898 = vsel %vm4866, 1, 0
  %v4899 = vsel %vm4867, 1, 0
  %v4900 = vsel %vm4868, 1, 0
  %v4901 = vsel %vm4869, 1, 0
  %v4902 = vsel %vm4870, 1, 0
  %v4903 = vsel %vm4871, 1, 0
  %v4904 = vsel %vm4872, 1, 0
  %v4905 = vsel %vm4873, 1, 0
  %v4906 = vsel %vm4874, 1, 0
  %v4907 = vsel %vm4875, 1, 0
  %v4908 = vsel %vm4876, 1, 0
  %v4909 = vcvt.s32.f32 %v4877
  %v4910 = vcvt.s32.f32 %v4878
  %v4911 = vcvt.s32.f32 %v4879
  %v4912 = vcvt.s32.f32 %v4880
  %v4913 = vcvt.s32.f32 %v4881
  %v4914 = vcvt.s32.f32 %v4882
  %v4915 = vcvt.s32.f32 %v4883
  %v4916 = vcvt.s32.f32 %v4884
  %v4917 = vcvt.s32.f32 %v4885
  %v4918 = vcvt.s32.f32 %v4886
  %v4919 = vcvt.s32.f32 %v4887
  %v4920 = vcvt.s32.f32 %v4888
  %v4921 = vcvt.s32.f32 %v4889
  %v4922 = vcvt.s32.f32 %v4890
  %v4923 = vcvt.s32.f32 %v4891
  %v4924 = vcvt.s32.f32 %v4892
  %v4925 = vcvt.s32.f32 %v4893
  %v4926 = vcvt.s32.f32 %v4894
  %v4927 = vcvt.s32.f32 %v4895
  %v4928 = vcvt.s32.f32 %v4896
  %v4929 = vcvt.s32.f32 %v4897
  %v4930 = vcvt.s32.f32 %v4898
  %v4931 = vcvt.s32.f32 %v4899
  %v4932 = vcvt.s32.f32 %v4900
  %v4933 = vcvt.s32.f32 %v4901
  %v4934 = vcvt.s32.f32 %v4902
  %v4935 = vcvt.s32.f32 %v4903
  %v4936 = vcvt.s32.f32 %v4904
  %v4937 = vcvt.s32.f32 %v4905
  %v4938 = vcvt.s32.f32 %v4906
  %v4939 = vcvt.s32.f32 %v4907
  %v4940 = vcvt.s32.f32 %v4908
  %v4941 = vadd.f32 %v4717, %v4909
  %v4942 = vadd.f32 %v4718, %v4910
  %v4943 = vadd.f32 %v4719, %v4911
  %v4944 = vadd.f32 %v4720, %v4912
  %v4945 = vadd.f32 %v4721, %v4913
  %v4946 = vadd.f32 %v4722, %v4914
  %v4947 = vadd.f32 %v4723, %v4915
  %v4948 = vadd.f32 %v4724, %v4916
  %v4949 = vadd.f32 %v4725, %v4917
  %v4950 = vadd.f32 %v4726, %v4918
  %v4951 = vadd.f32 %v4727, %v4919
  %v4952 = vadd.f32 %v4728, %v4920
  %v4953 = vadd.f32 %v4729, %v4921
  %v4954 = vadd.f32 %v4730, %v4922
  %v4955 = vadd.f32 %v4731, %v4923
  %v4956 = vadd.f32 %v4732, %v4924
  %v4957 = vadd.f32 %v4733, %v4925
  %v4958 = vadd.f32 %v4734, %v4926
  %v4959 = vadd.f32 %v4735, %v4927
  %v4960 = vadd.f32 %v4736, %v4928
  %v4961 = vadd.f32 %v4737, %v4929
  %v4962 = vadd.f32 %v4738, %v4930
  %v4963 = vadd.f32 %v4739, %v4931
  %v4964 = vadd.f32 %v4740, %v4932
  %v4965 = vadd.f32 %v4741, %v4933
  %v4966 = vadd.f32 %v4742, %v4934
  %v4967 = vadd.f32 %v4743, %v4935
  %v4968 = vadd.f32 %v4744, %v4936
  %v4969 = vadd.f32 %v4745, %v4937
  %v4970 = vadd.f32 %v4746, %v4938
  %v4971 = vadd.f32 %v4747, %v4939
  %v4972 = vadd.f32 %v4748, %v4940
  %4973 = vset.pattern.permute.xlu0 22
  %4974 = vperm.xlu0 %4973, %v11
  %v4975 = vpop.permute.xlu0 %4974
  %4976 = vset.pattern.permute.xlu0 22
  %4977 = vperm.xlu0 %4976, %v12
  %v4978 = vpop.permute.xlu0 %4977
  %4979 = vset.pattern.permute.xlu0 22
  %4980 = vperm.xlu0 %4979, %v13
  %v4981 = vpop.permute.xlu0 %4980
  %4982 = vset.pattern.permute.xlu0 22
  %4983 = vperm.xlu0 %4982, %v14
  %v4984 = vpop.permute.xlu0 %4983
  %4985 = vset.pattern.permute.xlu0 22
  %4986 = vperm.xlu0 %4985, %v15
  %v4987 = vpop.permute.xlu0 %4986
  %4988 = vset.pattern.permute.xlu0 22
  %4989 = vperm.xlu0 %4988, %v16
  %v4990 = vpop.permute.xlu0 %4989
  %4991 = vset.pattern.permute.xlu0 22
  %4992 = vperm.xlu0 %4991, %v17
  %v4993 = vpop.permute.xlu0 %4992
  %4994 = vset.pattern.permute.xlu0 22
  %4995 = vperm.xlu0 %4994, %v18
  %v4996 = vpop.permute.xlu0 %4995
  %4997 = vset.pattern.permute.xlu0 22
  %4998 = vperm.xlu0 %4997, %v19
  %v4999 = vpop.permute.xlu0 %4998
  %5000 = vset.pattern.permute.xlu0 22
  %5001 = vperm.xlu0 %5000, %v20
  %v5002 = vpop.permute.xlu0 %5001
  %5003 = vset.pattern.permute.xlu0 22
  %5004 = vperm.xlu0 %5003, %v21
  %v5005 = vpop.permute.xlu0 %5004
  %5006 = vset.pattern.permute.xlu0 22
  %5007 = vperm.xlu0 %5006, %v22
  %v5008 = vpop.permute.xlu0 %5007
  %5009 = vset.pattern.permute.xlu0 22
  %5010 = vperm.xlu0 %5009, %v23
  %v5011 = vpop.permute.xlu0 %5010
  %5012 = vset.pattern.permute.xlu0 22
  %5013 = vperm.xlu0 %5012, %v24
  %v5014 = vpop.permute.xlu0 %5013
  %5015 = vset.pattern.permute.xlu0 22
  %5016 = vperm.xlu0 %5015, %v25
  %v5017 = vpop.permute.xlu0 %5016
  %5018 = vset.pattern.permute.xlu0 22
  %5019 = vperm.xlu0 %5018, %v26
  %v5020 = vpop.permute.xlu0 %5019
  %5021 = vset.pattern.permute.xlu0 22
  %5022 = vperm.xlu0 %5021, %v27
  %v5023 = vpop.permute.xlu0 %5022
  %5024 = vset.pattern.permute.xlu0 22
  %5025 = vperm.xlu0 %5024, %v28
  %v5026 = vpop.permute.xlu0 %5025
  %5027 = vset.pattern.permute.xlu0 22
  %5028 = vperm.xlu0 %5027, %v29
  %v5029 = vpop.permute.xlu0 %5028
  %5030 = vset.pattern.permute.xlu0 22
  %5031 = vperm.xlu0 %5030, %v30
  %v5032 = vpop.permute.xlu0 %5031
  %5033 = vset.pattern.permute.xlu0 22
  %5034 = vperm.xlu0 %5033, %v31
  %v5035 = vpop.permute.xlu0 %5034
  %5036 = vset.pattern.permute.xlu0 22
  %5037 = vperm.xlu0 %5036, %v32
  %v5038 = vpop.permute.xlu0 %5037
  %5039 = vset.pattern.permute.xlu0 22
  %5040 = vperm.xlu0 %5039, %v33
  %v5041 = vpop.permute.xlu0 %5040
  %5042 = vset.pattern.permute.xlu0 22
  %5043 = vperm.xlu0 %5042, %v34
  %v5044 = vpop.permute.xlu0 %5043
  %5045 = vset.pattern.permute.xlu0 22
  %5046 = vperm.xlu0 %5045, %v35
  %v5047 = vpop.permute.xlu0 %5046
  %5048 = vset.pattern.permute.xlu0 22
  %5049 = vperm.xlu0 %5048, %v36
  %v5050 = vpop.permute.xlu0 %5049
  %5051 = vset.pattern.permute.xlu0 22
  %5052 = vperm.xlu0 %5051, %v37
  %v5053 = vpop.permute.xlu0 %5052
  %5054 = vset.pattern.permute.xlu0 22
  %5055 = vperm.xlu0 %5054, %v38
  %v5056 = vpop.permute.xlu0 %5055
  %5057 = vset.pattern.permute.xlu0 22
  %5058 = vperm.xlu0 %5057, %v39
  %v5059 = vpop.permute.xlu0 %5058
  %5060 = vset.pattern.permute.xlu0 22
  %5061 = vperm.xlu0 %5060, %v40
  %v5062 = vpop.permute.xlu0 %5061
  %5063 = vset.pattern.permute.xlu0 22
  %5064 = vperm.xlu0 %5063, %v41
  %v5065 = vpop.permute.xlu0 %5064
  %5066 = vset.pattern.permute.xlu0 22
  %5067 = vperm.xlu0 %5066, %v42
  %v5068 = vpop.permute.xlu0 %5067
  %vm5069 = vcmp.eq.s32.totalorder %v4975, %v44
  %vm5070 = vcmp.eq.s32.totalorder %v4978, %v44
  %vm5071 = vcmp.eq.s32.totalorder %v4981, %v44
  %vm5072 = vcmp.eq.s32.totalorder %v4984, %v44
  %vm5073 = vcmp.eq.s32.totalorder %v4987, %v44
  %vm5074 = vcmp.eq.s32.totalorder %v4990, %v44
  %vm5075 = vcmp.eq.s32.totalorder %v4993, %v44
  %vm5076 = vcmp.eq.s32.totalorder %v4996, %v44
  %vm5077 = vcmp.eq.s32.totalorder %v4999, %v44
  %vm5078 = vcmp.eq.s32.totalorder %v5002, %v44
  %vm5079 = vcmp.eq.s32.totalorder %v5005, %v44
  %vm5080 = vcmp.eq.s32.totalorder %v5008, %v44
  %vm5081 = vcmp.eq.s32.totalorder %v5011, %v44
  %vm5082 = vcmp.eq.s32.totalorder %v5014, %v44
  %vm5083 = vcmp.eq.s32.totalorder %v5017, %v44
  %vm5084 = vcmp.eq.s32.totalorder %v5020, %v44
  %vm5085 = vcmp.eq.s32.totalorder %v5023, %v44
  %vm5086 = vcmp.eq.s32.totalorder %v5026, %v44
  %vm5087 = vcmp.eq.s32.totalorder %v5029, %v44
  %vm5088 = vcmp.eq.s32.totalorder %v5032, %v44
  %vm5089 = vcmp.eq.s32.totalorder %v5035, %v44
  %vm5090 = vcmp.eq.s32.totalorder %v5038, %v44
  %vm5091 = vcmp.eq.s32.totalorder %v5041, %v44
  %vm5092 = vcmp.eq.s32.totalorder %v5044, %v44
  %vm5093 = vcmp.eq.s32.totalorder %v5047, %v44
  %vm5094 = vcmp.eq.s32.totalorder %v5050, %v44
  %vm5095 = vcmp.eq.s32.totalorder %v5053, %v44
  %vm5096 = vcmp.eq.s32.totalorder %v5056, %v44
  %vm5097 = vcmp.eq.s32.totalorder %v5059, %v44
  %vm5098 = vcmp.eq.s32.totalorder %v5062, %v44
  %vm5099 = vcmp.eq.s32.totalorder %v5065, %v44
  %vm5100 = vcmp.eq.s32.totalorder %v5068, %v44
  %v5101 = vsel %vm5069, 1, 0
  %v5102 = vsel %vm5070, 1, 0
  %v5103 = vsel %vm5071, 1, 0
  %v5104 = vsel %vm5072, 1, 0
  %v5105 = vsel %vm5073, 1, 0
  %v5106 = vsel %vm5074, 1, 0
  %v5107 = vsel %vm5075, 1, 0
  %v5108 = vsel %vm5076, 1, 0
  %v5109 = vsel %vm5077, 1, 0
  %v5110 = vsel %vm5078, 1, 0
  %v5111 = vsel %vm5079, 1, 0
  %v5112 = vsel %vm5080, 1, 0
  %v5113 = vsel %vm5081, 1, 0
  %v5114 = vsel %vm5082, 1, 0
  %v5115 = vsel %vm5083, 1, 0
  %v5116 = vsel %vm5084, 1, 0
  %v5117 = vsel %vm5085, 1, 0
  %v5118 = vsel %vm5086, 1, 0
  %v5119 = vsel %vm5087, 1, 0
  %v5120 = vsel %vm5088, 1, 0
  %v5121 = vsel %vm5089, 1, 0
  %v5122 = vsel %vm5090, 1, 0
  %v5123 = vsel %vm5091, 1, 0
  %v5124 = vsel %vm5092, 1, 0
  %v5125 = vsel %vm5093, 1, 0
  %v5126 = vsel %vm5094, 1, 0
  %v5127 = vsel %vm5095, 1, 0
  %v5128 = vsel %vm5096, 1, 0
  %v5129 = vsel %vm5097, 1, 0
  %v5130 = vsel %vm5098, 1, 0
  %v5131 = vsel %vm5099, 1, 0
  %v5132 = vsel %vm5100, 1, 0
  %v5133 = vcvt.s32.f32 %v5101
  %v5134 = vcvt.s32.f32 %v5102
  %v5135 = vcvt.s32.f32 %v5103
  %v5136 = vcvt.s32.f32 %v5104
  %v5137 = vcvt.s32.f32 %v5105
  %v5138 = vcvt.s32.f32 %v5106
  %v5139 = vcvt.s32.f32 %v5107
  %v5140 = vcvt.s32.f32 %v5108
  %v5141 = vcvt.s32.f32 %v5109
  %v5142 = vcvt.s32.f32 %v5110
  %v5143 = vcvt.s32.f32 %v5111
  %v5144 = vcvt.s32.f32 %v5112
  %v5145 = vcvt.s32.f32 %v5113
  %v5146 = vcvt.s32.f32 %v5114
  %v5147 = vcvt.s32.f32 %v5115
  %v5148 = vcvt.s32.f32 %v5116
  %v5149 = vcvt.s32.f32 %v5117
  %v5150 = vcvt.s32.f32 %v5118
  %v5151 = vcvt.s32.f32 %v5119
  %v5152 = vcvt.s32.f32 %v5120
  %v5153 = vcvt.s32.f32 %v5121
  %v5154 = vcvt.s32.f32 %v5122
  %v5155 = vcvt.s32.f32 %v5123
  %v5156 = vcvt.s32.f32 %v5124
  %v5157 = vcvt.s32.f32 %v5125
  %v5158 = vcvt.s32.f32 %v5126
  %v5159 = vcvt.s32.f32 %v5127
  %v5160 = vcvt.s32.f32 %v5128
  %v5161 = vcvt.s32.f32 %v5129
  %v5162 = vcvt.s32.f32 %v5130
  %v5163 = vcvt.s32.f32 %v5131
  %v5164 = vcvt.s32.f32 %v5132
  %v5165 = vadd.f32 %v4941, %v5133
  %v5166 = vadd.f32 %v4942, %v5134
  %v5167 = vadd.f32 %v4943, %v5135
  %v5168 = vadd.f32 %v4944, %v5136
  %v5169 = vadd.f32 %v4945, %v5137
  %v5170 = vadd.f32 %v4946, %v5138
  %v5171 = vadd.f32 %v4947, %v5139
  %v5172 = vadd.f32 %v4948, %v5140
  %v5173 = vadd.f32 %v4949, %v5141
  %v5174 = vadd.f32 %v4950, %v5142
  %v5175 = vadd.f32 %v4951, %v5143
  %v5176 = vadd.f32 %v4952, %v5144
  %v5177 = vadd.f32 %v4953, %v5145
  %v5178 = vadd.f32 %v4954, %v5146
  %v5179 = vadd.f32 %v4955, %v5147
  %v5180 = vadd.f32 %v4956, %v5148
  %v5181 = vadd.f32 %v4957, %v5149
  %v5182 = vadd.f32 %v4958, %v5150
  %v5183 = vadd.f32 %v4959, %v5151
  %v5184 = vadd.f32 %v4960, %v5152
  %v5185 = vadd.f32 %v4961, %v5153
  %v5186 = vadd.f32 %v4962, %v5154
  %v5187 = vadd.f32 %v4963, %v5155
  %v5188 = vadd.f32 %v4964, %v5156
  %v5189 = vadd.f32 %v4965, %v5157
  %v5190 = vadd.f32 %v4966, %v5158
  %v5191 = vadd.f32 %v4967, %v5159
  %v5192 = vadd.f32 %v4968, %v5160
  %v5193 = vadd.f32 %v4969, %v5161
  %v5194 = vadd.f32 %v4970, %v5162
  %v5195 = vadd.f32 %v4971, %v5163
  %v5196 = vadd.f32 %v4972, %v5164
  %5197 = vset.pattern.permute.xlu0 23
  %5198 = vperm.xlu0 %5197, %v11
  %v5199 = vpop.permute.xlu0 %5198
  %5200 = vset.pattern.permute.xlu0 23
  %5201 = vperm.xlu0 %5200, %v12
  %v5202 = vpop.permute.xlu0 %5201
  %5203 = vset.pattern.permute.xlu0 23
  %5204 = vperm.xlu0 %5203, %v13
  %v5205 = vpop.permute.xlu0 %5204
  %5206 = vset.pattern.permute.xlu0 23
  %5207 = vperm.xlu0 %5206, %v14
  %v5208 = vpop.permute.xlu0 %5207
  %5209 = vset.pattern.permute.xlu0 23
  %5210 = vperm.xlu0 %5209, %v15
  %v5211 = vpop.permute.xlu0 %5210
  %5212 = vset.pattern.permute.xlu0 23
  %5213 = vperm.xlu0 %5212, %v16
  %v5214 = vpop.permute.xlu0 %5213
  %5215 = vset.pattern.permute.xlu0 23
  %5216 = vperm.xlu0 %5215, %v17
  %v5217 = vpop.permute.xlu0 %5216
  %5218 = vset.pattern.permute.xlu0 23
  %5219 = vperm.xlu0 %5218, %v18
  %v5220 = vpop.permute.xlu0 %5219
  %5221 = vset.pattern.permute.xlu0 23
  %5222 = vperm.xlu0 %5221, %v19
  %v5223 = vpop.permute.xlu0 %5222
  %5224 = vset.pattern.permute.xlu0 23
  %5225 = vperm.xlu0 %5224, %v20
  %v5226 = vpop.permute.xlu0 %5225
  %5227 = vset.pattern.permute.xlu0 23
  %5228 = vperm.xlu0 %5227, %v21
  %v5229 = vpop.permute.xlu0 %5228
  %5230 = vset.pattern.permute.xlu0 23
  %5231 = vperm.xlu0 %5230, %v22
  %v5232 = vpop.permute.xlu0 %5231
  %5233 = vset.pattern.permute.xlu0 23
  %5234 = vperm.xlu0 %5233, %v23
  %v5235 = vpop.permute.xlu0 %5234
  %5236 = vset.pattern.permute.xlu0 23
  %5237 = vperm.xlu0 %5236, %v24
  %v5238 = vpop.permute.xlu0 %5237
  %5239 = vset.pattern.permute.xlu0 23
  %5240 = vperm.xlu0 %5239, %v25
  %v5241 = vpop.permute.xlu0 %5240
  %5242 = vset.pattern.permute.xlu0 23
  %5243 = vperm.xlu0 %5242, %v26
  %v5244 = vpop.permute.xlu0 %5243
  %5245 = vset.pattern.permute.xlu0 23
  %5246 = vperm.xlu0 %5245, %v27
  %v5247 = vpop.permute.xlu0 %5246
  %5248 = vset.pattern.permute.xlu0 23
  %5249 = vperm.xlu0 %5248, %v28
  %v5250 = vpop.permute.xlu0 %5249
  %5251 = vset.pattern.permute.xlu0 23
  %5252 = vperm.xlu0 %5251, %v29
  %v5253 = vpop.permute.xlu0 %5252
  %5254 = vset.pattern.permute.xlu0 23
  %5255 = vperm.xlu0 %5254, %v30
  %v5256 = vpop.permute.xlu0 %5255
  %5257 = vset.pattern.permute.xlu0 23
  %5258 = vperm.xlu0 %5257, %v31
  %v5259 = vpop.permute.xlu0 %5258
  %5260 = vset.pattern.permute.xlu0 23
  %5261 = vperm.xlu0 %5260, %v32
  %v5262 = vpop.permute.xlu0 %5261
  %5263 = vset.pattern.permute.xlu0 23
  %5264 = vperm.xlu0 %5263, %v33
  %v5265 = vpop.permute.xlu0 %5264
  %5266 = vset.pattern.permute.xlu0 23
  %5267 = vperm.xlu0 %5266, %v34
  %v5268 = vpop.permute.xlu0 %5267
  %5269 = vset.pattern.permute.xlu0 23
  %5270 = vperm.xlu0 %5269, %v35
  %v5271 = vpop.permute.xlu0 %5270
  %5272 = vset.pattern.permute.xlu0 23
  %5273 = vperm.xlu0 %5272, %v36
  %v5274 = vpop.permute.xlu0 %5273
  %5275 = vset.pattern.permute.xlu0 23
  %5276 = vperm.xlu0 %5275, %v37
  %v5277 = vpop.permute.xlu0 %5276
  %5278 = vset.pattern.permute.xlu0 23
  %5279 = vperm.xlu0 %5278, %v38
  %v5280 = vpop.permute.xlu0 %5279
  %5281 = vset.pattern.permute.xlu0 23
  %5282 = vperm.xlu0 %5281, %v39
  %v5283 = vpop.permute.xlu0 %5282
  %5284 = vset.pattern.permute.xlu0 23
  %5285 = vperm.xlu0 %5284, %v40
  %v5286 = vpop.permute.xlu0 %5285
  %5287 = vset.pattern.permute.xlu0 23
  %5288 = vperm.xlu0 %5287, %v41
  %v5289 = vpop.permute.xlu0 %5288
  %5290 = vset.pattern.permute.xlu0 23
  %5291 = vperm.xlu0 %5290, %v42
  %v5292 = vpop.permute.xlu0 %5291
  %vm5293 = vcmp.eq.s32.totalorder %v5199, %v44
  %vm5294 = vcmp.eq.s32.totalorder %v5202, %v44
  %vm5295 = vcmp.eq.s32.totalorder %v5205, %v44
  %vm5296 = vcmp.eq.s32.totalorder %v5208, %v44
  %vm5297 = vcmp.eq.s32.totalorder %v5211, %v44
  %vm5298 = vcmp.eq.s32.totalorder %v5214, %v44
  %vm5299 = vcmp.eq.s32.totalorder %v5217, %v44
  %vm5300 = vcmp.eq.s32.totalorder %v5220, %v44
  %vm5301 = vcmp.eq.s32.totalorder %v5223, %v44
  %vm5302 = vcmp.eq.s32.totalorder %v5226, %v44
  %vm5303 = vcmp.eq.s32.totalorder %v5229, %v44
  %vm5304 = vcmp.eq.s32.totalorder %v5232, %v44
  %vm5305 = vcmp.eq.s32.totalorder %v5235, %v44
  %vm5306 = vcmp.eq.s32.totalorder %v5238, %v44
  %vm5307 = vcmp.eq.s32.totalorder %v5241, %v44
  %vm5308 = vcmp.eq.s32.totalorder %v5244, %v44
  %vm5309 = vcmp.eq.s32.totalorder %v5247, %v44
  %vm5310 = vcmp.eq.s32.totalorder %v5250, %v44
  %vm5311 = vcmp.eq.s32.totalorder %v5253, %v44
  %vm5312 = vcmp.eq.s32.totalorder %v5256, %v44
  %vm5313 = vcmp.eq.s32.totalorder %v5259, %v44
  %vm5314 = vcmp.eq.s32.totalorder %v5262, %v44
  %vm5315 = vcmp.eq.s32.totalorder %v5265, %v44
  %vm5316 = vcmp.eq.s32.totalorder %v5268, %v44
  %vm5317 = vcmp.eq.s32.totalorder %v5271, %v44
  %vm5318 = vcmp.eq.s32.totalorder %v5274, %v44
  %vm5319 = vcmp.eq.s32.totalorder %v5277, %v44
  %vm5320 = vcmp.eq.s32.totalorder %v5280, %v44
  %vm5321 = vcmp.eq.s32.totalorder %v5283, %v44
  %vm5322 = vcmp.eq.s32.totalorder %v5286, %v44
  %vm5323 = vcmp.eq.s32.totalorder %v5289, %v44
  %vm5324 = vcmp.eq.s32.totalorder %v5292, %v44
  %v5325 = vsel %vm5293, 1, 0
  %v5326 = vsel %vm5294, 1, 0
  %v5327 = vsel %vm5295, 1, 0
  %v5328 = vsel %vm5296, 1, 0
  %v5329 = vsel %vm5297, 1, 0
  %v5330 = vsel %vm5298, 1, 0
  %v5331 = vsel %vm5299, 1, 0
  %v5332 = vsel %vm5300, 1, 0
  %v5333 = vsel %vm5301, 1, 0
  %v5334 = vsel %vm5302, 1, 0
  %v5335 = vsel %vm5303, 1, 0
  %v5336 = vsel %vm5304, 1, 0
  %v5337 = vsel %vm5305, 1, 0
  %v5338 = vsel %vm5306, 1, 0
  %v5339 = vsel %vm5307, 1, 0
  %v5340 = vsel %vm5308, 1, 0
  %v5341 = vsel %vm5309, 1, 0
  %v5342 = vsel %vm5310, 1, 0
  %v5343 = vsel %vm5311, 1, 0
  %v5344 = vsel %vm5312, 1, 0
  %v5345 = vsel %vm5313, 1, 0
  %v5346 = vsel %vm5314, 1, 0
  %v5347 = vsel %vm5315, 1, 0
  %v5348 = vsel %vm5316, 1, 0
  %v5349 = vsel %vm5317, 1, 0
  %v5350 = vsel %vm5318, 1, 0
  %v5351 = vsel %vm5319, 1, 0
  %v5352 = vsel %vm5320, 1, 0
  %v5353 = vsel %vm5321, 1, 0
  %v5354 = vsel %vm5322, 1, 0
  %v5355 = vsel %vm5323, 1, 0
  %v5356 = vsel %vm5324, 1, 0
  %v5357 = vcvt.s32.f32 %v5325
  %v5358 = vcvt.s32.f32 %v5326
  %v5359 = vcvt.s32.f32 %v5327
  %v5360 = vcvt.s32.f32 %v5328
  %v5361 = vcvt.s32.f32 %v5329
  %v5362 = vcvt.s32.f32 %v5330
  %v5363 = vcvt.s32.f32 %v5331
  %v5364 = vcvt.s32.f32 %v5332
  %v5365 = vcvt.s32.f32 %v5333
  %v5366 = vcvt.s32.f32 %v5334
  %v5367 = vcvt.s32.f32 %v5335
  %v5368 = vcvt.s32.f32 %v5336
  %v5369 = vcvt.s32.f32 %v5337
  %v5370 = vcvt.s32.f32 %v5338
  %v5371 = vcvt.s32.f32 %v5339
  %v5372 = vcvt.s32.f32 %v5340
  %v5373 = vcvt.s32.f32 %v5341
  %v5374 = vcvt.s32.f32 %v5342
  %v5375 = vcvt.s32.f32 %v5343
  %v5376 = vcvt.s32.f32 %v5344
  %v5377 = vcvt.s32.f32 %v5345
  %v5378 = vcvt.s32.f32 %v5346
  %v5379 = vcvt.s32.f32 %v5347
  %v5380 = vcvt.s32.f32 %v5348
  %v5381 = vcvt.s32.f32 %v5349
  %v5382 = vcvt.s32.f32 %v5350
  %v5383 = vcvt.s32.f32 %v5351
  %v5384 = vcvt.s32.f32 %v5352
  %v5385 = vcvt.s32.f32 %v5353
  %v5386 = vcvt.s32.f32 %v5354
  %v5387 = vcvt.s32.f32 %v5355
  %v5388 = vcvt.s32.f32 %v5356
  %v5389 = vadd.f32 %v5165, %v5357
  %v5390 = vadd.f32 %v5166, %v5358
  %v5391 = vadd.f32 %v5167, %v5359
  %v5392 = vadd.f32 %v5168, %v5360
  %v5393 = vadd.f32 %v5169, %v5361
  %v5394 = vadd.f32 %v5170, %v5362
  %v5395 = vadd.f32 %v5171, %v5363
  %v5396 = vadd.f32 %v5172, %v5364
  %v5397 = vadd.f32 %v5173, %v5365
  %v5398 = vadd.f32 %v5174, %v5366
  %v5399 = vadd.f32 %v5175, %v5367
  %v5400 = vadd.f32 %v5176, %v5368
  %v5401 = vadd.f32 %v5177, %v5369
  %v5402 = vadd.f32 %v5178, %v5370
  %v5403 = vadd.f32 %v5179, %v5371
  %v5404 = vadd.f32 %v5180, %v5372
  %v5405 = vadd.f32 %v5181, %v5373
  %v5406 = vadd.f32 %v5182, %v5374
  %v5407 = vadd.f32 %v5183, %v5375
  %v5408 = vadd.f32 %v5184, %v5376
  %v5409 = vadd.f32 %v5185, %v5377
  %v5410 = vadd.f32 %v5186, %v5378
  %v5411 = vadd.f32 %v5187, %v5379
  %v5412 = vadd.f32 %v5188, %v5380
  %v5413 = vadd.f32 %v5189, %v5381
  %v5414 = vadd.f32 %v5190, %v5382
  %v5415 = vadd.f32 %v5191, %v5383
  %v5416 = vadd.f32 %v5192, %v5384
  %v5417 = vadd.f32 %v5193, %v5385
  %v5418 = vadd.f32 %v5194, %v5386
  %v5419 = vadd.f32 %v5195, %v5387
  %v5420 = vadd.f32 %v5196, %v5388
  %5421 = vset.pattern.permute.xlu0 24
  %5422 = vperm.xlu0 %5421, %v11
  %v5423 = vpop.permute.xlu0 %5422
  %5424 = vset.pattern.permute.xlu0 24
  %5425 = vperm.xlu0 %5424, %v12
  %v5426 = vpop.permute.xlu0 %5425
  %5427 = vset.pattern.permute.xlu0 24
  %5428 = vperm.xlu0 %5427, %v13
  %v5429 = vpop.permute.xlu0 %5428
  %5430 = vset.pattern.permute.xlu0 24
  %5431 = vperm.xlu0 %5430, %v14
  %v5432 = vpop.permute.xlu0 %5431
  %5433 = vset.pattern.permute.xlu0 24
  %5434 = vperm.xlu0 %5433, %v15
  %v5435 = vpop.permute.xlu0 %5434
  %5436 = vset.pattern.permute.xlu0 24
  %5437 = vperm.xlu0 %5436, %v16
  %v5438 = vpop.permute.xlu0 %5437
  %5439 = vset.pattern.permute.xlu0 24
  %5440 = vperm.xlu0 %5439, %v17
  %v5441 = vpop.permute.xlu0 %5440
  %5442 = vset.pattern.permute.xlu0 24
  %5443 = vperm.xlu0 %5442, %v18
  %v5444 = vpop.permute.xlu0 %5443
  %5445 = vset.pattern.permute.xlu0 24
  %5446 = vperm.xlu0 %5445, %v19
  %v5447 = vpop.permute.xlu0 %5446
  %5448 = vset.pattern.permute.xlu0 24
  %5449 = vperm.xlu0 %5448, %v20
  %v5450 = vpop.permute.xlu0 %5449
  %5451 = vset.pattern.permute.xlu0 24
  %5452 = vperm.xlu0 %5451, %v21
  %v5453 = vpop.permute.xlu0 %5452
  %5454 = vset.pattern.permute.xlu0 24
  %5455 = vperm.xlu0 %5454, %v22
  %v5456 = vpop.permute.xlu0 %5455
  %5457 = vset.pattern.permute.xlu0 24
  %5458 = vperm.xlu0 %5457, %v23
  %v5459 = vpop.permute.xlu0 %5458
  %5460 = vset.pattern.permute.xlu0 24
  %5461 = vperm.xlu0 %5460, %v24
  %v5462 = vpop.permute.xlu0 %5461
  %5463 = vset.pattern.permute.xlu0 24
  %5464 = vperm.xlu0 %5463, %v25
  %v5465 = vpop.permute.xlu0 %5464
  %5466 = vset.pattern.permute.xlu0 24
  %5467 = vperm.xlu0 %5466, %v26
  %v5468 = vpop.permute.xlu0 %5467
  %5469 = vset.pattern.permute.xlu0 24
  %5470 = vperm.xlu0 %5469, %v27
  %v5471 = vpop.permute.xlu0 %5470
  %5472 = vset.pattern.permute.xlu0 24
  %5473 = vperm.xlu0 %5472, %v28
  %v5474 = vpop.permute.xlu0 %5473
  %5475 = vset.pattern.permute.xlu0 24
  %5476 = vperm.xlu0 %5475, %v29
  %v5477 = vpop.permute.xlu0 %5476
  %5478 = vset.pattern.permute.xlu0 24
  %5479 = vperm.xlu0 %5478, %v30
  %v5480 = vpop.permute.xlu0 %5479
  %5481 = vset.pattern.permute.xlu0 24
  %5482 = vperm.xlu0 %5481, %v31
  %v5483 = vpop.permute.xlu0 %5482
  %5484 = vset.pattern.permute.xlu0 24
  %5485 = vperm.xlu0 %5484, %v32
  %v5486 = vpop.permute.xlu0 %5485
  %5487 = vset.pattern.permute.xlu0 24
  %5488 = vperm.xlu0 %5487, %v33
  %v5489 = vpop.permute.xlu0 %5488
  %5490 = vset.pattern.permute.xlu0 24
  %5491 = vperm.xlu0 %5490, %v34
  %v5492 = vpop.permute.xlu0 %5491
  %5493 = vset.pattern.permute.xlu0 24
  %5494 = vperm.xlu0 %5493, %v35
  %v5495 = vpop.permute.xlu0 %5494
  %5496 = vset.pattern.permute.xlu0 24
  %5497 = vperm.xlu0 %5496, %v36
  %v5498 = vpop.permute.xlu0 %5497
  %5499 = vset.pattern.permute.xlu0 24
  %5500 = vperm.xlu0 %5499, %v37
  %v5501 = vpop.permute.xlu0 %5500
  %5502 = vset.pattern.permute.xlu0 24
  %5503 = vperm.xlu0 %5502, %v38
  %v5504 = vpop.permute.xlu0 %5503
  %5505 = vset.pattern.permute.xlu0 24
  %5506 = vperm.xlu0 %5505, %v39
  %v5507 = vpop.permute.xlu0 %5506
  %5508 = vset.pattern.permute.xlu0 24
  %5509 = vperm.xlu0 %5508, %v40
  %v5510 = vpop.permute.xlu0 %5509
  %5511 = vset.pattern.permute.xlu0 24
  %5512 = vperm.xlu0 %5511, %v41
  %v5513 = vpop.permute.xlu0 %5512
  %5514 = vset.pattern.permute.xlu0 24
  %5515 = vperm.xlu0 %5514, %v42
  %v5516 = vpop.permute.xlu0 %5515
  %vm5517 = vcmp.eq.s32.totalorder %v5423, %v44
  %vm5518 = vcmp.eq.s32.totalorder %v5426, %v44
  %vm5519 = vcmp.eq.s32.totalorder %v5429, %v44
  %vm5520 = vcmp.eq.s32.totalorder %v5432, %v44
  %vm5521 = vcmp.eq.s32.totalorder %v5435, %v44
  %vm5522 = vcmp.eq.s32.totalorder %v5438, %v44
  %vm5523 = vcmp.eq.s32.totalorder %v5441, %v44
  %vm5524 = vcmp.eq.s32.totalorder %v5444, %v44
  %vm5525 = vcmp.eq.s32.totalorder %v5447, %v44
  %vm5526 = vcmp.eq.s32.totalorder %v5450, %v44
  %vm5527 = vcmp.eq.s32.totalorder %v5453, %v44
  %vm5528 = vcmp.eq.s32.totalorder %v5456, %v44
  %vm5529 = vcmp.eq.s32.totalorder %v5459, %v44
  %vm5530 = vcmp.eq.s32.totalorder %v5462, %v44
  %vm5531 = vcmp.eq.s32.totalorder %v5465, %v44
  %vm5532 = vcmp.eq.s32.totalorder %v5468, %v44
  %vm5533 = vcmp.eq.s32.totalorder %v5471, %v44
  %vm5534 = vcmp.eq.s32.totalorder %v5474, %v44
  %vm5535 = vcmp.eq.s32.totalorder %v5477, %v44
  %vm5536 = vcmp.eq.s32.totalorder %v5480, %v44
  %vm5537 = vcmp.eq.s32.totalorder %v5483, %v44
  %vm5538 = vcmp.eq.s32.totalorder %v5486, %v44
  %vm5539 = vcmp.eq.s32.totalorder %v5489, %v44
  %vm5540 = vcmp.eq.s32.totalorder %v5492, %v44
  %vm5541 = vcmp.eq.s32.totalorder %v5495, %v44
  %vm5542 = vcmp.eq.s32.totalorder %v5498, %v44
  %vm5543 = vcmp.eq.s32.totalorder %v5501, %v44
  %vm5544 = vcmp.eq.s32.totalorder %v5504, %v44
  %vm5545 = vcmp.eq.s32.totalorder %v5507, %v44
  %vm5546 = vcmp.eq.s32.totalorder %v5510, %v44
  %vm5547 = vcmp.eq.s32.totalorder %v5513, %v44
  %vm5548 = vcmp.eq.s32.totalorder %v5516, %v44
  %v5549 = vsel %vm5517, 1, 0
  %v5550 = vsel %vm5518, 1, 0
  %v5551 = vsel %vm5519, 1, 0
  %v5552 = vsel %vm5520, 1, 0
  %v5553 = vsel %vm5521, 1, 0
  %v5554 = vsel %vm5522, 1, 0
  %v5555 = vsel %vm5523, 1, 0
  %v5556 = vsel %vm5524, 1, 0
  %v5557 = vsel %vm5525, 1, 0
  %v5558 = vsel %vm5526, 1, 0
  %v5559 = vsel %vm5527, 1, 0
  %v5560 = vsel %vm5528, 1, 0
  %v5561 = vsel %vm5529, 1, 0
  %v5562 = vsel %vm5530, 1, 0
  %v5563 = vsel %vm5531, 1, 0
  %v5564 = vsel %vm5532, 1, 0
  %v5565 = vsel %vm5533, 1, 0
  %v5566 = vsel %vm5534, 1, 0
  %v5567 = vsel %vm5535, 1, 0
  %v5568 = vsel %vm5536, 1, 0
  %v5569 = vsel %vm5537, 1, 0
  %v5570 = vsel %vm5538, 1, 0
  %v5571 = vsel %vm5539, 1, 0
  %v5572 = vsel %vm5540, 1, 0
  %v5573 = vsel %vm5541, 1, 0
  %v5574 = vsel %vm5542, 1, 0
  %v5575 = vsel %vm5543, 1, 0
  %v5576 = vsel %vm5544, 1, 0
  %v5577 = vsel %vm5545, 1, 0
  %v5578 = vsel %vm5546, 1, 0
  %v5579 = vsel %vm5547, 1, 0
  %v5580 = vsel %vm5548, 1, 0
  %v5581 = vcvt.s32.f32 %v5549
  %v5582 = vcvt.s32.f32 %v5550
  %v5583 = vcvt.s32.f32 %v5551
  %v5584 = vcvt.s32.f32 %v5552
  %v5585 = vcvt.s32.f32 %v5553
  %v5586 = vcvt.s32.f32 %v5554
  %v5587 = vcvt.s32.f32 %v5555
  %v5588 = vcvt.s32.f32 %v5556
  %v5589 = vcvt.s32.f32 %v5557
  %v5590 = vcvt.s32.f32 %v5558
  %v5591 = vcvt.s32.f32 %v5559
  %v5592 = vcvt.s32.f32 %v5560
  %v5593 = vcvt.s32.f32 %v5561
  %v5594 = vcvt.s32.f32 %v5562
  %v5595 = vcvt.s32.f32 %v5563
  %v5596 = vcvt.s32.f32 %v5564
  %v5597 = vcvt.s32.f32 %v5565
  %v5598 = vcvt.s32.f32 %v5566
  %v5599 = vcvt.s32.f32 %v5567
  %v5600 = vcvt.s32.f32 %v5568
  %v5601 = vcvt.s32.f32 %v5569
  %v5602 = vcvt.s32.f32 %v5570
  %v5603 = vcvt.s32.f32 %v5571
  %v5604 = vcvt.s32.f32 %v5572
  %v5605 = vcvt.s32.f32 %v5573
  %v5606 = vcvt.s32.f32 %v5574
  %v5607 = vcvt.s32.f32 %v5575
  %v5608 = vcvt.s32.f32 %v5576
  %v5609 = vcvt.s32.f32 %v5577
  %v5610 = vcvt.s32.f32 %v5578
  %v5611 = vcvt.s32.f32 %v5579
  %v5612 = vcvt.s32.f32 %v5580
  %v5613 = vadd.f32 %v5389, %v5581
  %v5614 = vadd.f32 %v5390, %v5582
  %v5615 = vadd.f32 %v5391, %v5583
  %v5616 = vadd.f32 %v5392, %v5584
  %v5617 = vadd.f32 %v5393, %v5585
  %v5618 = vadd.f32 %v5394, %v5586
  %v5619 = vadd.f32 %v5395, %v5587
  %v5620 = vadd.f32 %v5396, %v5588
  %v5621 = vadd.f32 %v5397, %v5589
  %v5622 = vadd.f32 %v5398, %v5590
  %v5623 = vadd.f32 %v5399, %v5591
  %v5624 = vadd.f32 %v5400, %v5592
  %v5625 = vadd.f32 %v5401, %v5593
  %v5626 = vadd.f32 %v5402, %v5594
  %v5627 = vadd.f32 %v5403, %v5595
  %v5628 = vadd.f32 %v5404, %v5596
  %v5629 = vadd.f32 %v5405, %v5597
  %v5630 = vadd.f32 %v5406, %v5598
  %v5631 = vadd.f32 %v5407, %v5599
  %v5632 = vadd.f32 %v5408, %v5600
  %v5633 = vadd.f32 %v5409, %v5601
  %v5634 = vadd.f32 %v5410, %v5602
  %v5635 = vadd.f32 %v5411, %v5603
  %v5636 = vadd.f32 %v5412, %v5604
  %v5637 = vadd.f32 %v5413, %v5605
  %v5638 = vadd.f32 %v5414, %v5606
  %v5639 = vadd.f32 %v5415, %v5607
  %v5640 = vadd.f32 %v5416, %v5608
  %v5641 = vadd.f32 %v5417, %v5609
  %v5642 = vadd.f32 %v5418, %v5610
  %v5643 = vadd.f32 %v5419, %v5611
  %v5644 = vadd.f32 %v5420, %v5612
  %5645 = vset.pattern.permute.xlu0 25
  %5646 = vperm.xlu0 %5645, %v11
  %v5647 = vpop.permute.xlu0 %5646
  %5648 = vset.pattern.permute.xlu0 25
  %5649 = vperm.xlu0 %5648, %v12
  %v5650 = vpop.permute.xlu0 %5649
  %5651 = vset.pattern.permute.xlu0 25
  %5652 = vperm.xlu0 %5651, %v13
  %v5653 = vpop.permute.xlu0 %5652
  %5654 = vset.pattern.permute.xlu0 25
  %5655 = vperm.xlu0 %5654, %v14
  %v5656 = vpop.permute.xlu0 %5655
  %5657 = vset.pattern.permute.xlu0 25
  %5658 = vperm.xlu0 %5657, %v15
  %v5659 = vpop.permute.xlu0 %5658
  %5660 = vset.pattern.permute.xlu0 25
  %5661 = vperm.xlu0 %5660, %v16
  %v5662 = vpop.permute.xlu0 %5661
  %5663 = vset.pattern.permute.xlu0 25
  %5664 = vperm.xlu0 %5663, %v17
  %v5665 = vpop.permute.xlu0 %5664
  %5666 = vset.pattern.permute.xlu0 25
  %5667 = vperm.xlu0 %5666, %v18
  %v5668 = vpop.permute.xlu0 %5667
  %5669 = vset.pattern.permute.xlu0 25
  %5670 = vperm.xlu0 %5669, %v19
  %v5671 = vpop.permute.xlu0 %5670
  %5672 = vset.pattern.permute.xlu0 25
  %5673 = vperm.xlu0 %5672, %v20
  %v5674 = vpop.permute.xlu0 %5673
  %5675 = vset.pattern.permute.xlu0 25
  %5676 = vperm.xlu0 %5675, %v21
  %v5677 = vpop.permute.xlu0 %5676
  %5678 = vset.pattern.permute.xlu0 25
  %5679 = vperm.xlu0 %5678, %v22
  %v5680 = vpop.permute.xlu0 %5679
  %5681 = vset.pattern.permute.xlu0 25
  %5682 = vperm.xlu0 %5681, %v23
  %v5683 = vpop.permute.xlu0 %5682
  %5684 = vset.pattern.permute.xlu0 25
  %5685 = vperm.xlu0 %5684, %v24
  %v5686 = vpop.permute.xlu0 %5685
  %5687 = vset.pattern.permute.xlu0 25
  %5688 = vperm.xlu0 %5687, %v25
  %v5689 = vpop.permute.xlu0 %5688
  %5690 = vset.pattern.permute.xlu0 25
  %5691 = vperm.xlu0 %5690, %v26
  %v5692 = vpop.permute.xlu0 %5691
  %5693 = vset.pattern.permute.xlu0 25
  %5694 = vperm.xlu0 %5693, %v27
  %v5695 = vpop.permute.xlu0 %5694
  %5696 = vset.pattern.permute.xlu0 25
  %5697 = vperm.xlu0 %5696, %v28
  %v5698 = vpop.permute.xlu0 %5697
  %5699 = vset.pattern.permute.xlu0 25
  %5700 = vperm.xlu0 %5699, %v29
  %v5701 = vpop.permute.xlu0 %5700
  %5702 = vset.pattern.permute.xlu0 25
  %5703 = vperm.xlu0 %5702, %v30
  %v5704 = vpop.permute.xlu0 %5703
  %5705 = vset.pattern.permute.xlu0 25
  %5706 = vperm.xlu0 %5705, %v31
  %v5707 = vpop.permute.xlu0 %5706
  %5708 = vset.pattern.permute.xlu0 25
  %5709 = vperm.xlu0 %5708, %v32
  %v5710 = vpop.permute.xlu0 %5709
  %5711 = vset.pattern.permute.xlu0 25
  %5712 = vperm.xlu0 %5711, %v33
  %v5713 = vpop.permute.xlu0 %5712
  %5714 = vset.pattern.permute.xlu0 25
  %5715 = vperm.xlu0 %5714, %v34
  %v5716 = vpop.permute.xlu0 %5715
  %5717 = vset.pattern.permute.xlu0 25
  %5718 = vperm.xlu0 %5717, %v35
  %v5719 = vpop.permute.xlu0 %5718
  %5720 = vset.pattern.permute.xlu0 25
  %5721 = vperm.xlu0 %5720, %v36
  %v5722 = vpop.permute.xlu0 %5721
  %5723 = vset.pattern.permute.xlu0 25
  %5724 = vperm.xlu0 %5723, %v37
  %v5725 = vpop.permute.xlu0 %5724
  %5726 = vset.pattern.permute.xlu0 25
  %5727 = vperm.xlu0 %5726, %v38
  %v5728 = vpop.permute.xlu0 %5727
  %5729 = vset.pattern.permute.xlu0 25
  %5730 = vperm.xlu0 %5729, %v39
  %v5731 = vpop.permute.xlu0 %5730
  %5732 = vset.pattern.permute.xlu0 25
  %5733 = vperm.xlu0 %5732, %v40
  %v5734 = vpop.permute.xlu0 %5733
  %5735 = vset.pattern.permute.xlu0 25
  %5736 = vperm.xlu0 %5735, %v41
  %v5737 = vpop.permute.xlu0 %5736
  %5738 = vset.pattern.permute.xlu0 25
  %5739 = vperm.xlu0 %5738, %v42
  %v5740 = vpop.permute.xlu0 %5739
  %vm5741 = vcmp.eq.s32.totalorder %v5647, %v44
  %vm5742 = vcmp.eq.s32.totalorder %v5650, %v44
  %vm5743 = vcmp.eq.s32.totalorder %v5653, %v44
  %vm5744 = vcmp.eq.s32.totalorder %v5656, %v44
  %vm5745 = vcmp.eq.s32.totalorder %v5659, %v44
  %vm5746 = vcmp.eq.s32.totalorder %v5662, %v44
  %vm5747 = vcmp.eq.s32.totalorder %v5665, %v44
  %vm5748 = vcmp.eq.s32.totalorder %v5668, %v44
  %vm5749 = vcmp.eq.s32.totalorder %v5671, %v44
  %vm5750 = vcmp.eq.s32.totalorder %v5674, %v44
  %vm5751 = vcmp.eq.s32.totalorder %v5677, %v44
  %vm5752 = vcmp.eq.s32.totalorder %v5680, %v44
  %vm5753 = vcmp.eq.s32.totalorder %v5683, %v44
  %vm5754 = vcmp.eq.s32.totalorder %v5686, %v44
  %vm5755 = vcmp.eq.s32.totalorder %v5689, %v44
  %vm5756 = vcmp.eq.s32.totalorder %v5692, %v44
  %vm5757 = vcmp.eq.s32.totalorder %v5695, %v44
  %vm5758 = vcmp.eq.s32.totalorder %v5698, %v44
  %vm5759 = vcmp.eq.s32.totalorder %v5701, %v44
  %vm5760 = vcmp.eq.s32.totalorder %v5704, %v44
  %vm5761 = vcmp.eq.s32.totalorder %v5707, %v44
  %vm5762 = vcmp.eq.s32.totalorder %v5710, %v44
  %vm5763 = vcmp.eq.s32.totalorder %v5713, %v44
  %vm5764 = vcmp.eq.s32.totalorder %v5716, %v44
  %vm5765 = vcmp.eq.s32.totalorder %v5719, %v44
  %vm5766 = vcmp.eq.s32.totalorder %v5722, %v44
  %vm5767 = vcmp.eq.s32.totalorder %v5725, %v44
  %vm5768 = vcmp.eq.s32.totalorder %v5728, %v44
  %vm5769 = vcmp.eq.s32.totalorder %v5731, %v44
  %vm5770 = vcmp.eq.s32.totalorder %v5734, %v44
  %vm5771 = vcmp.eq.s32.totalorder %v5737, %v44
  %vm5772 = vcmp.eq.s32.totalorder %v5740, %v44
  %v5773 = vsel %vm5741, 1, 0
  %v5774 = vsel %vm5742, 1, 0
  %v5775 = vsel %vm5743, 1, 0
  %v5776 = vsel %vm5744, 1, 0
  %v5777 = vsel %vm5745, 1, 0
  %v5778 = vsel %vm5746, 1, 0
  %v5779 = vsel %vm5747, 1, 0
  %v5780 = vsel %vm5748, 1, 0
  %v5781 = vsel %vm5749, 1, 0
  %v5782 = vsel %vm5750, 1, 0
  %v5783 = vsel %vm5751, 1, 0
  %v5784 = vsel %vm5752, 1, 0
  %v5785 = vsel %vm5753, 1, 0
  %v5786 = vsel %vm5754, 1, 0
  %v5787 = vsel %vm5755, 1, 0
  %v5788 = vsel %vm5756, 1, 0
  %v5789 = vsel %vm5757, 1, 0
  %v5790 = vsel %vm5758, 1, 0
  %v5791 = vsel %vm5759, 1, 0
  %v5792 = vsel %vm5760, 1, 0
  %v5793 = vsel %vm5761, 1, 0
  %v5794 = vsel %vm5762, 1, 0
  %v5795 = vsel %vm5763, 1, 0
  %v5796 = vsel %vm5764, 1, 0
  %v5797 = vsel %vm5765, 1, 0
  %v5798 = vsel %vm5766, 1, 0
  %v5799 = vsel %vm5767, 1, 0
  %v5800 = vsel %vm5768, 1, 0
  %v5801 = vsel %vm5769, 1, 0
  %v5802 = vsel %vm5770, 1, 0
  %v5803 = vsel %vm5771, 1, 0
  %v5804 = vsel %vm5772, 1, 0
  %v5805 = vcvt.s32.f32 %v5773
  %v5806 = vcvt.s32.f32 %v5774
  %v5807 = vcvt.s32.f32 %v5775
  %v5808 = vcvt.s32.f32 %v5776
  %v5809 = vcvt.s32.f32 %v5777
  %v5810 = vcvt.s32.f32 %v5778
  %v5811 = vcvt.s32.f32 %v5779
  %v5812 = vcvt.s32.f32 %v5780
  %v5813 = vcvt.s32.f32 %v5781
  %v5814 = vcvt.s32.f32 %v5782
  %v5815 = vcvt.s32.f32 %v5783
  %v5816 = vcvt.s32.f32 %v5784
  %v5817 = vcvt.s32.f32 %v5785
  %v5818 = vcvt.s32.f32 %v5786
  %v5819 = vcvt.s32.f32 %v5787
  %v5820 = vcvt.s32.f32 %v5788
  %v5821 = vcvt.s32.f32 %v5789
  %v5822 = vcvt.s32.f32 %v5790
  %v5823 = vcvt.s32.f32 %v5791
  %v5824 = vcvt.s32.f32 %v5792
  %v5825 = vcvt.s32.f32 %v5793
  %v5826 = vcvt.s32.f32 %v5794
  %v5827 = vcvt.s32.f32 %v5795
  %v5828 = vcvt.s32.f32 %v5796
  %v5829 = vcvt.s32.f32 %v5797
  %v5830 = vcvt.s32.f32 %v5798
  %v5831 = vcvt.s32.f32 %v5799
  %v5832 = vcvt.s32.f32 %v5800
  %v5833 = vcvt.s32.f32 %v5801
  %v5834 = vcvt.s32.f32 %v5802
  %v5835 = vcvt.s32.f32 %v5803
  %v5836 = vcvt.s32.f32 %v5804
  %v5837 = vadd.f32 %v5613, %v5805
  %v5838 = vadd.f32 %v5614, %v5806
  %v5839 = vadd.f32 %v5615, %v5807
  %v5840 = vadd.f32 %v5616, %v5808
  %v5841 = vadd.f32 %v5617, %v5809
  %v5842 = vadd.f32 %v5618, %v5810
  %v5843 = vadd.f32 %v5619, %v5811
  %v5844 = vadd.f32 %v5620, %v5812
  %v5845 = vadd.f32 %v5621, %v5813
  %v5846 = vadd.f32 %v5622, %v5814
  %v5847 = vadd.f32 %v5623, %v5815
  %v5848 = vadd.f32 %v5624, %v5816
  %v5849 = vadd.f32 %v5625, %v5817
  %v5850 = vadd.f32 %v5626, %v5818
  %v5851 = vadd.f32 %v5627, %v5819
  %v5852 = vadd.f32 %v5628, %v5820
  %v5853 = vadd.f32 %v5629, %v5821
  %v5854 = vadd.f32 %v5630, %v5822
  %v5855 = vadd.f32 %v5631, %v5823
  %v5856 = vadd.f32 %v5632, %v5824
  %v5857 = vadd.f32 %v5633, %v5825
  %v5858 = vadd.f32 %v5634, %v5826
  %v5859 = vadd.f32 %v5635, %v5827
  %v5860 = vadd.f32 %v5636, %v5828
  %v5861 = vadd.f32 %v5637, %v5829
  %v5862 = vadd.f32 %v5638, %v5830
  %v5863 = vadd.f32 %v5639, %v5831
  %v5864 = vadd.f32 %v5640, %v5832
  %v5865 = vadd.f32 %v5641, %v5833
  %v5866 = vadd.f32 %v5642, %v5834
  %v5867 = vadd.f32 %v5643, %v5835
  %v5868 = vadd.f32 %v5644, %v5836
  %5869 = vset.pattern.permute.xlu0 26
  %5870 = vperm.xlu0 %5869, %v11
  %v5871 = vpop.permute.xlu0 %5870
  %5872 = vset.pattern.permute.xlu0 26
  %5873 = vperm.xlu0 %5872, %v12
  %v5874 = vpop.permute.xlu0 %5873
  %5875 = vset.pattern.permute.xlu0 26
  %5876 = vperm.xlu0 %5875, %v13
  %v5877 = vpop.permute.xlu0 %5876
  %5878 = vset.pattern.permute.xlu0 26
  %5879 = vperm.xlu0 %5878, %v14
  %v5880 = vpop.permute.xlu0 %5879
  %5881 = vset.pattern.permute.xlu0 26
  %5882 = vperm.xlu0 %5881, %v15
  %v5883 = vpop.permute.xlu0 %5882
  %5884 = vset.pattern.permute.xlu0 26
  %5885 = vperm.xlu0 %5884, %v16
  %v5886 = vpop.permute.xlu0 %5885
  %5887 = vset.pattern.permute.xlu0 26
  %5888 = vperm.xlu0 %5887, %v17
  %v5889 = vpop.permute.xlu0 %5888
  %5890 = vset.pattern.permute.xlu0 26
  %5891 = vperm.xlu0 %5890, %v18
  %v5892 = vpop.permute.xlu0 %5891
  %5893 = vset.pattern.permute.xlu0 26
  %5894 = vperm.xlu0 %5893, %v19
  %v5895 = vpop.permute.xlu0 %5894
  %5896 = vset.pattern.permute.xlu0 26
  %5897 = vperm.xlu0 %5896, %v20
  %v5898 = vpop.permute.xlu0 %5897
  %5899 = vset.pattern.permute.xlu0 26
  %5900 = vperm.xlu0 %5899, %v21
  %v5901 = vpop.permute.xlu0 %5900
  %5902 = vset.pattern.permute.xlu0 26
  %5903 = vperm.xlu0 %5902, %v22
  %v5904 = vpop.permute.xlu0 %5903
  %5905 = vset.pattern.permute.xlu0 26
  %5906 = vperm.xlu0 %5905, %v23
  %v5907 = vpop.permute.xlu0 %5906
  %5908 = vset.pattern.permute.xlu0 26
  %5909 = vperm.xlu0 %5908, %v24
  %v5910 = vpop.permute.xlu0 %5909
  %5911 = vset.pattern.permute.xlu0 26
  %5912 = vperm.xlu0 %5911, %v25
  %v5913 = vpop.permute.xlu0 %5912
  %5914 = vset.pattern.permute.xlu0 26
  %5915 = vperm.xlu0 %5914, %v26
  %v5916 = vpop.permute.xlu0 %5915
  %5917 = vset.pattern.permute.xlu0 26
  %5918 = vperm.xlu0 %5917, %v27
  %v5919 = vpop.permute.xlu0 %5918
  %5920 = vset.pattern.permute.xlu0 26
  %5921 = vperm.xlu0 %5920, %v28
  %v5922 = vpop.permute.xlu0 %5921
  %5923 = vset.pattern.permute.xlu0 26
  %5924 = vperm.xlu0 %5923, %v29
  %v5925 = vpop.permute.xlu0 %5924
  %5926 = vset.pattern.permute.xlu0 26
  %5927 = vperm.xlu0 %5926, %v30
  %v5928 = vpop.permute.xlu0 %5927
  %5929 = vset.pattern.permute.xlu0 26
  %5930 = vperm.xlu0 %5929, %v31
  %v5931 = vpop.permute.xlu0 %5930
  %5932 = vset.pattern.permute.xlu0 26
  %5933 = vperm.xlu0 %5932, %v32
  %v5934 = vpop.permute.xlu0 %5933
  %5935 = vset.pattern.permute.xlu0 26
  %5936 = vperm.xlu0 %5935, %v33
  %v5937 = vpop.permute.xlu0 %5936
  %5938 = vset.pattern.permute.xlu0 26
  %5939 = vperm.xlu0 %5938, %v34
  %v5940 = vpop.permute.xlu0 %5939
  %5941 = vset.pattern.permute.xlu0 26
  %5942 = vperm.xlu0 %5941, %v35
  %v5943 = vpop.permute.xlu0 %5942
  %5944 = vset.pattern.permute.xlu0 26
  %5945 = vperm.xlu0 %5944, %v36
  %v5946 = vpop.permute.xlu0 %5945
  %5947 = vset.pattern.permute.xlu0 26
  %5948 = vperm.xlu0 %5947, %v37
  %v5949 = vpop.permute.xlu0 %5948
  %5950 = vset.pattern.permute.xlu0 26
  %5951 = vperm.xlu0 %5950, %v38
  %v5952 = vpop.permute.xlu0 %5951
  %5953 = vset.pattern.permute.xlu0 26
  %5954 = vperm.xlu0 %5953, %v39
  %v5955 = vpop.permute.xlu0 %5954
  %5956 = vset.pattern.permute.xlu0 26
  %5957 = vperm.xlu0 %5956, %v40
  %v5958 = vpop.permute.xlu0 %5957
  %5959 = vset.pattern.permute.xlu0 26
  %5960 = vperm.xlu0 %5959, %v41
  %v5961 = vpop.permute.xlu0 %5960
  %5962 = vset.pattern.permute.xlu0 26
  %5963 = vperm.xlu0 %5962, %v42
  %v5964 = vpop.permute.xlu0 %5963
  %vm5965 = vcmp.eq.s32.totalorder %v5871, %v44
  %vm5966 = vcmp.eq.s32.totalorder %v5874, %v44
  %vm5967 = vcmp.eq.s32.totalorder %v5877, %v44
  %vm5968 = vcmp.eq.s32.totalorder %v5880, %v44
  %vm5969 = vcmp.eq.s32.totalorder %v5883, %v44
  %vm5970 = vcmp.eq.s32.totalorder %v5886, %v44
  %vm5971 = vcmp.eq.s32.totalorder %v5889, %v44
  %vm5972 = vcmp.eq.s32.totalorder %v5892, %v44
  %vm5973 = vcmp.eq.s32.totalorder %v5895, %v44
  %vm5974 = vcmp.eq.s32.totalorder %v5898, %v44
  %vm5975 = vcmp.eq.s32.totalorder %v5901, %v44
  %vm5976 = vcmp.eq.s32.totalorder %v5904, %v44
  %vm5977 = vcmp.eq.s32.totalorder %v5907, %v44
  %vm5978 = vcmp.eq.s32.totalorder %v5910, %v44
  %vm5979 = vcmp.eq.s32.totalorder %v5913, %v44
  %vm5980 = vcmp.eq.s32.totalorder %v5916, %v44
  %vm5981 = vcmp.eq.s32.totalorder %v5919, %v44
  %vm5982 = vcmp.eq.s32.totalorder %v5922, %v44
  %vm5983 = vcmp.eq.s32.totalorder %v5925, %v44
  %vm5984 = vcmp.eq.s32.totalorder %v5928, %v44
  %vm5985 = vcmp.eq.s32.totalorder %v5931, %v44
  %vm5986 = vcmp.eq.s32.totalorder %v5934, %v44
  %vm5987 = vcmp.eq.s32.totalorder %v5937, %v44
  %vm5988 = vcmp.eq.s32.totalorder %v5940, %v44
  %vm5989 = vcmp.eq.s32.totalorder %v5943, %v44
  %vm5990 = vcmp.eq.s32.totalorder %v5946, %v44
  %vm5991 = vcmp.eq.s32.totalorder %v5949, %v44
  %vm5992 = vcmp.eq.s32.totalorder %v5952, %v44
  %vm5993 = vcmp.eq.s32.totalorder %v5955, %v44
  %vm5994 = vcmp.eq.s32.totalorder %v5958, %v44
  %vm5995 = vcmp.eq.s32.totalorder %v5961, %v44
  %vm5996 = vcmp.eq.s32.totalorder %v5964, %v44
  %v5997 = vsel %vm5965, 1, 0
  %v5998 = vsel %vm5966, 1, 0
  %v5999 = vsel %vm5967, 1, 0
  %v6000 = vsel %vm5968, 1, 0
  %v6001 = vsel %vm5969, 1, 0
  %v6002 = vsel %vm5970, 1, 0
  %v6003 = vsel %vm5971, 1, 0
  %v6004 = vsel %vm5972, 1, 0
  %v6005 = vsel %vm5973, 1, 0
  %v6006 = vsel %vm5974, 1, 0
  %v6007 = vsel %vm5975, 1, 0
  %v6008 = vsel %vm5976, 1, 0
  %v6009 = vsel %vm5977, 1, 0
  %v6010 = vsel %vm5978, 1, 0
  %v6011 = vsel %vm5979, 1, 0
  %v6012 = vsel %vm5980, 1, 0
  %v6013 = vsel %vm5981, 1, 0
  %v6014 = vsel %vm5982, 1, 0
  %v6015 = vsel %vm5983, 1, 0
  %v6016 = vsel %vm5984, 1, 0
  %v6017 = vsel %vm5985, 1, 0
  %v6018 = vsel %vm5986, 1, 0
  %v6019 = vsel %vm5987, 1, 0
  %v6020 = vsel %vm5988, 1, 0
  %v6021 = vsel %vm5989, 1, 0
  %v6022 = vsel %vm5990, 1, 0
  %v6023 = vsel %vm5991, 1, 0
  %v6024 = vsel %vm5992, 1, 0
  %v6025 = vsel %vm5993, 1, 0
  %v6026 = vsel %vm5994, 1, 0
  %v6027 = vsel %vm5995, 1, 0
  %v6028 = vsel %vm5996, 1, 0
  %v6029 = vcvt.s32.f32 %v5997
  %v6030 = vcvt.s32.f32 %v5998
  %v6031 = vcvt.s32.f32 %v5999
  %v6032 = vcvt.s32.f32 %v6000
  %v6033 = vcvt.s32.f32 %v6001
  %v6034 = vcvt.s32.f32 %v6002
  %v6035 = vcvt.s32.f32 %v6003
  %v6036 = vcvt.s32.f32 %v6004
  %v6037 = vcvt.s32.f32 %v6005
  %v6038 = vcvt.s32.f32 %v6006
  %v6039 = vcvt.s32.f32 %v6007
  %v6040 = vcvt.s32.f32 %v6008
  %v6041 = vcvt.s32.f32 %v6009
  %v6042 = vcvt.s32.f32 %v6010
  %v6043 = vcvt.s32.f32 %v6011
  %v6044 = vcvt.s32.f32 %v6012
  %v6045 = vcvt.s32.f32 %v6013
  %v6046 = vcvt.s32.f32 %v6014
  %v6047 = vcvt.s32.f32 %v6015
  %v6048 = vcvt.s32.f32 %v6016
  %v6049 = vcvt.s32.f32 %v6017
  %v6050 = vcvt.s32.f32 %v6018
  %v6051 = vcvt.s32.f32 %v6019
  %v6052 = vcvt.s32.f32 %v6020
  %v6053 = vcvt.s32.f32 %v6021
  %v6054 = vcvt.s32.f32 %v6022
  %v6055 = vcvt.s32.f32 %v6023
  %v6056 = vcvt.s32.f32 %v6024
  %v6057 = vcvt.s32.f32 %v6025
  %v6058 = vcvt.s32.f32 %v6026
  %v6059 = vcvt.s32.f32 %v6027
  %v6060 = vcvt.s32.f32 %v6028
  %v6061 = vadd.f32 %v5837, %v6029
  %v6062 = vadd.f32 %v5838, %v6030
  %v6063 = vadd.f32 %v5839, %v6031
  %v6064 = vadd.f32 %v5840, %v6032
  %v6065 = vadd.f32 %v5841, %v6033
  %v6066 = vadd.f32 %v5842, %v6034
  %v6067 = vadd.f32 %v5843, %v6035
  %v6068 = vadd.f32 %v5844, %v6036
  %v6069 = vadd.f32 %v5845, %v6037
  %v6070 = vadd.f32 %v5846, %v6038
  %v6071 = vadd.f32 %v5847, %v6039
  %v6072 = vadd.f32 %v5848, %v6040
  %v6073 = vadd.f32 %v5849, %v6041
  %v6074 = vadd.f32 %v5850, %v6042
  %v6075 = vadd.f32 %v5851, %v6043
  %v6076 = vadd.f32 %v5852, %v6044
  %v6077 = vadd.f32 %v5853, %v6045
  %v6078 = vadd.f32 %v5854, %v6046
  %v6079 = vadd.f32 %v5855, %v6047
  %v6080 = vadd.f32 %v5856, %v6048
  %v6081 = vadd.f32 %v5857, %v6049
  %v6082 = vadd.f32 %v5858, %v6050
  %v6083 = vadd.f32 %v5859, %v6051
  %v6084 = vadd.f32 %v5860, %v6052
  %v6085 = vadd.f32 %v5861, %v6053
  %v6086 = vadd.f32 %v5862, %v6054
  %v6087 = vadd.f32 %v5863, %v6055
  %v6088 = vadd.f32 %v5864, %v6056
  %v6089 = vadd.f32 %v5865, %v6057
  %v6090 = vadd.f32 %v5866, %v6058
  %v6091 = vadd.f32 %v5867, %v6059
  %v6092 = vadd.f32 %v5868, %v6060
  %6093 = vset.pattern.permute.xlu0 27
  %6094 = vperm.xlu0 %6093, %v11
  %v6095 = vpop.permute.xlu0 %6094
  %6096 = vset.pattern.permute.xlu0 27
  %6097 = vperm.xlu0 %6096, %v12
  %v6098 = vpop.permute.xlu0 %6097
  %6099 = vset.pattern.permute.xlu0 27
  %6100 = vperm.xlu0 %6099, %v13
  %v6101 = vpop.permute.xlu0 %6100
  %6102 = vset.pattern.permute.xlu0 27
  %6103 = vperm.xlu0 %6102, %v14
  %v6104 = vpop.permute.xlu0 %6103
  %6105 = vset.pattern.permute.xlu0 27
  %6106 = vperm.xlu0 %6105, %v15
  %v6107 = vpop.permute.xlu0 %6106
  %6108 = vset.pattern.permute.xlu0 27
  %6109 = vperm.xlu0 %6108, %v16
  %v6110 = vpop.permute.xlu0 %6109
  %6111 = vset.pattern.permute.xlu0 27
  %6112 = vperm.xlu0 %6111, %v17
  %v6113 = vpop.permute.xlu0 %6112
  %6114 = vset.pattern.permute.xlu0 27
  %6115 = vperm.xlu0 %6114, %v18
  %v6116 = vpop.permute.xlu0 %6115
  %6117 = vset.pattern.permute.xlu0 27
  %6118 = vperm.xlu0 %6117, %v19
  %v6119 = vpop.permute.xlu0 %6118
  %6120 = vset.pattern.permute.xlu0 27
  %6121 = vperm.xlu0 %6120, %v20
  %v6122 = vpop.permute.xlu0 %6121
  %6123 = vset.pattern.permute.xlu0 27
  %6124 = vperm.xlu0 %6123, %v21
  %v6125 = vpop.permute.xlu0 %6124
  %6126 = vset.pattern.permute.xlu0 27
  %6127 = vperm.xlu0 %6126, %v22
  %v6128 = vpop.permute.xlu0 %6127
  %6129 = vset.pattern.permute.xlu0 27
  %6130 = vperm.xlu0 %6129, %v23
  %v6131 = vpop.permute.xlu0 %6130
  %6132 = vset.pattern.permute.xlu0 27
  %6133 = vperm.xlu0 %6132, %v24
  %v6134 = vpop.permute.xlu0 %6133
  %6135 = vset.pattern.permute.xlu0 27
  %6136 = vperm.xlu0 %6135, %v25
  %v6137 = vpop.permute.xlu0 %6136
  %6138 = vset.pattern.permute.xlu0 27
  %6139 = vperm.xlu0 %6138, %v26
  %v6140 = vpop.permute.xlu0 %6139
  %6141 = vset.pattern.permute.xlu0 27
  %6142 = vperm.xlu0 %6141, %v27
  %v6143 = vpop.permute.xlu0 %6142
  %6144 = vset.pattern.permute.xlu0 27
  %6145 = vperm.xlu0 %6144, %v28
  %v6146 = vpop.permute.xlu0 %6145
  %6147 = vset.pattern.permute.xlu0 27
  %6148 = vperm.xlu0 %6147, %v29
  %v6149 = vpop.permute.xlu0 %6148
  %6150 = vset.pattern.permute.xlu0 27
  %6151 = vperm.xlu0 %6150, %v30
  %v6152 = vpop.permute.xlu0 %6151
  %6153 = vset.pattern.permute.xlu0 27
  %6154 = vperm.xlu0 %6153, %v31
  %v6155 = vpop.permute.xlu0 %6154
  %6156 = vset.pattern.permute.xlu0 27
  %6157 = vperm.xlu0 %6156, %v32
  %v6158 = vpop.permute.xlu0 %6157
  %6159 = vset.pattern.permute.xlu0 27
  %6160 = vperm.xlu0 %6159, %v33
  %v6161 = vpop.permute.xlu0 %6160
  %6162 = vset.pattern.permute.xlu0 27
  %6163 = vperm.xlu0 %6162, %v34
  %v6164 = vpop.permute.xlu0 %6163
  %6165 = vset.pattern.permute.xlu0 27
  %6166 = vperm.xlu0 %6165, %v35
  %v6167 = vpop.permute.xlu0 %6166
  %6168 = vset.pattern.permute.xlu0 27
  %6169 = vperm.xlu0 %6168, %v36
  %v6170 = vpop.permute.xlu0 %6169
  %6171 = vset.pattern.permute.xlu0 27
  %6172 = vperm.xlu0 %6171, %v37
  %v6173 = vpop.permute.xlu0 %6172
  %6174 = vset.pattern.permute.xlu0 27
  %6175 = vperm.xlu0 %6174, %v38
  %v6176 = vpop.permute.xlu0 %6175
  %6177 = vset.pattern.permute.xlu0 27
  %6178 = vperm.xlu0 %6177, %v39
  %v6179 = vpop.permute.xlu0 %6178
  %6180 = vset.pattern.permute.xlu0 27
  %6181 = vperm.xlu0 %6180, %v40
  %v6182 = vpop.permute.xlu0 %6181
  %6183 = vset.pattern.permute.xlu0 27
  %6184 = vperm.xlu0 %6183, %v41
  %v6185 = vpop.permute.xlu0 %6184
  %6186 = vset.pattern.permute.xlu0 27
  %6187 = vperm.xlu0 %6186, %v42
  %v6188 = vpop.permute.xlu0 %6187
  %vm6189 = vcmp.eq.s32.totalorder %v6095, %v44
  %vm6190 = vcmp.eq.s32.totalorder %v6098, %v44
  %vm6191 = vcmp.eq.s32.totalorder %v6101, %v44
  %vm6192 = vcmp.eq.s32.totalorder %v6104, %v44
  %vm6193 = vcmp.eq.s32.totalorder %v6107, %v44
  %vm6194 = vcmp.eq.s32.totalorder %v6110, %v44
  %vm6195 = vcmp.eq.s32.totalorder %v6113, %v44
  %vm6196 = vcmp.eq.s32.totalorder %v6116, %v44
  %vm6197 = vcmp.eq.s32.totalorder %v6119, %v44
  %vm6198 = vcmp.eq.s32.totalorder %v6122, %v44
  %vm6199 = vcmp.eq.s32.totalorder %v6125, %v44
  %vm6200 = vcmp.eq.s32.totalorder %v6128, %v44
  %vm6201 = vcmp.eq.s32.totalorder %v6131, %v44
  %vm6202 = vcmp.eq.s32.totalorder %v6134, %v44
  %vm6203 = vcmp.eq.s32.totalorder %v6137, %v44
  %vm6204 = vcmp.eq.s32.totalorder %v6140, %v44
  %vm6205 = vcmp.eq.s32.totalorder %v6143, %v44
  %vm6206 = vcmp.eq.s32.totalorder %v6146, %v44
  %vm6207 = vcmp.eq.s32.totalorder %v6149, %v44
  %vm6208 = vcmp.eq.s32.totalorder %v6152, %v44
  %vm6209 = vcmp.eq.s32.totalorder %v6155, %v44
  %vm6210 = vcmp.eq.s32.totalorder %v6158, %v44
  %vm6211 = vcmp.eq.s32.totalorder %v6161, %v44
  %vm6212 = vcmp.eq.s32.totalorder %v6164, %v44
  %vm6213 = vcmp.eq.s32.totalorder %v6167, %v44
  %vm6214 = vcmp.eq.s32.totalorder %v6170, %v44
  %vm6215 = vcmp.eq.s32.totalorder %v6173, %v44
  %vm6216 = vcmp.eq.s32.totalorder %v6176, %v44
  %vm6217 = vcmp.eq.s32.totalorder %v6179, %v44
  %vm6218 = vcmp.eq.s32.totalorder %v6182, %v44
  %vm6219 = vcmp.eq.s32.totalorder %v6185, %v44
  %vm6220 = vcmp.eq.s32.totalorder %v6188, %v44
  %v6221 = vsel %vm6189, 1, 0
  %v6222 = vsel %vm6190, 1, 0
  %v6223 = vsel %vm6191, 1, 0
  %v6224 = vsel %vm6192, 1, 0
  %v6225 = vsel %vm6193, 1, 0
  %v6226 = vsel %vm6194, 1, 0
  %v6227 = vsel %vm6195, 1, 0
  %v6228 = vsel %vm6196, 1, 0
  %v6229 = vsel %vm6197, 1, 0
  %v6230 = vsel %vm6198, 1, 0
  %v6231 = vsel %vm6199, 1, 0
  %v6232 = vsel %vm6200, 1, 0
  %v6233 = vsel %vm6201, 1, 0
  %v6234 = vsel %vm6202, 1, 0
  %v6235 = vsel %vm6203, 1, 0
  %v6236 = vsel %vm6204, 1, 0
  %v6237 = vsel %vm6205, 1, 0
  %v6238 = vsel %vm6206, 1, 0
  %v6239 = vsel %vm6207, 1, 0
  %v6240 = vsel %vm6208, 1, 0
  %v6241 = vsel %vm6209, 1, 0
  %v6242 = vsel %vm6210, 1, 0
  %v6243 = vsel %vm6211, 1, 0
  %v6244 = vsel %vm6212, 1, 0
  %v6245 = vsel %vm6213, 1, 0
  %v6246 = vsel %vm6214, 1, 0
  %v6247 = vsel %vm6215, 1, 0
  %v6248 = vsel %vm6216, 1, 0
  %v6249 = vsel %vm6217, 1, 0
  %v6250 = vsel %vm6218, 1, 0
  %v6251 = vsel %vm6219, 1, 0
  %v6252 = vsel %vm6220, 1, 0
  %v6253 = vcvt.s32.f32 %v6221
  %v6254 = vcvt.s32.f32 %v6222
  %v6255 = vcvt.s32.f32 %v6223
  %v6256 = vcvt.s32.f32 %v6224
  %v6257 = vcvt.s32.f32 %v6225
  %v6258 = vcvt.s32.f32 %v6226
  %v6259 = vcvt.s32.f32 %v6227
  %v6260 = vcvt.s32.f32 %v6228
  %v6261 = vcvt.s32.f32 %v6229
  %v6262 = vcvt.s32.f32 %v6230
  %v6263 = vcvt.s32.f32 %v6231
  %v6264 = vcvt.s32.f32 %v6232
  %v6265 = vcvt.s32.f32 %v6233
  %v6266 = vcvt.s32.f32 %v6234
  %v6267 = vcvt.s32.f32 %v6235
  %v6268 = vcvt.s32.f32 %v6236
  %v6269 = vcvt.s32.f32 %v6237
  %v6270 = vcvt.s32.f32 %v6238
  %v6271 = vcvt.s32.f32 %v6239
  %v6272 = vcvt.s32.f32 %v6240
  %v6273 = vcvt.s32.f32 %v6241
  %v6274 = vcvt.s32.f32 %v6242
  %v6275 = vcvt.s32.f32 %v6243
  %v6276 = vcvt.s32.f32 %v6244
  %v6277 = vcvt.s32.f32 %v6245
  %v6278 = vcvt.s32.f32 %v6246
  %v6279 = vcvt.s32.f32 %v6247
  %v6280 = vcvt.s32.f32 %v6248
  %v6281 = vcvt.s32.f32 %v6249
  %v6282 = vcvt.s32.f32 %v6250
  %v6283 = vcvt.s32.f32 %v6251
  %v6284 = vcvt.s32.f32 %v6252
  %v6285 = vadd.f32 %v6061, %v6253
  %v6286 = vadd.f32 %v6062, %v6254
  %v6287 = vadd.f32 %v6063, %v6255
  %v6288 = vadd.f32 %v6064, %v6256
  %v6289 = vadd.f32 %v6065, %v6257
  %v6290 = vadd.f32 %v6066, %v6258
  %v6291 = vadd.f32 %v6067, %v6259
  %v6292 = vadd.f32 %v6068, %v6260
  %v6293 = vadd.f32 %v6069, %v6261
  %v6294 = vadd.f32 %v6070, %v6262
  %v6295 = vadd.f32 %v6071, %v6263
  %v6296 = vadd.f32 %v6072, %v6264
  %v6297 = vadd.f32 %v6073, %v6265
  %v6298 = vadd.f32 %v6074, %v6266
  %v6299 = vadd.f32 %v6075, %v6267
  %v6300 = vadd.f32 %v6076, %v6268
  %v6301 = vadd.f32 %v6077, %v6269
  %v6302 = vadd.f32 %v6078, %v6270
  %v6303 = vadd.f32 %v6079, %v6271
  %v6304 = vadd.f32 %v6080, %v6272
  %v6305 = vadd.f32 %v6081, %v6273
  %v6306 = vadd.f32 %v6082, %v6274
  %v6307 = vadd.f32 %v6083, %v6275
  %v6308 = vadd.f32 %v6084, %v6276
  %v6309 = vadd.f32 %v6085, %v6277
  %v6310 = vadd.f32 %v6086, %v6278
  %v6311 = vadd.f32 %v6087, %v6279
  %v6312 = vadd.f32 %v6088, %v6280
  %v6313 = vadd.f32 %v6089, %v6281
  %v6314 = vadd.f32 %v6090, %v6282
  %v6315 = vadd.f32 %v6091, %v6283
  %v6316 = vadd.f32 %v6092, %v6284
  %6317 = vset.pattern.permute.xlu0 28
  %6318 = vperm.xlu0 %6317, %v11
  %v6319 = vpop.permute.xlu0 %6318
  %6320 = vset.pattern.permute.xlu0 28
  %6321 = vperm.xlu0 %6320, %v12
  %v6322 = vpop.permute.xlu0 %6321
  %6323 = vset.pattern.permute.xlu0 28
  %6324 = vperm.xlu0 %6323, %v13
  %v6325 = vpop.permute.xlu0 %6324
  %6326 = vset.pattern.permute.xlu0 28
  %6327 = vperm.xlu0 %6326, %v14
  %v6328 = vpop.permute.xlu0 %6327
  %6329 = vset.pattern.permute.xlu0 28
  %6330 = vperm.xlu0 %6329, %v15
  %v6331 = vpop.permute.xlu0 %6330
  %6332 = vset.pattern.permute.xlu0 28
  %6333 = vperm.xlu0 %6332, %v16
  %v6334 = vpop.permute.xlu0 %6333
  %6335 = vset.pattern.permute.xlu0 28
  %6336 = vperm.xlu0 %6335, %v17
  %v6337 = vpop.permute.xlu0 %6336
  %6338 = vset.pattern.permute.xlu0 28
  %6339 = vperm.xlu0 %6338, %v18
  %v6340 = vpop.permute.xlu0 %6339
  %6341 = vset.pattern.permute.xlu0 28
  %6342 = vperm.xlu0 %6341, %v19
  %v6343 = vpop.permute.xlu0 %6342
  %6344 = vset.pattern.permute.xlu0 28
  %6345 = vperm.xlu0 %6344, %v20
  %v6346 = vpop.permute.xlu0 %6345
  %6347 = vset.pattern.permute.xlu0 28
  %6348 = vperm.xlu0 %6347, %v21
  %v6349 = vpop.permute.xlu0 %6348
  %6350 = vset.pattern.permute.xlu0 28
  %6351 = vperm.xlu0 %6350, %v22
  %v6352 = vpop.permute.xlu0 %6351
  %6353 = vset.pattern.permute.xlu0 28
  %6354 = vperm.xlu0 %6353, %v23
  %v6355 = vpop.permute.xlu0 %6354
  %6356 = vset.pattern.permute.xlu0 28
  %6357 = vperm.xlu0 %6356, %v24
  %v6358 = vpop.permute.xlu0 %6357
  %6359 = vset.pattern.permute.xlu0 28
  %6360 = vperm.xlu0 %6359, %v25
  %v6361 = vpop.permute.xlu0 %6360
  %6362 = vset.pattern.permute.xlu0 28
  %6363 = vperm.xlu0 %6362, %v26
  %v6364 = vpop.permute.xlu0 %6363
  %6365 = vset.pattern.permute.xlu0 28
  %6366 = vperm.xlu0 %6365, %v27
  %v6367 = vpop.permute.xlu0 %6366
  %6368 = vset.pattern.permute.xlu0 28
  %6369 = vperm.xlu0 %6368, %v28
  %v6370 = vpop.permute.xlu0 %6369
  %6371 = vset.pattern.permute.xlu0 28
  %6372 = vperm.xlu0 %6371, %v29
  %v6373 = vpop.permute.xlu0 %6372
  %6374 = vset.pattern.permute.xlu0 28
  %6375 = vperm.xlu0 %6374, %v30
  %v6376 = vpop.permute.xlu0 %6375
  %6377 = vset.pattern.permute.xlu0 28
  %6378 = vperm.xlu0 %6377, %v31
  %v6379 = vpop.permute.xlu0 %6378
  %6380 = vset.pattern.permute.xlu0 28
  %6381 = vperm.xlu0 %6380, %v32
  %v6382 = vpop.permute.xlu0 %6381
  %6383 = vset.pattern.permute.xlu0 28
  %6384 = vperm.xlu0 %6383, %v33
  %v6385 = vpop.permute.xlu0 %6384
  %6386 = vset.pattern.permute.xlu0 28
  %6387 = vperm.xlu0 %6386, %v34
  %v6388 = vpop.permute.xlu0 %6387
  %6389 = vset.pattern.permute.xlu0 28
  %6390 = vperm.xlu0 %6389, %v35
  %v6391 = vpop.permute.xlu0 %6390
  %6392 = vset.pattern.permute.xlu0 28
  %6393 = vperm.xlu0 %6392, %v36
  %v6394 = vpop.permute.xlu0 %6393
  %6395 = vset.pattern.permute.xlu0 28
  %6396 = vperm.xlu0 %6395, %v37
  %v6397 = vpop.permute.xlu0 %6396
  %6398 = vset.pattern.permute.xlu0 28
  %6399 = vperm.xlu0 %6398, %v38
  %v6400 = vpop.permute.xlu0 %6399
  %6401 = vset.pattern.permute.xlu0 28
  %6402 = vperm.xlu0 %6401, %v39
  %v6403 = vpop.permute.xlu0 %6402
  %6404 = vset.pattern.permute.xlu0 28
  %6405 = vperm.xlu0 %6404, %v40
  %v6406 = vpop.permute.xlu0 %6405
  %6407 = vset.pattern.permute.xlu0 28
  %6408 = vperm.xlu0 %6407, %v41
  %v6409 = vpop.permute.xlu0 %6408
  %6410 = vset.pattern.permute.xlu0 28
  %6411 = vperm.xlu0 %6410, %v42
  %v6412 = vpop.permute.xlu0 %6411
  %vm6413 = vcmp.eq.s32.totalorder %v6319, %v44
  %vm6414 = vcmp.eq.s32.totalorder %v6322, %v44
  %vm6415 = vcmp.eq.s32.totalorder %v6325, %v44
  %vm6416 = vcmp.eq.s32.totalorder %v6328, %v44
  %vm6417 = vcmp.eq.s32.totalorder %v6331, %v44
  %vm6418 = vcmp.eq.s32.totalorder %v6334, %v44
  %vm6419 = vcmp.eq.s32.totalorder %v6337, %v44
  %vm6420 = vcmp.eq.s32.totalorder %v6340, %v44
  %vm6421 = vcmp.eq.s32.totalorder %v6343, %v44
  %vm6422 = vcmp.eq.s32.totalorder %v6346, %v44
  %vm6423 = vcmp.eq.s32.totalorder %v6349, %v44
  %vm6424 = vcmp.eq.s32.totalorder %v6352, %v44
  %vm6425 = vcmp.eq.s32.totalorder %v6355, %v44
  %vm6426 = vcmp.eq.s32.totalorder %v6358, %v44
  %vm6427 = vcmp.eq.s32.totalorder %v6361, %v44
  %vm6428 = vcmp.eq.s32.totalorder %v6364, %v44
  %vm6429 = vcmp.eq.s32.totalorder %v6367, %v44
  %vm6430 = vcmp.eq.s32.totalorder %v6370, %v44
  %vm6431 = vcmp.eq.s32.totalorder %v6373, %v44
  %vm6432 = vcmp.eq.s32.totalorder %v6376, %v44
  %vm6433 = vcmp.eq.s32.totalorder %v6379, %v44
  %vm6434 = vcmp.eq.s32.totalorder %v6382, %v44
  %vm6435 = vcmp.eq.s32.totalorder %v6385, %v44
  %vm6436 = vcmp.eq.s32.totalorder %v6388, %v44
  %vm6437 = vcmp.eq.s32.totalorder %v6391, %v44
  %vm6438 = vcmp.eq.s32.totalorder %v6394, %v44
  %vm6439 = vcmp.eq.s32.totalorder %v6397, %v44
  %vm6440 = vcmp.eq.s32.totalorder %v6400, %v44
  %vm6441 = vcmp.eq.s32.totalorder %v6403, %v44
  %vm6442 = vcmp.eq.s32.totalorder %v6406, %v44
  %vm6443 = vcmp.eq.s32.totalorder %v6409, %v44
  %vm6444 = vcmp.eq.s32.totalorder %v6412, %v44
  %v6445 = vsel %vm6413, 1, 0
  %v6446 = vsel %vm6414, 1, 0
  %v6447 = vsel %vm6415, 1, 0
  %v6448 = vsel %vm6416, 1, 0
  %v6449 = vsel %vm6417, 1, 0
  %v6450 = vsel %vm6418, 1, 0
  %v6451 = vsel %vm6419, 1, 0
  %v6452 = vsel %vm6420, 1, 0
  %v6453 = vsel %vm6421, 1, 0
  %v6454 = vsel %vm6422, 1, 0
  %v6455 = vsel %vm6423, 1, 0
  %v6456 = vsel %vm6424, 1, 0
  %v6457 = vsel %vm6425, 1, 0
  %v6458 = vsel %vm6426, 1, 0
  %v6459 = vsel %vm6427, 1, 0
  %v6460 = vsel %vm6428, 1, 0
  %v6461 = vsel %vm6429, 1, 0
  %v6462 = vsel %vm6430, 1, 0
  %v6463 = vsel %vm6431, 1, 0
  %v6464 = vsel %vm6432, 1, 0
  %v6465 = vsel %vm6433, 1, 0
  %v6466 = vsel %vm6434, 1, 0
  %v6467 = vsel %vm6435, 1, 0
  %v6468 = vsel %vm6436, 1, 0
  %v6469 = vsel %vm6437, 1, 0
  %v6470 = vsel %vm6438, 1, 0
  %v6471 = vsel %vm6439, 1, 0
  %v6472 = vsel %vm6440, 1, 0
  %v6473 = vsel %vm6441, 1, 0
  %v6474 = vsel %vm6442, 1, 0
  %v6475 = vsel %vm6443, 1, 0
  %v6476 = vsel %vm6444, 1, 0
  %v6477 = vcvt.s32.f32 %v6445
  %v6478 = vcvt.s32.f32 %v6446
  %v6479 = vcvt.s32.f32 %v6447
  %v6480 = vcvt.s32.f32 %v6448
  %v6481 = vcvt.s32.f32 %v6449
  %v6482 = vcvt.s32.f32 %v6450
  %v6483 = vcvt.s32.f32 %v6451
  %v6484 = vcvt.s32.f32 %v6452
  %v6485 = vcvt.s32.f32 %v6453
  %v6486 = vcvt.s32.f32 %v6454
  %v6487 = vcvt.s32.f32 %v6455
  %v6488 = vcvt.s32.f32 %v6456
  %v6489 = vcvt.s32.f32 %v6457
  %v6490 = vcvt.s32.f32 %v6458
  %v6491 = vcvt.s32.f32 %v6459
  %v6492 = vcvt.s32.f32 %v6460
  %v6493 = vcvt.s32.f32 %v6461
  %v6494 = vcvt.s32.f32 %v6462
  %v6495 = vcvt.s32.f32 %v6463
  %v6496 = vcvt.s32.f32 %v6464
  %v6497 = vcvt.s32.f32 %v6465
  %v6498 = vcvt.s32.f32 %v6466
  %v6499 = vcvt.s32.f32 %v6467
  %v6500 = vcvt.s32.f32 %v6468
  %v6501 = vcvt.s32.f32 %v6469
  %v6502 = vcvt.s32.f32 %v6470
  %v6503 = vcvt.s32.f32 %v6471
  %v6504 = vcvt.s32.f32 %v6472
  %v6505 = vcvt.s32.f32 %v6473
  %v6506 = vcvt.s32.f32 %v6474
  %v6507 = vcvt.s32.f32 %v6475
  %v6508 = vcvt.s32.f32 %v6476
  %v6509 = vadd.f32 %v6285, %v6477
  %v6510 = vadd.f32 %v6286, %v6478
  %v6511 = vadd.f32 %v6287, %v6479
  %v6512 = vadd.f32 %v6288, %v6480
  %v6513 = vadd.f32 %v6289, %v6481
  %v6514 = vadd.f32 %v6290, %v6482
  %v6515 = vadd.f32 %v6291, %v6483
  %v6516 = vadd.f32 %v6292, %v6484
  %v6517 = vadd.f32 %v6293, %v6485
  %v6518 = vadd.f32 %v6294, %v6486
  %v6519 = vadd.f32 %v6295, %v6487
  %v6520 = vadd.f32 %v6296, %v6488
  %v6521 = vadd.f32 %v6297, %v6489
  %v6522 = vadd.f32 %v6298, %v6490
  %v6523 = vadd.f32 %v6299, %v6491
  %v6524 = vadd.f32 %v6300, %v6492
  %v6525 = vadd.f32 %v6301, %v6493
  %v6526 = vadd.f32 %v6302, %v6494
  %v6527 = vadd.f32 %v6303, %v6495
  %v6528 = vadd.f32 %v6304, %v6496
  %v6529 = vadd.f32 %v6305, %v6497
  %v6530 = vadd.f32 %v6306, %v6498
  %v6531 = vadd.f32 %v6307, %v6499
  %v6532 = vadd.f32 %v6308, %v6500
  %v6533 = vadd.f32 %v6309, %v6501
  %v6534 = vadd.f32 %v6310, %v6502
  %v6535 = vadd.f32 %v6311, %v6503
  %v6536 = vadd.f32 %v6312, %v6504
  %v6537 = vadd.f32 %v6313, %v6505
  %v6538 = vadd.f32 %v6314, %v6506
  %v6539 = vadd.f32 %v6315, %v6507
  %v6540 = vadd.f32 %v6316, %v6508
  %6541 = vset.pattern.permute.xlu0 29
  %6542 = vperm.xlu0 %6541, %v11
  %v6543 = vpop.permute.xlu0 %6542
  %6544 = vset.pattern.permute.xlu0 29
  %6545 = vperm.xlu0 %6544, %v12
  %v6546 = vpop.permute.xlu0 %6545
  %6547 = vset.pattern.permute.xlu0 29
  %6548 = vperm.xlu0 %6547, %v13
  %v6549 = vpop.permute.xlu0 %6548
  %6550 = vset.pattern.permute.xlu0 29
  %6551 = vperm.xlu0 %6550, %v14
  %v6552 = vpop.permute.xlu0 %6551
  %6553 = vset.pattern.permute.xlu0 29
  %6554 = vperm.xlu0 %6553, %v15
  %v6555 = vpop.permute.xlu0 %6554
  %6556 = vset.pattern.permute.xlu0 29
  %6557 = vperm.xlu0 %6556, %v16
  %v6558 = vpop.permute.xlu0 %6557
  %6559 = vset.pattern.permute.xlu0 29
  %6560 = vperm.xlu0 %6559, %v17
  %v6561 = vpop.permute.xlu0 %6560
  %6562 = vset.pattern.permute.xlu0 29
  %6563 = vperm.xlu0 %6562, %v18
  %v6564 = vpop.permute.xlu0 %6563
  %6565 = vset.pattern.permute.xlu0 29
  %6566 = vperm.xlu0 %6565, %v19
  %v6567 = vpop.permute.xlu0 %6566
  %6568 = vset.pattern.permute.xlu0 29
  %6569 = vperm.xlu0 %6568, %v20
  %v6570 = vpop.permute.xlu0 %6569
  %6571 = vset.pattern.permute.xlu0 29
  %6572 = vperm.xlu0 %6571, %v21
  %v6573 = vpop.permute.xlu0 %6572
  %6574 = vset.pattern.permute.xlu0 29
  %6575 = vperm.xlu0 %6574, %v22
  %v6576 = vpop.permute.xlu0 %6575
  %6577 = vset.pattern.permute.xlu0 29
  %6578 = vperm.xlu0 %6577, %v23
  %v6579 = vpop.permute.xlu0 %6578
  %6580 = vset.pattern.permute.xlu0 29
  %6581 = vperm.xlu0 %6580, %v24
  %v6582 = vpop.permute.xlu0 %6581
  %6583 = vset.pattern.permute.xlu0 29
  %6584 = vperm.xlu0 %6583, %v25
  %v6585 = vpop.permute.xlu0 %6584
  %6586 = vset.pattern.permute.xlu0 29
  %6587 = vperm.xlu0 %6586, %v26
  %v6588 = vpop.permute.xlu0 %6587
  %6589 = vset.pattern.permute.xlu0 29
  %6590 = vperm.xlu0 %6589, %v27
  %v6591 = vpop.permute.xlu0 %6590
  %6592 = vset.pattern.permute.xlu0 29
  %6593 = vperm.xlu0 %6592, %v28
  %v6594 = vpop.permute.xlu0 %6593
  %6595 = vset.pattern.permute.xlu0 29
  %6596 = vperm.xlu0 %6595, %v29
  %v6597 = vpop.permute.xlu0 %6596
  %6598 = vset.pattern.permute.xlu0 29
  %6599 = vperm.xlu0 %6598, %v30
  %v6600 = vpop.permute.xlu0 %6599
  %6601 = vset.pattern.permute.xlu0 29
  %6602 = vperm.xlu0 %6601, %v31
  %v6603 = vpop.permute.xlu0 %6602
  %6604 = vset.pattern.permute.xlu0 29
  %6605 = vperm.xlu0 %6604, %v32
  %v6606 = vpop.permute.xlu0 %6605
  %6607 = vset.pattern.permute.xlu0 29
  %6608 = vperm.xlu0 %6607, %v33
  %v6609 = vpop.permute.xlu0 %6608
  %6610 = vset.pattern.permute.xlu0 29
  %6611 = vperm.xlu0 %6610, %v34
  %v6612 = vpop.permute.xlu0 %6611
  %6613 = vset.pattern.permute.xlu0 29
  %6614 = vperm.xlu0 %6613, %v35
  %v6615 = vpop.permute.xlu0 %6614
  %6616 = vset.pattern.permute.xlu0 29
  %6617 = vperm.xlu0 %6616, %v36
  %v6618 = vpop.permute.xlu0 %6617
  %6619 = vset.pattern.permute.xlu0 29
  %6620 = vperm.xlu0 %6619, %v37
  %v6621 = vpop.permute.xlu0 %6620
  %6622 = vset.pattern.permute.xlu0 29
  %6623 = vperm.xlu0 %6622, %v38
  %v6624 = vpop.permute.xlu0 %6623
  %6625 = vset.pattern.permute.xlu0 29
  %6626 = vperm.xlu0 %6625, %v39
  %v6627 = vpop.permute.xlu0 %6626
  %6628 = vset.pattern.permute.xlu0 29
  %6629 = vperm.xlu0 %6628, %v40
  %v6630 = vpop.permute.xlu0 %6629
  %6631 = vset.pattern.permute.xlu0 29
  %6632 = vperm.xlu0 %6631, %v41
  %v6633 = vpop.permute.xlu0 %6632
  %6634 = vset.pattern.permute.xlu0 29
  %6635 = vperm.xlu0 %6634, %v42
  %v6636 = vpop.permute.xlu0 %6635
  %vm6637 = vcmp.eq.s32.totalorder %v6543, %v44
  %vm6638 = vcmp.eq.s32.totalorder %v6546, %v44
  %vm6639 = vcmp.eq.s32.totalorder %v6549, %v44
  %vm6640 = vcmp.eq.s32.totalorder %v6552, %v44
  %vm6641 = vcmp.eq.s32.totalorder %v6555, %v44
  %vm6642 = vcmp.eq.s32.totalorder %v6558, %v44
  %vm6643 = vcmp.eq.s32.totalorder %v6561, %v44
  %vm6644 = vcmp.eq.s32.totalorder %v6564, %v44
  %vm6645 = vcmp.eq.s32.totalorder %v6567, %v44
  %vm6646 = vcmp.eq.s32.totalorder %v6570, %v44
  %vm6647 = vcmp.eq.s32.totalorder %v6573, %v44
  %vm6648 = vcmp.eq.s32.totalorder %v6576, %v44
  %vm6649 = vcmp.eq.s32.totalorder %v6579, %v44
  %vm6650 = vcmp.eq.s32.totalorder %v6582, %v44
  %vm6651 = vcmp.eq.s32.totalorder %v6585, %v44
  %vm6652 = vcmp.eq.s32.totalorder %v6588, %v44
  %vm6653 = vcmp.eq.s32.totalorder %v6591, %v44
  %vm6654 = vcmp.eq.s32.totalorder %v6594, %v44
  %vm6655 = vcmp.eq.s32.totalorder %v6597, %v44
  %vm6656 = vcmp.eq.s32.totalorder %v6600, %v44
  %vm6657 = vcmp.eq.s32.totalorder %v6603, %v44
  %vm6658 = vcmp.eq.s32.totalorder %v6606, %v44
  %vm6659 = vcmp.eq.s32.totalorder %v6609, %v44
  %vm6660 = vcmp.eq.s32.totalorder %v6612, %v44
  %vm6661 = vcmp.eq.s32.totalorder %v6615, %v44
  %vm6662 = vcmp.eq.s32.totalorder %v6618, %v44
  %vm6663 = vcmp.eq.s32.totalorder %v6621, %v44
  %vm6664 = vcmp.eq.s32.totalorder %v6624, %v44
  %vm6665 = vcmp.eq.s32.totalorder %v6627, %v44
  %vm6666 = vcmp.eq.s32.totalorder %v6630, %v44
  %vm6667 = vcmp.eq.s32.totalorder %v6633, %v44
  %vm6668 = vcmp.eq.s32.totalorder %v6636, %v44
  %v6669 = vsel %vm6637, 1, 0
  %v6670 = vsel %vm6638, 1, 0
  %v6671 = vsel %vm6639, 1, 0
  %v6672 = vsel %vm6640, 1, 0
  %v6673 = vsel %vm6641, 1, 0
  %v6674 = vsel %vm6642, 1, 0
  %v6675 = vsel %vm6643, 1, 0
  %v6676 = vsel %vm6644, 1, 0
  %v6677 = vsel %vm6645, 1, 0
  %v6678 = vsel %vm6646, 1, 0
  %v6679 = vsel %vm6647, 1, 0
  %v6680 = vsel %vm6648, 1, 0
  %v6681 = vsel %vm6649, 1, 0
  %v6682 = vsel %vm6650, 1, 0
  %v6683 = vsel %vm6651, 1, 0
  %v6684 = vsel %vm6652, 1, 0
  %v6685 = vsel %vm6653, 1, 0
  %v6686 = vsel %vm6654, 1, 0
  %v6687 = vsel %vm6655, 1, 0
  %v6688 = vsel %vm6656, 1, 0
  %v6689 = vsel %vm6657, 1, 0
  %v6690 = vsel %vm6658, 1, 0
  %v6691 = vsel %vm6659, 1, 0
  %v6692 = vsel %vm6660, 1, 0
  %v6693 = vsel %vm6661, 1, 0
  %v6694 = vsel %vm6662, 1, 0
  %v6695 = vsel %vm6663, 1, 0
  %v6696 = vsel %vm6664, 1, 0
  %v6697 = vsel %vm6665, 1, 0
  %v6698 = vsel %vm6666, 1, 0
  %v6699 = vsel %vm6667, 1, 0
  %v6700 = vsel %vm6668, 1, 0
  %v6701 = vcvt.s32.f32 %v6669
  %v6702 = vcvt.s32.f32 %v6670
  %v6703 = vcvt.s32.f32 %v6671
  %v6704 = vcvt.s32.f32 %v6672
  %v6705 = vcvt.s32.f32 %v6673
  %v6706 = vcvt.s32.f32 %v6674
  %v6707 = vcvt.s32.f32 %v6675
  %v6708 = vcvt.s32.f32 %v6676
  %v6709 = vcvt.s32.f32 %v6677
  %v6710 = vcvt.s32.f32 %v6678
  %v6711 = vcvt.s32.f32 %v6679
  %v6712 = vcvt.s32.f32 %v6680
  %v6713 = vcvt.s32.f32 %v6681
  %v6714 = vcvt.s32.f32 %v6682
  %v6715 = vcvt.s32.f32 %v6683
  %v6716 = vcvt.s32.f32 %v6684
  %v6717 = vcvt.s32.f32 %v6685
  %v6718 = vcvt.s32.f32 %v6686
  %v6719 = vcvt.s32.f32 %v6687
  %v6720 = vcvt.s32.f32 %v6688
  %v6721 = vcvt.s32.f32 %v6689
  %v6722 = vcvt.s32.f32 %v6690
  %v6723 = vcvt.s32.f32 %v6691
  %v6724 = vcvt.s32.f32 %v6692
  %v6725 = vcvt.s32.f32 %v6693
  %v6726 = vcvt.s32.f32 %v6694
  %v6727 = vcvt.s32.f32 %v6695
  %v6728 = vcvt.s32.f32 %v6696
  %v6729 = vcvt.s32.f32 %v6697
  %v6730 = vcvt.s32.f32 %v6698
  %v6731 = vcvt.s32.f32 %v6699
  %v6732 = vcvt.s32.f32 %v6700
  %v6733 = vadd.f32 %v6509, %v6701
  %v6734 = vadd.f32 %v6510, %v6702
  %v6735 = vadd.f32 %v6511, %v6703
  %v6736 = vadd.f32 %v6512, %v6704
  %v6737 = vadd.f32 %v6513, %v6705
  %v6738 = vadd.f32 %v6514, %v6706
  %v6739 = vadd.f32 %v6515, %v6707
  %v6740 = vadd.f32 %v6516, %v6708
  %v6741 = vadd.f32 %v6517, %v6709
  %v6742 = vadd.f32 %v6518, %v6710
  %v6743 = vadd.f32 %v6519, %v6711
  %v6744 = vadd.f32 %v6520, %v6712
  %v6745 = vadd.f32 %v6521, %v6713
  %v6746 = vadd.f32 %v6522, %v6714
  %v6747 = vadd.f32 %v6523, %v6715
  %v6748 = vadd.f32 %v6524, %v6716
  %v6749 = vadd.f32 %v6525, %v6717
  %v6750 = vadd.f32 %v6526, %v6718
  %v6751 = vadd.f32 %v6527, %v6719
  %v6752 = vadd.f32 %v6528, %v6720
  %v6753 = vadd.f32 %v6529, %v6721
  %v6754 = vadd.f32 %v6530, %v6722
  %v6755 = vadd.f32 %v6531, %v6723
  %v6756 = vadd.f32 %v6532, %v6724
  %v6757 = vadd.f32 %v6533, %v6725
  %v6758 = vadd.f32 %v6534, %v6726
  %v6759 = vadd.f32 %v6535, %v6727
  %v6760 = vadd.f32 %v6536, %v6728
  %v6761 = vadd.f32 %v6537, %v6729
  %v6762 = vadd.f32 %v6538, %v6730
  %v6763 = vadd.f32 %v6539, %v6731
  %v6764 = vadd.f32 %v6540, %v6732
  %6765 = vset.pattern.permute.xlu0 30
  %6766 = vperm.xlu0 %6765, %v11
  %v6767 = vpop.permute.xlu0 %6766
  %6768 = vset.pattern.permute.xlu0 30
  %6769 = vperm.xlu0 %6768, %v12
  %v6770 = vpop.permute.xlu0 %6769
  %6771 = vset.pattern.permute.xlu0 30
  %6772 = vperm.xlu0 %6771, %v13
  %v6773 = vpop.permute.xlu0 %6772
  %6774 = vset.pattern.permute.xlu0 30
  %6775 = vperm.xlu0 %6774, %v14
  %v6776 = vpop.permute.xlu0 %6775
  %6777 = vset.pattern.permute.xlu0 30
  %6778 = vperm.xlu0 %6777, %v15
  %v6779 = vpop.permute.xlu0 %6778
  %6780 = vset.pattern.permute.xlu0 30
  %6781 = vperm.xlu0 %6780, %v16
  %v6782 = vpop.permute.xlu0 %6781
  %6783 = vset.pattern.permute.xlu0 30
  %6784 = vperm.xlu0 %6783, %v17
  %v6785 = vpop.permute.xlu0 %6784
  %6786 = vset.pattern.permute.xlu0 30
  %6787 = vperm.xlu0 %6786, %v18
  %v6788 = vpop.permute.xlu0 %6787
  %6789 = vset.pattern.permute.xlu0 30
  %6790 = vperm.xlu0 %6789, %v19
  %v6791 = vpop.permute.xlu0 %6790
  %6792 = vset.pattern.permute.xlu0 30
  %6793 = vperm.xlu0 %6792, %v20
  %v6794 = vpop.permute.xlu0 %6793
  %6795 = vset.pattern.permute.xlu0 30
  %6796 = vperm.xlu0 %6795, %v21
  %v6797 = vpop.permute.xlu0 %6796
  %6798 = vset.pattern.permute.xlu0 30
  %6799 = vperm.xlu0 %6798, %v22
  %v6800 = vpop.permute.xlu0 %6799
  %6801 = vset.pattern.permute.xlu0 30
  %6802 = vperm.xlu0 %6801, %v23
  %v6803 = vpop.permute.xlu0 %6802
  %6804 = vset.pattern.permute.xlu0 30
  %6805 = vperm.xlu0 %6804, %v24
  %v6806 = vpop.permute.xlu0 %6805
  %6807 = vset.pattern.permute.xlu0 30
  %6808 = vperm.xlu0 %6807, %v25
  %v6809 = vpop.permute.xlu0 %6808
  %6810 = vset.pattern.permute.xlu0 30
  %6811 = vperm.xlu0 %6810, %v26
  %v6812 = vpop.permute.xlu0 %6811
  %6813 = vset.pattern.permute.xlu0 30
  %6814 = vperm.xlu0 %6813, %v27
  %v6815 = vpop.permute.xlu0 %6814
  %6816 = vset.pattern.permute.xlu0 30
  %6817 = vperm.xlu0 %6816, %v28
  %v6818 = vpop.permute.xlu0 %6817
  %6819 = vset.pattern.permute.xlu0 30
  %6820 = vperm.xlu0 %6819, %v29
  %v6821 = vpop.permute.xlu0 %6820
  %6822 = vset.pattern.permute.xlu0 30
  %6823 = vperm.xlu0 %6822, %v30
  %v6824 = vpop.permute.xlu0 %6823
  %6825 = vset.pattern.permute.xlu0 30
  %6826 = vperm.xlu0 %6825, %v31
  %v6827 = vpop.permute.xlu0 %6826
  %6828 = vset.pattern.permute.xlu0 30
  %6829 = vperm.xlu0 %6828, %v32
  %v6830 = vpop.permute.xlu0 %6829
  %6831 = vset.pattern.permute.xlu0 30
  %6832 = vperm.xlu0 %6831, %v33
  %v6833 = vpop.permute.xlu0 %6832
  %6834 = vset.pattern.permute.xlu0 30
  %6835 = vperm.xlu0 %6834, %v34
  %v6836 = vpop.permute.xlu0 %6835
  %6837 = vset.pattern.permute.xlu0 30
  %6838 = vperm.xlu0 %6837, %v35
  %v6839 = vpop.permute.xlu0 %6838
  %6840 = vset.pattern.permute.xlu0 30
  %6841 = vperm.xlu0 %6840, %v36
  %v6842 = vpop.permute.xlu0 %6841
  %6843 = vset.pattern.permute.xlu0 30
  %6844 = vperm.xlu0 %6843, %v37
  %v6845 = vpop.permute.xlu0 %6844
  %6846 = vset.pattern.permute.xlu0 30
  %6847 = vperm.xlu0 %6846, %v38
  %v6848 = vpop.permute.xlu0 %6847
  %6849 = vset.pattern.permute.xlu0 30
  %6850 = vperm.xlu0 %6849, %v39
  %v6851 = vpop.permute.xlu0 %6850
  %6852 = vset.pattern.permute.xlu0 30
  %6853 = vperm.xlu0 %6852, %v40
  %v6854 = vpop.permute.xlu0 %6853
  %6855 = vset.pattern.permute.xlu0 30
  %6856 = vperm.xlu0 %6855, %v41
  %v6857 = vpop.permute.xlu0 %6856
  %6858 = vset.pattern.permute.xlu0 30
  %6859 = vperm.xlu0 %6858, %v42
  %v6860 = vpop.permute.xlu0 %6859
  %vm6861 = vcmp.eq.s32.totalorder %v6767, %v44
  %vm6862 = vcmp.eq.s32.totalorder %v6770, %v44
  %vm6863 = vcmp.eq.s32.totalorder %v6773, %v44
  %vm6864 = vcmp.eq.s32.totalorder %v6776, %v44
  %vm6865 = vcmp.eq.s32.totalorder %v6779, %v44
  %vm6866 = vcmp.eq.s32.totalorder %v6782, %v44
  %vm6867 = vcmp.eq.s32.totalorder %v6785, %v44
  %vm6868 = vcmp.eq.s32.totalorder %v6788, %v44
  %vm6869 = vcmp.eq.s32.totalorder %v6791, %v44
  %vm6870 = vcmp.eq.s32.totalorder %v6794, %v44
  %vm6871 = vcmp.eq.s32.totalorder %v6797, %v44
  %vm6872 = vcmp.eq.s32.totalorder %v6800, %v44
  %vm6873 = vcmp.eq.s32.totalorder %v6803, %v44
  %vm6874 = vcmp.eq.s32.totalorder %v6806, %v44
  %vm6875 = vcmp.eq.s32.totalorder %v6809, %v44
  %vm6876 = vcmp.eq.s32.totalorder %v6812, %v44
  %vm6877 = vcmp.eq.s32.totalorder %v6815, %v44
  %vm6878 = vcmp.eq.s32.totalorder %v6818, %v44
  %vm6879 = vcmp.eq.s32.totalorder %v6821, %v44
  %vm6880 = vcmp.eq.s32.totalorder %v6824, %v44
  %vm6881 = vcmp.eq.s32.totalorder %v6827, %v44
  %vm6882 = vcmp.eq.s32.totalorder %v6830, %v44
  %vm6883 = vcmp.eq.s32.totalorder %v6833, %v44
  %vm6884 = vcmp.eq.s32.totalorder %v6836, %v44
  %vm6885 = vcmp.eq.s32.totalorder %v6839, %v44
  %vm6886 = vcmp.eq.s32.totalorder %v6842, %v44
  %vm6887 = vcmp.eq.s32.totalorder %v6845, %v44
  %vm6888 = vcmp.eq.s32.totalorder %v6848, %v44
  %vm6889 = vcmp.eq.s32.totalorder %v6851, %v44
  %vm6890 = vcmp.eq.s32.totalorder %v6854, %v44
  %vm6891 = vcmp.eq.s32.totalorder %v6857, %v44
  %vm6892 = vcmp.eq.s32.totalorder %v6860, %v44
  %v6893 = vsel %vm6861, 1, 0
  %v6894 = vsel %vm6862, 1, 0
  %v6895 = vsel %vm6863, 1, 0
  %v6896 = vsel %vm6864, 1, 0
  %v6897 = vsel %vm6865, 1, 0
  %v6898 = vsel %vm6866, 1, 0
  %v6899 = vsel %vm6867, 1, 0
  %v6900 = vsel %vm6868, 1, 0
  %v6901 = vsel %vm6869, 1, 0
  %v6902 = vsel %vm6870, 1, 0
  %v6903 = vsel %vm6871, 1, 0
  %v6904 = vsel %vm6872, 1, 0
  %v6905 = vsel %vm6873, 1, 0
  %v6906 = vsel %vm6874, 1, 0
  %v6907 = vsel %vm6875, 1, 0
  %v6908 = vsel %vm6876, 1, 0
  %v6909 = vsel %vm6877, 1, 0
  %v6910 = vsel %vm6878, 1, 0
  %v6911 = vsel %vm6879, 1, 0
  %v6912 = vsel %vm6880, 1, 0
  %v6913 = vsel %vm6881, 1, 0
  %v6914 = vsel %vm6882, 1, 0
  %v6915 = vsel %vm6883, 1, 0
  %v6916 = vsel %vm6884, 1, 0
  %v6917 = vsel %vm6885, 1, 0
  %v6918 = vsel %vm6886, 1, 0
  %v6919 = vsel %vm6887, 1, 0
  %v6920 = vsel %vm6888, 1, 0
  %v6921 = vsel %vm6889, 1, 0
  %v6922 = vsel %vm6890, 1, 0
  %v6923 = vsel %vm6891, 1, 0
  %v6924 = vsel %vm6892, 1, 0
  %v6925 = vcvt.s32.f32 %v6893
  %v6926 = vcvt.s32.f32 %v6894
  %v6927 = vcvt.s32.f32 %v6895
  %v6928 = vcvt.s32.f32 %v6896
  %v6929 = vcvt.s32.f32 %v6897
  %v6930 = vcvt.s32.f32 %v6898
  %v6931 = vcvt.s32.f32 %v6899
  %v6932 = vcvt.s32.f32 %v6900
  %v6933 = vcvt.s32.f32 %v6901
  %v6934 = vcvt.s32.f32 %v6902
  %v6935 = vcvt.s32.f32 %v6903
  %v6936 = vcvt.s32.f32 %v6904
  %v6937 = vcvt.s32.f32 %v6905
  %v6938 = vcvt.s32.f32 %v6906
  %v6939 = vcvt.s32.f32 %v6907
  %v6940 = vcvt.s32.f32 %v6908
  %v6941 = vcvt.s32.f32 %v6909
  %v6942 = vcvt.s32.f32 %v6910
  %v6943 = vcvt.s32.f32 %v6911
  %v6944 = vcvt.s32.f32 %v6912
  %v6945 = vcvt.s32.f32 %v6913
  %v6946 = vcvt.s32.f32 %v6914
  %v6947 = vcvt.s32.f32 %v6915
  %v6948 = vcvt.s32.f32 %v6916
  %v6949 = vcvt.s32.f32 %v6917
  %v6950 = vcvt.s32.f32 %v6918
  %v6951 = vcvt.s32.f32 %v6919
  %v6952 = vcvt.s32.f32 %v6920
  %v6953 = vcvt.s32.f32 %v6921
  %v6954 = vcvt.s32.f32 %v6922
  %v6955 = vcvt.s32.f32 %v6923
  %v6956 = vcvt.s32.f32 %v6924
  %v6957 = vadd.f32 %v6733, %v6925
  %v6958 = vadd.f32 %v6734, %v6926
  %v6959 = vadd.f32 %v6735, %v6927
  %v6960 = vadd.f32 %v6736, %v6928
  %v6961 = vadd.f32 %v6737, %v6929
  %v6962 = vadd.f32 %v6738, %v6930
  %v6963 = vadd.f32 %v6739, %v6931
  %v6964 = vadd.f32 %v6740, %v6932
  %v6965 = vadd.f32 %v6741, %v6933
  %v6966 = vadd.f32 %v6742, %v6934
  %v6967 = vadd.f32 %v6743, %v6935
  %v6968 = vadd.f32 %v6744, %v6936
  %v6969 = vadd.f32 %v6745, %v6937
  %v6970 = vadd.f32 %v6746, %v6938
  %v6971 = vadd.f32 %v6747, %v6939
  %v6972 = vadd.f32 %v6748, %v6940
  %v6973 = vadd.f32 %v6749, %v6941
  %v6974 = vadd.f32 %v6750, %v6942
  %v6975 = vadd.f32 %v6751, %v6943
  %v6976 = vadd.f32 %v6752, %v6944
  %v6977 = vadd.f32 %v6753, %v6945
  %v6978 = vadd.f32 %v6754, %v6946
  %v6979 = vadd.f32 %v6755, %v6947
  %v6980 = vadd.f32 %v6756, %v6948
  %v6981 = vadd.f32 %v6757, %v6949
  %v6982 = vadd.f32 %v6758, %v6950
  %v6983 = vadd.f32 %v6759, %v6951
  %v6984 = vadd.f32 %v6760, %v6952
  %v6985 = vadd.f32 %v6761, %v6953
  %v6986 = vadd.f32 %v6762, %v6954
  %v6987 = vadd.f32 %v6763, %v6955
  %v6988 = vadd.f32 %v6764, %v6956
  %6989 = vset.pattern.permute.xlu0 31
  %6990 = vperm.xlu0 %6989, %v11
  %v6991 = vpop.permute.xlu0 %6990
  %6992 = vset.pattern.permute.xlu0 31
  %6993 = vperm.xlu0 %6992, %v12
  %v6994 = vpop.permute.xlu0 %6993
  %6995 = vset.pattern.permute.xlu0 31
  %6996 = vperm.xlu0 %6995, %v13
  %v6997 = vpop.permute.xlu0 %6996
  %6998 = vset.pattern.permute.xlu0 31
  %6999 = vperm.xlu0 %6998, %v14
  %v7000 = vpop.permute.xlu0 %6999
  %7001 = vset.pattern.permute.xlu0 31
  %7002 = vperm.xlu0 %7001, %v15
  %v7003 = vpop.permute.xlu0 %7002
  %7004 = vset.pattern.permute.xlu0 31
  %7005 = vperm.xlu0 %7004, %v16
  %v7006 = vpop.permute.xlu0 %7005
  %7007 = vset.pattern.permute.xlu0 31
  %7008 = vperm.xlu0 %7007, %v17
  %v7009 = vpop.permute.xlu0 %7008
  %7010 = vset.pattern.permute.xlu0 31
  %7011 = vperm.xlu0 %7010, %v18
  %v7012 = vpop.permute.xlu0 %7011
  %7013 = vset.pattern.permute.xlu0 31
  %7014 = vperm.xlu0 %7013, %v19
  %v7015 = vpop.permute.xlu0 %7014
  %7016 = vset.pattern.permute.xlu0 31
  %7017 = vperm.xlu0 %7016, %v20
  %v7018 = vpop.permute.xlu0 %7017
  %7019 = vset.pattern.permute.xlu0 31
  %7020 = vperm.xlu0 %7019, %v21
  %v7021 = vpop.permute.xlu0 %7020
  %7022 = vset.pattern.permute.xlu0 31
  %7023 = vperm.xlu0 %7022, %v22
  %v7024 = vpop.permute.xlu0 %7023
  %7025 = vset.pattern.permute.xlu0 31
  %7026 = vperm.xlu0 %7025, %v23
  %v7027 = vpop.permute.xlu0 %7026
  %7028 = vset.pattern.permute.xlu0 31
  %7029 = vperm.xlu0 %7028, %v24
  %v7030 = vpop.permute.xlu0 %7029
  %7031 = vset.pattern.permute.xlu0 31
  %7032 = vperm.xlu0 %7031, %v25
  %v7033 = vpop.permute.xlu0 %7032
  %7034 = vset.pattern.permute.xlu0 31
  %7035 = vperm.xlu0 %7034, %v26
  %v7036 = vpop.permute.xlu0 %7035
  %7037 = vset.pattern.permute.xlu0 31
  %7038 = vperm.xlu0 %7037, %v27
  %v7039 = vpop.permute.xlu0 %7038
  %7040 = vset.pattern.permute.xlu0 31
  %7041 = vperm.xlu0 %7040, %v28
  %v7042 = vpop.permute.xlu0 %7041
  %7043 = vset.pattern.permute.xlu0 31
  %7044 = vperm.xlu0 %7043, %v29
  %v7045 = vpop.permute.xlu0 %7044
  %7046 = vset.pattern.permute.xlu0 31
  %7047 = vperm.xlu0 %7046, %v30
  %v7048 = vpop.permute.xlu0 %7047
  %7049 = vset.pattern.permute.xlu0 31
  %7050 = vperm.xlu0 %7049, %v31
  %v7051 = vpop.permute.xlu0 %7050
  %7052 = vset.pattern.permute.xlu0 31
  %7053 = vperm.xlu0 %7052, %v32
  %v7054 = vpop.permute.xlu0 %7053
  %7055 = vset.pattern.permute.xlu0 31
  %7056 = vperm.xlu0 %7055, %v33
  %v7057 = vpop.permute.xlu0 %7056
  %7058 = vset.pattern.permute.xlu0 31
  %7059 = vperm.xlu0 %7058, %v34
  %v7060 = vpop.permute.xlu0 %7059
  %7061 = vset.pattern.permute.xlu0 31
  %7062 = vperm.xlu0 %7061, %v35
  %v7063 = vpop.permute.xlu0 %7062
  %7064 = vset.pattern.permute.xlu0 31
  %7065 = vperm.xlu0 %7064, %v36
  %v7066 = vpop.permute.xlu0 %7065
  %7067 = vset.pattern.permute.xlu0 31
  %7068 = vperm.xlu0 %7067, %v37
  %v7069 = vpop.permute.xlu0 %7068
  %7070 = vset.pattern.permute.xlu0 31
  %7071 = vperm.xlu0 %7070, %v38
  %v7072 = vpop.permute.xlu0 %7071
  %7073 = vset.pattern.permute.xlu0 31
  %7074 = vperm.xlu0 %7073, %v39
  %v7075 = vpop.permute.xlu0 %7074
  %7076 = vset.pattern.permute.xlu0 31
  %7077 = vperm.xlu0 %7076, %v40
  %v7078 = vpop.permute.xlu0 %7077
  %7079 = vset.pattern.permute.xlu0 31
  %7080 = vperm.xlu0 %7079, %v41
  %v7081 = vpop.permute.xlu0 %7080
  %7082 = vset.pattern.permute.xlu0 31
  %7083 = vperm.xlu0 %7082, %v42
  %v7084 = vpop.permute.xlu0 %7083
  %vm7085 = vcmp.eq.s32.totalorder %v6991, %v44
  %vm7086 = vcmp.eq.s32.totalorder %v6994, %v44
  %vm7087 = vcmp.eq.s32.totalorder %v6997, %v44
  %vm7088 = vcmp.eq.s32.totalorder %v7000, %v44
  %vm7089 = vcmp.eq.s32.totalorder %v7003, %v44
  %vm7090 = vcmp.eq.s32.totalorder %v7006, %v44
  %vm7091 = vcmp.eq.s32.totalorder %v7009, %v44
  %vm7092 = vcmp.eq.s32.totalorder %v7012, %v44
  %vm7093 = vcmp.eq.s32.totalorder %v7015, %v44
  %vm7094 = vcmp.eq.s32.totalorder %v7018, %v44
  %vm7095 = vcmp.eq.s32.totalorder %v7021, %v44
  %vm7096 = vcmp.eq.s32.totalorder %v7024, %v44
  %vm7097 = vcmp.eq.s32.totalorder %v7027, %v44
  %vm7098 = vcmp.eq.s32.totalorder %v7030, %v44
  %vm7099 = vcmp.eq.s32.totalorder %v7033, %v44
  %vm7100 = vcmp.eq.s32.totalorder %v7036, %v44
  %vm7101 = vcmp.eq.s32.totalorder %v7039, %v44
  %vm7102 = vcmp.eq.s32.totalorder %v7042, %v44
  %vm7103 = vcmp.eq.s32.totalorder %v7045, %v44
  %vm7104 = vcmp.eq.s32.totalorder %v7048, %v44
  %vm7105 = vcmp.eq.s32.totalorder %v7051, %v44
  %vm7106 = vcmp.eq.s32.totalorder %v7054, %v44
  %vm7107 = vcmp.eq.s32.totalorder %v7057, %v44
  %vm7108 = vcmp.eq.s32.totalorder %v7060, %v44
  %vm7109 = vcmp.eq.s32.totalorder %v7063, %v44
  %vm7110 = vcmp.eq.s32.totalorder %v7066, %v44
  %vm7111 = vcmp.eq.s32.totalorder %v7069, %v44
  %vm7112 = vcmp.eq.s32.totalorder %v7072, %v44
  %vm7113 = vcmp.eq.s32.totalorder %v7075, %v44
  %vm7114 = vcmp.eq.s32.totalorder %v7078, %v44
  %vm7115 = vcmp.eq.s32.totalorder %v7081, %v44
  %vm7116 = vcmp.eq.s32.totalorder %v7084, %v44
  %v7117 = vsel %vm7085, 1, 0
  %v7118 = vsel %vm7086, 1, 0
  %v7119 = vsel %vm7087, 1, 0
  %v7120 = vsel %vm7088, 1, 0
  %v7121 = vsel %vm7089, 1, 0
  %v7122 = vsel %vm7090, 1, 0
  %v7123 = vsel %vm7091, 1, 0
  %v7124 = vsel %vm7092, 1, 0
  %v7125 = vsel %vm7093, 1, 0
  %v7126 = vsel %vm7094, 1, 0
  %v7127 = vsel %vm7095, 1, 0
  %v7128 = vsel %vm7096, 1, 0
  %v7129 = vsel %vm7097, 1, 0
  %v7130 = vsel %vm7098, 1, 0
  %v7131 = vsel %vm7099, 1, 0
  %v7132 = vsel %vm7100, 1, 0
  %v7133 = vsel %vm7101, 1, 0
  %v7134 = vsel %vm7102, 1, 0
  %v7135 = vsel %vm7103, 1, 0
  %v7136 = vsel %vm7104, 1, 0
  %v7137 = vsel %vm7105, 1, 0
  %v7138 = vsel %vm7106, 1, 0
  %v7139 = vsel %vm7107, 1, 0
  %v7140 = vsel %vm7108, 1, 0
  %v7141 = vsel %vm7109, 1, 0
  %v7142 = vsel %vm7110, 1, 0
  %v7143 = vsel %vm7111, 1, 0
  %v7144 = vsel %vm7112, 1, 0
  %v7145 = vsel %vm7113, 1, 0
  %v7146 = vsel %vm7114, 1, 0
  %v7147 = vsel %vm7115, 1, 0
  %v7148 = vsel %vm7116, 1, 0
  %v7149 = vcvt.s32.f32 %v7117
  %v7150 = vcvt.s32.f32 %v7118
  %v7151 = vcvt.s32.f32 %v7119
  %v7152 = vcvt.s32.f32 %v7120
  %v7153 = vcvt.s32.f32 %v7121
  %v7154 = vcvt.s32.f32 %v7122
  %v7155 = vcvt.s32.f32 %v7123
  %v7156 = vcvt.s32.f32 %v7124
  %v7157 = vcvt.s32.f32 %v7125
  %v7158 = vcvt.s32.f32 %v7126
  %v7159 = vcvt.s32.f32 %v7127
  %v7160 = vcvt.s32.f32 %v7128
  %v7161 = vcvt.s32.f32 %v7129
  %v7162 = vcvt.s32.f32 %v7130
  %v7163 = vcvt.s32.f32 %v7131
  %v7164 = vcvt.s32.f32 %v7132
  %v7165 = vcvt.s32.f32 %v7133
  %v7166 = vcvt.s32.f32 %v7134
  %v7167 = vcvt.s32.f32 %v7135
  %v7168 = vcvt.s32.f32 %v7136
  %v7169 = vcvt.s32.f32 %v7137
  %v7170 = vcvt.s32.f32 %v7138
  %v7171 = vcvt.s32.f32 %v7139
  %v7172 = vcvt.s32.f32 %v7140
  %v7173 = vcvt.s32.f32 %v7141
  %v7174 = vcvt.s32.f32 %v7142
  %v7175 = vcvt.s32.f32 %v7143
  %v7176 = vcvt.s32.f32 %v7144
  %v7177 = vcvt.s32.f32 %v7145
  %v7178 = vcvt.s32.f32 %v7146
  %v7179 = vcvt.s32.f32 %v7147
  %v7180 = vcvt.s32.f32 %v7148
  %v7181 = vadd.f32 %v6957, %v7149
  %v7182 = vadd.f32 %v6958, %v7150
  %v7183 = vadd.f32 %v6959, %v7151
  %v7184 = vadd.f32 %v6960, %v7152
  %v7185 = vadd.f32 %v6961, %v7153
  %v7186 = vadd.f32 %v6962, %v7154
  %v7187 = vadd.f32 %v6963, %v7155
  %v7188 = vadd.f32 %v6964, %v7156
  %v7189 = vadd.f32 %v6965, %v7157
  %v7190 = vadd.f32 %v6966, %v7158
  %v7191 = vadd.f32 %v6967, %v7159
  %v7192 = vadd.f32 %v6968, %v7160
  %v7193 = vadd.f32 %v6969, %v7161
  %v7194 = vadd.f32 %v6970, %v7162
  %v7195 = vadd.f32 %v6971, %v7163
  %v7196 = vadd.f32 %v6972, %v7164
  %v7197 = vadd.f32 %v6973, %v7165
  %v7198 = vadd.f32 %v6974, %v7166
  %v7199 = vadd.f32 %v6975, %v7167
  %v7200 = vadd.f32 %v6976, %v7168
  %v7201 = vadd.f32 %v6977, %v7169
  %v7202 = vadd.f32 %v6978, %v7170
  %v7203 = vadd.f32 %v6979, %v7171
  %v7204 = vadd.f32 %v6980, %v7172
  %v7205 = vadd.f32 %v6981, %v7173
  %v7206 = vadd.f32 %v6982, %v7174
  %v7207 = vadd.f32 %v6983, %v7175
  %v7208 = vadd.f32 %v6984, %v7176
  %v7209 = vadd.f32 %v6985, %v7177
  %v7210 = vadd.f32 %v6986, %v7178
  %v7211 = vadd.f32 %v6987, %v7179
  %v7212 = vadd.f32 %v6988, %v7180
  %v7213 = vld [vmem:[%s1] sm:$0xff]
  %v7214 = vld [vmem:[%s1 + $0x8] sm:$0xff]
  %v7215 = vld [vmem:[%s1 + $0x10] sm:$0xff]
  %v7216 = vld [vmem:[%s1 + $0x18] sm:$0xff]
  %v7217 = vld [vmem:[%s1 + $0x20] sm:$0xff]
  %v7218 = vld [vmem:[%s1 + $0x28] sm:$0xff]
  %v7219 = vld [vmem:[%s1 + $0x30] sm:$0xff]
  %v7220 = vld [vmem:[%s1 + $0x38] sm:$0xff]
  %v7221 = vld [vmem:[%s1 + $0x40] sm:$0xff]
  %v7222 = vld [vmem:[%s1 + $0x48] sm:$0xff]
  %v7223 = vld [vmem:[%s1 + $0x50] sm:$0xff]
  %v7224 = vld [vmem:[%s1 + $0x58] sm:$0xff]
  %v7225 = vld [vmem:[%s1 + $0x60] sm:$0xff]
  %v7226 = vld [vmem:[%s1 + $0x68] sm:$0xff]
  %v7227 = vld [vmem:[%s1 + $0x70] sm:$0xff]
  %v7228 = vld [vmem:[%s1 + $0x78] sm:$0xff]
  %7229 = vmatprep.subr.mxu0 0.0
  %7230 = vmatpush1.msra.mxu0 %v7213
  %7231 = vmatprep.subr.mxu0 0.0
  %7232 = vmatpush1.msra.mxu0 %v7214
  %7233 = vmatprep.subr.mxu0 0.0
  %7234 = vmatpush1.msra.mxu0 %v7215
  %7235 = vmatprep.subr.mxu0 0.0
  %7236 = vmatpush1.msra.mxu0 %v7216
  %7237 = vmatprep.subr.mxu0 0.0
  %7238 = vmatpush1.msra.mxu0 %v7217
  %7239 = vmatprep.subr.mxu0 0.0
  %7240 = vmatpush1.msra.mxu0 %v7218
  %7241 = vmatprep.subr.mxu0 0.0
  %7242 = vmatpush1.msra.mxu0 %v7219
  %7243 = vmatprep.subr.mxu0 0.0
  %7244 = vmatpush1.msra.mxu0 %v7220
  %7245 = vmatprep.subr.mxu0 0.0
  %7246 = vmatpush1.msra.mxu0 %v7221
  %7247 = vmatprep.subr.mxu0 0.0
  %7248 = vmatpush1.msra.mxu0 %v7222
  %7249 = vmatprep.subr.mxu0 0.0
  %7250 = vmatpush1.msra.mxu0 %v7223
  %7251 = vmatprep.subr.mxu0 0.0
  %7252 = vmatpush1.msra.mxu0 %v7224
  %7253 = vmatprep.subr.mxu0 0.0
  %7254 = vmatpush1.msra.mxu0 %v7225
  %7255 = vmatprep.subr.mxu0 0.0
  %7256 = vmatpush1.msra.mxu0 %v7226
  %7257 = vmatprep.subr.mxu0 0.0
  %7258 = vmatpush1.msra.mxu0 %v7227
  %7259 = vmatprep.subr.mxu0 0.0
  %7260 = vmatpush1.msra.mxu0 %v7228
  %7261 = vmatprep.subr.mxu0 0.0
  %7262 = vmatpush1.msra.mxu0 0.0
  %7263 = vmatprep.subr.mxu0 0.0
  %7264 = vmatpush1.msra.mxu0 0.0
  %7265 = vmatprep.subr.mxu0 0.0
  %7266 = vmatpush1.msra.mxu0 0.0
  %7267 = vmatprep.subr.mxu0 0.0
  %7268 = vmatpush1.msra.mxu0 0.0
  %7269 = vmatprep.subr.mxu0 0.0
  %7270 = vmatpush1.msra.mxu0 0.0
  %7271 = vmatprep.subr.mxu0 0.0
  %7272 = vmatpush1.msra.mxu0 0.0
  %7273 = vmatprep.subr.mxu0 0.0
  %7274 = vmatpush1.msra.mxu0 0.0
  %7275 = vmatprep.subr.mxu0 0.0
  %7276 = vmatpush1.msra.mxu0 0.0
  %7277 = vmatprep.subr.mxu0 0.0
  %7278 = vmatpush1.msra.mxu0 0.0
  %7279 = vmatprep.subr.mxu0 0.0
  %7280 = vmatpush1.msra.mxu0 0.0
  %7281 = vmatprep.subr.mxu0 0.0
  %7282 = vmatpush1.msra.mxu0 0.0
  %7283 = vmatprep.subr.mxu0 0.0
  %7284 = vmatpush1.msra.mxu0 0.0
  %7285 = vmatprep.subr.mxu0 0.0
  %7286 = vmatpush1.msra.mxu0 0.0
  %7287 = vmatprep.subr.mxu0 0.0
  %7288 = vmatpush1.msra.mxu0 0.0
  %7289 = vmatprep.subr.mxu0 0.0
  %7290 = vmatpush1.msra.mxu0 0.0
  %7291 = vmatprep.subr.mxu0 0.0
  %7292 = vmatpush1.msra.mxu0 0.0
  %7293 = vmatprep.mubr.f32.mxu0 0.0
  %7294 = vmatmul.mubr.f32.gmra.mrb[0].mxu0 %v7181
  %v7295 = vpop.f32.mrb[0].mxu0
  %v7296 = vadd.f32 0.0, %v7295
  %v7297 = vpop.f32.mrb[0].mxu0
  %7298 = vmatprep.mubr.f32.mxu0 0.0
  %7299 = vmatmul.mubr.f32.gmra.mrb[0].mxu0 %v7182
  %v7300 = vpop.f32.mrb[0].mxu0
  %v7301 = vadd.f32 0.0, %v7300
  %v7302 = vpop.f32.mrb[0].mxu0
  %7303 = vmatprep.mubr.f32.mxu0 0.0
  %7304 = vmatmul.mubr.f32.gmra.mrb[0].mxu0 %v7183
  %v7305 = vpop.f32.mrb[0].mxu0
  %v7306 = vadd.f32 0.0, %v7305
  %v7307 = vpop.f32.mrb[0].mxu0
  %7308 = vmatprep.mubr.f32.mxu0 0.0
  %7309 = vmatmul.mubr.f32.gmra.mrb[0].mxu0 %v7184
  %v7310 = vpop.f32.mrb[0].mxu0
  %v7311 = vadd.f32 0.0, %v7310
  %v7312 = vpop.f32.mrb[0].mxu0
  %7313 = vmatprep.mubr.f32.mxu0 0.0
  %7314 = vmatmul.mubr.f32.gmra.mrb[0].mxu0 %v7185
  %v7315 = vpop.f32.mrb[0].mxu0
  %v7316 = vadd.f32 0.0, %v7315
  %v7317 = vpop.f32.mrb[0].mxu0
  %7318 = vmatprep.mubr.f32.mxu0 0.0
  %7319 = vmatmul.mubr.f32.gmra.mrb[0].mxu0 %v7186
  %v7320 = vpop.f32.mrb[0].mxu0
  %v7321 = vadd.f32 0.0, %v7320
  %v7322 = vpop.f32.mrb[0].mxu0
  %7323 = vmatprep.mubr.f32.mxu0 0.0
  %7324 = vmatmul.mubr.f32.gmra.mrb[0].mxu0 %v7187
  %v7325 = vpop.f32.mrb[0].mxu0
  %v7326 = vadd.f32 0.0, %v7325
  %v7327 = vpop.f32.mrb[0].mxu0
  %7328 = vmatprep.mubr.f32.mxu0 0.0
  %7329 = vmatmul.mubr.f32.gmra.mrb[0].mxu0 %v7188
  %v7330 = vpop.f32.mrb[0].mxu0
  %v7331 = vadd.f32 0.0, %v7330
  %v7332 = vpop.f32.mrb[0].mxu0
  %7333 = vmatprep.mubr.f32.mxu0 0.0
  %7334 = vmatmul.mubr.f32.gmra.mrb[0].mxu0 %v7189
  %v7335 = vpop.f32.mrb[0].mxu0
  %v7336 = vadd.f32 0.0, %v7335
  %v7337 = vpop.f32.mrb[0].mxu0
  %7338 = vmatprep.mubr.f32.mxu0 0.0
  %7339 = vmatmul.mubr.f32.gmra.mrb[0].mxu0 %v7190
  %v7340 = vpop.f32.mrb[0].mxu0
  %v7341 = vadd.f32 0.0, %v7340
  %v7342 = vpop.f32.mrb[0].mxu0
  %7343 = vmatprep.mubr.f32.mxu0 0.0
  %7344 = vmatmul.mubr.f32.gmra.mrb[0].mxu0 %v7191
  %v7345 = vpop.f32.mrb[0].mxu0
  %v7346 = vadd.f32 0.0, %v7345
  %v7347 = vpop.f32.mrb[0].mxu0
  %7348 = vmatprep.mubr.f32.mxu0 0.0
  %7349 = vmatmul.mubr.f32.gmra.mrb[0].mxu0 %v7192
  %v7350 = vpop.f32.mrb[0].mxu0
  %v7351 = vadd.f32 0.0, %v7350
  %v7352 = vpop.f32.mrb[0].mxu0
  %7353 = vmatprep.mubr.f32.mxu0 0.0
  %7354 = vmatmul.mubr.f32.gmra.mrb[0].mxu0 %v7193
  %v7355 = vpop.f32.mrb[0].mxu0
  %v7356 = vadd.f32 0.0, %v7355
  %v7357 = vpop.f32.mrb[0].mxu0
  %7358 = vmatprep.mubr.f32.mxu0 0.0
  %7359 = vmatmul.mubr.f32.gmra.mrb[0].mxu0 %v7194
  %v7360 = vpop.f32.mrb[0].mxu0
  %v7361 = vadd.f32 0.0, %v7360
  %v7362 = vpop.f32.mrb[0].mxu0
  %7363 = vmatprep.mubr.f32.mxu0 0.0
  %7364 = vmatmul.mubr.f32.gmra.mrb[0].mxu0 %v7195
  %v7365 = vpop.f32.mrb[0].mxu0
  %v7366 = vadd.f32 0.0, %v7365
  %v7367 = vpop.f32.mrb[0].mxu0
  %7368 = vmatprep.mubr.f32.mxu0 0.0
  %7369 = vmatmul.mubr.f32.gmra.mrb[0].mxu0 %v7196
  %v7370 = vpop.f32.mrb[0].mxu0
  %v7371 = vadd.f32 0.0, %v7370
  %v7372 = vpop.f32.mrb[0].mxu0
  %7373 = vmatprep.mubr.f32.mxu0 0.0
  %7374 = vmatmul.mubr.f32.gmra.mrb[0].mxu0 %v7197
  %v7375 = vpop.f32.mrb[0].mxu0
  %v7376 = vadd.f32 0.0, %v7375
  %v7377 = vpop.f32.mrb[0].mxu0
  %7378 = vmatprep.mubr.f32.mxu0 0.0
  %7379 = vmatmul.mubr.f32.gmra.mrb[0].mxu0 %v7198
  %v7380 = vpop.f32.mrb[0].mxu0
  %v7381 = vadd.f32 0.0, %v7380
  %v7382 = vpop.f32.mrb[0].mxu0
  %7383 = vmatprep.mubr.f32.mxu0 0.0
  %7384 = vmatmul.mubr.f32.gmra.mrb[0].mxu0 %v7199
  %v7385 = vpop.f32.mrb[0].mxu0
  %v7386 = vadd.f32 0.0, %v7385
  %v7387 = vpop.f32.mrb[0].mxu0
  %7388 = vmatprep.mubr.f32.mxu0 0.0
  %7389 = vmatmul.mubr.f32.gmra.mrb[0].mxu0 %v7200
  %v7390 = vpop.f32.mrb[0].mxu0
  %v7391 = vadd.f32 0.0, %v7390
  %v7392 = vpop.f32.mrb[0].mxu0
  %7393 = vmatprep.mubr.f32.mxu0 0.0
  %7394 = vmatmul.mubr.f32.gmra.mrb[0].mxu0 %v7201
  %v7395 = vpop.f32.mrb[0].mxu0
  %v7396 = vadd.f32 0.0, %v7395
  %v7397 = vpop.f32.mrb[0].mxu0
  %7398 = vmatprep.mubr.f32.mxu0 0.0
  %7399 = vmatmul.mubr.f32.gmra.mrb[0].mxu0 %v7202
  %v7400 = vpop.f32.mrb[0].mxu0
  %v7401 = vadd.f32 0.0, %v7400
  %v7402 = vpop.f32.mrb[0].mxu0
  %7403 = vmatprep.mubr.f32.mxu0 0.0
  %7404 = vmatmul.mubr.f32.gmra.mrb[0].mxu0 %v7203
  %v7405 = vpop.f32.mrb[0].mxu0
  %v7406 = vadd.f32 0.0, %v7405
  %v7407 = vpop.f32.mrb[0].mxu0
  %7408 = vmatprep.mubr.f32.mxu0 0.0
  %7409 = vmatmul.mubr.f32.gmra.mrb[0].mxu0 %v7204
  %v7410 = vpop.f32.mrb[0].mxu0
  %v7411 = vadd.f32 0.0, %v7410
  %v7412 = vpop.f32.mrb[0].mxu0
  %7413 = vmatprep.mubr.f32.mxu0 0.0
  %7414 = vmatmul.mubr.f32.gmra.mrb[0].mxu0 %v7205
  %v7415 = vpop.f32.mrb[0].mxu0
  %v7416 = vadd.f32 0.0, %v7415
  %v7417 = vpop.f32.mrb[0].mxu0
  %7418 = vmatprep.mubr.f32.mxu0 0.0
  %7419 = vmatmul.mubr.f32.gmra.mrb[0].mxu0 %v7206
  %v7420 = vpop.f32.mrb[0].mxu0
  %v7421 = vadd.f32 0.0, %v7420
  %v7422 = vpop.f32.mrb[0].mxu0
  %7423 = vmatprep.mubr.f32.mxu0 0.0
  %7424 = vmatmul.mubr.f32.gmra.mrb[0].mxu0 %v7207
  %v7425 = vpop.f32.mrb[0].mxu0
  %v7426 = vadd.f32 0.0, %v7425
  %v7427 = vpop.f32.mrb[0].mxu0
  %7428 = vmatprep.mubr.f32.mxu0 0.0
  %7429 = vmatmul.mubr.f32.gmra.mrb[0].mxu0 %v7208
  %v7430 = vpop.f32.mrb[0].mxu0
  %v7431 = vadd.f32 0.0, %v7430
  %v7432 = vpop.f32.mrb[0].mxu0
  %7433 = vmatprep.mubr.f32.mxu0 0.0
  %7434 = vmatmul.mubr.f32.gmra.mrb[0].mxu0 %v7209
  %v7435 = vpop.f32.mrb[0].mxu0
  %v7436 = vadd.f32 0.0, %v7435
  %v7437 = vpop.f32.mrb[0].mxu0
  %7438 = vmatprep.mubr.f32.mxu0 0.0
  %7439 = vmatmul.mubr.f32.gmra.mrb[0].mxu0 %v7210
  %v7440 = vpop.f32.mrb[0].mxu0
  %v7441 = vadd.f32 0.0, %v7440
  %v7442 = vpop.f32.mrb[0].mxu0
  %7443 = vmatprep.mubr.f32.mxu0 0.0
  %7444 = vmatmul.mubr.f32.gmra.mrb[0].mxu0 %v7211
  %v7445 = vpop.f32.mrb[0].mxu0
  %v7446 = vadd.f32 0.0, %v7445
  %v7447 = vpop.f32.mrb[0].mxu0
  %7448 = vmatprep.mubr.f32.mxu0 0.0
  %7449 = vmatmul.mubr.f32.gmra.mrb[0].mxu0 %v7212
  %v7450 = vpop.f32.mrb[0].mxu0
  %v7451 = vadd.f32 0.0, %v7450
  %v7452 = vpop.f32.mrb[0].mxu0
  %7453 = vdwg.mxu0
  %v7454 = vmul.f32 %v7296, %v7296
  %v7455 = vmul.f32 %v7301, %v7301
  %v7456 = vmul.f32 %v7306, %v7306
  %v7457 = vmul.f32 %v7311, %v7311
  %v7458 = vmul.f32 %v7316, %v7316
  %v7459 = vmul.f32 %v7321, %v7321
  %v7460 = vmul.f32 %v7326, %v7326
  %v7461 = vmul.f32 %v7331, %v7331
  %v7462 = vmul.f32 %v7336, %v7336
  %v7463 = vmul.f32 %v7341, %v7341
  %v7464 = vmul.f32 %v7346, %v7346
  %v7465 = vmul.f32 %v7351, %v7351
  %v7466 = vmul.f32 %v7356, %v7356
  %v7467 = vmul.f32 %v7361, %v7361
  %v7468 = vmul.f32 %v7366, %v7366
  %v7469 = vmul.f32 %v7371, %v7371
  %v7470 = vmul.f32 %v7376, %v7376
  %v7471 = vmul.f32 %v7381, %v7381
  %v7472 = vmul.f32 %v7386, %v7386
  %v7473 = vmul.f32 %v7391, %v7391
  %v7474 = vmul.f32 %v7396, %v7396
  %v7475 = vmul.f32 %v7401, %v7401
  %v7476 = vmul.f32 %v7406, %v7406
  %v7477 = vmul.f32 %v7411, %v7411
  %v7478 = vmul.f32 %v7416, %v7416
  %v7479 = vmul.f32 %v7421, %v7421
  %v7480 = vmul.f32 %v7426, %v7426
  %v7481 = vmul.f32 %v7431, %v7431
  %v7482 = vmul.f32 %v7436, %v7436
  %v7483 = vmul.f32 %v7441, %v7441
  %v7484 = vmul.f32 %v7446, %v7446
  %v7485 = vmul.f32 %v7451, %v7451
  %vm7486 = vcmask 523264
  %v7487 = vsel %vm7486, %v7454, 0.0
  %7488 = vadd.xlane.f32.xlu0 %v7487
  %v7489 = vpop.xlane.xlu0 %7488
  %v7490 = vsel %vm7486, %v7455, 0.0
  %7491 = vadd.xlane.f32.xlu0 %v7490
  %v7492 = vpop.xlane.xlu0 %7491
  %v7493 = vsel %vm7486, %v7456, 0.0
  %7494 = vadd.xlane.f32.xlu0 %v7493
  %v7495 = vpop.xlane.xlu0 %7494
  %v7496 = vsel %vm7486, %v7457, 0.0
  %7497 = vadd.xlane.f32.xlu0 %v7496
  %v7498 = vpop.xlane.xlu0 %7497
  %v7499 = vsel %vm7486, %v7458, 0.0
  %7500 = vadd.xlane.f32.xlu0 %v7499
  %v7501 = vpop.xlane.xlu0 %7500
  %v7502 = vsel %vm7486, %v7459, 0.0
  %7503 = vadd.xlane.f32.xlu0 %v7502
  %v7504 = vpop.xlane.xlu0 %7503
  %v7505 = vsel %vm7486, %v7460, 0.0
  %7506 = vadd.xlane.f32.xlu0 %v7505
  %v7507 = vpop.xlane.xlu0 %7506
  %v7508 = vsel %vm7486, %v7461, 0.0
  %7509 = vadd.xlane.f32.xlu0 %v7508
  %v7510 = vpop.xlane.xlu0 %7509
  %v7511 = vsel %vm7486, %v7462, 0.0
  %7512 = vadd.xlane.f32.xlu0 %v7511
  %v7513 = vpop.xlane.xlu0 %7512
  %v7514 = vsel %vm7486, %v7463, 0.0
  %7515 = vadd.xlane.f32.xlu0 %v7514
  %v7516 = vpop.xlane.xlu0 %7515
  %v7517 = vsel %vm7486, %v7464, 0.0
  %7518 = vadd.xlane.f32.xlu0 %v7517
  %v7519 = vpop.xlane.xlu0 %7518
  %v7520 = vsel %vm7486, %v7465, 0.0
  %7521 = vadd.xlane.f32.xlu0 %v7520
  %v7522 = vpop.xlane.xlu0 %7521
  %v7523 = vsel %vm7486, %v7466, 0.0
  %7524 = vadd.xlane.f32.xlu0 %v7523
  %v7525 = vpop.xlane.xlu0 %7524
  %v7526 = vsel %vm7486, %v7467, 0.0
  %7527 = vadd.xlane.f32.xlu0 %v7526
  %v7528 = vpop.xlane.xlu0 %7527
  %v7529 = vsel %vm7486, %v7468, 0.0
  %7530 = vadd.xlane.f32.xlu0 %v7529
  %v7531 = vpop.xlane.xlu0 %7530
  %v7532 = vsel %vm7486, %v7469, 0.0
  %7533 = vadd.xlane.f32.xlu0 %v7532
  %v7534 = vpop.xlane.xlu0 %7533
  %v7535 = vsel %vm7486, %v7470, 0.0
  %7536 = vadd.xlane.f32.xlu0 %v7535
  %v7537 = vpop.xlane.xlu0 %7536
  %v7538 = vsel %vm7486, %v7471, 0.0
  %7539 = vadd.xlane.f32.xlu0 %v7538
  %v7540 = vpop.xlane.xlu0 %7539
  %v7541 = vsel %vm7486, %v7472, 0.0
  %7542 = vadd.xlane.f32.xlu0 %v7541
  %v7543 = vpop.xlane.xlu0 %7542
  %v7544 = vsel %vm7486, %v7473, 0.0
  %7545 = vadd.xlane.f32.xlu0 %v7544
  %v7546 = vpop.xlane.xlu0 %7545
  %v7547 = vsel %vm7486, %v7474, 0.0
  %7548 = vadd.xlane.f32.xlu0 %v7547
  %v7549 = vpop.xlane.xlu0 %7548
  %v7550 = vsel %vm7486, %v7475, 0.0
  %7551 = vadd.xlane.f32.xlu0 %v7550
  %v7552 = vpop.xlane.xlu0 %7551
  %v7553 = vsel %vm7486, %v7476, 0.0
  %7554 = vadd.xlane.f32.xlu0 %v7553
  %v7555 = vpop.xlane.xlu0 %7554
  %v7556 = vsel %vm7486, %v7477, 0.0
  %7557 = vadd.xlane.f32.xlu0 %v7556
  %v7558 = vpop.xlane.xlu0 %7557
  %v7559 = vsel %vm7486, %v7478, 0.0
  %7560 = vadd.xlane.f32.xlu0 %v7559
  %v7561 = vpop.xlane.xlu0 %7560
  %v7562 = vsel %vm7486, %v7479, 0.0
  %7563 = vadd.xlane.f32.xlu0 %v7562
  %v7564 = vpop.xlane.xlu0 %7563
  %v7565 = vsel %vm7486, %v7480, 0.0
  %7566 = vadd.xlane.f32.xlu0 %v7565
  %v7567 = vpop.xlane.xlu0 %7566
  %v7568 = vsel %vm7486, %v7481, 0.0
  %7569 = vadd.xlane.f32.xlu0 %v7568
  %v7570 = vpop.xlane.xlu0 %7569
  %v7571 = vsel %vm7486, %v7482, 0.0
  %7572 = vadd.xlane.f32.xlu0 %v7571
  %v7573 = vpop.xlane.xlu0 %7572
  %v7574 = vsel %vm7486, %v7483, 0.0
  %7575 = vadd.xlane.f32.xlu0 %v7574
  %v7576 = vpop.xlane.xlu0 %7575
  %v7577 = vsel %vm7486, %v7484, 0.0
  %7578 = vadd.xlane.f32.xlu0 %v7577
  %v7579 = vpop.xlane.xlu0 %7578
  %v7580 = vsel %vm7486, %v7485, 0.0
  %7581 = vadd.xlane.f32.xlu0 %v7580
  %v7582 = vpop.xlane.xlu0 %7581
  %v7583 = vmax.f32 %v7489, 1e-24
  %v7584 = vmax.f32 %v7492, 1e-24
  %v7585 = vmax.f32 %v7495, 1e-24
  %v7586 = vmax.f32 %v7498, 1e-24
  %v7587 = vmax.f32 %v7501, 1e-24
  %v7588 = vmax.f32 %v7504, 1e-24
  %v7589 = vmax.f32 %v7507, 1e-24
  %v7590 = vmax.f32 %v7510, 1e-24
  %v7591 = vmax.f32 %v7513, 1e-24
  %v7592 = vmax.f32 %v7516, 1e-24
  %v7593 = vmax.f32 %v7519, 1e-24
  %v7594 = vmax.f32 %v7522, 1e-24
  %v7595 = vmax.f32 %v7525, 1e-24
  %v7596 = vmax.f32 %v7528, 1e-24
  %v7597 = vmax.f32 %v7531, 1e-24
  %v7598 = vmax.f32 %v7534, 1e-24
  %v7599 = vmax.f32 %v7537, 1e-24
  %v7600 = vmax.f32 %v7540, 1e-24
  %v7601 = vmax.f32 %v7543, 1e-24
  %v7602 = vmax.f32 %v7546, 1e-24
  %v7603 = vmax.f32 %v7549, 1e-24
  %v7604 = vmax.f32 %v7552, 1e-24
  %v7605 = vmax.f32 %v7555, 1e-24
  %v7606 = vmax.f32 %v7558, 1e-24
  %v7607 = vmax.f32 %v7561, 1e-24
  %v7608 = vmax.f32 %v7564, 1e-24
  %v7609 = vmax.f32 %v7567, 1e-24
  %v7610 = vmax.f32 %v7570, 1e-24
  %v7611 = vmax.f32 %v7573, 1e-24
  %v7612 = vmax.f32 %v7576, 1e-24
  %v7613 = vmax.f32 %v7579, 1e-24
  %v7614 = vmax.f32 %v7582, 1e-24
  %v7615 = vrsqrt.pop %v7583
  %v7616 = vrsqrt.pop %v7584
  %v7617 = vrsqrt.pop %v7585
  %v7618 = vrsqrt.pop %v7586
  %v7619 = vrsqrt.pop %v7587
  %v7620 = vrsqrt.pop %v7588
  %v7621 = vrsqrt.pop %v7589
  %v7622 = vrsqrt.pop %v7590
  %v7623 = vrsqrt.pop %v7591
  %v7624 = vrsqrt.pop %v7592
  %v7625 = vrsqrt.pop %v7593
  %v7626 = vrsqrt.pop %v7594
  %v7627 = vrsqrt.pop %v7595
  %v7628 = vrsqrt.pop %v7596
  %v7629 = vrsqrt.pop %v7597
  %v7630 = vrsqrt.pop %v7598
  %v7631 = vrsqrt.pop %v7599
  %v7632 = vrsqrt.pop %v7600
  %v7633 = vrsqrt.pop %v7601
  %v7634 = vrsqrt.pop %v7602
  %v7635 = vrsqrt.pop %v7603
  %v7636 = vrsqrt.pop %v7604
  %v7637 = vrsqrt.pop %v7605
  %v7638 = vrsqrt.pop %v7606
  %v7639 = vrsqrt.pop %v7607
  %v7640 = vrsqrt.pop %v7608
  %v7641 = vrsqrt.pop %v7609
  %v7642 = vrsqrt.pop %v7610
  %v7643 = vrsqrt.pop %v7611
  %v7644 = vrsqrt.pop %v7612
  %v7645 = vrsqrt.pop %v7613
  %v7646 = vrsqrt.pop %v7614
  %v7647 = vmul.f32 %v7296, %v7615
  %v7648 = vmul.f32 %v7301, %v7616
  %v7649 = vmul.f32 %v7306, %v7617
  %v7650 = vmul.f32 %v7311, %v7618
  %v7651 = vmul.f32 %v7316, %v7619
  %v7652 = vmul.f32 %v7321, %v7620
  %v7653 = vmul.f32 %v7326, %v7621
  %v7654 = vmul.f32 %v7331, %v7622
  %v7655 = vmul.f32 %v7336, %v7623
  %v7656 = vmul.f32 %v7341, %v7624
  %v7657 = vmul.f32 %v7346, %v7625
  %v7658 = vmul.f32 %v7351, %v7626
  %v7659 = vmul.f32 %v7356, %v7627
  %v7660 = vmul.f32 %v7361, %v7628
  %v7661 = vmul.f32 %v7366, %v7629
  %v7662 = vmul.f32 %v7371, %v7630
  %v7663 = vmul.f32 %v7376, %v7631
  %v7664 = vmul.f32 %v7381, %v7632
  %v7665 = vmul.f32 %v7386, %v7633
  %v7666 = vmul.f32 %v7391, %v7634
  %v7667 = vmul.f32 %v7396, %v7635
  %v7668 = vmul.f32 %v7401, %v7636
  %v7669 = vmul.f32 %v7406, %v7637
  %v7670 = vmul.f32 %v7411, %v7638
  %v7671 = vmul.f32 %v7416, %v7639
  %v7672 = vmul.f32 %v7421, %v7640
  %v7673 = vmul.f32 %v7426, %v7641
  %v7674 = vmul.f32 %v7431, %v7642
  %v7675 = vmul.f32 %v7436, %v7643
  %v7676 = vmul.f32 %v7441, %v7644
  %v7677 = vmul.f32 %v7446, %v7645
  %v7678 = vmul.f32 %v7451, %v7646
  %7679 = vst.msk [vmem:[%s2] sm:$0xff] %vm7486, %v7647
  %7680 = vst.msk [vmem:[%s2 + $0x8] sm:$0xff] %vm7486, %v7648
  %7681 = vst.msk [vmem:[%s2 + $0x10] sm:$0xff] %vm7486, %v7649
  %7682 = vst.msk [vmem:[%s2 + $0x18] sm:$0xff] %vm7486, %v7650
  %7683 = vst.msk [vmem:[%s2 + $0x20] sm:$0xff] %vm7486, %v7651
  %7684 = vst.msk [vmem:[%s2 + $0x28] sm:$0xff] %vm7486, %v7652
  %7685 = vst.msk [vmem:[%s2 + $0x30] sm:$0xff] %vm7486, %v7653
  %7686 = vst.msk [vmem:[%s2 + $0x38] sm:$0xff] %vm7486, %v7654
  %7687 = vst.msk [vmem:[%s2 + $0x40] sm:$0xff] %vm7486, %v7655
  %7688 = vst.msk [vmem:[%s2 + $0x48] sm:$0xff] %vm7486, %v7656
  %7689 = vst.msk [vmem:[%s2 + $0x50] sm:$0xff] %vm7486, %v7657
  %7690 = vst.msk [vmem:[%s2 + $0x58] sm:$0xff] %vm7486, %v7658
  %7691 = vst.msk [vmem:[%s2 + $0x60] sm:$0xff] %vm7486, %v7659
  %7692 = vst.msk [vmem:[%s2 + $0x68] sm:$0xff] %vm7486, %v7660
  %7693 = vst.msk [vmem:[%s2 + $0x70] sm:$0xff] %vm7486, %v7661
  %7694 = vst.msk [vmem:[%s2 + $0x78] sm:$0xff] %vm7486, %v7662
  %7695 = vst.msk [vmem:[%s2 + $0x80] sm:$0xff] %vm7486, %v7663
  %7696 = vst.msk [vmem:[%s2 + $0x88] sm:$0xff] %vm7486, %v7664
  %7697 = vst.msk [vmem:[%s2 + $0x90] sm:$0xff] %vm7486, %v7665
  %7698 = vst.msk [vmem:[%s2 + $0x98] sm:$0xff] %vm7486, %v7666
  %7699 = vst.msk [vmem:[%s2 + $0xa0] sm:$0xff] %vm7486, %v7667
  %7700 = vst.msk [vmem:[%s2 + $0xa8] sm:$0xff] %vm7486, %v7668
  %7701 = vst.msk [vmem:[%s2 + $0xb0] sm:$0xff] %vm7486, %v7669
  %7702 = vst.msk [vmem:[%s2 + $0xb8] sm:$0xff] %vm7486, %v7670
  %7703 = vst.msk [vmem:[%s2 + $0xc0] sm:$0xff] %vm7486, %v7671
  %7704 = vst.msk [vmem:[%s2 + $0xc8] sm:$0xff] %vm7486, %v7672
  %7705 = vst.msk [vmem:[%s2 + $0xd0] sm:$0xff] %vm7486, %v7673
  %7706 = vst.msk [vmem:[%s2 + $0xd8] sm:$0xff] %vm7486, %v7674
  %7707 = vst.msk [vmem:[%s2 + $0xe0] sm:$0xff] %vm7486, %v7675
  %7708 = vst.msk [vmem:[%s2 + $0xe8] sm:$0xff] %vm7486, %v7676
  %7709 = vst.msk [vmem:[%s2 + $0xf0] sm:$0xff] %vm7486, %v7677
  %7710 = vst.msk [vmem:[%s2 + $0xf8] sm:$0xff] %vm7486, %v7678
  // Predicated region
  $region10: #{tpu_custom_call.1} parent=0 // pred_check
    _
  $region11: #{tpu_custom_call.1} parent=0 // pred_check_branch
    %7712 = sbr.rel (0) target = $region13
  $region12: #{tpu_custom_call.1} parent=0 // pred_region
    _
  $region13: #{tpu_custom_call.1} parent=0 // pred_fallthru
    _
  // Predicated region
  $region14: #{tpu_custom_call.1} parent=0 // pred_check
    _
  $region15: #{tpu_custom_call.1} parent=0 // pred_check_branch
    %7714 = sbr.rel (0) target = $region17
  $region16: #{tpu_custom_call.1} parent=0 // pred_region
    _
  $region17: #{tpu_custom_call.1} parent=0 // pred_fallthru
    _

</llo_original>
